<compile_context>
chip_gen: v5e
topology: v5e:2x2
jax: 0.10.0
libtpu: 0.0.40
codegen_flags: <defaults>
</compile_context>

<pallas_src>
import functools

import jax
import jax.numpy as jnp
import numpy as np
from jax.experimental import pallas as pl
from jax.experimental.pallas import tpu as pltpu

_NPAD = 128           # lane pad for weight slots, biases and the logits tile
_KPAD = 192           # sublane pad of the packed weight slab (max K = 192)
_C1, _C2, _HID, _NOUT = 32, 64, 128, 3
_MAX_ROWS = 4096      # conv rows (3*TB*L) per grid step, VMEM-friendly


def _model_kernel(x_ref, w_ref, b_ref, out_ref, *, L, Cin):
    # x_ref: (3, TB*L, Cin) — timeframe-major, then batch, then time.
    TBL = x_ref.shape[1]
    TB = TBL // L
    rows = 3 * TBL
    cdt = x_ref.dtype                     # matmul compute dtype (bf16 default)

    # Hoisted per-row sequence-boundary masks (0/1 in compute dtype), applied
    # to the narrow pre-matmul operands rather than the wide f32 conv outputs.
    r = jax.lax.broadcasted_iota(jnp.int32, (rows, 1), 0)
    m_lo = (r % L != 0).astype(cdt)       # row has a valid t-1 neighbour
    m_hi = (r % L != L - 1).astype(cdt)   # row has a valid t+1 neighbour

    def taps(a):
        # a: (rows, C) -> (a[t-1], a[t], a[t+1]) with zeros at sequence
        # boundaries.  Rolls are XLU sublane rotations; rows are ordered
        # (timeframe, batch, time) with time innermost and stride L, so the
        # r % L masks kill every cross-sequence wrap-around.
        am = pltpu.roll(a, shift=1, axis=0) * m_lo
        ap = pltpu.roll(a, shift=rows - 1, axis=0) * m_hi    # == shift of -1
        return am, a, ap

    # Static slices of the packed slabs (free ref views / tiny loads).
    w1 = [w_ref[k, :Cin, :_C1] for k in range(3)]            # 3 x (Cin, 32)
    w2 = [w_ref[3 + k, :_C1, :_C2] for k in range(3)]        # 3 x (32, 64)
    wf2 = w_ref[7, :_HID, :]                                  # (128, 128) pad
    b1 = b_ref[0][:, :_C1]
    b2 = b_ref[1][:, :_C2]
    bf1 = b_ref[2]                                            # (1, 128)
    bf2 = b_ref[3]                                            # (1, 128) pad

    # ---- Conv1d(Cin->32, k=3, pad=1) + ReLU ---------------------------------
    x = x_ref[...].reshape(rows, Cin)
    xm, x0, xp = taps(x)
    h1 = (jnp.dot(xm, w1[0], preferred_element_type=jnp.float32)
          + jnp.dot(x0, w1[1], preferred_element_type=jnp.float32)
          + jnp.dot(xp, w1[2], preferred_element_type=jnp.float32))
    h1 = jnp.maximum(h1 + b1, 0.0).astype(cdt)                # (rows, 32)

    # ---- Conv1d(32->64, k=3, pad=1) + ReLU ----------------------------------
    # TODO(synk): a single K=96 dot needs an unaligned lane concat of the
    # three 32-lane taps; kept as 3 dots for robust lowering.
    hm, h0, hp = taps(h1)
    h2 = (jnp.dot(hm, w2[0], preferred_element_type=jnp.float32)
          + jnp.dot(h0, w2[1], preferred_element_type=jnp.float32)
          + jnp.dot(hp, w2[2], preferred_element_type=jnp.float32))
    h2 = jnp.maximum(h2 + b2, 0.0)                            # (rows, 64) f32

    # ---- AdaptiveAvgPool1d(1): segmented mean over each length-L sequence ---
    # Leading-dim regroup (minor dim untouched, L % 8 == 0) + sublane reduce;
    # 1/L scale stays in f32 (exact for any L).
    pooled = h2.reshape(3, TB, L, _C2).sum(axis=2) * (1.0 / L)
    pooled = pooled.astype(cdt)                               # (3, TB, 64)

    # ---- concat(3 timeframes) + Linear(192,128) + ReLU ----------------------
    # cat([f0,f1,f2], -1) @ Wfc1 == sum_f f_f @ Wfc1[64f:64(f+1)].
    h = bf1
    for f in range(3):
        h = h + jnp.dot(pooled[f], w_ref[6, f * _C2:(f + 1) * _C2, :],
                        preferred_element_type=jnp.float32)
    h = jnp.maximum(h, 0.0)                                   # (TB, 128) f32
    # Dropout(0.2) is identity in eval/inference.
    # TODO(synk): training-mode stochastic dropout not implemented.

    # ---- Linear(128,3), zero-padded to 128 lanes -> dense vector store ------
    out = jnp.dot(h.astype(cdt), wf2, preferred_element_type=jnp.float32) + bf2
    out_ref[...] = out.astype(out_ref.dtype)


def _pick_tb(B, L):
    """Largest batch tile: grid=1 when the whole batch fits the row budget,
    else the biggest divisor of B that is a multiple of 8 (aligned blocks)
    and keeps 3*TB*L conv rows under _MAX_ROWS."""
    if 3 * B * L <= _MAX_ROWS:
        return B
    best = None
    for d in range(1, B + 1):
        if B % d == 0 and d % 8 == 0 and 3 * d * L <= _MAX_ROWS:
            best = d
    return best if best is not None else B


def multi_tf_pattern_cnn(params, x1h, x4h, x1d, *, compute_dtype=jnp.bfloat16):
    B, L, Cin = x1h.shape
    assert L % 8 == 0, "time length must be a multiple of 8 (sublane tiling)"
    # TODO(synk): zero-pad the time axis to a multiple of 8 for general L.
    TB = _pick_tb(B, L)
    assert B % TB == 0

    # Raw input slab, timeframe-major -> (3, B*L, Cin); no wrapper im2col, so
    # HBM input traffic is 1x (k=3 taps are built in-kernel with rolls).
    slab = jnp.stack([x1h, x4h, x1d], axis=0).reshape(3, B * L, Cin)
    slab = slab.astype(compute_dtype)

    def pad2(a, k, n):
        return jnp.pad(a, ((0, k - a.shape[0]), (0, n - a.shape[1])))

    # One packed weight slab (8 slots of 192x128) and one packed f32 bias slab
    # -> 3 per-step DMAs total instead of ~10 tiny ones.
    wslab = jnp.stack(
        [pad2(params["w1"][k], _KPAD, _NPAD) for k in range(3)]
        + [pad2(params["w2"][k], _KPAD, _NPAD) for k in range(3)]
        + [pad2(params["wf1"], _KPAD, _NPAD),
           pad2(params["wf2"], _KPAD, _NPAD)]).astype(compute_dtype)
    bslab = jnp.stack(
        [pad2(params["b1"], 1, _NPAD), pad2(params["b2"], 1, _NPAD),
         pad2(params["bf1"], 1, _NPAD), pad2(params["bf2"], 1, _NPAD)]
    ).astype(jnp.float32)                                     # (4, 1, 128)

    out = pl.pallas_call(
        functools.partial(_model_kernel, L=L, Cin=Cin),
        out_shape=jax.ShapeDtypeStruct((B, _NPAD), jnp.float32),
        grid=(B // TB,),
        in_specs=[
            pl.BlockSpec((3, TB * L, Cin), lambda i: (0, i, 0)),
            pl.BlockSpec(wslab.shape, lambda i: (0, 0, 0)),
            pl.BlockSpec(bslab.shape, lambda i: (0, 0, 0)),
        ],
        out_specs=pl.BlockSpec((TB, _NPAD), lambda i: (i, 0)),
        compiler_params=pltpu.CompilerParams(
            # Batch tiles are independent; a grid that is a multiple of 2 lets
            # v7x's two TensorCores split it.
            dimension_semantics=("parallel",),
            # Budget against v7x's 64 MiB physical VMEM; also lifts the v5e
            # 16 MiB scoped default so large batch tiles are realizable there.
            vmem_limit_bytes=48 * 1024 * 1024,
        ),
    )(slab, wslab, bslab)
    return out[:, :_NOUT]


def reference(params, x1h, x4h, x1d):
    """Pure-JAX f32 reference (lax conv) mirroring the PyTorch forward."""
    def cnn(x):
        dn = jax.lax.conv_dimension_numbers(x.shape, params["w1"].shape,
                                            ("NWC", "WIO", "NWC"))
        h = jax.lax.conv_general_dilated(x, params["w1"], (1,), [(1, 1)],
                                         dimension_numbers=dn)
        h = jax.nn.relu(h + params["b1"])
        dn2 = jax.lax.conv_dimension_numbers(h.shape, params["w2"].shape,
                                             ("NWC", "WIO", "NWC"))
        h = jax.lax.conv_general_dilated(h, params["w2"], (1,), [(1, 1)],
                                         dimension_numbers=dn2)
        h = jax.nn.relu(h + params["b2"])
        return jnp.mean(h, axis=1)  # AdaptiveAvgPool1d(1) + squeeze -> (B, 64)

    f = jnp.concatenate([cnn(x1h), cnn(x4h), cnn(x1d)], axis=1)   # (B, 192)
    h = jax.nn.relu(f @ params["wf1"] + params["bf1"])
    return h @ params["wf2"] + params["bf2"]


if __name__ == "__main__":
    B, L, Cin = 16, 16, 5
    key = jax.random.PRNGKey(0)
    ks = jax.random.split(key, 11)
    params = {
        "w1":  0.2 * jax.random.normal(ks[0], (3, Cin, 32), jnp.float32),
        "b1":  0.1 * jax.random.normal(ks[1], (1, 32), jnp.float32),
        "w2":  0.2 * jax.random.normal(ks[2], (3, 32, 64), jnp.float32),
        "b2":  0.1 * jax.random.normal(ks[3], (1, 64), jnp.float32),
        "wf1": 0.1 * jax.random.normal(ks[4], (64 * 3, 128), jnp.float32),
        "bf1": 0.1 * jax.random.normal(ks[5], (1, 128), jnp.float32),
        "wf2": 0.1 * jax.random.normal(ks[6], (128, 3), jnp.float32),
        "bf2": 0.1 * jax.random.normal(ks[7], (1, 3), jnp.float32),
    }
    x1h = jax.random.normal(ks[8], (B, L, Cin), jnp.float32)
    x4h = jax.random.normal(ks[9], (B, L, Cin), jnp.float32)
    x1d = jax.random.normal(ks[10], (B, L, Cin), jnp.float32)

    ref = reference(params, x1h, x4h, x1d)

    # f32 path: tight check against the pure-JAX reference.
    out_f32 = jax.block_until_ready(
        multi_tf_pattern_cnn(params, x1h, x4h, x1d,
                             compute_dtype=jnp.float32))
    assert out_f32.shape == (B, 3)
    np.testing.assert_allclose(np.asarray(out_f32), np.asarray(ref),
                               rtol=1e-4, atol=1e-4)

    # Default bf16 MXU path: loose check (bf16 operand rounding vs f32 ref).
    out_bf16 = jax.block_until_ready(
        multi_tf_pattern_cnn(params, x1h, x4h, x1d))
    assert out_bf16.shape == (B, 3)
    np.testing.assert_allclose(np.asarray(out_bf16), np.asarray(ref),
                               rtol=1e-1, atol=1e-1)
    print("KERNEL_OK")
</pallas_src>

<mosaic_0001>
module attributes {stable_mosaic.version = 11 : i64} {
  func.func @_model_kernel(%arg0: i32, %arg1: memref<3x256x5xf32, #tpu.memory_space<vmem>>, %arg2: memref<8x192x128xf32, #tpu.memory_space<vmem>>, %arg3: memref<4x1x128xf32, #tpu.memory_space<vmem>>, %arg4: memref<16x128xf32, #tpu.memory_space<vmem>>) attributes {dimension_semantics = [#tpu.dimension_semantics<parallel>], iteration_bounds = array<i64: 1>, scalar_prefetch = 0 : i64, scratch_operands = 0 : i64, tpu.core_type = #tpu.core_type<tc>, window_params = [{transform_indices = @transform_0, window_bounds = array<i64: 3, 256, 5>}, {pipeline_mode = #tpu.pipeline_mode<synchronous>, transform_indices = @transform_1, window_bounds = array<i64: 8, 192, 128>}, {pipeline_mode = #tpu.pipeline_mode<synchronous>, transform_indices = @transform_2, window_bounds = array<i64: 4, 1, 128>}, {transform_indices = @transform_3, window_bounds = array<i64: 16, 128>}]} {
    %0 = tpu.iota {dimensions = array<i32: 0>} : vector<768x1xi32>
    %c16_i32 = arith.constant 16 : i32
    %c0_i32 = arith.constant 0 : i32
    %1 = arith.cmpi eq, %c16_i32, %c0_i32 : i32
    %c1_i32 = arith.constant 1 : i32
    %2 = arith.select %1, %c1_i32, %c16_i32 : i32
    %3 = vector.broadcast %2 : i32 to vector<768x1xi32>
    %4 = arith.remsi %0, %3 : vector<768x1xi32>
    %c0_i32_0 = arith.constant 0 : i32
    %5 = vector.broadcast %c0_i32_0 : i32 to vector<768x1xi32>
    %6 = arith.cmpi ne, %4, %5 : vector<768x1xi32>
    %c0_i32_1 = arith.constant 0 : i32
    %7 = vector.broadcast %c0_i32_1 : i32 to vector<768x1xi32>
    %8 = arith.cmpi slt, %4, %7 : vector<768x1xi32>
    %c0_i32_2 = arith.constant 0 : i32
    %9 = arith.cmpi slt, %2, %c0_i32_2 : i32
    %10 = vector.broadcast %9 : i1 to vector<768x1xi1>
    %11 = vector.broadcast %10 : vector<768x1xi1> to vector<768x1xi1>
    %12 = arith.xori %8, %11 : vector<768x1xi1>
    %13 = arith.andi %12, %6 : vector<768x1xi1>
    %14 = vector.broadcast %2 : i32 to vector<768x1xi32>
    %15 = arith.addi %4, %14 : vector<768x1xi32>
    %16 = arith.select %13, %15, %4 : vector<768x1xi1>, vector<768x1xi32>
    %c0_i32_3 = arith.constant 0 : i32
    %17 = vector.broadcast %c0_i32_3 : i32 to vector<768x1xi32>
    %18 = arith.cmpi ne, %16, %17 : vector<768x1xi32>
    %19 = arith.extui %18 : vector<768x1xi1> to vector<768x1xi32>
    %20 = arith.sitofp %19 : vector<768x1xi32> to vector<768x1xf32>
    %c16_i32_4 = arith.constant 16 : i32
    %c0_i32_5 = arith.constant 0 : i32
    %21 = arith.cmpi eq, %c16_i32_4, %c0_i32_5 : i32
    %c1_i32_6 = arith.constant 1 : i32
    %22 = arith.select %21, %c1_i32_6, %c16_i32_4 : i32
    %23 = vector.broadcast %22 : i32 to vector<768x1xi32>
    %24 = arith.remsi %0, %23 : vector<768x1xi32>
    %c0_i32_7 = arith.constant 0 : i32
    %25 = vector.broadcast %c0_i32_7 : i32 to vector<768x1xi32>
    %26 = arith.cmpi ne, %24, %25 : vector<768x1xi32>
    %c0_i32_8 = arith.constant 0 : i32
    %27 = vector.broadcast %c0_i32_8 : i32 to vector<768x1xi32>
    %28 = arith.cmpi slt, %24, %27 : vector<768x1xi32>
    %c0_i32_9 = arith.constant 0 : i32
    %29 = arith.cmpi slt, %22, %c0_i32_9 : i32
    %30 = vector.broadcast %29 : i1 to vector<768x1xi1>
    %31 = vector.broadcast %30 : vector<768x1xi1> to vector<768x1xi1>
    %32 = arith.xori %28, %31 : vector<768x1xi1>
    %33 = arith.andi %32, %26 : vector<768x1xi1>
    %34 = vector.broadcast %22 : i32 to vector<768x1xi32>
    %35 = arith.addi %24, %34 : vector<768x1xi32>
    %36 = arith.select %33, %35, %24 : vector<768x1xi1>, vector<768x1xi32>
    %c15_i32 = arith.constant 15 : i32
    %37 = vector.broadcast %c15_i32 : i32 to vector<768x1xi32>
    %38 = arith.cmpi ne, %36, %37 : vector<768x1xi32>
    %39 = arith.extui %38 : vector<768x1xi1> to vector<768x1xi32>
    %40 = arith.sitofp %39 : vector<768x1xi32> to vector<768x1xf32>
    %c0 = arith.constant 0 : index
    %c0_10 = arith.constant 0 : index
    %c0_11 = arith.constant 0 : index
    %41 = vector.load %arg2[%c0, %c0_10, %c0_11] : memref<8x192x128xf32, #tpu.memory_space<vmem>>, vector<1x5x32xf32>
    %42 = vector.shape_cast %41 : vector<1x5x32xf32> to vector<5x32xf32>
    %c1 = arith.constant 1 : index
    %c0_12 = arith.constant 0 : index
    %c0_13 = arith.constant 0 : index
    %43 = vector.load %arg2[%c1, %c0_12, %c0_13] : memref<8x192x128xf32, #tpu.memory_space<vmem>>, vector<1x5x32xf32>
    %44 = vector.shape_cast %43 : vector<1x5x32xf32> to vector<5x32xf32>
    %c2 = arith.constant 2 : index
    %c0_14 = arith.constant 0 : index
    %c0_15 = arith.constant 0 : index
    %45 = vector.load %arg2[%c2, %c0_14, %c0_15] : memref<8x192x128xf32, #tpu.memory_space<vmem>>, vector<1x5x32xf32>
    %46 = vector.shape_cast %45 : vector<1x5x32xf32> to vector<5x32xf32>
    %c3 = arith.constant 3 : index
    %c0_16 = arith.constant 0 : index
    %c0_17 = arith.constant 0 : index
    %47 = vector.load %arg2[%c3, %c0_16, %c0_17] : memref<8x192x128xf32, #tpu.memory_space<vmem>>, vector<1x32x64xf32>
    %48 = vector.shape_cast %47 : vector<1x32x64xf32> to vector<32x64xf32>
    %c4 = arith.constant 4 : index
    %c0_18 = arith.constant 0 : index
    %c0_19 = arith.constant 0 : index
    %49 = vector.load %arg2[%c4, %c0_18, %c0_19] : memref<8x192x128xf32, #tpu.memory_space<vmem>>, vector<1x32x64xf32>
    %50 = vector.shape_cast %49 : vector<1x32x64xf32> to vector<32x64xf32>
    %c5 = arith.constant 5 : index
    %c0_20 = arith.constant 0 : index
    %c0_21 = arith.constant 0 : index
    %51 = vector.load %arg2[%c5, %c0_20, %c0_21] : memref<8x192x128xf32, #tpu.memory_space<vmem>>, vector<1x32x64xf32>
    %52 = vector.shape_cast %51 : vector<1x32x64xf32> to vector<32x64xf32>
    %c7 = arith.constant 7 : index
    %c0_22 = arith.constant 0 : index
    %c0_23 = arith.constant 0 : index
    %53 = vector.load %arg2[%c7, %c0_22, %c0_23] : memref<8x192x128xf32, #tpu.memory_space<vmem>>, vector<1x128x128xf32>
    %54 = vector.shape_cast %53 : vector<1x128x128xf32> to vector<128x128xf32>
    %c0_24 = arith.constant 0 : index
    %c0_25 = arith.constant 0 : index
    %c0_26 = arith.constant 0 : index
    %55 = vector.load %arg3[%c0_24, %c0_25, %c0_26] : memref<4x1x128xf32, #tpu.memory_space<vmem>>, vector<1x1x128xf32>
    %56 = vector.shape_cast %55 : vector<1x1x128xf32> to vector<1x128xf32>
    %57 = vector.extract_strided_slice %56 {offsets = [0, 0], sizes = [1, 32], strides = [1, 1]} : vector<1x128xf32> to vector<1x32xf32>
    %c1_27 = arith.constant 1 : index
    %c0_28 = arith.constant 0 : index
    %c0_29 = arith.constant 0 : index
    %58 = vector.load %arg3[%c1_27, %c0_28, %c0_29] : memref<4x1x128xf32, #tpu.memory_space<vmem>>, vector<1x1x128xf32>
    %59 = vector.shape_cast %58 : vector<1x1x128xf32> to vector<1x128xf32>
    %60 = vector.extract_strided_slice %59 {offsets = [0, 0], sizes = [1, 64], strides = [1, 1]} : vector<1x128xf32> to vector<1x64xf32>
    %c2_30 = arith.constant 2 : index
    %c0_31 = arith.constant 0 : index
    %c0_32 = arith.constant 0 : index
    %61 = vector.load %arg3[%c2_30, %c0_31, %c0_32] : memref<4x1x128xf32, #tpu.memory_space<vmem>>, vector<1x1x128xf32>
    %62 = vector.shape_cast %61 : vector<1x1x128xf32> to vector<1x128xf32>
    %c3_33 = arith.constant 3 : index
    %c0_34 = arith.constant 0 : index
    %c0_35 = arith.constant 0 : index
    %63 = vector.load %arg3[%c3_33, %c0_34, %c0_35] : memref<4x1x128xf32, #tpu.memory_space<vmem>>, vector<1x1x128xf32>
    %64 = vector.shape_cast %63 : vector<1x1x128xf32> to vector<1x128xf32>
    %c0_36 = arith.constant 0 : index
    %c0_37 = arith.constant 0 : index
    %c0_38 = arith.constant 0 : index
    %65 = vector.load %arg1[%c0_36, %c0_37, %c0_38] : memref<3x256x5xf32, #tpu.memory_space<vmem>>, vector<3x256x5xf32>
    %66 = vector.shape_cast %65 : vector<3x256x5xf32> to vector<768x5xf32>
    %c1_i32_39 = arith.constant 1 : i32
    %67 = tpu.dynamic_rotate %66 by %c1_i32_39 dim 0 : vector<768x5xf32>, i32 -> vector<768x5xf32>
    %68 = vector.broadcast %20 : vector<768x1xf32> to vector<768x5xf32>
    %69 = arith.mulf %67, %68 : vector<768x5xf32>
    %c767_i32 = arith.constant 767 : i32
    %70 = tpu.dynamic_rotate %66 by %c767_i32 dim 0 : vector<768x5xf32>, i32 -> vector<768x5xf32>
    %71 = vector.broadcast %40 : vector<768x1xf32> to vector<768x5xf32>
    %72 = arith.mulf %70, %71 : vector<768x5xf32>
    %cst = arith.constant dense<0.000000e+00> : vector<768x32xf32>
    %73 = tpu.matmul %69, %42, %cst {dimension_numbers = #tpu.dot_dimension_numbers<[1], [0], [0], [1], [0, 0, 1, 1], [], []>} : vector<768x5xf32>, vector<5x32xf32>, vector<768x32xf32> -> vector<768x32xf32>
    %cst_40 = arith.constant dense<0.000000e+00> : vector<768x32xf32>
    %74 = tpu.matmul %66, %44, %cst_40 {dimension_numbers = #tpu.dot_dimension_numbers<[1], [0], [0], [1], [0, 0, 1, 1], [], []>} : vector<768x5xf32>, vector<5x32xf32>, vector<768x32xf32> -> vector<768x32xf32>
    %75 = arith.addf %73, %74 : vector<768x32xf32>
    %cst_41 = arith.constant dense<0.000000e+00> : vector<768x32xf32>
    %76 = tpu.matmul %72, %46, %cst_41 {dimension_numbers = #tpu.dot_dimension_numbers<[1], [0], [0], [1], [0, 0, 1, 1], [], []>} : vector<768x5xf32>, vector<5x32xf32>, vector<768x32xf32> -> vector<768x32xf32>
    %77 = arith.addf %75, %76 : vector<768x32xf32>
    %78 = vector.broadcast %57 : vector<1x32xf32> to vector<768x32xf32>
    %79 = arith.addf %77, %78 : vector<768x32xf32>
    %cst_42 = arith.constant 0.000000e+00 : f32
    %80 = vector.broadcast %cst_42 : f32 to vector<768x32xf32>
    %81 = arith.maximumf %79, %80 : vector<768x32xf32>
    %c1_i32_43 = arith.constant 1 : i32
    %82 = tpu.dynamic_rotate %81 by %c1_i32_43 dim 0 : vector<768x32xf32>, i32 -> vector<768x32xf32>
    %83 = vector.broadcast %20 : vector<768x1xf32> to vector<768x32xf32>
    %84 = arith.mulf %82, %83 : vector<768x32xf32>
    %c767_i32_44 = arith.constant 767 : i32
    %85 = tpu.dynamic_rotate %81 by %c767_i32_44 dim 0 : vector<768x32xf32>, i32 -> vector<768x32xf32>
    %86 = vector.broadcast %40 : vector<768x1xf32> to vector<768x32xf32>
    %87 = arith.mulf %85, %86 : vector<768x32xf32>
    %cst_45 = arith.constant dense<0.000000e+00> : vector<768x64xf32>
    %88 = tpu.matmul %84, %48, %cst_45 {dimension_numbers = #tpu.dot_dimension_numbers<[1], [0], [0], [1], [0, 0, 1, 1], [], []>} : vector<768x32xf32>, vector<32x64xf32>, vector<768x64xf32> -> vector<768x64xf32>
    %cst_46 = arith.constant dense<0.000000e+00> : vector<768x64xf32>
    %89 = tpu.matmul %81, %50, %cst_46 {dimension_numbers = #tpu.dot_dimension_numbers<[1], [0], [0], [1], [0, 0, 1, 1], [], []>} : vector<768x32xf32>, vector<32x64xf32>, vector<768x64xf32> -> vector<768x64xf32>
    %90 = arith.addf %88, %89 : vector<768x64xf32>
    %cst_47 = arith.constant dense<0.000000e+00> : vector<768x64xf32>
    %91 = tpu.matmul %87, %52, %cst_47 {dimension_numbers = #tpu.dot_dimension_numbers<[1], [0], [0], [1], [0, 0, 1, 1], [], []>} : vector<768x32xf32>, vector<32x64xf32>, vector<768x64xf32> -> vector<768x64xf32>
    %92 = arith.addf %90, %91 : vector<768x64xf32>
    %93 = vector.broadcast %60 : vector<1x64xf32> to vector<768x64xf32>
    %94 = arith.addf %92, %93 : vector<768x64xf32>
    %cst_48 = arith.constant 0.000000e+00 : f32
    %95 = vector.broadcast %cst_48 : f32 to vector<768x64xf32>
    %96 = arith.maximumf %94, %95 : vector<768x64xf32>
    %97 = vector.shape_cast %96 : vector<768x64xf32> to vector<3x16x16x64xf32>
    %cst_49 = arith.constant dense<0.000000e+00> : vector<3x16x64xf32>
    %98 = vector.multi_reduction <add>, %97, %cst_49 [2] : vector<3x16x16x64xf32> to vector<3x16x64xf32>
    %cst_50 = arith.constant 6.250000e-02 : f32
    %99 = vector.broadcast %cst_50 : f32 to vector<3x16x64xf32>
    %100 = arith.mulf %98, %99 : vector<3x16x64xf32>
    %101 = vector.extract_strided_slice %100 {offsets = [0, 0, 0], sizes = [1, 16, 64], strides = [1, 1, 1]} : vector<3x16x64xf32> to vector<1x16x64xf32>
    %102 = vector.shape_cast %101 : vector<1x16x64xf32> to vector<16x64xf32>
    %c6 = arith.constant 6 : index
    %c0_51 = arith.constant 0 : index
    %c0_52 = arith.constant 0 : index
    %103 = vector.load %arg2[%c6, %c0_51, %c0_52] : memref<8x192x128xf32, #tpu.memory_space<vmem>>, vector<1x64x128xf32>
    %104 = vector.shape_cast %103 : vector<1x64x128xf32> to vector<64x128xf32>
    %cst_53 = arith.constant dense<0.000000e+00> : vector<16x128xf32>
    %105 = tpu.matmul %102, %104, %cst_53 {dimension_numbers = #tpu.dot_dimension_numbers<[1], [0], [0], [1], [0, 0, 1, 1], [], []>} : vector<16x64xf32>, vector<64x128xf32>, vector<16x128xf32> -> vector<16x128xf32>
    %106 = vector.broadcast %62 : vector<1x128xf32> to vector<16x128xf32>
    %107 = arith.addf %106, %105 : vector<16x128xf32>
    %108 = vector.extract_strided_slice %100 {offsets = [1, 0, 0], sizes = [1, 16, 64], strides = [1, 1, 1]} : vector<3x16x64xf32> to vector<1x16x64xf32>
    %109 = vector.shape_cast %108 : vector<1x16x64xf32> to vector<16x64xf32>
    %c6_54 = arith.constant 6 : index
    %c64 = arith.constant 64 : index
    %c0_55 = arith.constant 0 : index
    %110 = vector.load %arg2[%c6_54, %c64, %c0_55] : memref<8x192x128xf32, #tpu.memory_space<vmem>>, vector<1x64x128xf32>
    %111 = vector.shape_cast %110 : vector<1x64x128xf32> to vector<64x128xf32>
    %cst_56 = arith.constant dense<0.000000e+00> : vector<16x128xf32>
    %112 = tpu.matmul %109, %111, %cst_56 {dimension_numbers = #tpu.dot_dimension_numbers<[1], [0], [0], [1], [0, 0, 1, 1], [], []>} : vector<16x64xf32>, vector<64x128xf32>, vector<16x128xf32> -> vector<16x128xf32>
    %113 = arith.addf %107, %112 : vector<16x128xf32>
    %114 = vector.extract_strided_slice %100 {offsets = [2, 0, 0], sizes = [1, 16, 64], strides = [1, 1, 1]} : vector<3x16x64xf32> to vector<1x16x64xf32>
    %115 = vector.shape_cast %114 : vector<1x16x64xf32> to vector<16x64xf32>
    %c6_57 = arith.constant 6 : index
    %c128 = arith.constant 128 : index
    %c0_58 = arith.constant 0 : index
    %116 = vector.load %arg2[%c6_57, %c128, %c0_58] : memref<8x192x128xf32, #tpu.memory_space<vmem>>, vector<1x64x128xf32>
    %117 = vector.shape_cast %116 : vector<1x64x128xf32> to vector<64x128xf32>
    %cst_59 = arith.constant dense<0.000000e+00> : vector<16x128xf32>
    %118 = tpu.matmul %115, %117, %cst_59 {dimension_numbers = #tpu.dot_dimension_numbers<[1], [0], [0], [1], [0, 0, 1, 1], [], []>} : vector<16x64xf32>, vector<64x128xf32>, vector<16x128xf32> -> vector<16x128xf32>
    %119 = arith.addf %113, %118 : vector<16x128xf32>
    %cst_60 = arith.constant 0.000000e+00 : f32
    %120 = vector.broadcast %cst_60 : f32 to vector<16x128xf32>
    %121 = arith.maximumf %119, %120 : vector<16x128xf32>
    %cst_61 = arith.constant dense<0.000000e+00> : vector<16x128xf32>
    %122 = tpu.matmul %121, %54, %cst_61 {dimension_numbers = #tpu.dot_dimension_numbers<[1], [0], [0], [1], [0, 0, 1, 1], [], []>} : vector<16x128xf32>, vector<128x128xf32>, vector<16x128xf32> -> vector<16x128xf32>
    %123 = vector.broadcast %64 : vector<1x128xf32> to vector<16x128xf32>
    %124 = arith.addf %122, %123 : vector<16x128xf32>
    %c0_62 = arith.constant 0 : index
    %c0_63 = arith.constant 0 : index
    %125 = vector.load %arg4[%c0_62, %c0_63] : memref<16x128xf32, #tpu.memory_space<vmem>>, vector<16x128xf32>
    tpu.vector_store %arg4[%c0_62, %c0_63], %124 {strides = array<i32>} : memref<16x128xf32, #tpu.memory_space<vmem>>, vector<16x128xf32>,
    return
  }
  func.func @transform_0(%arg0: i32) -> (i32, i32, i32) {
    %c0_i32 = arith.constant 0 : i32
    %c0_i32_0 = arith.constant 0 : i32
    %c0_i32_1 = arith.constant 0 : i32
    return %c0_i32, %arg0, %c0_i32_0 : i32, i32, i32
  }
  func.func @transform_1(%arg0: i32) -> (i32, i32, i32) {
    %c0_i32 = arith.constant 0 : i32
    %c0_i32_0 = arith.constant 0 : i32
    %c0_i32_1 = arith.constant 0 : i32
    %c0_i32_2 = arith.constant 0 : i32
    return %c0_i32, %c0_i32_0, %c0_i32_1 : i32, i32, i32
  }
  func.func @transform_2(%arg0: i32) -> (i32, i32, i32) {
    %c0_i32 = arith.constant 0 : i32
    %c0_i32_0 = arith.constant 0 : i32
    %c0_i32_1 = arith.constant 0 : i32
    %c0_i32_2 = arith.constant 0 : i32
    return %c0_i32, %c0_i32_0, %c0_i32_1 : i32, i32, i32
  }
  func.func @transform_3(%arg0: i32) -> (i32, i32) {
    %c0_i32 = arith.constant 0 : i32
    %c0_i32_0 = arith.constant 0 : i32
    return %arg0, %c0_i32 : i32, i32
  }
}

</mosaic_0001>

<llo_original>
// kernel: tpu_custom_call.1
$region0: #{tpu_custom_call.1}
  #allocation0 [shape = 'u32[]', space=smem, size = 0x4, offset = 0x4, fixed_abs, tag = 'smem constant byte address 0x4 - core index']
  #allocation1 [shape = 'u32[72,128]{1,0:T(1,128)}', space=vmem, size = 0x9000, scoped, tag = 'internal scratch']
  %s0 = inlined_call_operand.vmem [shape: f32[3,256,5], index: 0, kind: input, shape index: {}]
  %s1 = inlined_call_operand.hbm [shape: f32[8,192,128], index: 1, kind: input, shape index: {}]
  %s2 = inlined_call_operand.vmem [shape: f32[4,1,128], index: 2, kind: input, shape index: {}]
  %s3 = inlined_call_operand.hbm [shape: f32[16,128], index: 3, kind: output, shape index: {}]
  %s4 = sld [smem:[#allocation0]]
  $region26: #{tpu_custom_call.1} parent=0
    _
  %s6 = ssub.s32 1, %s4
  %s7 = scalar_select 0, %s6, %s4
  $region1: #{tpu_custom_call.1} parent=0
    #allocation2 [shape = 'u8[786432]{0}', space=vmem, size = 0xc0000, scoped, tag = 'input window, operand 1, single buffered']
    #allocation3 [shape = 's32[1]{0}', space=sflag, size = 0x4, scoped, tag = 'scoped memory for tpu_custom_call.1']
    #allocation4 [shape = 's32[1]{0}', space=sflag, size = 0x4, scoped, tag = 'scoped memory for tpu_custom_call.1']
    #allocation5 [shape = 'u8[8192]{0}', space=vmem, size = 0x2000, scoped, tag = 'output window, operand 0, single buffered']
    %8 = vsyncpa [#allocation3], 0
    %9 = vsyncpa [#allocation4], 0
    // Predicated region
    $region2: #{tpu_custom_call.1} parent=1 // pred_check
      _
    $region3: #{tpu_custom_call.1} parent=1 // pred_check_branch
      %11 = sbr.rel (0) target = $region5
    $region4: #{tpu_custom_call.1} parent=1 // pred_region
      _
    $region5: #{tpu_custom_call.1} parent=1 // pred_fallthru
      _
    // Predicated region
    $region6: #{tpu_custom_call.1} parent=1 // pred_check
      _
    $region7: #{tpu_custom_call.1} parent=1 // pred_check_branch
      %13 = sbr.rel (0) target = $region9
    $region8: #{tpu_custom_call.1} parent=1 // pred_region
      %15 = vsyncadd [#allocation3], 0
      %s16 = sshll.u32 %s1, 4
      %s17 = int_to_ptr.hbm [resolvable:$true] %s16
      %s18 = sshll.u32 [#allocation2], 4
      %s19 = int_to_ptr.vmem [resolvable:$true] %s18
      %24 = dma.hbm_to_vmem [thread:$0]  %s17, 24576, %s19, [#allocation3], 128, 128, 8
    $region9: #{tpu_custom_call.1} parent=1 // pred_fallthru
      _
    // Predicated region
    $region10: #{tpu_custom_call.1} parent=1 // pred_check
      _
    $region11: #{tpu_custom_call.1} parent=1 // pred_check_branch
      %26 = sbr.rel (0) target = $region13
    $region12: #{tpu_custom_call.1} parent=1 // pred_region
      _
    $region13: #{tpu_custom_call.1} parent=1 // pred_fallthru
      _
    // Predicated region
    $region14: #{tpu_custom_call.1} parent=1 // pred_check
      _
    $region15: #{tpu_custom_call.1} parent=1 // pred_check_branch
      %28 = sbr.rel (0) target = $region17
    $region16: #{tpu_custom_call.1} parent=1 // pred_region
      %30 = dma.done [#allocation3], 24576
    $region17: #{tpu_custom_call.1} parent=1 // pred_fallthru
      _
    %v31 = vlaneseq
    %v32 = vshrl.u32 %v31, 7
    %v33 = vadd.s32 %v32, 8
    %v34 = vadd.s32 %v32, 16
    %v35 = vadd.s32 %v32, 24
    %v36 = vadd.s32 %v32, 32
    %v37 = vadd.s32 %v32, 40
    %v38 = vadd.s32 %v32, 48
    %v39 = vadd.s32 %v32, 56
    %v40 = vadd.s32 %v32, 64
    %v41 = vadd.s32 %v32, 72
    %v42 = vadd.s32 %v32, 80
    %v43 = vadd.s32 %v32, 88
    %v44 = vadd.s32 %v32, 96
    %v45 = vadd.s32 %v32, 104
    %v46 = vadd.s32 %v32, 112
    %v47 = vadd.s32 %v32, 120
    %v48 = vadd.s32 %v32, 128
    %v49 = vadd.s32 %v32, 136
    %v50 = vadd.s32 %v32, 144
    %v51 = vadd.s32 %v32, 152
    %v52 = vadd.s32 %v32, 160
    %v53 = vadd.s32 %v32, 168
    %v54 = vadd.s32 %v32, 176
    %v55 = vadd.s32 %v32, 184
    %v56 = vadd.s32 %v32, 192
    %v57 = vadd.s32 %v32, 200
    %v58 = vadd.s32 %v32, 208
    %v59 = vadd.s32 %v32, 216
    %v60 = vadd.s32 %v32, 224
    %v61 = vadd.s32 %v32, 232
    %v62 = vadd.s32 %v32, 240
    %v63 = vadd.s32 %v32, 248
    %v64 = vadd.s32 %v32, 256
    %v65 = vadd.s32 %v32, 264
    %v66 = vadd.s32 %v32, 272
    %v67 = vadd.s32 %v32, 280
    %v68 = vadd.s32 %v32, 288
    %v69 = vadd.s32 %v32, 296
    %v70 = vadd.s32 %v32, 304
    %v71 = vadd.s32 %v32, 312
    %v72 = vadd.s32 %v32, 320
    %v73 = vadd.s32 %v32, 328
    %v74 = vadd.s32 %v32, 336
    %v75 = vadd.s32 %v32, 344
    %v76 = vadd.s32 %v32, 352
    %v77 = vadd.s32 %v32, 360
    %v78 = vadd.s32 %v32, 368
    %v79 = vadd.s32 %v32, 376
    %v80 = vadd.s32 %v32, 384
    %v81 = vadd.s32 %v32, 392
    %v82 = vadd.s32 %v32, 400
    %v83 = vadd.s32 %v32, 408
    %v84 = vadd.s32 %v32, 416
    %v85 = vadd.s32 %v32, 424
    %v86 = vadd.s32 %v32, 432
    %v87 = vadd.s32 %v32, 440
    %v88 = vadd.s32 %v32, 448
    %v89 = vadd.s32 %v32, 456
    %v90 = vadd.s32 %v32, 464
    %v91 = vadd.s32 %v32, 472
    %v92 = vadd.s32 %v32, 480
    %v93 = vadd.s32 %v32, 488
    %v94 = vadd.s32 %v32, 496
    %v95 = vadd.s32 %v32, 504
    %v96 = vadd.s32 %v32, 512
    %v97 = vadd.s32 %v32, 520
    %v98 = vadd.s32 %v32, 528
    %v99 = vadd.s32 %v32, 536
    %v100 = vadd.s32 %v32, 544
    %v101 = vadd.s32 %v32, 552
    %v102 = vadd.s32 %v32, 560
    %v103 = vadd.s32 %v32, 568
    %v104 = vadd.s32 %v32, 576
    %v105 = vadd.s32 %v32, 584
    %v106 = vadd.s32 %v32, 592
    %v107 = vadd.s32 %v32, 600
    %v108 = vadd.s32 %v32, 608
    %v109 = vadd.s32 %v32, 616
    %v110 = vadd.s32 %v32, 624
    %v111 = vadd.s32 %v32, 632
    %v112 = vadd.s32 %v32, 640
    %v113 = vadd.s32 %v32, 648
    %v114 = vadd.s32 %v32, 656
    %v115 = vadd.s32 %v32, 664
    %v116 = vadd.s32 %v32, 672
    %v117 = vadd.s32 %v32, 680
    %v118 = vadd.s32 %v32, 688
    %v119 = vadd.s32 %v32, 696
    %v120 = vadd.s32 %v32, 704
    %v121 = vadd.s32 %v32, 712
    %v122 = vadd.s32 %v32, 720
    %v123 = vadd.s32 %v32, 728
    %v124 = vadd.s32 %v32, 736
    %v125 = vadd.s32 %v32, 744
    %v126 = vadd.s32 %v32, 752
    %v127 = vadd.s32 %v32, 760
    %vm128 = vcmp.lt.s32.totalorder %v32, 0
    %v129 = vsub.s32 0, %v32
    %v130 = vsel %vm128, %v129, %v32
    %v131 = vshrl.u32 %v130, 4
    %v132 = vand.u32 %v130, 15
    %v133 = vsub.s32 0, %v132
    %v134 = vsel %vm128, %v133, %v132
    %vm135 = vcmp.lt.s32.totalorder %v33, 0
    %v136 = vsub.s32 0, %v33
    %v137 = vsel %vm135, %v136, %v33
    %v138 = vshrl.u32 %v137, 4
    %v139 = vand.u32 %v137, 15
    %v140 = vsub.s32 0, %v139
    %v141 = vsel %vm135, %v140, %v139
    %vm142 = vcmp.lt.s32.totalorder %v34, 0
    %v143 = vsub.s32 0, %v34
    %v144 = vsel %vm142, %v143, %v34
    %v145 = vshrl.u32 %v144, 4
    %v146 = vand.u32 %v144, 15
    %v147 = vsub.s32 0, %v146
    %v148 = vsel %vm142, %v147, %v146
    %vm149 = vcmp.lt.s32.totalorder %v35, 0
    %v150 = vsub.s32 0, %v35
    %v151 = vsel %vm149, %v150, %v35
    %v152 = vshrl.u32 %v151, 4
    %v153 = vand.u32 %v151, 15
    %v154 = vsub.s32 0, %v153
    %v155 = vsel %vm149, %v154, %v153
    %vm156 = vcmp.lt.s32.totalorder %v36, 0
    %v157 = vsub.s32 0, %v36
    %v158 = vsel %vm156, %v157, %v36
    %v159 = vshrl.u32 %v158, 4
    %v160 = vand.u32 %v158, 15
    %v161 = vsub.s32 0, %v160
    %v162 = vsel %vm156, %v161, %v160
    %vm163 = vcmp.lt.s32.totalorder %v37, 0
    %v164 = vsub.s32 0, %v37
    %v165 = vsel %vm163, %v164, %v37
    %v166 = vshrl.u32 %v165, 4
    %v167 = vand.u32 %v165, 15
    %v168 = vsub.s32 0, %v167
    %v169 = vsel %vm163, %v168, %v167
    %vm170 = vcmp.lt.s32.totalorder %v38, 0
    %v171 = vsub.s32 0, %v38
    %v172 = vsel %vm170, %v171, %v38
    %v173 = vshrl.u32 %v172, 4
    %v174 = vand.u32 %v172, 15
    %v175 = vsub.s32 0, %v174
    %v176 = vsel %vm170, %v175, %v174
    %vm177 = vcmp.lt.s32.totalorder %v39, 0
    %v178 = vsub.s32 0, %v39
    %v179 = vsel %vm177, %v178, %v39
    %v180 = vshrl.u32 %v179, 4
    %v181 = vand.u32 %v179, 15
    %v182 = vsub.s32 0, %v181
    %v183 = vsel %vm177, %v182, %v181
    %vm184 = vcmp.lt.s32.totalorder %v40, 0
    %v185 = vsub.s32 0, %v40
    %v186 = vsel %vm184, %v185, %v40
    %v187 = vshrl.u32 %v186, 4
    %v188 = vand.u32 %v186, 15
    %v189 = vsub.s32 0, %v188
    %v190 = vsel %vm184, %v189, %v188
    %vm191 = vcmp.lt.s32.totalorder %v41, 0
    %v192 = vsub.s32 0, %v41
    %v193 = vsel %vm191, %v192, %v41
    %v194 = vshrl.u32 %v193, 4
    %v195 = vand.u32 %v193, 15
    %v196 = vsub.s32 0, %v195
    %v197 = vsel %vm191, %v196, %v195
    %vm198 = vcmp.lt.s32.totalorder %v42, 0
    %v199 = vsub.s32 0, %v42
    %v200 = vsel %vm198, %v199, %v42
    %v201 = vshrl.u32 %v200, 4
    %v202 = vand.u32 %v200, 15
    %v203 = vsub.s32 0, %v202
    %v204 = vsel %vm198, %v203, %v202
    %vm205 = vcmp.lt.s32.totalorder %v43, 0
    %v206 = vsub.s32 0, %v43
    %v207 = vsel %vm205, %v206, %v43
    %v208 = vshrl.u32 %v207, 4
    %v209 = vand.u32 %v207, 15
    %v210 = vsub.s32 0, %v209
    %v211 = vsel %vm205, %v210, %v209
    %vm212 = vcmp.lt.s32.totalorder %v44, 0
    %v213 = vsub.s32 0, %v44
    %v214 = vsel %vm212, %v213, %v44
    %v215 = vshrl.u32 %v214, 4
    %v216 = vand.u32 %v214, 15
    %v217 = vsub.s32 0, %v216
    %v218 = vsel %vm212, %v217, %v216
    %vm219 = vcmp.lt.s32.totalorder %v45, 0
    %v220 = vsub.s32 0, %v45
    %v221 = vsel %vm219, %v220, %v45
    %v222 = vshrl.u32 %v221, 4
    %v223 = vand.u32 %v221, 15
    %v224 = vsub.s32 0, %v223
    %v225 = vsel %vm219, %v224, %v223
    %vm226 = vcmp.lt.s32.totalorder %v46, 0
    %v227 = vsub.s32 0, %v46
    %v228 = vsel %vm226, %v227, %v46
    %v229 = vshrl.u32 %v228, 4
    %v230 = vand.u32 %v228, 15
    %v231 = vsub.s32 0, %v230
    %v232 = vsel %vm226, %v231, %v230
    %vm233 = vcmp.lt.s32.totalorder %v47, 0
    %v234 = vsub.s32 0, %v47
    %v235 = vsel %vm233, %v234, %v47
    %v236 = vshrl.u32 %v235, 4
    %v237 = vand.u32 %v235, 15
    %v238 = vsub.s32 0, %v237
    %v239 = vsel %vm233, %v238, %v237
    %vm240 = vcmp.lt.s32.totalorder %v48, 0
    %v241 = vsub.s32 0, %v48
    %v242 = vsel %vm240, %v241, %v48
    %v243 = vshrl.u32 %v242, 4
    %v244 = vand.u32 %v242, 15
    %v245 = vsub.s32 0, %v244
    %v246 = vsel %vm240, %v245, %v244
    %vm247 = vcmp.lt.s32.totalorder %v49, 0
    %v248 = vsub.s32 0, %v49
    %v249 = vsel %vm247, %v248, %v49
    %v250 = vshrl.u32 %v249, 4
    %v251 = vand.u32 %v249, 15
    %v252 = vsub.s32 0, %v251
    %v253 = vsel %vm247, %v252, %v251
    %vm254 = vcmp.lt.s32.totalorder %v50, 0
    %v255 = vsub.s32 0, %v50
    %v256 = vsel %vm254, %v255, %v50
    %v257 = vshrl.u32 %v256, 4
    %v258 = vand.u32 %v256, 15
    %v259 = vsub.s32 0, %v258
    %v260 = vsel %vm254, %v259, %v258
    %vm261 = vcmp.lt.s32.totalorder %v51, 0
    %v262 = vsub.s32 0, %v51
    %v263 = vsel %vm261, %v262, %v51
    %v264 = vshrl.u32 %v263, 4
    %v265 = vand.u32 %v263, 15
    %v266 = vsub.s32 0, %v265
    %v267 = vsel %vm261, %v266, %v265
    %vm268 = vcmp.lt.s32.totalorder %v52, 0
    %v269 = vsub.s32 0, %v52
    %v270 = vsel %vm268, %v269, %v52
    %v271 = vshrl.u32 %v270, 4
    %v272 = vand.u32 %v270, 15
    %v273 = vsub.s32 0, %v272
    %v274 = vsel %vm268, %v273, %v272
    %vm275 = vcmp.lt.s32.totalorder %v53, 0
    %v276 = vsub.s32 0, %v53
    %v277 = vsel %vm275, %v276, %v53
    %v278 = vshrl.u32 %v277, 4
    %v279 = vand.u32 %v277, 15
    %v280 = vsub.s32 0, %v279
    %v281 = vsel %vm275, %v280, %v279
    %vm282 = vcmp.lt.s32.totalorder %v54, 0
    %v283 = vsub.s32 0, %v54
    %v284 = vsel %vm282, %v283, %v54
    %v285 = vshrl.u32 %v284, 4
    %v286 = vand.u32 %v284, 15
    %v287 = vsub.s32 0, %v286
    %v288 = vsel %vm282, %v287, %v286
    %vm289 = vcmp.lt.s32.totalorder %v55, 0
    %v290 = vsub.s32 0, %v55
    %v291 = vsel %vm289, %v290, %v55
    %v292 = vshrl.u32 %v291, 4
    %v293 = vand.u32 %v291, 15
    %v294 = vsub.s32 0, %v293
    %v295 = vsel %vm289, %v294, %v293
    %vm296 = vcmp.lt.s32.totalorder %v56, 0
    %v297 = vsub.s32 0, %v56
    %v298 = vsel %vm296, %v297, %v56
    %v299 = vshrl.u32 %v298, 4
    %v300 = vand.u32 %v298, 15
    %v301 = vsub.s32 0, %v300
    %v302 = vsel %vm296, %v301, %v300
    %vm303 = vcmp.lt.s32.totalorder %v57, 0
    %v304 = vsub.s32 0, %v57
    %v305 = vsel %vm303, %v304, %v57
    %v306 = vshrl.u32 %v305, 4
    %v307 = vand.u32 %v305, 15
    %v308 = vsub.s32 0, %v307
    %v309 = vsel %vm303, %v308, %v307
    %vm310 = vcmp.lt.s32.totalorder %v58, 0
    %v311 = vsub.s32 0, %v58
    %v312 = vsel %vm310, %v311, %v58
    %v313 = vshrl.u32 %v312, 4
    %v314 = vand.u32 %v312, 15
    %v315 = vsub.s32 0, %v314
    %v316 = vsel %vm310, %v315, %v314
    %vm317 = vcmp.lt.s32.totalorder %v59, 0
    %v318 = vsub.s32 0, %v59
    %v319 = vsel %vm317, %v318, %v59
    %v320 = vshrl.u32 %v319, 4
    %v321 = vand.u32 %v319, 15
    %v322 = vsub.s32 0, %v321
    %v323 = vsel %vm317, %v322, %v321
    %vm324 = vcmp.lt.s32.totalorder %v60, 0
    %v325 = vsub.s32 0, %v60
    %v326 = vsel %vm324, %v325, %v60
    %v327 = vshrl.u32 %v326, 4
    %v328 = vand.u32 %v326, 15
    %v329 = vsub.s32 0, %v328
    %v330 = vsel %vm324, %v329, %v328
    %vm331 = vcmp.lt.s32.totalorder %v61, 0
    %v332 = vsub.s32 0, %v61
    %v333 = vsel %vm331, %v332, %v61
    %v334 = vshrl.u32 %v333, 4
    %v335 = vand.u32 %v333, 15
    %v336 = vsub.s32 0, %v335
    %v337 = vsel %vm331, %v336, %v335
    %vm338 = vcmp.lt.s32.totalorder %v62, 0
    %v339 = vsub.s32 0, %v62
    %v340 = vsel %vm338, %v339, %v62
    %v341 = vshrl.u32 %v340, 4
    %v342 = vand.u32 %v340, 15
    %v343 = vsub.s32 0, %v342
    %v344 = vsel %vm338, %v343, %v342
    %vm345 = vcmp.lt.s32.totalorder %v63, 0
    %v346 = vsub.s32 0, %v63
    %v347 = vsel %vm345, %v346, %v63
    %v348 = vshrl.u32 %v347, 4
    %v349 = vand.u32 %v347, 15
    %v350 = vsub.s32 0, %v349
    %v351 = vsel %vm345, %v350, %v349
    %vm352 = vcmp.lt.s32.totalorder %v64, 0
    %v353 = vsub.s32 0, %v64
    %v354 = vsel %vm352, %v353, %v64
    %v355 = vshrl.u32 %v354, 4
    %v356 = vand.u32 %v354, 15
    %v357 = vsub.s32 0, %v356
    %v358 = vsel %vm352, %v357, %v356
    %vm359 = vcmp.lt.s32.totalorder %v65, 0
    %v360 = vsub.s32 0, %v65
    %v361 = vsel %vm359, %v360, %v65
    %v362 = vshrl.u32 %v361, 4
    %v363 = vand.u32 %v361, 15
    %v364 = vsub.s32 0, %v363
    %v365 = vsel %vm359, %v364, %v363
    %vm366 = vcmp.lt.s32.totalorder %v66, 0
    %v367 = vsub.s32 0, %v66
    %v368 = vsel %vm366, %v367, %v66
    %v369 = vshrl.u32 %v368, 4
    %v370 = vand.u32 %v368, 15
    %v371 = vsub.s32 0, %v370
    %v372 = vsel %vm366, %v371, %v370
    %vm373 = vcmp.lt.s32.totalorder %v67, 0
    %v374 = vsub.s32 0, %v67
    %v375 = vsel %vm373, %v374, %v67
    %v376 = vshrl.u32 %v375, 4
    %v377 = vand.u32 %v375, 15
    %v378 = vsub.s32 0, %v377
    %v379 = vsel %vm373, %v378, %v377
    %vm380 = vcmp.lt.s32.totalorder %v68, 0
    %v381 = vsub.s32 0, %v68
    %v382 = vsel %vm380, %v381, %v68
    %v383 = vshrl.u32 %v382, 4
    %v384 = vand.u32 %v382, 15
    %v385 = vsub.s32 0, %v384
    %v386 = vsel %vm380, %v385, %v384
    %vm387 = vcmp.lt.s32.totalorder %v69, 0
    %v388 = vsub.s32 0, %v69
    %v389 = vsel %vm387, %v388, %v69
    %v390 = vshrl.u32 %v389, 4
    %v391 = vand.u32 %v389, 15
    %v392 = vsub.s32 0, %v391
    %v393 = vsel %vm387, %v392, %v391
    %vm394 = vcmp.lt.s32.totalorder %v70, 0
    %v395 = vsub.s32 0, %v70
    %v396 = vsel %vm394, %v395, %v70
    %v397 = vshrl.u32 %v396, 4
    %v398 = vand.u32 %v396, 15
    %v399 = vsub.s32 0, %v398
    %v400 = vsel %vm394, %v399, %v398
    %vm401 = vcmp.lt.s32.totalorder %v71, 0
    %v402 = vsub.s32 0, %v71
    %v403 = vsel %vm401, %v402, %v71
    %v404 = vshrl.u32 %v403, 4
    %v405 = vand.u32 %v403, 15
    %v406 = vsub.s32 0, %v405
    %v407 = vsel %vm401, %v406, %v405
    %vm408 = vcmp.lt.s32.totalorder %v72, 0
    %v409 = vsub.s32 0, %v72
    %v410 = vsel %vm408, %v409, %v72
    %v411 = vshrl.u32 %v410, 4
    %v412 = vand.u32 %v410, 15
    %v413 = vsub.s32 0, %v412
    %v414 = vsel %vm408, %v413, %v412
    %vm415 = vcmp.lt.s32.totalorder %v73, 0
    %v416 = vsub.s32 0, %v73
    %v417 = vsel %vm415, %v416, %v73
    %v418 = vshrl.u32 %v417, 4
    %v419 = vand.u32 %v417, 15
    %v420 = vsub.s32 0, %v419
    %v421 = vsel %vm415, %v420, %v419
    %vm422 = vcmp.lt.s32.totalorder %v74, 0
    %v423 = vsub.s32 0, %v74
    %v424 = vsel %vm422, %v423, %v74
    %v425 = vshrl.u32 %v424, 4
    %v426 = vand.u32 %v424, 15
    %v427 = vsub.s32 0, %v426
    %v428 = vsel %vm422, %v427, %v426
    %vm429 = vcmp.lt.s32.totalorder %v75, 0
    %v430 = vsub.s32 0, %v75
    %v431 = vsel %vm429, %v430, %v75
    %v432 = vshrl.u32 %v431, 4
    %v433 = vand.u32 %v431, 15
    %v434 = vsub.s32 0, %v433
    %v435 = vsel %vm429, %v434, %v433
    %vm436 = vcmp.lt.s32.totalorder %v76, 0
    %v437 = vsub.s32 0, %v76
    %v438 = vsel %vm436, %v437, %v76
    %v439 = vshrl.u32 %v438, 4
    %v440 = vand.u32 %v438, 15
    %v441 = vsub.s32 0, %v440
    %v442 = vsel %vm436, %v441, %v440
    %vm443 = vcmp.lt.s32.totalorder %v77, 0
    %v444 = vsub.s32 0, %v77
    %v445 = vsel %vm443, %v444, %v77
    %v446 = vshrl.u32 %v445, 4
    %v447 = vand.u32 %v445, 15
    %v448 = vsub.s32 0, %v447
    %v449 = vsel %vm443, %v448, %v447
    %vm450 = vcmp.lt.s32.totalorder %v78, 0
    %v451 = vsub.s32 0, %v78
    %v452 = vsel %vm450, %v451, %v78
    %v453 = vshrl.u32 %v452, 4
    %v454 = vand.u32 %v452, 15
    %v455 = vsub.s32 0, %v454
    %v456 = vsel %vm450, %v455, %v454
    %vm457 = vcmp.lt.s32.totalorder %v79, 0
    %v458 = vsub.s32 0, %v79
    %v459 = vsel %vm457, %v458, %v79
    %v460 = vshrl.u32 %v459, 4
    %v461 = vand.u32 %v459, 15
    %v462 = vsub.s32 0, %v461
    %v463 = vsel %vm457, %v462, %v461
    %vm464 = vcmp.lt.s32.totalorder %v80, 0
    %v465 = vsub.s32 0, %v80
    %v466 = vsel %vm464, %v465, %v80
    %v467 = vshrl.u32 %v466, 4
    %v468 = vand.u32 %v466, 15
    %v469 = vsub.s32 0, %v468
    %v470 = vsel %vm464, %v469, %v468
    %vm471 = vcmp.lt.s32.totalorder %v81, 0
    %v472 = vsub.s32 0, %v81
    %v473 = vsel %vm471, %v472, %v81
    %v474 = vshrl.u32 %v473, 4
    %v475 = vand.u32 %v473, 15
    %v476 = vsub.s32 0, %v475
    %v477 = vsel %vm471, %v476, %v475
    %vm478 = vcmp.lt.s32.totalorder %v82, 0
    %v479 = vsub.s32 0, %v82
    %v480 = vsel %vm478, %v479, %v82
    %v481 = vshrl.u32 %v480, 4
    %v482 = vand.u32 %v480, 15
    %v483 = vsub.s32 0, %v482
    %v484 = vsel %vm478, %v483, %v482
    %vm485 = vcmp.lt.s32.totalorder %v83, 0
    %v486 = vsub.s32 0, %v83
    %v487 = vsel %vm485, %v486, %v83
    %v488 = vshrl.u32 %v487, 4
    %v489 = vand.u32 %v487, 15
    %v490 = vsub.s32 0, %v489
    %v491 = vsel %vm485, %v490, %v489
    %vm492 = vcmp.lt.s32.totalorder %v84, 0
    %v493 = vsub.s32 0, %v84
    %v494 = vsel %vm492, %v493, %v84
    %v495 = vshrl.u32 %v494, 4
    %v496 = vand.u32 %v494, 15
    %v497 = vsub.s32 0, %v496
    %v498 = vsel %vm492, %v497, %v496
    %vm499 = vcmp.lt.s32.totalorder %v85, 0
    %v500 = vsub.s32 0, %v85
    %v501 = vsel %vm499, %v500, %v85
    %v502 = vshrl.u32 %v501, 4
    %v503 = vand.u32 %v501, 15
    %v504 = vsub.s32 0, %v503
    %v505 = vsel %vm499, %v504, %v503
    %vm506 = vcmp.lt.s32.totalorder %v86, 0
    %v507 = vsub.s32 0, %v86
    %v508 = vsel %vm506, %v507, %v86
    %v509 = vshrl.u32 %v508, 4
    %v510 = vand.u32 %v508, 15
    %v511 = vsub.s32 0, %v510
    %v512 = vsel %vm506, %v511, %v510
    %vm513 = vcmp.lt.s32.totalorder %v87, 0
    %v514 = vsub.s32 0, %v87
    %v515 = vsel %vm513, %v514, %v87
    %v516 = vshrl.u32 %v515, 4
    %v517 = vand.u32 %v515, 15
    %v518 = vsub.s32 0, %v517
    %v519 = vsel %vm513, %v518, %v517
    %vm520 = vcmp.lt.s32.totalorder %v88, 0
    %v521 = vsub.s32 0, %v88
    %v522 = vsel %vm520, %v521, %v88
    %v523 = vshrl.u32 %v522, 4
    %v524 = vand.u32 %v522, 15
    %v525 = vsub.s32 0, %v524
    %v526 = vsel %vm520, %v525, %v524
    %vm527 = vcmp.lt.s32.totalorder %v89, 0
    %v528 = vsub.s32 0, %v89
    %v529 = vsel %vm527, %v528, %v89
    %v530 = vshrl.u32 %v529, 4
    %v531 = vand.u32 %v529, 15
    %v532 = vsub.s32 0, %v531
    %v533 = vsel %vm527, %v532, %v531
    %vm534 = vcmp.lt.s32.totalorder %v90, 0
    %v535 = vsub.s32 0, %v90
    %v536 = vsel %vm534, %v535, %v90
    %v537 = vshrl.u32 %v536, 4
    %v538 = vand.u32 %v536, 15
    %v539 = vsub.s32 0, %v538
    %v540 = vsel %vm534, %v539, %v538
    %vm541 = vcmp.lt.s32.totalorder %v91, 0
    %v542 = vsub.s32 0, %v91
    %v543 = vsel %vm541, %v542, %v91
    %v544 = vshrl.u32 %v543, 4
    %v545 = vand.u32 %v543, 15
    %v546 = vsub.s32 0, %v545
    %v547 = vsel %vm541, %v546, %v545
    %vm548 = vcmp.lt.s32.totalorder %v92, 0
    %v549 = vsub.s32 0, %v92
    %v550 = vsel %vm548, %v549, %v92
    %v551 = vshrl.u32 %v550, 4
    %v552 = vand.u32 %v550, 15
    %v553 = vsub.s32 0, %v552
    %v554 = vsel %vm548, %v553, %v552
    %vm555 = vcmp.lt.s32.totalorder %v93, 0
    %v556 = vsub.s32 0, %v93
    %v557 = vsel %vm555, %v556, %v93
    %v558 = vshrl.u32 %v557, 4
    %v559 = vand.u32 %v557, 15
    %v560 = vsub.s32 0, %v559
    %v561 = vsel %vm555, %v560, %v559
    %vm562 = vcmp.lt.s32.totalorder %v94, 0
    %v563 = vsub.s32 0, %v94
    %v564 = vsel %vm562, %v563, %v94
    %v565 = vshrl.u32 %v564, 4
    %v566 = vand.u32 %v564, 15
    %v567 = vsub.s32 0, %v566
    %v568 = vsel %vm562, %v567, %v566
    %vm569 = vcmp.lt.s32.totalorder %v95, 0
    %v570 = vsub.s32 0, %v95
    %v571 = vsel %vm569, %v570, %v95
    %v572 = vshrl.u32 %v571, 4
    %v573 = vand.u32 %v571, 15
    %v574 = vsub.s32 0, %v573
    %v575 = vsel %vm569, %v574, %v573
    %vm576 = vcmp.lt.s32.totalorder %v96, 0
    %v577 = vsub.s32 0, %v96
    %v578 = vsel %vm576, %v577, %v96
    %v579 = vshrl.u32 %v578, 4
    %v580 = vand.u32 %v578, 15
    %v581 = vsub.s32 0, %v580
    %v582 = vsel %vm576, %v581, %v580
    %vm583 = vcmp.lt.s32.totalorder %v97, 0
    %v584 = vsub.s32 0, %v97
    %v585 = vsel %vm583, %v584, %v97
    %v586 = vshrl.u32 %v585, 4
    %v587 = vand.u32 %v585, 15
    %v588 = vsub.s32 0, %v587
    %v589 = vsel %vm583, %v588, %v587
    %vm590 = vcmp.lt.s32.totalorder %v98, 0
    %v591 = vsub.s32 0, %v98
    %v592 = vsel %vm590, %v591, %v98
    %v593 = vshrl.u32 %v592, 4
    %v594 = vand.u32 %v592, 15
    %v595 = vsub.s32 0, %v594
    %v596 = vsel %vm590, %v595, %v594
    %vm597 = vcmp.lt.s32.totalorder %v99, 0
    %v598 = vsub.s32 0, %v99
    %v599 = vsel %vm597, %v598, %v99
    %v600 = vshrl.u32 %v599, 4
    %v601 = vand.u32 %v599, 15
    %v602 = vsub.s32 0, %v601
    %v603 = vsel %vm597, %v602, %v601
    %vm604 = vcmp.lt.s32.totalorder %v100, 0
    %v605 = vsub.s32 0, %v100
    %v606 = vsel %vm604, %v605, %v100
    %v607 = vshrl.u32 %v606, 4
    %v608 = vand.u32 %v606, 15
    %v609 = vsub.s32 0, %v608
    %v610 = vsel %vm604, %v609, %v608
    %vm611 = vcmp.lt.s32.totalorder %v101, 0
    %v612 = vsub.s32 0, %v101
    %v613 = vsel %vm611, %v612, %v101
    %v614 = vshrl.u32 %v613, 4
    %v615 = vand.u32 %v613, 15
    %v616 = vsub.s32 0, %v615
    %v617 = vsel %vm611, %v616, %v615
    %vm618 = vcmp.lt.s32.totalorder %v102, 0
    %v619 = vsub.s32 0, %v102
    %v620 = vsel %vm618, %v619, %v102
    %v621 = vshrl.u32 %v620, 4
    %v622 = vand.u32 %v620, 15
    %v623 = vsub.s32 0, %v622
    %v624 = vsel %vm618, %v623, %v622
    %vm625 = vcmp.lt.s32.totalorder %v103, 0
    %v626 = vsub.s32 0, %v103
    %v627 = vsel %vm625, %v626, %v103
    %v628 = vshrl.u32 %v627, 4
    %v629 = vand.u32 %v627, 15
    %v630 = vsub.s32 0, %v629
    %v631 = vsel %vm625, %v630, %v629
    %vm632 = vcmp.lt.s32.totalorder %v104, 0
    %v633 = vsub.s32 0, %v104
    %v634 = vsel %vm632, %v633, %v104
    %v635 = vshrl.u32 %v634, 4
    %v636 = vand.u32 %v634, 15
    %v637 = vsub.s32 0, %v636
    %v638 = vsel %vm632, %v637, %v636
    %vm639 = vcmp.lt.s32.totalorder %v105, 0
    %v640 = vsub.s32 0, %v105
    %v641 = vsel %vm639, %v640, %v105
    %v642 = vshrl.u32 %v641, 4
    %v643 = vand.u32 %v641, 15
    %v644 = vsub.s32 0, %v643
    %v645 = vsel %vm639, %v644, %v643
    %vm646 = vcmp.lt.s32.totalorder %v106, 0
    %v647 = vsub.s32 0, %v106
    %v648 = vsel %vm646, %v647, %v106
    %v649 = vshrl.u32 %v648, 4
    %v650 = vand.u32 %v648, 15
    %v651 = vsub.s32 0, %v650
    %v652 = vsel %vm646, %v651, %v650
    %vm653 = vcmp.lt.s32.totalorder %v107, 0
    %v654 = vsub.s32 0, %v107
    %v655 = vsel %vm653, %v654, %v107
    %v656 = vshrl.u32 %v655, 4
    %v657 = vand.u32 %v655, 15
    %v658 = vsub.s32 0, %v657
    %v659 = vsel %vm653, %v658, %v657
    %vm660 = vcmp.lt.s32.totalorder %v108, 0
    %v661 = vsub.s32 0, %v108
    %v662 = vsel %vm660, %v661, %v108
    %v663 = vshrl.u32 %v662, 4
    %v664 = vand.u32 %v662, 15
    %v665 = vsub.s32 0, %v664
    %v666 = vsel %vm660, %v665, %v664
    %vm667 = vcmp.lt.s32.totalorder %v109, 0
    %v668 = vsub.s32 0, %v109
    %v669 = vsel %vm667, %v668, %v109
    %v670 = vshrl.u32 %v669, 4
    %v671 = vand.u32 %v669, 15
    %v672 = vsub.s32 0, %v671
    %v673 = vsel %vm667, %v672, %v671
    %vm674 = vcmp.lt.s32.totalorder %v110, 0
    %v675 = vsub.s32 0, %v110
    %v676 = vsel %vm674, %v675, %v110
    %v677 = vshrl.u32 %v676, 4
    %v678 = vand.u32 %v676, 15
    %v679 = vsub.s32 0, %v678
    %v680 = vsel %vm674, %v679, %v678
    %vm681 = vcmp.lt.s32.totalorder %v111, 0
    %v682 = vsub.s32 0, %v111
    %v683 = vsel %vm681, %v682, %v111
    %v684 = vshrl.u32 %v683, 4
    %v685 = vand.u32 %v683, 15
    %v686 = vsub.s32 0, %v685
    %v687 = vsel %vm681, %v686, %v685
    %vm688 = vcmp.lt.s32.totalorder %v112, 0
    %v689 = vsub.s32 0, %v112
    %v690 = vsel %vm688, %v689, %v112
    %v691 = vshrl.u32 %v690, 4
    %v692 = vand.u32 %v690, 15
    %v693 = vsub.s32 0, %v692
    %v694 = vsel %vm688, %v693, %v692
    %vm695 = vcmp.lt.s32.totalorder %v113, 0
    %v696 = vsub.s32 0, %v113
    %v697 = vsel %vm695, %v696, %v113
    %v698 = vshrl.u32 %v697, 4
    %v699 = vand.u32 %v697, 15
    %v700 = vsub.s32 0, %v699
    %v701 = vsel %vm695, %v700, %v699
    %vm702 = vcmp.lt.s32.totalorder %v114, 0
    %v703 = vsub.s32 0, %v114
    %v704 = vsel %vm702, %v703, %v114
    %v705 = vshrl.u32 %v704, 4
    %v706 = vand.u32 %v704, 15
    %v707 = vsub.s32 0, %v706
    %v708 = vsel %vm702, %v707, %v706
    %vm709 = vcmp.lt.s32.totalorder %v115, 0
    %v710 = vsub.s32 0, %v115
    %v711 = vsel %vm709, %v710, %v115
    %v712 = vshrl.u32 %v711, 4
    %v713 = vand.u32 %v711, 15
    %v714 = vsub.s32 0, %v713
    %v715 = vsel %vm709, %v714, %v713
    %vm716 = vcmp.lt.s32.totalorder %v116, 0
    %v717 = vsub.s32 0, %v116
    %v718 = vsel %vm716, %v717, %v116
    %v719 = vshrl.u32 %v718, 4
    %v720 = vand.u32 %v718, 15
    %v721 = vsub.s32 0, %v720
    %v722 = vsel %vm716, %v721, %v720
    %vm723 = vcmp.lt.s32.totalorder %v117, 0
    %v724 = vsub.s32 0, %v117
    %v725 = vsel %vm723, %v724, %v117
    %v726 = vshrl.u32 %v725, 4
    %v727 = vand.u32 %v725, 15
    %v728 = vsub.s32 0, %v727
    %v729 = vsel %vm723, %v728, %v727
    %vm730 = vcmp.lt.s32.totalorder %v118, 0
    %v731 = vsub.s32 0, %v118
    %v732 = vsel %vm730, %v731, %v118
    %v733 = vshrl.u32 %v732, 4
    %v734 = vand.u32 %v732, 15
    %v735 = vsub.s32 0, %v734
    %v736 = vsel %vm730, %v735, %v734
    %vm737 = vcmp.lt.s32.totalorder %v119, 0
    %v738 = vsub.s32 0, %v119
    %v739 = vsel %vm737, %v738, %v119
    %v740 = vshrl.u32 %v739, 4
    %v741 = vand.u32 %v739, 15
    %v742 = vsub.s32 0, %v741
    %v743 = vsel %vm737, %v742, %v741
    %vm744 = vcmp.lt.s32.totalorder %v120, 0
    %v745 = vsub.s32 0, %v120
    %v746 = vsel %vm744, %v745, %v120
    %v747 = vshrl.u32 %v746, 4
    %v748 = vand.u32 %v746, 15
    %v749 = vsub.s32 0, %v748
    %v750 = vsel %vm744, %v749, %v748
    %vm751 = vcmp.lt.s32.totalorder %v121, 0
    %v752 = vsub.s32 0, %v121
    %v753 = vsel %vm751, %v752, %v121
    %v754 = vshrl.u32 %v753, 4
    %v755 = vand.u32 %v753, 15
    %v756 = vsub.s32 0, %v755
    %v757 = vsel %vm751, %v756, %v755
    %vm758 = vcmp.lt.s32.totalorder %v122, 0
    %v759 = vsub.s32 0, %v122
    %v760 = vsel %vm758, %v759, %v122
    %v761 = vshrl.u32 %v760, 4
    %v762 = vand.u32 %v760, 15
    %v763 = vsub.s32 0, %v762
    %v764 = vsel %vm758, %v763, %v762
    %vm765 = vcmp.lt.s32.totalorder %v123, 0
    %v766 = vsub.s32 0, %v123
    %v767 = vsel %vm765, %v766, %v123
    %v768 = vshrl.u32 %v767, 4
    %v769 = vand.u32 %v767, 15
    %v770 = vsub.s32 0, %v769
    %v771 = vsel %vm765, %v770, %v769
    %vm772 = vcmp.lt.s32.totalorder %v124, 0
    %v773 = vsub.s32 0, %v124
    %v774 = vsel %vm772, %v773, %v124
    %v775 = vshrl.u32 %v774, 4
    %v776 = vand.u32 %v774, 15
    %v777 = vsub.s32 0, %v776
    %v778 = vsel %vm772, %v777, %v776
    %vm779 = vcmp.lt.s32.totalorder %v125, 0
    %v780 = vsub.s32 0, %v125
    %v781 = vsel %vm779, %v780, %v125
    %v782 = vshrl.u32 %v781, 4
    %v783 = vand.u32 %v781, 15
    %v784 = vsub.s32 0, %v783
    %v785 = vsel %vm779, %v784, %v783
    %vm786 = vcmp.lt.s32.totalorder %v126, 0
    %v787 = vsub.s32 0, %v126
    %v788 = vsel %vm786, %v787, %v126
    %v789 = vshrl.u32 %v788, 4
    %v790 = vand.u32 %v788, 15
    %v791 = vsub.s32 0, %v790
    %v792 = vsel %vm786, %v791, %v790
    %vm793 = vcmp.lt.s32.totalorder %v127, 0
    %v794 = vsub.s32 0, %v127
    %v795 = vsel %vm793, %v794, %v127
    %v796 = vshrl.u32 %v795, 4
    %v797 = vand.u32 %v795, 15
    %v798 = vsub.s32 0, %v797
    %v799 = vsel %vm793, %v798, %v797
    %vm800 = vcmp.ne.s32.totalorder %v134, 0
    %vm801 = vcmp.ne.s32.totalorder %v141, 0
    %vm802 = vcmp.ne.s32.totalorder %v148, 0
    %vm803 = vcmp.ne.s32.totalorder %v155, 0
    %vm804 = vcmp.ne.s32.totalorder %v162, 0
    %vm805 = vcmp.ne.s32.totalorder %v169, 0
    %vm806 = vcmp.ne.s32.totalorder %v176, 0
    %vm807 = vcmp.ne.s32.totalorder %v183, 0
    %vm808 = vcmp.ne.s32.totalorder %v190, 0
    %vm809 = vcmp.ne.s32.totalorder %v197, 0
    %vm810 = vcmp.ne.s32.totalorder %v204, 0
    %vm811 = vcmp.ne.s32.totalorder %v211, 0
    %vm812 = vcmp.ne.s32.totalorder %v218, 0
    %vm813 = vcmp.ne.s32.totalorder %v225, 0
    %vm814 = vcmp.ne.s32.totalorder %v232, 0
    %vm815 = vcmp.ne.s32.totalorder %v239, 0
    %vm816 = vcmp.ne.s32.totalorder %v246, 0
    %vm817 = vcmp.ne.s32.totalorder %v253, 0
    %vm818 = vcmp.ne.s32.totalorder %v260, 0
    %vm819 = vcmp.ne.s32.totalorder %v267, 0
    %vm820 = vcmp.ne.s32.totalorder %v274, 0
    %vm821 = vcmp.ne.s32.totalorder %v281, 0
    %vm822 = vcmp.ne.s32.totalorder %v288, 0
    %vm823 = vcmp.ne.s32.totalorder %v295, 0
    %vm824 = vcmp.ne.s32.totalorder %v302, 0
    %vm825 = vcmp.ne.s32.totalorder %v309, 0
    %vm826 = vcmp.ne.s32.totalorder %v316, 0
    %vm827 = vcmp.ne.s32.totalorder %v323, 0
    %vm828 = vcmp.ne.s32.totalorder %v330, 0
    %vm829 = vcmp.ne.s32.totalorder %v337, 0
    %vm830 = vcmp.ne.s32.totalorder %v344, 0
    %vm831 = vcmp.ne.s32.totalorder %v351, 0
    %vm832 = vcmp.ne.s32.totalorder %v358, 0
    %vm833 = vcmp.ne.s32.totalorder %v365, 0
    %vm834 = vcmp.ne.s32.totalorder %v372, 0
    %vm835 = vcmp.ne.s32.totalorder %v379, 0
    %vm836 = vcmp.ne.s32.totalorder %v386, 0
    %vm837 = vcmp.ne.s32.totalorder %v393, 0
    %vm838 = vcmp.ne.s32.totalorder %v400, 0
    %vm839 = vcmp.ne.s32.totalorder %v407, 0
    %vm840 = vcmp.ne.s32.totalorder %v414, 0
    %vm841 = vcmp.ne.s32.totalorder %v421, 0
    %vm842 = vcmp.ne.s32.totalorder %v428, 0
    %vm843 = vcmp.ne.s32.totalorder %v435, 0
    %vm844 = vcmp.ne.s32.totalorder %v442, 0
    %vm845 = vcmp.ne.s32.totalorder %v449, 0
    %vm846 = vcmp.ne.s32.totalorder %v456, 0
    %vm847 = vcmp.ne.s32.totalorder %v463, 0
    %vm848 = vcmp.ne.s32.totalorder %v470, 0
    %vm849 = vcmp.ne.s32.totalorder %v477, 0
    %vm850 = vcmp.ne.s32.totalorder %v484, 0
    %vm851 = vcmp.ne.s32.totalorder %v491, 0
    %vm852 = vcmp.ne.s32.totalorder %v498, 0
    %vm853 = vcmp.ne.s32.totalorder %v505, 0
    %vm854 = vcmp.ne.s32.totalorder %v512, 0
    %vm855 = vcmp.ne.s32.totalorder %v519, 0
    %vm856 = vcmp.ne.s32.totalorder %v526, 0
    %vm857 = vcmp.ne.s32.totalorder %v533, 0
    %vm858 = vcmp.ne.s32.totalorder %v540, 0
    %vm859 = vcmp.ne.s32.totalorder %v547, 0
    %vm860 = vcmp.ne.s32.totalorder %v554, 0
    %vm861 = vcmp.ne.s32.totalorder %v561, 0
    %vm862 = vcmp.ne.s32.totalorder %v568, 0
    %vm863 = vcmp.ne.s32.totalorder %v575, 0
    %vm864 = vcmp.ne.s32.totalorder %v582, 0
    %vm865 = vcmp.ne.s32.totalorder %v589, 0
    %vm866 = vcmp.ne.s32.totalorder %v596, 0
    %vm867 = vcmp.ne.s32.totalorder %v603, 0
    %vm868 = vcmp.ne.s32.totalorder %v610, 0
    %vm869 = vcmp.ne.s32.totalorder %v617, 0
    %vm870 = vcmp.ne.s32.totalorder %v624, 0
    %vm871 = vcmp.ne.s32.totalorder %v631, 0
    %vm872 = vcmp.ne.s32.totalorder %v638, 0
    %vm873 = vcmp.ne.s32.totalorder %v645, 0
    %vm874 = vcmp.ne.s32.totalorder %v652, 0
    %vm875 = vcmp.ne.s32.totalorder %v659, 0
    %vm876 = vcmp.ne.s32.totalorder %v666, 0
    %vm877 = vcmp.ne.s32.totalorder %v673, 0
    %vm878 = vcmp.ne.s32.totalorder %v680, 0
    %vm879 = vcmp.ne.s32.totalorder %v687, 0
    %vm880 = vcmp.ne.s32.totalorder %v694, 0
    %vm881 = vcmp.ne.s32.totalorder %v701, 0
    %vm882 = vcmp.ne.s32.totalorder %v708, 0
    %vm883 = vcmp.ne.s32.totalorder %v715, 0
    %vm884 = vcmp.ne.s32.totalorder %v722, 0
    %vm885 = vcmp.ne.s32.totalorder %v729, 0
    %vm886 = vcmp.ne.s32.totalorder %v736, 0
    %vm887 = vcmp.ne.s32.totalorder %v743, 0
    %vm888 = vcmp.ne.s32.totalorder %v750, 0
    %vm889 = vcmp.ne.s32.totalorder %v757, 0
    %vm890 = vcmp.ne.s32.totalorder %v764, 0
    %vm891 = vcmp.ne.s32.totalorder %v771, 0
    %vm892 = vcmp.ne.s32.totalorder %v778, 0
    %vm893 = vcmp.ne.s32.totalorder %v785, 0
    %vm894 = vcmp.ne.s32.totalorder %v792, 0
    %vm895 = vcmp.ne.s32.totalorder %v799, 0
    %vm896 = vcmp.lt.s32.totalorder %v134, 0
    %vm897 = vcmp.lt.s32.totalorder %v141, 0
    %vm898 = vcmp.lt.s32.totalorder %v148, 0
    %vm899 = vcmp.lt.s32.totalorder %v155, 0
    %vm900 = vcmp.lt.s32.totalorder %v162, 0
    %vm901 = vcmp.lt.s32.totalorder %v169, 0
    %vm902 = vcmp.lt.s32.totalorder %v176, 0
    %vm903 = vcmp.lt.s32.totalorder %v183, 0
    %vm904 = vcmp.lt.s32.totalorder %v190, 0
    %vm905 = vcmp.lt.s32.totalorder %v197, 0
    %vm906 = vcmp.lt.s32.totalorder %v204, 0
    %vm907 = vcmp.lt.s32.totalorder %v211, 0
    %vm908 = vcmp.lt.s32.totalorder %v218, 0
    %vm909 = vcmp.lt.s32.totalorder %v225, 0
    %vm910 = vcmp.lt.s32.totalorder %v232, 0
    %vm911 = vcmp.lt.s32.totalorder %v239, 0
    %vm912 = vcmp.lt.s32.totalorder %v246, 0
    %vm913 = vcmp.lt.s32.totalorder %v253, 0
    %vm914 = vcmp.lt.s32.totalorder %v260, 0
    %vm915 = vcmp.lt.s32.totalorder %v267, 0
    %vm916 = vcmp.lt.s32.totalorder %v274, 0
    %vm917 = vcmp.lt.s32.totalorder %v281, 0
    %vm918 = vcmp.lt.s32.totalorder %v288, 0
    %vm919 = vcmp.lt.s32.totalorder %v295, 0
    %vm920 = vcmp.lt.s32.totalorder %v302, 0
    %vm921 = vcmp.lt.s32.totalorder %v309, 0
    %vm922 = vcmp.lt.s32.totalorder %v316, 0
    %vm923 = vcmp.lt.s32.totalorder %v323, 0
    %vm924 = vcmp.lt.s32.totalorder %v330, 0
    %vm925 = vcmp.lt.s32.totalorder %v337, 0
    %vm926 = vcmp.lt.s32.totalorder %v344, 0
    %vm927 = vcmp.lt.s32.totalorder %v351, 0
    %vm928 = vcmp.lt.s32.totalorder %v358, 0
    %vm929 = vcmp.lt.s32.totalorder %v365, 0
    %vm930 = vcmp.lt.s32.totalorder %v372, 0
    %vm931 = vcmp.lt.s32.totalorder %v379, 0
    %vm932 = vcmp.lt.s32.totalorder %v386, 0
    %vm933 = vcmp.lt.s32.totalorder %v393, 0
    %vm934 = vcmp.lt.s32.totalorder %v400, 0
    %vm935 = vcmp.lt.s32.totalorder %v407, 0
    %vm936 = vcmp.lt.s32.totalorder %v414, 0
    %vm937 = vcmp.lt.s32.totalorder %v421, 0
    %vm938 = vcmp.lt.s32.totalorder %v428, 0
    %vm939 = vcmp.lt.s32.totalorder %v435, 0
    %vm940 = vcmp.lt.s32.totalorder %v442, 0
    %vm941 = vcmp.lt.s32.totalorder %v449, 0
    %vm942 = vcmp.lt.s32.totalorder %v456, 0
    %vm943 = vcmp.lt.s32.totalorder %v463, 0
    %vm944 = vcmp.lt.s32.totalorder %v470, 0
    %vm945 = vcmp.lt.s32.totalorder %v477, 0
    %vm946 = vcmp.lt.s32.totalorder %v484, 0
    %vm947 = vcmp.lt.s32.totalorder %v491, 0
    %vm948 = vcmp.lt.s32.totalorder %v498, 0
    %vm949 = vcmp.lt.s32.totalorder %v505, 0
    %vm950 = vcmp.lt.s32.totalorder %v512, 0
    %vm951 = vcmp.lt.s32.totalorder %v519, 0
    %vm952 = vcmp.lt.s32.totalorder %v526, 0
    %vm953 = vcmp.lt.s32.totalorder %v533, 0
    %vm954 = vcmp.lt.s32.totalorder %v540, 0
    %vm955 = vcmp.lt.s32.totalorder %v547, 0
    %vm956 = vcmp.lt.s32.totalorder %v554, 0
    %vm957 = vcmp.lt.s32.totalorder %v561, 0
    %vm958 = vcmp.lt.s32.totalorder %v568, 0
    %vm959 = vcmp.lt.s32.totalorder %v575, 0
    %vm960 = vcmp.lt.s32.totalorder %v582, 0
    %vm961 = vcmp.lt.s32.totalorder %v589, 0
    %vm962 = vcmp.lt.s32.totalorder %v596, 0
    %vm963 = vcmp.lt.s32.totalorder %v603, 0
    %vm964 = vcmp.lt.s32.totalorder %v610, 0
    %vm965 = vcmp.lt.s32.totalorder %v617, 0
    %vm966 = vcmp.lt.s32.totalorder %v624, 0
    %vm967 = vcmp.lt.s32.totalorder %v631, 0
    %vm968 = vcmp.lt.s32.totalorder %v638, 0
    %vm969 = vcmp.lt.s32.totalorder %v645, 0
    %vm970 = vcmp.lt.s32.totalorder %v652, 0
    %vm971 = vcmp.lt.s32.totalorder %v659, 0
    %vm972 = vcmp.lt.s32.totalorder %v666, 0
    %vm973 = vcmp.lt.s32.totalorder %v673, 0
    %vm974 = vcmp.lt.s32.totalorder %v680, 0
    %vm975 = vcmp.lt.s32.totalorder %v687, 0
    %vm976 = vcmp.lt.s32.totalorder %v694, 0
    %vm977 = vcmp.lt.s32.totalorder %v701, 0
    %vm978 = vcmp.lt.s32.totalorder %v708, 0
    %vm979 = vcmp.lt.s32.totalorder %v715, 0
    %vm980 = vcmp.lt.s32.totalorder %v722, 0
    %vm981 = vcmp.lt.s32.totalorder %v729, 0
    %vm982 = vcmp.lt.s32.totalorder %v736, 0
    %vm983 = vcmp.lt.s32.totalorder %v743, 0
    %vm984 = vcmp.lt.s32.totalorder %v750, 0
    %vm985 = vcmp.lt.s32.totalorder %v757, 0
    %vm986 = vcmp.lt.s32.totalorder %v764, 0
    %vm987 = vcmp.lt.s32.totalorder %v771, 0
    %vm988 = vcmp.lt.s32.totalorder %v778, 0
    %vm989 = vcmp.lt.s32.totalorder %v785, 0
    %vm990 = vcmp.lt.s32.totalorder %v792, 0
    %vm991 = vcmp.lt.s32.totalorder %v799, 0
    %vm992 = vmand %vm896, %vm800
    %vm993 = vmand %vm897, %vm801
    %vm994 = vmand %vm898, %vm802
    %vm995 = vmand %vm899, %vm803
    %vm996 = vmand %vm900, %vm804
    %vm997 = vmand %vm901, %vm805
    %vm998 = vmand %vm902, %vm806
    %vm999 = vmand %vm903, %vm807
    %vm1000 = vmand %vm904, %vm808
    %vm1001 = vmand %vm905, %vm809
    %vm1002 = vmand %vm906, %vm810
    %vm1003 = vmand %vm907, %vm811
    %vm1004 = vmand %vm908, %vm812
    %vm1005 = vmand %vm909, %vm813
    %vm1006 = vmand %vm910, %vm814
    %vm1007 = vmand %vm911, %vm815
    %vm1008 = vmand %vm912, %vm816
    %vm1009 = vmand %vm913, %vm817
    %vm1010 = vmand %vm914, %vm818
    %vm1011 = vmand %vm915, %vm819
    %vm1012 = vmand %vm916, %vm820
    %vm1013 = vmand %vm917, %vm821
    %vm1014 = vmand %vm918, %vm822
    %vm1015 = vmand %vm919, %vm823
    %vm1016 = vmand %vm920, %vm824
    %vm1017 = vmand %vm921, %vm825
    %vm1018 = vmand %vm922, %vm826
    %vm1019 = vmand %vm923, %vm827
    %vm1020 = vmand %vm924, %vm828
    %vm1021 = vmand %vm925, %vm829
    %vm1022 = vmand %vm926, %vm830
    %vm1023 = vmand %vm927, %vm831
    %vm1024 = vmand %vm928, %vm832
    %vm1025 = vmand %vm929, %vm833
    %vm1026 = vmand %vm930, %vm834
    %vm1027 = vmand %vm931, %vm835
    %vm1028 = vmand %vm932, %vm836
    %vm1029 = vmand %vm933, %vm837
    %vm1030 = vmand %vm934, %vm838
    %vm1031 = vmand %vm935, %vm839
    %vm1032 = vmand %vm936, %vm840
    %vm1033 = vmand %vm937, %vm841
    %vm1034 = vmand %vm938, %vm842
    %vm1035 = vmand %vm939, %vm843
    %vm1036 = vmand %vm940, %vm844
    %vm1037 = vmand %vm941, %vm845
    %vm1038 = vmand %vm942, %vm846
    %vm1039 = vmand %vm943, %vm847
    %vm1040 = vmand %vm944, %vm848
    %vm1041 = vmand %vm945, %vm849
    %vm1042 = vmand %vm946, %vm850
    %vm1043 = vmand %vm947, %vm851
    %vm1044 = vmand %vm948, %vm852
    %vm1045 = vmand %vm949, %vm853
    %vm1046 = vmand %vm950, %vm854
    %vm1047 = vmand %vm951, %vm855
    %vm1048 = vmand %vm952, %vm856
    %vm1049 = vmand %vm953, %vm857
    %vm1050 = vmand %vm954, %vm858
    %vm1051 = vmand %vm955, %vm859
    %vm1052 = vmand %vm956, %vm860
    %vm1053 = vmand %vm957, %vm861
    %vm1054 = vmand %vm958, %vm862
    %vm1055 = vmand %vm959, %vm863
    %vm1056 = vmand %vm960, %vm864
    %vm1057 = vmand %vm961, %vm865
    %vm1058 = vmand %vm962, %vm866
    %vm1059 = vmand %vm963, %vm867
    %vm1060 = vmand %vm964, %vm868
    %vm1061 = vmand %vm965, %vm869
    %vm1062 = vmand %vm966, %vm870
    %vm1063 = vmand %vm967, %vm871
    %vm1064 = vmand %vm968, %vm872
    %vm1065 = vmand %vm969, %vm873
    %vm1066 = vmand %vm970, %vm874
    %vm1067 = vmand %vm971, %vm875
    %vm1068 = vmand %vm972, %vm876
    %vm1069 = vmand %vm973, %vm877
    %vm1070 = vmand %vm974, %vm878
    %vm1071 = vmand %vm975, %vm879
    %vm1072 = vmand %vm976, %vm880
    %vm1073 = vmand %vm977, %vm881
    %vm1074 = vmand %vm978, %vm882
    %vm1075 = vmand %vm979, %vm883
    %vm1076 = vmand %vm980, %vm884
    %vm1077 = vmand %vm981, %vm885
    %vm1078 = vmand %vm982, %vm886
    %vm1079 = vmand %vm983, %vm887
    %vm1080 = vmand %vm984, %vm888
    %vm1081 = vmand %vm985, %vm889
    %vm1082 = vmand %vm986, %vm890
    %vm1083 = vmand %vm987, %vm891
    %vm1084 = vmand %vm988, %vm892
    %vm1085 = vmand %vm989, %vm893
    %vm1086 = vmand %vm990, %vm894
    %vm1087 = vmand %vm991, %vm895
    %v1088 = vadd.s32 %v134, 16
    %v1089 = vadd.s32 %v141, 16
    %v1090 = vadd.s32 %v148, 16
    %v1091 = vadd.s32 %v155, 16
    %v1092 = vadd.s32 %v162, 16
    %v1093 = vadd.s32 %v169, 16
    %v1094 = vadd.s32 %v176, 16
    %v1095 = vadd.s32 %v183, 16
    %v1096 = vadd.s32 %v190, 16
    %v1097 = vadd.s32 %v197, 16
    %v1098 = vadd.s32 %v204, 16
    %v1099 = vadd.s32 %v211, 16
    %v1100 = vadd.s32 %v218, 16
    %v1101 = vadd.s32 %v225, 16
    %v1102 = vadd.s32 %v232, 16
    %v1103 = vadd.s32 %v239, 16
    %v1104 = vadd.s32 %v246, 16
    %v1105 = vadd.s32 %v253, 16
    %v1106 = vadd.s32 %v260, 16
    %v1107 = vadd.s32 %v267, 16
    %v1108 = vadd.s32 %v274, 16
    %v1109 = vadd.s32 %v281, 16
    %v1110 = vadd.s32 %v288, 16
    %v1111 = vadd.s32 %v295, 16
    %v1112 = vadd.s32 %v302, 16
    %v1113 = vadd.s32 %v309, 16
    %v1114 = vadd.s32 %v316, 16
    %v1115 = vadd.s32 %v323, 16
    %v1116 = vadd.s32 %v330, 16
    %v1117 = vadd.s32 %v337, 16
    %v1118 = vadd.s32 %v344, 16
    %v1119 = vadd.s32 %v351, 16
    %v1120 = vadd.s32 %v358, 16
    %v1121 = vadd.s32 %v365, 16
    %v1122 = vadd.s32 %v372, 16
    %v1123 = vadd.s32 %v379, 16
    %v1124 = vadd.s32 %v386, 16
    %v1125 = vadd.s32 %v393, 16
    %v1126 = vadd.s32 %v400, 16
    %v1127 = vadd.s32 %v407, 16
    %v1128 = vadd.s32 %v414, 16
    %v1129 = vadd.s32 %v421, 16
    %v1130 = vadd.s32 %v428, 16
    %v1131 = vadd.s32 %v435, 16
    %v1132 = vadd.s32 %v442, 16
    %v1133 = vadd.s32 %v449, 16
    %v1134 = vadd.s32 %v456, 16
    %v1135 = vadd.s32 %v463, 16
    %v1136 = vadd.s32 %v470, 16
    %v1137 = vadd.s32 %v477, 16
    %v1138 = vadd.s32 %v484, 16
    %v1139 = vadd.s32 %v491, 16
    %v1140 = vadd.s32 %v498, 16
    %v1141 = vadd.s32 %v505, 16
    %v1142 = vadd.s32 %v512, 16
    %v1143 = vadd.s32 %v519, 16
    %v1144 = vadd.s32 %v526, 16
    %v1145 = vadd.s32 %v533, 16
    %v1146 = vadd.s32 %v540, 16
    %v1147 = vadd.s32 %v547, 16
    %v1148 = vadd.s32 %v554, 16
    %v1149 = vadd.s32 %v561, 16
    %v1150 = vadd.s32 %v568, 16
    %v1151 = vadd.s32 %v575, 16
    %v1152 = vadd.s32 %v582, 16
    %v1153 = vadd.s32 %v589, 16
    %v1154 = vadd.s32 %v596, 16
    %v1155 = vadd.s32 %v603, 16
    %v1156 = vadd.s32 %v610, 16
    %v1157 = vadd.s32 %v617, 16
    %v1158 = vadd.s32 %v624, 16
    %v1159 = vadd.s32 %v631, 16
    %v1160 = vadd.s32 %v638, 16
    %v1161 = vadd.s32 %v645, 16
    %v1162 = vadd.s32 %v652, 16
    %v1163 = vadd.s32 %v659, 16
    %v1164 = vadd.s32 %v666, 16
    %v1165 = vadd.s32 %v673, 16
    %v1166 = vadd.s32 %v680, 16
    %v1167 = vadd.s32 %v687, 16
    %v1168 = vadd.s32 %v694, 16
    %v1169 = vadd.s32 %v701, 16
    %v1170 = vadd.s32 %v708, 16
    %v1171 = vadd.s32 %v715, 16
    %v1172 = vadd.s32 %v722, 16
    %v1173 = vadd.s32 %v729, 16
    %v1174 = vadd.s32 %v736, 16
    %v1175 = vadd.s32 %v743, 16
    %v1176 = vadd.s32 %v750, 16
    %v1177 = vadd.s32 %v757, 16
    %v1178 = vadd.s32 %v764, 16
    %v1179 = vadd.s32 %v771, 16
    %v1180 = vadd.s32 %v778, 16
    %v1181 = vadd.s32 %v785, 16
    %v1182 = vadd.s32 %v792, 16
    %v1183 = vadd.s32 %v799, 16
    %v1184 = vsel %vm992, %v1088, %v134
    %v1185 = vsel %vm993, %v1089, %v141
    %v1186 = vsel %vm994, %v1090, %v148
    %v1187 = vsel %vm995, %v1091, %v155
    %v1188 = vsel %vm996, %v1092, %v162
    %v1189 = vsel %vm997, %v1093, %v169
    %v1190 = vsel %vm998, %v1094, %v176
    %v1191 = vsel %vm999, %v1095, %v183
    %v1192 = vsel %vm1000, %v1096, %v190
    %v1193 = vsel %vm1001, %v1097, %v197
    %v1194 = vsel %vm1002, %v1098, %v204
    %v1195 = vsel %vm1003, %v1099, %v211
    %v1196 = vsel %vm1004, %v1100, %v218
    %v1197 = vsel %vm1005, %v1101, %v225
    %v1198 = vsel %vm1006, %v1102, %v232
    %v1199 = vsel %vm1007, %v1103, %v239
    %v1200 = vsel %vm1008, %v1104, %v246
    %v1201 = vsel %vm1009, %v1105, %v253
    %v1202 = vsel %vm1010, %v1106, %v260
    %v1203 = vsel %vm1011, %v1107, %v267
    %v1204 = vsel %vm1012, %v1108, %v274
    %v1205 = vsel %vm1013, %v1109, %v281
    %v1206 = vsel %vm1014, %v1110, %v288
    %v1207 = vsel %vm1015, %v1111, %v295
    %v1208 = vsel %vm1016, %v1112, %v302
    %v1209 = vsel %vm1017, %v1113, %v309
    %v1210 = vsel %vm1018, %v1114, %v316
    %v1211 = vsel %vm1019, %v1115, %v323
    %v1212 = vsel %vm1020, %v1116, %v330
    %v1213 = vsel %vm1021, %v1117, %v337
    %v1214 = vsel %vm1022, %v1118, %v344
    %v1215 = vsel %vm1023, %v1119, %v351
    %v1216 = vsel %vm1024, %v1120, %v358
    %v1217 = vsel %vm1025, %v1121, %v365
    %v1218 = vsel %vm1026, %v1122, %v372
    %v1219 = vsel %vm1027, %v1123, %v379
    %v1220 = vsel %vm1028, %v1124, %v386
    %v1221 = vsel %vm1029, %v1125, %v393
    %v1222 = vsel %vm1030, %v1126, %v400
    %v1223 = vsel %vm1031, %v1127, %v407
    %v1224 = vsel %vm1032, %v1128, %v414
    %v1225 = vsel %vm1033, %v1129, %v421
    %v1226 = vsel %vm1034, %v1130, %v428
    %v1227 = vsel %vm1035, %v1131, %v435
    %v1228 = vsel %vm1036, %v1132, %v442
    %v1229 = vsel %vm1037, %v1133, %v449
    %v1230 = vsel %vm1038, %v1134, %v456
    %v1231 = vsel %vm1039, %v1135, %v463
    %v1232 = vsel %vm1040, %v1136, %v470
    %v1233 = vsel %vm1041, %v1137, %v477
    %v1234 = vsel %vm1042, %v1138, %v484
    %v1235 = vsel %vm1043, %v1139, %v491
    %v1236 = vsel %vm1044, %v1140, %v498
    %v1237 = vsel %vm1045, %v1141, %v505
    %v1238 = vsel %vm1046, %v1142, %v512
    %v1239 = vsel %vm1047, %v1143, %v519
    %v1240 = vsel %vm1048, %v1144, %v526
    %v1241 = vsel %vm1049, %v1145, %v533
    %v1242 = vsel %vm1050, %v1146, %v540
    %v1243 = vsel %vm1051, %v1147, %v547
    %v1244 = vsel %vm1052, %v1148, %v554
    %v1245 = vsel %vm1053, %v1149, %v561
    %v1246 = vsel %vm1054, %v1150, %v568
    %v1247 = vsel %vm1055, %v1151, %v575
    %v1248 = vsel %vm1056, %v1152, %v582
    %v1249 = vsel %vm1057, %v1153, %v589
    %v1250 = vsel %vm1058, %v1154, %v596
    %v1251 = vsel %vm1059, %v1155, %v603
    %v1252 = vsel %vm1060, %v1156, %v610
    %v1253 = vsel %vm1061, %v1157, %v617
    %v1254 = vsel %vm1062, %v1158, %v624
    %v1255 = vsel %vm1063, %v1159, %v631
    %v1256 = vsel %vm1064, %v1160, %v638
    %v1257 = vsel %vm1065, %v1161, %v645
    %v1258 = vsel %vm1066, %v1162, %v652
    %v1259 = vsel %vm1067, %v1163, %v659
    %v1260 = vsel %vm1068, %v1164, %v666
    %v1261 = vsel %vm1069, %v1165, %v673
    %v1262 = vsel %vm1070, %v1166, %v680
    %v1263 = vsel %vm1071, %v1167, %v687
    %v1264 = vsel %vm1072, %v1168, %v694
    %v1265 = vsel %vm1073, %v1169, %v701
    %v1266 = vsel %vm1074, %v1170, %v708
    %v1267 = vsel %vm1075, %v1171, %v715
    %v1268 = vsel %vm1076, %v1172, %v722
    %v1269 = vsel %vm1077, %v1173, %v729
    %v1270 = vsel %vm1078, %v1174, %v736
    %v1271 = vsel %vm1079, %v1175, %v743
    %v1272 = vsel %vm1080, %v1176, %v750
    %v1273 = vsel %vm1081, %v1177, %v757
    %v1274 = vsel %vm1082, %v1178, %v764
    %v1275 = vsel %vm1083, %v1179, %v771
    %v1276 = vsel %vm1084, %v1180, %v778
    %v1277 = vsel %vm1085, %v1181, %v785
    %v1278 = vsel %vm1086, %v1182, %v792
    %v1279 = vsel %vm1087, %v1183, %v799
    %vm1280 = vcmp.ne.s32.totalorder %v1184, 0
    %vm1281 = vcmp.ne.s32.totalorder %v1185, 0
    %vm1282 = vcmp.ne.s32.totalorder %v1186, 0
    %vm1283 = vcmp.ne.s32.totalorder %v1187, 0
    %vm1284 = vcmp.ne.s32.totalorder %v1188, 0
    %vm1285 = vcmp.ne.s32.totalorder %v1189, 0
    %vm1286 = vcmp.ne.s32.totalorder %v1190, 0
    %vm1287 = vcmp.ne.s32.totalorder %v1191, 0
    %vm1288 = vcmp.ne.s32.totalorder %v1192, 0
    %vm1289 = vcmp.ne.s32.totalorder %v1193, 0
    %vm1290 = vcmp.ne.s32.totalorder %v1194, 0
    %vm1291 = vcmp.ne.s32.totalorder %v1195, 0
    %vm1292 = vcmp.ne.s32.totalorder %v1196, 0
    %vm1293 = vcmp.ne.s32.totalorder %v1197, 0
    %vm1294 = vcmp.ne.s32.totalorder %v1198, 0
    %vm1295 = vcmp.ne.s32.totalorder %v1199, 0
    %vm1296 = vcmp.ne.s32.totalorder %v1200, 0
    %vm1297 = vcmp.ne.s32.totalorder %v1201, 0
    %vm1298 = vcmp.ne.s32.totalorder %v1202, 0
    %vm1299 = vcmp.ne.s32.totalorder %v1203, 0
    %vm1300 = vcmp.ne.s32.totalorder %v1204, 0
    %vm1301 = vcmp.ne.s32.totalorder %v1205, 0
    %vm1302 = vcmp.ne.s32.totalorder %v1206, 0
    %vm1303 = vcmp.ne.s32.totalorder %v1207, 0
    %vm1304 = vcmp.ne.s32.totalorder %v1208, 0
    %vm1305 = vcmp.ne.s32.totalorder %v1209, 0
    %vm1306 = vcmp.ne.s32.totalorder %v1210, 0
    %vm1307 = vcmp.ne.s32.totalorder %v1211, 0
    %vm1308 = vcmp.ne.s32.totalorder %v1212, 0
    %vm1309 = vcmp.ne.s32.totalorder %v1213, 0
    %vm1310 = vcmp.ne.s32.totalorder %v1214, 0
    %vm1311 = vcmp.ne.s32.totalorder %v1215, 0
    %vm1312 = vcmp.ne.s32.totalorder %v1216, 0
    %vm1313 = vcmp.ne.s32.totalorder %v1217, 0
    %vm1314 = vcmp.ne.s32.totalorder %v1218, 0
    %vm1315 = vcmp.ne.s32.totalorder %v1219, 0
    %vm1316 = vcmp.ne.s32.totalorder %v1220, 0
    %vm1317 = vcmp.ne.s32.totalorder %v1221, 0
    %vm1318 = vcmp.ne.s32.totalorder %v1222, 0
    %vm1319 = vcmp.ne.s32.totalorder %v1223, 0
    %vm1320 = vcmp.ne.s32.totalorder %v1224, 0
    %vm1321 = vcmp.ne.s32.totalorder %v1225, 0
    %vm1322 = vcmp.ne.s32.totalorder %v1226, 0
    %vm1323 = vcmp.ne.s32.totalorder %v1227, 0
    %vm1324 = vcmp.ne.s32.totalorder %v1228, 0
    %vm1325 = vcmp.ne.s32.totalorder %v1229, 0
    %vm1326 = vcmp.ne.s32.totalorder %v1230, 0
    %vm1327 = vcmp.ne.s32.totalorder %v1231, 0
    %vm1328 = vcmp.ne.s32.totalorder %v1232, 0
    %vm1329 = vcmp.ne.s32.totalorder %v1233, 0
    %vm1330 = vcmp.ne.s32.totalorder %v1234, 0
    %vm1331 = vcmp.ne.s32.totalorder %v1235, 0
    %vm1332 = vcmp.ne.s32.totalorder %v1236, 0
    %vm1333 = vcmp.ne.s32.totalorder %v1237, 0
    %vm1334 = vcmp.ne.s32.totalorder %v1238, 0
    %vm1335 = vcmp.ne.s32.totalorder %v1239, 0
    %vm1336 = vcmp.ne.s32.totalorder %v1240, 0
    %vm1337 = vcmp.ne.s32.totalorder %v1241, 0
    %vm1338 = vcmp.ne.s32.totalorder %v1242, 0
    %vm1339 = vcmp.ne.s32.totalorder %v1243, 0
    %vm1340 = vcmp.ne.s32.totalorder %v1244, 0
    %vm1341 = vcmp.ne.s32.totalorder %v1245, 0
    %vm1342 = vcmp.ne.s32.totalorder %v1246, 0
    %vm1343 = vcmp.ne.s32.totalorder %v1247, 0
    %vm1344 = vcmp.ne.s32.totalorder %v1248, 0
    %vm1345 = vcmp.ne.s32.totalorder %v1249, 0
    %vm1346 = vcmp.ne.s32.totalorder %v1250, 0
    %vm1347 = vcmp.ne.s32.totalorder %v1251, 0
    %vm1348 = vcmp.ne.s32.totalorder %v1252, 0
    %vm1349 = vcmp.ne.s32.totalorder %v1253, 0
    %vm1350 = vcmp.ne.s32.totalorder %v1254, 0
    %vm1351 = vcmp.ne.s32.totalorder %v1255, 0
    %vm1352 = vcmp.ne.s32.totalorder %v1256, 0
    %vm1353 = vcmp.ne.s32.totalorder %v1257, 0
    %vm1354 = vcmp.ne.s32.totalorder %v1258, 0
    %vm1355 = vcmp.ne.s32.totalorder %v1259, 0
    %vm1356 = vcmp.ne.s32.totalorder %v1260, 0
    %vm1357 = vcmp.ne.s32.totalorder %v1261, 0
    %vm1358 = vcmp.ne.s32.totalorder %v1262, 0
    %vm1359 = vcmp.ne.s32.totalorder %v1263, 0
    %vm1360 = vcmp.ne.s32.totalorder %v1264, 0
    %vm1361 = vcmp.ne.s32.totalorder %v1265, 0
    %vm1362 = vcmp.ne.s32.totalorder %v1266, 0
    %vm1363 = vcmp.ne.s32.totalorder %v1267, 0
    %vm1364 = vcmp.ne.s32.totalorder %v1268, 0
    %vm1365 = vcmp.ne.s32.totalorder %v1269, 0
    %vm1366 = vcmp.ne.s32.totalorder %v1270, 0
    %vm1367 = vcmp.ne.s32.totalorder %v1271, 0
    %vm1368 = vcmp.ne.s32.totalorder %v1272, 0
    %vm1369 = vcmp.ne.s32.totalorder %v1273, 0
    %vm1370 = vcmp.ne.s32.totalorder %v1274, 0
    %vm1371 = vcmp.ne.s32.totalorder %v1275, 0
    %vm1372 = vcmp.ne.s32.totalorder %v1276, 0
    %vm1373 = vcmp.ne.s32.totalorder %v1277, 0
    %vm1374 = vcmp.ne.s32.totalorder %v1278, 0
    %vm1375 = vcmp.ne.s32.totalorder %v1279, 0
    %v1376 = vsel %vm1280, 1, 0
    %v1377 = vsel %vm1281, 1, 0
    %v1378 = vsel %vm1282, 1, 0
    %v1379 = vsel %vm1283, 1, 0
    %v1380 = vsel %vm1284, 1, 0
    %v1381 = vsel %vm1285, 1, 0
    %v1382 = vsel %vm1286, 1, 0
    %v1383 = vsel %vm1287, 1, 0
    %v1384 = vsel %vm1288, 1, 0
    %v1385 = vsel %vm1289, 1, 0
    %v1386 = vsel %vm1290, 1, 0
    %v1387 = vsel %vm1291, 1, 0
    %v1388 = vsel %vm1292, 1, 0
    %v1389 = vsel %vm1293, 1, 0
    %v1390 = vsel %vm1294, 1, 0
    %v1391 = vsel %vm1295, 1, 0
    %v1392 = vsel %vm1296, 1, 0
    %v1393 = vsel %vm1297, 1, 0
    %v1394 = vsel %vm1298, 1, 0
    %v1395 = vsel %vm1299, 1, 0
    %v1396 = vsel %vm1300, 1, 0
    %v1397 = vsel %vm1301, 1, 0
    %v1398 = vsel %vm1302, 1, 0
    %v1399 = vsel %vm1303, 1, 0
    %v1400 = vsel %vm1304, 1, 0
    %v1401 = vsel %vm1305, 1, 0
    %v1402 = vsel %vm1306, 1, 0
    %v1403 = vsel %vm1307, 1, 0
    %v1404 = vsel %vm1308, 1, 0
    %v1405 = vsel %vm1309, 1, 0
    %v1406 = vsel %vm1310, 1, 0
    %v1407 = vsel %vm1311, 1, 0
    %v1408 = vsel %vm1312, 1, 0
    %v1409 = vsel %vm1313, 1, 0
    %v1410 = vsel %vm1314, 1, 0
    %v1411 = vsel %vm1315, 1, 0
    %v1412 = vsel %vm1316, 1, 0
    %v1413 = vsel %vm1317, 1, 0
    %v1414 = vsel %vm1318, 1, 0
    %v1415 = vsel %vm1319, 1, 0
    %v1416 = vsel %vm1320, 1, 0
    %v1417 = vsel %vm1321, 1, 0
    %v1418 = vsel %vm1322, 1, 0
    %v1419 = vsel %vm1323, 1, 0
    %v1420 = vsel %vm1324, 1, 0
    %v1421 = vsel %vm1325, 1, 0
    %v1422 = vsel %vm1326, 1, 0
    %v1423 = vsel %vm1327, 1, 0
    %v1424 = vsel %vm1328, 1, 0
    %v1425 = vsel %vm1329, 1, 0
    %v1426 = vsel %vm1330, 1, 0
    %v1427 = vsel %vm1331, 1, 0
    %v1428 = vsel %vm1332, 1, 0
    %v1429 = vsel %vm1333, 1, 0
    %v1430 = vsel %vm1334, 1, 0
    %v1431 = vsel %vm1335, 1, 0
    %v1432 = vsel %vm1336, 1, 0
    %v1433 = vsel %vm1337, 1, 0
    %v1434 = vsel %vm1338, 1, 0
    %v1435 = vsel %vm1339, 1, 0
    %v1436 = vsel %vm1340, 1, 0
    %v1437 = vsel %vm1341, 1, 0
    %v1438 = vsel %vm1342, 1, 0
    %v1439 = vsel %vm1343, 1, 0
    %v1440 = vsel %vm1344, 1, 0
    %v1441 = vsel %vm1345, 1, 0
    %v1442 = vsel %vm1346, 1, 0
    %v1443 = vsel %vm1347, 1, 0
    %v1444 = vsel %vm1348, 1, 0
    %v1445 = vsel %vm1349, 1, 0
    %v1446 = vsel %vm1350, 1, 0
    %v1447 = vsel %vm1351, 1, 0
    %v1448 = vsel %vm1352, 1, 0
    %v1449 = vsel %vm1353, 1, 0
    %v1450 = vsel %vm1354, 1, 0
    %v1451 = vsel %vm1355, 1, 0
    %v1452 = vsel %vm1356, 1, 0
    %v1453 = vsel %vm1357, 1, 0
    %v1454 = vsel %vm1358, 1, 0
    %v1455 = vsel %vm1359, 1, 0
    %v1456 = vsel %vm1360, 1, 0
    %v1457 = vsel %vm1361, 1, 0
    %v1458 = vsel %vm1362, 1, 0
    %v1459 = vsel %vm1363, 1, 0
    %v1460 = vsel %vm1364, 1, 0
    %v1461 = vsel %vm1365, 1, 0
    %v1462 = vsel %vm1366, 1, 0
    %v1463 = vsel %vm1367, 1, 0
    %v1464 = vsel %vm1368, 1, 0
    %v1465 = vsel %vm1369, 1, 0
    %v1466 = vsel %vm1370, 1, 0
    %v1467 = vsel %vm1371, 1, 0
    %v1468 = vsel %vm1372, 1, 0
    %v1469 = vsel %vm1373, 1, 0
    %v1470 = vsel %vm1374, 1, 0
    %v1471 = vsel %vm1375, 1, 0
    %v1472 = vcvt.s32.f32 %v1376
    %v1473 = vcvt.s32.f32 %v1377
    %v1474 = vcvt.s32.f32 %v1378
    %v1475 = vcvt.s32.f32 %v1379
    %v1476 = vcvt.s32.f32 %v1380
    %v1477 = vcvt.s32.f32 %v1381
    %v1478 = vcvt.s32.f32 %v1382
    %v1479 = vcvt.s32.f32 %v1383
    %v1480 = vcvt.s32.f32 %v1384
    %v1481 = vcvt.s32.f32 %v1385
    %v1482 = vcvt.s32.f32 %v1386
    %v1483 = vcvt.s32.f32 %v1387
    %v1484 = vcvt.s32.f32 %v1388
    %v1485 = vcvt.s32.f32 %v1389
    %v1486 = vcvt.s32.f32 %v1390
    %v1487 = vcvt.s32.f32 %v1391
    %v1488 = vcvt.s32.f32 %v1392
    %v1489 = vcvt.s32.f32 %v1393
    %v1490 = vcvt.s32.f32 %v1394
    %v1491 = vcvt.s32.f32 %v1395
    %v1492 = vcvt.s32.f32 %v1396
    %v1493 = vcvt.s32.f32 %v1397
    %v1494 = vcvt.s32.f32 %v1398
    %v1495 = vcvt.s32.f32 %v1399
    %v1496 = vcvt.s32.f32 %v1400
    %v1497 = vcvt.s32.f32 %v1401
    %v1498 = vcvt.s32.f32 %v1402
    %v1499 = vcvt.s32.f32 %v1403
    %v1500 = vcvt.s32.f32 %v1404
    %v1501 = vcvt.s32.f32 %v1405
    %v1502 = vcvt.s32.f32 %v1406
    %v1503 = vcvt.s32.f32 %v1407
    %v1504 = vcvt.s32.f32 %v1408
    %v1505 = vcvt.s32.f32 %v1409
    %v1506 = vcvt.s32.f32 %v1410
    %v1507 = vcvt.s32.f32 %v1411
    %v1508 = vcvt.s32.f32 %v1412
    %v1509 = vcvt.s32.f32 %v1413
    %v1510 = vcvt.s32.f32 %v1414
    %v1511 = vcvt.s32.f32 %v1415
    %v1512 = vcvt.s32.f32 %v1416
    %v1513 = vcvt.s32.f32 %v1417
    %v1514 = vcvt.s32.f32 %v1418
    %v1515 = vcvt.s32.f32 %v1419
    %v1516 = vcvt.s32.f32 %v1420
    %v1517 = vcvt.s32.f32 %v1421
    %v1518 = vcvt.s32.f32 %v1422
    %v1519 = vcvt.s32.f32 %v1423
    %v1520 = vcvt.s32.f32 %v1424
    %v1521 = vcvt.s32.f32 %v1425
    %v1522 = vcvt.s32.f32 %v1426
    %v1523 = vcvt.s32.f32 %v1427
    %v1524 = vcvt.s32.f32 %v1428
    %v1525 = vcvt.s32.f32 %v1429
    %v1526 = vcvt.s32.f32 %v1430
    %v1527 = vcvt.s32.f32 %v1431
    %v1528 = vcvt.s32.f32 %v1432
    %v1529 = vcvt.s32.f32 %v1433
    %v1530 = vcvt.s32.f32 %v1434
    %v1531 = vcvt.s32.f32 %v1435
    %v1532 = vcvt.s32.f32 %v1436
    %v1533 = vcvt.s32.f32 %v1437
    %v1534 = vcvt.s32.f32 %v1438
    %v1535 = vcvt.s32.f32 %v1439
    %v1536 = vcvt.s32.f32 %v1440
    %v1537 = vcvt.s32.f32 %v1441
    %v1538 = vcvt.s32.f32 %v1442
    %v1539 = vcvt.s32.f32 %v1443
    %v1540 = vcvt.s32.f32 %v1444
    %v1541 = vcvt.s32.f32 %v1445
    %v1542 = vcvt.s32.f32 %v1446
    %v1543 = vcvt.s32.f32 %v1447
    %v1544 = vcvt.s32.f32 %v1448
    %v1545 = vcvt.s32.f32 %v1449
    %v1546 = vcvt.s32.f32 %v1450
    %v1547 = vcvt.s32.f32 %v1451
    %v1548 = vcvt.s32.f32 %v1452
    %v1549 = vcvt.s32.f32 %v1453
    %v1550 = vcvt.s32.f32 %v1454
    %v1551 = vcvt.s32.f32 %v1455
    %v1552 = vcvt.s32.f32 %v1456
    %v1553 = vcvt.s32.f32 %v1457
    %v1554 = vcvt.s32.f32 %v1458
    %v1555 = vcvt.s32.f32 %v1459
    %v1556 = vcvt.s32.f32 %v1460
    %v1557 = vcvt.s32.f32 %v1461
    %v1558 = vcvt.s32.f32 %v1462
    %v1559 = vcvt.s32.f32 %v1463
    %v1560 = vcvt.s32.f32 %v1464
    %v1561 = vcvt.s32.f32 %v1465
    %v1562 = vcvt.s32.f32 %v1466
    %v1563 = vcvt.s32.f32 %v1467
    %v1564 = vcvt.s32.f32 %v1468
    %v1565 = vcvt.s32.f32 %v1469
    %v1566 = vcvt.s32.f32 %v1470
    %v1567 = vcvt.s32.f32 %v1471
    %vm1568 = vcmp.ne.s32.totalorder %v1184, 15
    %vm1569 = vcmp.ne.s32.totalorder %v1185, 15
    %vm1570 = vcmp.ne.s32.totalorder %v1186, 15
    %vm1571 = vcmp.ne.s32.totalorder %v1187, 15
    %vm1572 = vcmp.ne.s32.totalorder %v1188, 15
    %vm1573 = vcmp.ne.s32.totalorder %v1189, 15
    %vm1574 = vcmp.ne.s32.totalorder %v1190, 15
    %vm1575 = vcmp.ne.s32.totalorder %v1191, 15
    %vm1576 = vcmp.ne.s32.totalorder %v1192, 15
    %vm1577 = vcmp.ne.s32.totalorder %v1193, 15
    %vm1578 = vcmp.ne.s32.totalorder %v1194, 15
    %vm1579 = vcmp.ne.s32.totalorder %v1195, 15
    %vm1580 = vcmp.ne.s32.totalorder %v1196, 15
    %vm1581 = vcmp.ne.s32.totalorder %v1197, 15
    %vm1582 = vcmp.ne.s32.totalorder %v1198, 15
    %vm1583 = vcmp.ne.s32.totalorder %v1199, 15
    %vm1584 = vcmp.ne.s32.totalorder %v1200, 15
    %vm1585 = vcmp.ne.s32.totalorder %v1201, 15
    %vm1586 = vcmp.ne.s32.totalorder %v1202, 15
    %vm1587 = vcmp.ne.s32.totalorder %v1203, 15
    %vm1588 = vcmp.ne.s32.totalorder %v1204, 15
    %vm1589 = vcmp.ne.s32.totalorder %v1205, 15
    %vm1590 = vcmp.ne.s32.totalorder %v1206, 15
    %vm1591 = vcmp.ne.s32.totalorder %v1207, 15
    %vm1592 = vcmp.ne.s32.totalorder %v1208, 15
    %vm1593 = vcmp.ne.s32.totalorder %v1209, 15
    %vm1594 = vcmp.ne.s32.totalorder %v1210, 15
    %vm1595 = vcmp.ne.s32.totalorder %v1211, 15
    %vm1596 = vcmp.ne.s32.totalorder %v1212, 15
    %vm1597 = vcmp.ne.s32.totalorder %v1213, 15
    %vm1598 = vcmp.ne.s32.totalorder %v1214, 15
    %vm1599 = vcmp.ne.s32.totalorder %v1215, 15
    %vm1600 = vcmp.ne.s32.totalorder %v1216, 15
    %vm1601 = vcmp.ne.s32.totalorder %v1217, 15
    %vm1602 = vcmp.ne.s32.totalorder %v1218, 15
    %vm1603 = vcmp.ne.s32.totalorder %v1219, 15
    %vm1604 = vcmp.ne.s32.totalorder %v1220, 15
    %vm1605 = vcmp.ne.s32.totalorder %v1221, 15
    %vm1606 = vcmp.ne.s32.totalorder %v1222, 15
    %vm1607 = vcmp.ne.s32.totalorder %v1223, 15
    %vm1608 = vcmp.ne.s32.totalorder %v1224, 15
    %vm1609 = vcmp.ne.s32.totalorder %v1225, 15
    %vm1610 = vcmp.ne.s32.totalorder %v1226, 15
    %vm1611 = vcmp.ne.s32.totalorder %v1227, 15
    %vm1612 = vcmp.ne.s32.totalorder %v1228, 15
    %vm1613 = vcmp.ne.s32.totalorder %v1229, 15
    %vm1614 = vcmp.ne.s32.totalorder %v1230, 15
    %vm1615 = vcmp.ne.s32.totalorder %v1231, 15
    %vm1616 = vcmp.ne.s32.totalorder %v1232, 15
    %vm1617 = vcmp.ne.s32.totalorder %v1233, 15
    %vm1618 = vcmp.ne.s32.totalorder %v1234, 15
    %vm1619 = vcmp.ne.s32.totalorder %v1235, 15
    %vm1620 = vcmp.ne.s32.totalorder %v1236, 15
    %vm1621 = vcmp.ne.s32.totalorder %v1237, 15
    %vm1622 = vcmp.ne.s32.totalorder %v1238, 15
    %vm1623 = vcmp.ne.s32.totalorder %v1239, 15
    %vm1624 = vcmp.ne.s32.totalorder %v1240, 15
    %vm1625 = vcmp.ne.s32.totalorder %v1241, 15
    %vm1626 = vcmp.ne.s32.totalorder %v1242, 15
    %vm1627 = vcmp.ne.s32.totalorder %v1243, 15
    %vm1628 = vcmp.ne.s32.totalorder %v1244, 15
    %vm1629 = vcmp.ne.s32.totalorder %v1245, 15
    %vm1630 = vcmp.ne.s32.totalorder %v1246, 15
    %vm1631 = vcmp.ne.s32.totalorder %v1247, 15
    %vm1632 = vcmp.ne.s32.totalorder %v1248, 15
    %vm1633 = vcmp.ne.s32.totalorder %v1249, 15
    %vm1634 = vcmp.ne.s32.totalorder %v1250, 15
    %vm1635 = vcmp.ne.s32.totalorder %v1251, 15
    %vm1636 = vcmp.ne.s32.totalorder %v1252, 15
    %vm1637 = vcmp.ne.s32.totalorder %v1253, 15
    %vm1638 = vcmp.ne.s32.totalorder %v1254, 15
    %vm1639 = vcmp.ne.s32.totalorder %v1255, 15
    %vm1640 = vcmp.ne.s32.totalorder %v1256, 15
    %vm1641 = vcmp.ne.s32.totalorder %v1257, 15
    %vm1642 = vcmp.ne.s32.totalorder %v1258, 15
    %vm1643 = vcmp.ne.s32.totalorder %v1259, 15
    %vm1644 = vcmp.ne.s32.totalorder %v1260, 15
    %vm1645 = vcmp.ne.s32.totalorder %v1261, 15
    %vm1646 = vcmp.ne.s32.totalorder %v1262, 15
    %vm1647 = vcmp.ne.s32.totalorder %v1263, 15
    %vm1648 = vcmp.ne.s32.totalorder %v1264, 15
    %vm1649 = vcmp.ne.s32.totalorder %v1265, 15
    %vm1650 = vcmp.ne.s32.totalorder %v1266, 15
    %vm1651 = vcmp.ne.s32.totalorder %v1267, 15
    %vm1652 = vcmp.ne.s32.totalorder %v1268, 15
    %vm1653 = vcmp.ne.s32.totalorder %v1269, 15
    %vm1654 = vcmp.ne.s32.totalorder %v1270, 15
    %vm1655 = vcmp.ne.s32.totalorder %v1271, 15
    %vm1656 = vcmp.ne.s32.totalorder %v1272, 15
    %vm1657 = vcmp.ne.s32.totalorder %v1273, 15
    %vm1658 = vcmp.ne.s32.totalorder %v1274, 15
    %vm1659 = vcmp.ne.s32.totalorder %v1275, 15
    %vm1660 = vcmp.ne.s32.totalorder %v1276, 15
    %vm1661 = vcmp.ne.s32.totalorder %v1277, 15
    %vm1662 = vcmp.ne.s32.totalorder %v1278, 15
    %vm1663 = vcmp.ne.s32.totalorder %v1279, 15
    %v1664 = vsel %vm1568, 1, 0
    %v1665 = vsel %vm1569, 1, 0
    %v1666 = vsel %vm1570, 1, 0
    %v1667 = vsel %vm1571, 1, 0
    %v1668 = vsel %vm1572, 1, 0
    %v1669 = vsel %vm1573, 1, 0
    %v1670 = vsel %vm1574, 1, 0
    %v1671 = vsel %vm1575, 1, 0
    %v1672 = vsel %vm1576, 1, 0
    %v1673 = vsel %vm1577, 1, 0
    %v1674 = vsel %vm1578, 1, 0
    %v1675 = vsel %vm1579, 1, 0
    %v1676 = vsel %vm1580, 1, 0
    %v1677 = vsel %vm1581, 1, 0
    %v1678 = vsel %vm1582, 1, 0
    %v1679 = vsel %vm1583, 1, 0
    %v1680 = vsel %vm1584, 1, 0
    %v1681 = vsel %vm1585, 1, 0
    %v1682 = vsel %vm1586, 1, 0
    %v1683 = vsel %vm1587, 1, 0
    %v1684 = vsel %vm1588, 1, 0
    %v1685 = vsel %vm1589, 1, 0
    %v1686 = vsel %vm1590, 1, 0
    %v1687 = vsel %vm1591, 1, 0
    %v1688 = vsel %vm1592, 1, 0
    %v1689 = vsel %vm1593, 1, 0
    %v1690 = vsel %vm1594, 1, 0
    %v1691 = vsel %vm1595, 1, 0
    %v1692 = vsel %vm1596, 1, 0
    %v1693 = vsel %vm1597, 1, 0
    %v1694 = vsel %vm1598, 1, 0
    %v1695 = vsel %vm1599, 1, 0
    %v1696 = vsel %vm1600, 1, 0
    %v1697 = vsel %vm1601, 1, 0
    %v1698 = vsel %vm1602, 1, 0
    %v1699 = vsel %vm1603, 1, 0
    %v1700 = vsel %vm1604, 1, 0
    %v1701 = vsel %vm1605, 1, 0
    %v1702 = vsel %vm1606, 1, 0
    %v1703 = vsel %vm1607, 1, 0
    %v1704 = vsel %vm1608, 1, 0
    %v1705 = vsel %vm1609, 1, 0
    %v1706 = vsel %vm1610, 1, 0
    %v1707 = vsel %vm1611, 1, 0
    %v1708 = vsel %vm1612, 1, 0
    %v1709 = vsel %vm1613, 1, 0
    %v1710 = vsel %vm1614, 1, 0
    %v1711 = vsel %vm1615, 1, 0
    %v1712 = vsel %vm1616, 1, 0
    %v1713 = vsel %vm1617, 1, 0
    %v1714 = vsel %vm1618, 1, 0
    %v1715 = vsel %vm1619, 1, 0
    %v1716 = vsel %vm1620, 1, 0
    %v1717 = vsel %vm1621, 1, 0
    %v1718 = vsel %vm1622, 1, 0
    %v1719 = vsel %vm1623, 1, 0
    %v1720 = vsel %vm1624, 1, 0
    %v1721 = vsel %vm1625, 1, 0
    %v1722 = vsel %vm1626, 1, 0
    %v1723 = vsel %vm1627, 1, 0
    %v1724 = vsel %vm1628, 1, 0
    %v1725 = vsel %vm1629, 1, 0
    %v1726 = vsel %vm1630, 1, 0
    %v1727 = vsel %vm1631, 1, 0
    %v1728 = vsel %vm1632, 1, 0
    %v1729 = vsel %vm1633, 1, 0
    %v1730 = vsel %vm1634, 1, 0
    %v1731 = vsel %vm1635, 1, 0
    %v1732 = vsel %vm1636, 1, 0
    %v1733 = vsel %vm1637, 1, 0
    %v1734 = vsel %vm1638, 1, 0
    %v1735 = vsel %vm1639, 1, 0
    %v1736 = vsel %vm1640, 1, 0
    %v1737 = vsel %vm1641, 1, 0
    %v1738 = vsel %vm1642, 1, 0
    %v1739 = vsel %vm1643, 1, 0
    %v1740 = vsel %vm1644, 1, 0
    %v1741 = vsel %vm1645, 1, 0
    %v1742 = vsel %vm1646, 1, 0
    %v1743 = vsel %vm1647, 1, 0
    %v1744 = vsel %vm1648, 1, 0
    %v1745 = vsel %vm1649, 1, 0
    %v1746 = vsel %vm1650, 1, 0
    %v1747 = vsel %vm1651, 1, 0
    %v1748 = vsel %vm1652, 1, 0
    %v1749 = vsel %vm1653, 1, 0
    %v1750 = vsel %vm1654, 1, 0
    %v1751 = vsel %vm1655, 1, 0
    %v1752 = vsel %vm1656, 1, 0
    %v1753 = vsel %vm1657, 1, 0
    %v1754 = vsel %vm1658, 1, 0
    %v1755 = vsel %vm1659, 1, 0
    %v1756 = vsel %vm1660, 1, 0
    %v1757 = vsel %vm1661, 1, 0
    %v1758 = vsel %vm1662, 1, 0
    %v1759 = vsel %vm1663, 1, 0
    %v1760 = vcvt.s32.f32 %v1664
    %v1761 = vcvt.s32.f32 %v1665
    %v1762 = vcvt.s32.f32 %v1666
    %v1763 = vcvt.s32.f32 %v1667
    %v1764 = vcvt.s32.f32 %v1668
    %v1765 = vcvt.s32.f32 %v1669
    %v1766 = vcvt.s32.f32 %v1670
    %v1767 = vcvt.s32.f32 %v1671
    %v1768 = vcvt.s32.f32 %v1672
    %v1769 = vcvt.s32.f32 %v1673
    %v1770 = vcvt.s32.f32 %v1674
    %v1771 = vcvt.s32.f32 %v1675
    %v1772 = vcvt.s32.f32 %v1676
    %v1773 = vcvt.s32.f32 %v1677
    %v1774 = vcvt.s32.f32 %v1678
    %v1775 = vcvt.s32.f32 %v1679
    %v1776 = vcvt.s32.f32 %v1680
    %v1777 = vcvt.s32.f32 %v1681
    %v1778 = vcvt.s32.f32 %v1682
    %v1779 = vcvt.s32.f32 %v1683
    %v1780 = vcvt.s32.f32 %v1684
    %v1781 = vcvt.s32.f32 %v1685
    %v1782 = vcvt.s32.f32 %v1686
    %v1783 = vcvt.s32.f32 %v1687
    %v1784 = vcvt.s32.f32 %v1688
    %v1785 = vcvt.s32.f32 %v1689
    %v1786 = vcvt.s32.f32 %v1690
    %v1787 = vcvt.s32.f32 %v1691
    %v1788 = vcvt.s32.f32 %v1692
    %v1789 = vcvt.s32.f32 %v1693
    %v1790 = vcvt.s32.f32 %v1694
    %v1791 = vcvt.s32.f32 %v1695
    %v1792 = vcvt.s32.f32 %v1696
    %v1793 = vcvt.s32.f32 %v1697
    %v1794 = vcvt.s32.f32 %v1698
    %v1795 = vcvt.s32.f32 %v1699
    %v1796 = vcvt.s32.f32 %v1700
    %v1797 = vcvt.s32.f32 %v1701
    %v1798 = vcvt.s32.f32 %v1702
    %v1799 = vcvt.s32.f32 %v1703
    %v1800 = vcvt.s32.f32 %v1704
    %v1801 = vcvt.s32.f32 %v1705
    %v1802 = vcvt.s32.f32 %v1706
    %v1803 = vcvt.s32.f32 %v1707
    %v1804 = vcvt.s32.f32 %v1708
    %v1805 = vcvt.s32.f32 %v1709
    %v1806 = vcvt.s32.f32 %v1710
    %v1807 = vcvt.s32.f32 %v1711
    %v1808 = vcvt.s32.f32 %v1712
    %v1809 = vcvt.s32.f32 %v1713
    %v1810 = vcvt.s32.f32 %v1714
    %v1811 = vcvt.s32.f32 %v1715
    %v1812 = vcvt.s32.f32 %v1716
    %v1813 = vcvt.s32.f32 %v1717
    %v1814 = vcvt.s32.f32 %v1718
    %v1815 = vcvt.s32.f32 %v1719
    %v1816 = vcvt.s32.f32 %v1720
    %v1817 = vcvt.s32.f32 %v1721
    %v1818 = vcvt.s32.f32 %v1722
    %v1819 = vcvt.s32.f32 %v1723
    %v1820 = vcvt.s32.f32 %v1724
    %v1821 = vcvt.s32.f32 %v1725
    %v1822 = vcvt.s32.f32 %v1726
    %v1823 = vcvt.s32.f32 %v1727
    %v1824 = vcvt.s32.f32 %v1728
    %v1825 = vcvt.s32.f32 %v1729
    %v1826 = vcvt.s32.f32 %v1730
    %v1827 = vcvt.s32.f32 %v1731
    %v1828 = vcvt.s32.f32 %v1732
    %v1829 = vcvt.s32.f32 %v1733
    %v1830 = vcvt.s32.f32 %v1734
    %v1831 = vcvt.s32.f32 %v1735
    %v1832 = vcvt.s32.f32 %v1736
    %v1833 = vcvt.s32.f32 %v1737
    %v1834 = vcvt.s32.f32 %v1738
    %v1835 = vcvt.s32.f32 %v1739
    %v1836 = vcvt.s32.f32 %v1740
    %v1837 = vcvt.s32.f32 %v1741
    %v1838 = vcvt.s32.f32 %v1742
    %v1839 = vcvt.s32.f32 %v1743
    %v1840 = vcvt.s32.f32 %v1744
    %v1841 = vcvt.s32.f32 %v1745
    %v1842 = vcvt.s32.f32 %v1746
    %v1843 = vcvt.s32.f32 %v1747
    %v1844 = vcvt.s32.f32 %v1748
    %v1845 = vcvt.s32.f32 %v1749
    %v1846 = vcvt.s32.f32 %v1750
    %v1847 = vcvt.s32.f32 %v1751
    %v1848 = vcvt.s32.f32 %v1752
    %v1849 = vcvt.s32.f32 %v1753
    %v1850 = vcvt.s32.f32 %v1754
    %v1851 = vcvt.s32.f32 %v1755
    %v1852 = vcvt.s32.f32 %v1756
    %v1853 = vcvt.s32.f32 %v1757
    %v1854 = vcvt.s32.f32 %v1758
    %v1855 = vcvt.s32.f32 %v1759
    %v1856 = vld [vmem:[#allocation2] sm:$0x1f]
    %s1857 = scalar_lea.vmem [#allocation2], 192
    %v1858 = vld [vmem:[%s1857] sm:$0x1f]
    %s1859 = scalar_lea.vmem [#allocation2], 384
    %v1860 = vld [vmem:[%s1859] sm:$0x1f]
    %s1861 = scalar_lea.vmem [#allocation2], 576
    %v1862 = vld [vmem:[%s1861] sm:$0xff]
    %v1863 = vld [vmem:[%s1861 + $0x8] sm:$0xff]
    %v1864 = vld [vmem:[%s1861 + $0x10] sm:$0xff]
    %v1865 = vld [vmem:[%s1861 + $0x18] sm:$0xff]
    %s1866 = scalar_lea.vmem [#allocation2], 768
    %v1867 = vld [vmem:[%s1866] sm:$0xff]
    %v1868 = vld [vmem:[%s1866 + $0x8] sm:$0xff]
    %v1869 = vld [vmem:[%s1866 + $0x10] sm:$0xff]
    %v1870 = vld [vmem:[%s1866 + $0x18] sm:$0xff]
    %s1871 = scalar_lea.vmem [#allocation2], 960
    %v1872 = vld [vmem:[%s1871] sm:$0xff]
    %v1873 = vld [vmem:[%s1871 + $0x8] sm:$0xff]
    %v1874 = vld [vmem:[%s1871 + $0x10] sm:$0xff]
    %v1875 = vld [vmem:[%s1871 + $0x18] sm:$0xff]
    %s1876 = scalar_lea.vmem [#allocation2], 1344
    %v1877 = vld [vmem:[%s1876] sm:$0xff]
    %v1878 = vld [vmem:[%s1876 + $0x8] sm:$0xff]
    %v1879 = vld [vmem:[%s1876 + $0x10] sm:$0xff]
    %v1880 = vld [vmem:[%s1876 + $0x18] sm:$0xff]
    %v1881 = vld [vmem:[%s1876 + $0x20] sm:$0xff]
    %v1882 = vld [vmem:[%s1876 + $0x28] sm:$0xff]
    %v1883 = vld [vmem:[%s1876 + $0x30] sm:$0xff]
    %v1884 = vld [vmem:[%s1876 + $0x38] sm:$0xff]
    %v1885 = vld [vmem:[%s1876 + $0x40] sm:$0xff]
    %v1886 = vld [vmem:[%s1876 + $0x48] sm:$0xff]
    %v1887 = vld [vmem:[%s1876 + $0x50] sm:$0xff]
    %v1888 = vld [vmem:[%s1876 + $0x58] sm:$0xff]
    %v1889 = vld [vmem:[%s1876 + $0x60] sm:$0xff]
    %v1890 = vld [vmem:[%s1876 + $0x68] sm:$0xff]
    %v1891 = vld [vmem:[%s1876 + $0x70] sm:$0xff]
    %v1892 = vld [vmem:[%s1876 + $0x78] sm:$0xff]
    %v1893 = vld [vmem:[%s2] sm:$0x1]
    %s1894 = scalar_lea.vmem %s2, 1
    %v1895 = vld [vmem:[%s1894] sm:$0x1]
    %s1896 = scalar_lea.vmem %s2, 2
    %v1897 = vld [vmem:[%s1896] sm:$0x1]
    %s1898 = scalar_lea.vmem %s2, 3
    %v1899 = vld [vmem:[%s1898] sm:$0x1]
    %v1900 = vld [vmem:[%s0] sm:$0xff]
    %v1901 = vld [vmem:[%s0 + $0x8] sm:$0xff]
    %v1902 = vld [vmem:[%s0 + $0x10] sm:$0xff]
    %v1903 = vld [vmem:[%s0 + $0x18] sm:$0xff]
    %v1904 = vld [vmem:[%s0 + $0x20] sm:$0xff]
    %v1905 = vld [vmem:[%s0 + $0x28] sm:$0xff]
    %v1906 = vld [vmem:[%s0 + $0x30] sm:$0xff]
    %v1907 = vld [vmem:[%s0 + $0x38] sm:$0xff]
    %v1908 = vld [vmem:[%s0 + $0x40] sm:$0xff]
    %v1909 = vld [vmem:[%s0 + $0x48] sm:$0xff]
    %v1910 = vld [vmem:[%s0 + $0x50] sm:$0xff]
    %v1911 = vld [vmem:[%s0 + $0x58] sm:$0xff]
    %v1912 = vld [vmem:[%s0 + $0x60] sm:$0xff]
    %v1913 = vld [vmem:[%s0 + $0x68] sm:$0xff]
    %v1914 = vld [vmem:[%s0 + $0x70] sm:$0xff]
    %v1915 = vld [vmem:[%s0 + $0x78] sm:$0xff]
    %v1916 = vld [vmem:[%s0 + $0x80] sm:$0xff]
    %v1917 = vld [vmem:[%s0 + $0x88] sm:$0xff]
    %v1918 = vld [vmem:[%s0 + $0x90] sm:$0xff]
    %v1919 = vld [vmem:[%s0 + $0x98] sm:$0xff]
    %v1920 = vld [vmem:[%s0 + $0xa0] sm:$0xff]
    %v1921 = vld [vmem:[%s0 + $0xa8] sm:$0xff]
    %v1922 = vld [vmem:[%s0 + $0xb0] sm:$0xff]
    %v1923 = vld [vmem:[%s0 + $0xb8] sm:$0xff]
    %v1924 = vld [vmem:[%s0 + $0xc0] sm:$0xff]
    %v1925 = vld [vmem:[%s0 + $0xc8] sm:$0xff]
    %v1926 = vld [vmem:[%s0 + $0xd0] sm:$0xff]
    %v1927 = vld [vmem:[%s0 + $0xd8] sm:$0xff]
    %v1928 = vld [vmem:[%s0 + $0xe0] sm:$0xff]
    %v1929 = vld [vmem:[%s0 + $0xe8] sm:$0xff]
    %v1930 = vld [vmem:[%s0 + $0xf0] sm:$0xff]
    %v1931 = vld [vmem:[%s0 + $0xf8] sm:$0xff]
    %v1932 = vld [vmem:[%s0 + $0x100] sm:$0xff]
    %v1933 = vld [vmem:[%s0 + $0x108] sm:$0xff]
    %v1934 = vld [vmem:[%s0 + $0x110] sm:$0xff]
    %v1935 = vld [vmem:[%s0 + $0x118] sm:$0xff]
    %v1936 = vld [vmem:[%s0 + $0x120] sm:$0xff]
    %v1937 = vld [vmem:[%s0 + $0x128] sm:$0xff]
    %v1938 = vld [vmem:[%s0 + $0x130] sm:$0xff]
    %v1939 = vld [vmem:[%s0 + $0x138] sm:$0xff]
    %v1940 = vld [vmem:[%s0 + $0x140] sm:$0xff]
    %v1941 = vld [vmem:[%s0 + $0x148] sm:$0xff]
    %v1942 = vld [vmem:[%s0 + $0x150] sm:$0xff]
    %v1943 = vld [vmem:[%s0 + $0x158] sm:$0xff]
    %v1944 = vld [vmem:[%s0 + $0x160] sm:$0xff]
    %v1945 = vld [vmem:[%s0 + $0x168] sm:$0xff]
    %v1946 = vld [vmem:[%s0 + $0x170] sm:$0xff]
    %v1947 = vld [vmem:[%s0 + $0x178] sm:$0xff]
    %v1948 = vld [vmem:[%s0 + $0x180] sm:$0xff]
    %v1949 = vld [vmem:[%s0 + $0x188] sm:$0xff]
    %v1950 = vld [vmem:[%s0 + $0x190] sm:$0xff]
    %v1951 = vld [vmem:[%s0 + $0x198] sm:$0xff]
    %v1952 = vld [vmem:[%s0 + $0x1a0] sm:$0xff]
    %v1953 = vld [vmem:[%s0 + $0x1a8] sm:$0xff]
    %v1954 = vld [vmem:[%s0 + $0x1b0] sm:$0xff]
    %v1955 = vld [vmem:[%s0 + $0x1b8] sm:$0xff]
    %v1956 = vld [vmem:[%s0 + $0x1c0] sm:$0xff]
    %v1957 = vld [vmem:[%s0 + $0x1c8] sm:$0xff]
    %v1958 = vld [vmem:[%s0 + $0x1d0] sm:$0xff]
    %v1959 = vld [vmem:[%s0 + $0x1d8] sm:$0xff]
    %v1960 = vld [vmem:[%s0 + $0x1e0] sm:$0xff]
    %v1961 = vld [vmem:[%s0 + $0x1e8] sm:$0xff]
    %v1962 = vld [vmem:[%s0 + $0x1f0] sm:$0xff]
    %v1963 = vld [vmem:[%s0 + $0x1f8] sm:$0xff]
    %v1964 = vld [vmem:[%s0 + $0x200] sm:$0xff]
    %v1965 = vld [vmem:[%s0 + $0x208] sm:$0xff]
    %v1966 = vld [vmem:[%s0 + $0x210] sm:$0xff]
    %v1967 = vld [vmem:[%s0 + $0x218] sm:$0xff]
    %v1968 = vld [vmem:[%s0 + $0x220] sm:$0xff]
    %v1969 = vld [vmem:[%s0 + $0x228] sm:$0xff]
    %v1970 = vld [vmem:[%s0 + $0x230] sm:$0xff]
    %v1971 = vld [vmem:[%s0 + $0x238] sm:$0xff]
    %v1972 = vld [vmem:[%s0 + $0x240] sm:$0xff]
    %v1973 = vld [vmem:[%s0 + $0x248] sm:$0xff]
    %v1974 = vld [vmem:[%s0 + $0x250] sm:$0xff]
    %v1975 = vld [vmem:[%s0 + $0x258] sm:$0xff]
    %v1976 = vld [vmem:[%s0 + $0x260] sm:$0xff]
    %v1977 = vld [vmem:[%s0 + $0x268] sm:$0xff]
    %v1978 = vld [vmem:[%s0 + $0x270] sm:$0xff]
    %v1979 = vld [vmem:[%s0 + $0x278] sm:$0xff]
    %v1980 = vld [vmem:[%s0 + $0x280] sm:$0xff]
    %v1981 = vld [vmem:[%s0 + $0x288] sm:$0xff]
    %v1982 = vld [vmem:[%s0 + $0x290] sm:$0xff]
    %v1983 = vld [vmem:[%s0 + $0x298] sm:$0xff]
    %v1984 = vld [vmem:[%s0 + $0x2a0] sm:$0xff]
    %v1985 = vld [vmem:[%s0 + $0x2a8] sm:$0xff]
    %v1986 = vld [vmem:[%s0 + $0x2b0] sm:$0xff]
    %v1987 = vld [vmem:[%s0 + $0x2b8] sm:$0xff]
    %v1988 = vld [vmem:[%s0 + $0x2c0] sm:$0xff]
    %v1989 = vld [vmem:[%s0 + $0x2c8] sm:$0xff]
    %v1990 = vld [vmem:[%s0 + $0x2d0] sm:$0xff]
    %v1991 = vld [vmem:[%s0 + $0x2d8] sm:$0xff]
    %v1992 = vld [vmem:[%s0 + $0x2e0] sm:$0xff]
    %v1993 = vld [vmem:[%s0 + $0x2e8] sm:$0xff]
    %v1994 = vld [vmem:[%s0 + $0x2f0] sm:$0xff]
    %v1995 = vld [vmem:[%s0 + $0x2f8] sm:$0xff]
    %v1996 = vrot.slane %v1900, 7
    %v1997 = vrot.slane %v1901, 7
    %v1998 = vrot.slane %v1902, 7
    %v1999 = vrot.slane %v1903, 7
    %v2000 = vrot.slane %v1904, 7
    %v2001 = vrot.slane %v1905, 7
    %v2002 = vrot.slane %v1906, 7
    %v2003 = vrot.slane %v1907, 7
    %v2004 = vrot.slane %v1908, 7
    %v2005 = vrot.slane %v1909, 7
    %v2006 = vrot.slane %v1910, 7
    %v2007 = vrot.slane %v1911, 7
    %v2008 = vrot.slane %v1912, 7
    %v2009 = vrot.slane %v1913, 7
    %v2010 = vrot.slane %v1914, 7
    %v2011 = vrot.slane %v1915, 7
    %v2012 = vrot.slane %v1916, 7
    %v2013 = vrot.slane %v1917, 7
    %v2014 = vrot.slane %v1918, 7
    %v2015 = vrot.slane %v1919, 7
    %v2016 = vrot.slane %v1920, 7
    %v2017 = vrot.slane %v1921, 7
    %v2018 = vrot.slane %v1922, 7
    %v2019 = vrot.slane %v1923, 7
    %v2020 = vrot.slane %v1924, 7
    %v2021 = vrot.slane %v1925, 7
    %v2022 = vrot.slane %v1926, 7
    %v2023 = vrot.slane %v1927, 7
    %v2024 = vrot.slane %v1928, 7
    %v2025 = vrot.slane %v1929, 7
    %v2026 = vrot.slane %v1930, 7
    %v2027 = vrot.slane %v1931, 7
    %v2028 = vrot.slane %v1932, 7
    %v2029 = vrot.slane %v1933, 7
    %v2030 = vrot.slane %v1934, 7
    %v2031 = vrot.slane %v1935, 7
    %v2032 = vrot.slane %v1936, 7
    %v2033 = vrot.slane %v1937, 7
    %v2034 = vrot.slane %v1938, 7
    %v2035 = vrot.slane %v1939, 7
    %v2036 = vrot.slane %v1940, 7
    %v2037 = vrot.slane %v1941, 7
    %v2038 = vrot.slane %v1942, 7
    %v2039 = vrot.slane %v1943, 7
    %v2040 = vrot.slane %v1944, 7
    %v2041 = vrot.slane %v1945, 7
    %v2042 = vrot.slane %v1946, 7
    %v2043 = vrot.slane %v1947, 7
    %v2044 = vrot.slane %v1948, 7
    %v2045 = vrot.slane %v1949, 7
    %v2046 = vrot.slane %v1950, 7
    %v2047 = vrot.slane %v1951, 7
    %v2048 = vrot.slane %v1952, 7
    %v2049 = vrot.slane %v1953, 7
    %v2050 = vrot.slane %v1954, 7
    %v2051 = vrot.slane %v1955, 7
    %v2052 = vrot.slane %v1956, 7
    %v2053 = vrot.slane %v1957, 7
    %v2054 = vrot.slane %v1958, 7
    %v2055 = vrot.slane %v1959, 7
    %v2056 = vrot.slane %v1960, 7
    %v2057 = vrot.slane %v1961, 7
    %v2058 = vrot.slane %v1962, 7
    %v2059 = vrot.slane %v1963, 7
    %v2060 = vrot.slane %v1964, 7
    %v2061 = vrot.slane %v1965, 7
    %v2062 = vrot.slane %v1966, 7
    %v2063 = vrot.slane %v1967, 7
    %v2064 = vrot.slane %v1968, 7
    %v2065 = vrot.slane %v1969, 7
    %v2066 = vrot.slane %v1970, 7
    %v2067 = vrot.slane %v1971, 7
    %v2068 = vrot.slane %v1972, 7
    %v2069 = vrot.slane %v1973, 7
    %v2070 = vrot.slane %v1974, 7
    %v2071 = vrot.slane %v1975, 7
    %v2072 = vrot.slane %v1976, 7
    %v2073 = vrot.slane %v1977, 7
    %v2074 = vrot.slane %v1978, 7
    %v2075 = vrot.slane %v1979, 7
    %v2076 = vrot.slane %v1980, 7
    %v2077 = vrot.slane %v1981, 7
    %v2078 = vrot.slane %v1982, 7
    %v2079 = vrot.slane %v1983, 7
    %v2080 = vrot.slane %v1984, 7
    %v2081 = vrot.slane %v1985, 7
    %v2082 = vrot.slane %v1986, 7
    %v2083 = vrot.slane %v1987, 7
    %v2084 = vrot.slane %v1988, 7
    %v2085 = vrot.slane %v1989, 7
    %v2086 = vrot.slane %v1990, 7
    %v2087 = vrot.slane %v1991, 7
    %v2088 = vrot.slane %v1992, 7
    %v2089 = vrot.slane %v1993, 7
    %v2090 = vrot.slane %v1994, 7
    %v2091 = vrot.slane %v1995, 7
    %vm2092 = vcmp.lt.s32.totalorder %v32, 1
    %v2093 = vsel %vm2092, %v2090, %v2091
    %v2094 = vsel %vm2092, %v2089, %v2090
    %v2095 = vsel %vm2092, %v2088, %v2089
    %v2096 = vsel %vm2092, %v2087, %v2088
    %v2097 = vsel %vm2092, %v2086, %v2087
    %v2098 = vsel %vm2092, %v2085, %v2086
    %v2099 = vsel %vm2092, %v2084, %v2085
    %v2100 = vsel %vm2092, %v2083, %v2084
    %v2101 = vsel %vm2092, %v2082, %v2083
    %v2102 = vsel %vm2092, %v2081, %v2082
    %v2103 = vsel %vm2092, %v2080, %v2081
    %v2104 = vsel %vm2092, %v2079, %v2080
    %v2105 = vsel %vm2092, %v2078, %v2079
    %v2106 = vsel %vm2092, %v2077, %v2078
    %v2107 = vsel %vm2092, %v2076, %v2077
    %v2108 = vsel %vm2092, %v2075, %v2076
    %v2109 = vsel %vm2092, %v2074, %v2075
    %v2110 = vsel %vm2092, %v2073, %v2074
    %v2111 = vsel %vm2092, %v2072, %v2073
    %v2112 = vsel %vm2092, %v2071, %v2072
    %v2113 = vsel %vm2092, %v2070, %v2071
    %v2114 = vsel %vm2092, %v2069, %v2070
    %v2115 = vsel %vm2092, %v2068, %v2069
    %v2116 = vsel %vm2092, %v2067, %v2068
    %v2117 = vsel %vm2092, %v2066, %v2067
    %v2118 = vsel %vm2092, %v2065, %v2066
    %v2119 = vsel %vm2092, %v2064, %v2065
    %v2120 = vsel %vm2092, %v2063, %v2064
    %v2121 = vsel %vm2092, %v2062, %v2063
    %v2122 = vsel %vm2092, %v2061, %v2062
    %v2123 = vsel %vm2092, %v2060, %v2061
    %v2124 = vsel %vm2092, %v2059, %v2060
    %v2125 = vsel %vm2092, %v2058, %v2059
    %v2126 = vsel %vm2092, %v2057, %v2058
    %v2127 = vsel %vm2092, %v2056, %v2057
    %v2128 = vsel %vm2092, %v2055, %v2056
    %v2129 = vsel %vm2092, %v2054, %v2055
    %v2130 = vsel %vm2092, %v2053, %v2054
    %v2131 = vsel %vm2092, %v2052, %v2053
    %v2132 = vsel %vm2092, %v2051, %v2052
    %v2133 = vsel %vm2092, %v2050, %v2051
    %v2134 = vsel %vm2092, %v2049, %v2050
    %v2135 = vsel %vm2092, %v2048, %v2049
    %v2136 = vsel %vm2092, %v2047, %v2048
    %v2137 = vsel %vm2092, %v2046, %v2047
    %v2138 = vsel %vm2092, %v2045, %v2046
    %v2139 = vsel %vm2092, %v2044, %v2045
    %v2140 = vsel %vm2092, %v2043, %v2044
    %v2141 = vsel %vm2092, %v2042, %v2043
    %v2142 = vsel %vm2092, %v2041, %v2042
    %v2143 = vsel %vm2092, %v2040, %v2041
    %v2144 = vsel %vm2092, %v2039, %v2040
    %v2145 = vsel %vm2092, %v2038, %v2039
    %v2146 = vsel %vm2092, %v2037, %v2038
    %v2147 = vsel %vm2092, %v2036, %v2037
    %v2148 = vsel %vm2092, %v2035, %v2036
    %v2149 = vsel %vm2092, %v2034, %v2035
    %v2150 = vsel %vm2092, %v2033, %v2034
    %v2151 = vsel %vm2092, %v2032, %v2033
    %v2152 = vsel %vm2092, %v2031, %v2032
    %v2153 = vsel %vm2092, %v2030, %v2031
    %v2154 = vsel %vm2092, %v2029, %v2030
    %v2155 = vsel %vm2092, %v2028, %v2029
    %v2156 = vsel %vm2092, %v2027, %v2028
    %v2157 = vsel %vm2092, %v2026, %v2027
    %v2158 = vsel %vm2092, %v2025, %v2026
    %v2159 = vsel %vm2092, %v2024, %v2025
    %v2160 = vsel %vm2092, %v2023, %v2024
    %v2161 = vsel %vm2092, %v2022, %v2023
    %v2162 = vsel %vm2092, %v2021, %v2022
    %v2163 = vsel %vm2092, %v2020, %v2021
    %v2164 = vsel %vm2092, %v2019, %v2020
    %v2165 = vsel %vm2092, %v2018, %v2019
    %v2166 = vsel %vm2092, %v2017, %v2018
    %v2167 = vsel %vm2092, %v2016, %v2017
    %v2168 = vsel %vm2092, %v2015, %v2016
    %v2169 = vsel %vm2092, %v2014, %v2015
    %v2170 = vsel %vm2092, %v2013, %v2014
    %v2171 = vsel %vm2092, %v2012, %v2013
    %v2172 = vsel %vm2092, %v2011, %v2012
    %v2173 = vsel %vm2092, %v2010, %v2011
    %v2174 = vsel %vm2092, %v2009, %v2010
    %v2175 = vsel %vm2092, %v2008, %v2009
    %v2176 = vsel %vm2092, %v2007, %v2008
    %v2177 = vsel %vm2092, %v2006, %v2007
    %v2178 = vsel %vm2092, %v2005, %v2006
    %v2179 = vsel %vm2092, %v2004, %v2005
    %v2180 = vsel %vm2092, %v2003, %v2004
    %v2181 = vsel %vm2092, %v2002, %v2003
    %v2182 = vsel %vm2092, %v2001, %v2002
    %v2183 = vsel %vm2092, %v2000, %v2001
    %v2184 = vsel %vm2092, %v1999, %v2000
    %v2185 = vsel %vm2092, %v1998, %v1999
    %v2186 = vsel %vm2092, %v1997, %v1998
    %v2187 = vsel %vm2092, %v1996, %v1997
    %v2188 = vsel %vm2092, %v2091, %v1996
    %v2189 = vmul.f32 %v2188, %v1472
    %v2190 = vmul.f32 %v2187, %v1473
    %v2191 = vmul.f32 %v2186, %v1474
    %v2192 = vmul.f32 %v2185, %v1475
    %v2193 = vmul.f32 %v2184, %v1476
    %v2194 = vmul.f32 %v2183, %v1477
    %v2195 = vmul.f32 %v2182, %v1478
    %v2196 = vmul.f32 %v2181, %v1479
    %v2197 = vmul.f32 %v2180, %v1480
    %v2198 = vmul.f32 %v2179, %v1481
    %v2199 = vmul.f32 %v2178, %v1482
    %v2200 = vmul.f32 %v2177, %v1483
    %v2201 = vmul.f32 %v2176, %v1484
    %v2202 = vmul.f32 %v2175, %v1485
    %v2203 = vmul.f32 %v2174, %v1486
    %v2204 = vmul.f32 %v2173, %v1487
    %v2205 = vmul.f32 %v2172, %v1488
    %v2206 = vmul.f32 %v2171, %v1489
    %v2207 = vmul.f32 %v2170, %v1490
    %v2208 = vmul.f32 %v2169, %v1491
    %v2209 = vmul.f32 %v2168, %v1492
    %v2210 = vmul.f32 %v2167, %v1493
    %v2211 = vmul.f32 %v2166, %v1494
    %v2212 = vmul.f32 %v2165, %v1495
    %v2213 = vmul.f32 %v2164, %v1496
    %v2214 = vmul.f32 %v2163, %v1497
    %v2215 = vmul.f32 %v2162, %v1498
    %v2216 = vmul.f32 %v2161, %v1499
    %v2217 = vmul.f32 %v2160, %v1500
    %v2218 = vmul.f32 %v2159, %v1501
    %v2219 = vmul.f32 %v2158, %v1502
    %v2220 = vmul.f32 %v2157, %v1503
    %v2221 = vmul.f32 %v2156, %v1504
    %v2222 = vmul.f32 %v2155, %v1505
    %v2223 = vmul.f32 %v2154, %v1506
    %v2224 = vmul.f32 %v2153, %v1507
    %v2225 = vmul.f32 %v2152, %v1508
    %v2226 = vmul.f32 %v2151, %v1509
    %v2227 = vmul.f32 %v2150, %v1510
    %v2228 = vmul.f32 %v2149, %v1511
    %v2229 = vmul.f32 %v2148, %v1512
    %v2230 = vmul.f32 %v2147, %v1513
    %v2231 = vmul.f32 %v2146, %v1514
    %v2232 = vmul.f32 %v2145, %v1515
    %v2233 = vmul.f32 %v2144, %v1516
    %v2234 = vmul.f32 %v2143, %v1517
    %v2235 = vmul.f32 %v2142, %v1518
    %v2236 = vmul.f32 %v2141, %v1519
    %v2237 = vmul.f32 %v2140, %v1520
    %v2238 = vmul.f32 %v2139, %v1521
    %v2239 = vmul.f32 %v2138, %v1522
    %v2240 = vmul.f32 %v2137, %v1523
    %v2241 = vmul.f32 %v2136, %v1524
    %v2242 = vmul.f32 %v2135, %v1525
    %v2243 = vmul.f32 %v2134, %v1526
    %v2244 = vmul.f32 %v2133, %v1527
    %v2245 = vmul.f32 %v2132, %v1528
    %v2246 = vmul.f32 %v2131, %v1529
    %v2247 = vmul.f32 %v2130, %v1530
    %v2248 = vmul.f32 %v2129, %v1531
    %v2249 = vmul.f32 %v2128, %v1532
    %v2250 = vmul.f32 %v2127, %v1533
    %v2251 = vmul.f32 %v2126, %v1534
    %v2252 = vmul.f32 %v2125, %v1535
    %v2253 = vmul.f32 %v2124, %v1536
    %v2254 = vmul.f32 %v2123, %v1537
    %v2255 = vmul.f32 %v2122, %v1538
    %v2256 = vmul.f32 %v2121, %v1539
    %v2257 = vmul.f32 %v2120, %v1540
    %v2258 = vmul.f32 %v2119, %v1541
    %v2259 = vmul.f32 %v2118, %v1542
    %v2260 = vmul.f32 %v2117, %v1543
    %v2261 = vmul.f32 %v2116, %v1544
    %v2262 = vmul.f32 %v2115, %v1545
    %v2263 = vmul.f32 %v2114, %v1546
    %v2264 = vmul.f32 %v2113, %v1547
    %v2265 = vmul.f32 %v2112, %v1548
    %v2266 = vmul.f32 %v2111, %v1549
    %v2267 = vmul.f32 %v2110, %v1550
    %v2268 = vmul.f32 %v2109, %v1551
    %v2269 = vmul.f32 %v2108, %v1552
    %v2270 = vmul.f32 %v2107, %v1553
    %v2271 = vmul.f32 %v2106, %v1554
    %v2272 = vmul.f32 %v2105, %v1555
    %v2273 = vmul.f32 %v2104, %v1556
    %v2274 = vmul.f32 %v2103, %v1557
    %v2275 = vmul.f32 %v2102, %v1558
    %v2276 = vmul.f32 %v2101, %v1559
    %v2277 = vmul.f32 %v2100, %v1560
    %v2278 = vmul.f32 %v2099, %v1561
    %v2279 = vmul.f32 %v2098, %v1562
    %v2280 = vmul.f32 %v2097, %v1563
    %v2281 = vmul.f32 %v2096, %v1564
    %v2282 = vmul.f32 %v2095, %v1565
    %v2283 = vmul.f32 %v2094, %v1566
    %v2284 = vmul.f32 %v2093, %v1567
    %v2285 = vrot.slane %v1900, 1
    %v2286 = vrot.slane %v1901, 1
    %v2287 = vrot.slane %v1902, 1
    %v2288 = vrot.slane %v1903, 1
    %v2289 = vrot.slane %v1904, 1
    %v2290 = vrot.slane %v1905, 1
    %v2291 = vrot.slane %v1906, 1
    %v2292 = vrot.slane %v1907, 1
    %v2293 = vrot.slane %v1908, 1
    %v2294 = vrot.slane %v1909, 1
    %v2295 = vrot.slane %v1910, 1
    %v2296 = vrot.slane %v1911, 1
    %v2297 = vrot.slane %v1912, 1
    %v2298 = vrot.slane %v1913, 1
    %v2299 = vrot.slane %v1914, 1
    %v2300 = vrot.slane %v1915, 1
    %v2301 = vrot.slane %v1916, 1
    %v2302 = vrot.slane %v1917, 1
    %v2303 = vrot.slane %v1918, 1
    %v2304 = vrot.slane %v1919, 1
    %v2305 = vrot.slane %v1920, 1
    %v2306 = vrot.slane %v1921, 1
    %v2307 = vrot.slane %v1922, 1
    %v2308 = vrot.slane %v1923, 1
    %v2309 = vrot.slane %v1924, 1
    %v2310 = vrot.slane %v1925, 1
    %v2311 = vrot.slane %v1926, 1
    %v2312 = vrot.slane %v1927, 1
    %v2313 = vrot.slane %v1928, 1
    %v2314 = vrot.slane %v1929, 1
    %v2315 = vrot.slane %v1930, 1
    %v2316 = vrot.slane %v1931, 1
    %v2317 = vrot.slane %v1932, 1
    %v2318 = vrot.slane %v1933, 1
    %v2319 = vrot.slane %v1934, 1
    %v2320 = vrot.slane %v1935, 1
    %v2321 = vrot.slane %v1936, 1
    %v2322 = vrot.slane %v1937, 1
    %v2323 = vrot.slane %v1938, 1
    %v2324 = vrot.slane %v1939, 1
    %v2325 = vrot.slane %v1940, 1
    %v2326 = vrot.slane %v1941, 1
    %v2327 = vrot.slane %v1942, 1
    %v2328 = vrot.slane %v1943, 1
    %v2329 = vrot.slane %v1944, 1
    %v2330 = vrot.slane %v1945, 1
    %v2331 = vrot.slane %v1946, 1
    %v2332 = vrot.slane %v1947, 1
    %v2333 = vrot.slane %v1948, 1
    %v2334 = vrot.slane %v1949, 1
    %v2335 = vrot.slane %v1950, 1
    %v2336 = vrot.slane %v1951, 1
    %v2337 = vrot.slane %v1952, 1
    %v2338 = vrot.slane %v1953, 1
    %v2339 = vrot.slane %v1954, 1
    %v2340 = vrot.slane %v1955, 1
    %v2341 = vrot.slane %v1956, 1
    %v2342 = vrot.slane %v1957, 1
    %v2343 = vrot.slane %v1958, 1
    %v2344 = vrot.slane %v1959, 1
    %v2345 = vrot.slane %v1960, 1
    %v2346 = vrot.slane %v1961, 1
    %v2347 = vrot.slane %v1962, 1
    %v2348 = vrot.slane %v1963, 1
    %v2349 = vrot.slane %v1964, 1
    %v2350 = vrot.slane %v1965, 1
    %v2351 = vrot.slane %v1966, 1
    %v2352 = vrot.slane %v1967, 1
    %v2353 = vrot.slane %v1968, 1
    %v2354 = vrot.slane %v1969, 1
    %v2355 = vrot.slane %v1970, 1
    %v2356 = vrot.slane %v1971, 1
    %v2357 = vrot.slane %v1972, 1
    %v2358 = vrot.slane %v1973, 1
    %v2359 = vrot.slane %v1974, 1
    %v2360 = vrot.slane %v1975, 1
    %v2361 = vrot.slane %v1976, 1
    %v2362 = vrot.slane %v1977, 1
    %v2363 = vrot.slane %v1978, 1
    %v2364 = vrot.slane %v1979, 1
    %v2365 = vrot.slane %v1980, 1
    %v2366 = vrot.slane %v1981, 1
    %v2367 = vrot.slane %v1982, 1
    %v2368 = vrot.slane %v1983, 1
    %v2369 = vrot.slane %v1984, 1
    %v2370 = vrot.slane %v1985, 1
    %v2371 = vrot.slane %v1986, 1
    %v2372 = vrot.slane %v1987, 1
    %v2373 = vrot.slane %v1988, 1
    %v2374 = vrot.slane %v1989, 1
    %v2375 = vrot.slane %v1990, 1
    %v2376 = vrot.slane %v1991, 1
    %v2377 = vrot.slane %v1992, 1
    %v2378 = vrot.slane %v1993, 1
    %v2379 = vrot.slane %v1994, 1
    %v2380 = vrot.slane %v1995, 1
    %vm2381 = vcmp.lt.s32.totalorder %v32, 7
    %v2382 = vsel %vm2381, %v2379, %v2380
    %v2383 = vsel %vm2381, %v2378, %v2379
    %v2384 = vsel %vm2381, %v2377, %v2378
    %v2385 = vsel %vm2381, %v2376, %v2377
    %v2386 = vsel %vm2381, %v2375, %v2376
    %v2387 = vsel %vm2381, %v2374, %v2375
    %v2388 = vsel %vm2381, %v2373, %v2374
    %v2389 = vsel %vm2381, %v2372, %v2373
    %v2390 = vsel %vm2381, %v2371, %v2372
    %v2391 = vsel %vm2381, %v2370, %v2371
    %v2392 = vsel %vm2381, %v2369, %v2370
    %v2393 = vsel %vm2381, %v2368, %v2369
    %v2394 = vsel %vm2381, %v2367, %v2368
    %v2395 = vsel %vm2381, %v2366, %v2367
    %v2396 = vsel %vm2381, %v2365, %v2366
    %v2397 = vsel %vm2381, %v2364, %v2365
    %v2398 = vsel %vm2381, %v2363, %v2364
    %v2399 = vsel %vm2381, %v2362, %v2363
    %v2400 = vsel %vm2381, %v2361, %v2362
    %v2401 = vsel %vm2381, %v2360, %v2361
    %v2402 = vsel %vm2381, %v2359, %v2360
    %v2403 = vsel %vm2381, %v2358, %v2359
    %v2404 = vsel %vm2381, %v2357, %v2358
    %v2405 = vsel %vm2381, %v2356, %v2357
    %v2406 = vsel %vm2381, %v2355, %v2356
    %v2407 = vsel %vm2381, %v2354, %v2355
    %v2408 = vsel %vm2381, %v2353, %v2354
    %v2409 = vsel %vm2381, %v2352, %v2353
    %v2410 = vsel %vm2381, %v2351, %v2352
    %v2411 = vsel %vm2381, %v2350, %v2351
    %v2412 = vsel %vm2381, %v2349, %v2350
    %v2413 = vsel %vm2381, %v2348, %v2349
    %v2414 = vsel %vm2381, %v2347, %v2348
    %v2415 = vsel %vm2381, %v2346, %v2347
    %v2416 = vsel %vm2381, %v2345, %v2346
    %v2417 = vsel %vm2381, %v2344, %v2345
    %v2418 = vsel %vm2381, %v2343, %v2344
    %v2419 = vsel %vm2381, %v2342, %v2343
    %v2420 = vsel %vm2381, %v2341, %v2342
    %v2421 = vsel %vm2381, %v2340, %v2341
    %v2422 = vsel %vm2381, %v2339, %v2340
    %v2423 = vsel %vm2381, %v2338, %v2339
    %v2424 = vsel %vm2381, %v2337, %v2338
    %v2425 = vsel %vm2381, %v2336, %v2337
    %v2426 = vsel %vm2381, %v2335, %v2336
    %v2427 = vsel %vm2381, %v2334, %v2335
    %v2428 = vsel %vm2381, %v2333, %v2334
    %v2429 = vsel %vm2381, %v2332, %v2333
    %v2430 = vsel %vm2381, %v2331, %v2332
    %v2431 = vsel %vm2381, %v2330, %v2331
    %v2432 = vsel %vm2381, %v2329, %v2330
    %v2433 = vsel %vm2381, %v2328, %v2329
    %v2434 = vsel %vm2381, %v2327, %v2328
    %v2435 = vsel %vm2381, %v2326, %v2327
    %v2436 = vsel %vm2381, %v2325, %v2326
    %v2437 = vsel %vm2381, %v2324, %v2325
    %v2438 = vsel %vm2381, %v2323, %v2324
    %v2439 = vsel %vm2381, %v2322, %v2323
    %v2440 = vsel %vm2381, %v2321, %v2322
    %v2441 = vsel %vm2381, %v2320, %v2321
    %v2442 = vsel %vm2381, %v2319, %v2320
    %v2443 = vsel %vm2381, %v2318, %v2319
    %v2444 = vsel %vm2381, %v2317, %v2318
    %v2445 = vsel %vm2381, %v2316, %v2317
    %v2446 = vsel %vm2381, %v2315, %v2316
    %v2447 = vsel %vm2381, %v2314, %v2315
    %v2448 = vsel %vm2381, %v2313, %v2314
    %v2449 = vsel %vm2381, %v2312, %v2313
    %v2450 = vsel %vm2381, %v2311, %v2312
    %v2451 = vsel %vm2381, %v2310, %v2311
    %v2452 = vsel %vm2381, %v2309, %v2310
    %v2453 = vsel %vm2381, %v2308, %v2309
    %v2454 = vsel %vm2381, %v2307, %v2308
    %v2455 = vsel %vm2381, %v2306, %v2307
    %v2456 = vsel %vm2381, %v2305, %v2306
    %v2457 = vsel %vm2381, %v2304, %v2305
    %v2458 = vsel %vm2381, %v2303, %v2304
    %v2459 = vsel %vm2381, %v2302, %v2303
    %v2460 = vsel %vm2381, %v2301, %v2302
    %v2461 = vsel %vm2381, %v2300, %v2301
    %v2462 = vsel %vm2381, %v2299, %v2300
    %v2463 = vsel %vm2381, %v2298, %v2299
    %v2464 = vsel %vm2381, %v2297, %v2298
    %v2465 = vsel %vm2381, %v2296, %v2297
    %v2466 = vsel %vm2381, %v2295, %v2296
    %v2467 = vsel %vm2381, %v2294, %v2295
    %v2468 = vsel %vm2381, %v2293, %v2294
    %v2469 = vsel %vm2381, %v2292, %v2293
    %v2470 = vsel %vm2381, %v2291, %v2292
    %v2471 = vsel %vm2381, %v2290, %v2291
    %v2472 = vsel %vm2381, %v2289, %v2290
    %v2473 = vsel %vm2381, %v2288, %v2289
    %v2474 = vsel %vm2381, %v2287, %v2288
    %v2475 = vsel %vm2381, %v2286, %v2287
    %v2476 = vsel %vm2381, %v2285, %v2286
    %v2477 = vsel %vm2381, %v2380, %v2285
    %v2478 = vmul.f32 %v2476, %v1760
    %v2479 = vmul.f32 %v2475, %v1761
    %v2480 = vmul.f32 %v2474, %v1762
    %v2481 = vmul.f32 %v2473, %v1763
    %v2482 = vmul.f32 %v2472, %v1764
    %v2483 = vmul.f32 %v2471, %v1765
    %v2484 = vmul.f32 %v2470, %v1766
    %v2485 = vmul.f32 %v2469, %v1767
    %v2486 = vmul.f32 %v2468, %v1768
    %v2487 = vmul.f32 %v2467, %v1769
    %v2488 = vmul.f32 %v2466, %v1770
    %v2489 = vmul.f32 %v2465, %v1771
    %v2490 = vmul.f32 %v2464, %v1772
    %v2491 = vmul.f32 %v2463, %v1773
    %v2492 = vmul.f32 %v2462, %v1774
    %v2493 = vmul.f32 %v2461, %v1775
    %v2494 = vmul.f32 %v2460, %v1776
    %v2495 = vmul.f32 %v2459, %v1777
    %v2496 = vmul.f32 %v2458, %v1778
    %v2497 = vmul.f32 %v2457, %v1779
    %v2498 = vmul.f32 %v2456, %v1780
    %v2499 = vmul.f32 %v2455, %v1781
    %v2500 = vmul.f32 %v2454, %v1782
    %v2501 = vmul.f32 %v2453, %v1783
    %v2502 = vmul.f32 %v2452, %v1784
    %v2503 = vmul.f32 %v2451, %v1785
    %v2504 = vmul.f32 %v2450, %v1786
    %v2505 = vmul.f32 %v2449, %v1787
    %v2506 = vmul.f32 %v2448, %v1788
    %v2507 = vmul.f32 %v2447, %v1789
    %v2508 = vmul.f32 %v2446, %v1790
    %v2509 = vmul.f32 %v2445, %v1791
    %v2510 = vmul.f32 %v2444, %v1792
    %v2511 = vmul.f32 %v2443, %v1793
    %v2512 = vmul.f32 %v2442, %v1794
    %v2513 = vmul.f32 %v2441, %v1795
    %v2514 = vmul.f32 %v2440, %v1796
    %v2515 = vmul.f32 %v2439, %v1797
    %v2516 = vmul.f32 %v2438, %v1798
    %v2517 = vmul.f32 %v2437, %v1799
    %v2518 = vmul.f32 %v2436, %v1800
    %v2519 = vmul.f32 %v2435, %v1801
    %v2520 = vmul.f32 %v2434, %v1802
    %v2521 = vmul.f32 %v2433, %v1803
    %v2522 = vmul.f32 %v2432, %v1804
    %v2523 = vmul.f32 %v2431, %v1805
    %v2524 = vmul.f32 %v2430, %v1806
    %v2525 = vmul.f32 %v2429, %v1807
    %v2526 = vmul.f32 %v2428, %v1808
    %v2527 = vmul.f32 %v2427, %v1809
    %v2528 = vmul.f32 %v2426, %v1810
    %v2529 = vmul.f32 %v2425, %v1811
    %v2530 = vmul.f32 %v2424, %v1812
    %v2531 = vmul.f32 %v2423, %v1813
    %v2532 = vmul.f32 %v2422, %v1814
    %v2533 = vmul.f32 %v2421, %v1815
    %v2534 = vmul.f32 %v2420, %v1816
    %v2535 = vmul.f32 %v2419, %v1817
    %v2536 = vmul.f32 %v2418, %v1818
    %v2537 = vmul.f32 %v2417, %v1819
    %v2538 = vmul.f32 %v2416, %v1820
    %v2539 = vmul.f32 %v2415, %v1821
    %v2540 = vmul.f32 %v2414, %v1822
    %v2541 = vmul.f32 %v2413, %v1823
    %v2542 = vmul.f32 %v2412, %v1824
    %v2543 = vmul.f32 %v2411, %v1825
    %v2544 = vmul.f32 %v2410, %v1826
    %v2545 = vmul.f32 %v2409, %v1827
    %v2546 = vmul.f32 %v2408, %v1828
    %v2547 = vmul.f32 %v2407, %v1829
    %v2548 = vmul.f32 %v2406, %v1830
    %v2549 = vmul.f32 %v2405, %v1831
    %v2550 = vmul.f32 %v2404, %v1832
    %v2551 = vmul.f32 %v2403, %v1833
    %v2552 = vmul.f32 %v2402, %v1834
    %v2553 = vmul.f32 %v2401, %v1835
    %v2554 = vmul.f32 %v2400, %v1836
    %v2555 = vmul.f32 %v2399, %v1837
    %v2556 = vmul.f32 %v2398, %v1838
    %v2557 = vmul.f32 %v2397, %v1839
    %v2558 = vmul.f32 %v2396, %v1840
    %v2559 = vmul.f32 %v2395, %v1841
    %v2560 = vmul.f32 %v2394, %v1842
    %v2561 = vmul.f32 %v2393, %v1843
    %v2562 = vmul.f32 %v2392, %v1844
    %v2563 = vmul.f32 %v2391, %v1845
    %v2564 = vmul.f32 %v2390, %v1846
    %v2565 = vmul.f32 %v2389, %v1847
    %v2566 = vmul.f32 %v2388, %v1848
    %v2567 = vmul.f32 %v2387, %v1849
    %v2568 = vmul.f32 %v2386, %v1850
    %v2569 = vmul.f32 %v2385, %v1851
    %v2570 = vmul.f32 %v2384, %v1852
    %v2571 = vmul.f32 %v2383, %v1853
    %v2572 = vmul.f32 %v2382, %v1854
    %v2573 = vmul.f32 %v2477, %v1855
    %vm2574 = vcmask 39936
    %v2576 = vsel %vm2574, %v1900, 0
    %v2579 = vsel %vm2574, %v1901, 0
    %v2582 = vsel %vm2574, %v1902, 0
    %v2585 = vsel %vm2574, %v1903, 0
    %v2588 = vsel %vm2574, %v1904, 0
    %v2591 = vsel %vm2574, %v1905, 0
    %v2594 = vsel %vm2574, %v1906, 0
    %v2597 = vsel %vm2574, %v1907, 0
    %v2600 = vsel %vm2574, %v1908, 0
    %v2603 = vsel %vm2574, %v1909, 0
    %v2606 = vsel %vm2574, %v1910, 0
    %v2609 = vsel %vm2574, %v1911, 0
    %v2612 = vsel %vm2574, %v1912, 0
    %v2615 = vsel %vm2574, %v1913, 0
    %v2618 = vsel %vm2574, %v1914, 0
    %v2621 = vsel %vm2574, %v1915, 0
    %v2624 = vsel %vm2574, %v1916, 0
    %v2627 = vsel %vm2574, %v1917, 0
    %v2630 = vsel %vm2574, %v1918, 0
    %v2633 = vsel %vm2574, %v1919, 0
    %v2636 = vsel %vm2574, %v1920, 0
    %v2639 = vsel %vm2574, %v1921, 0
    %v2642 = vsel %vm2574, %v1922, 0
    %v2645 = vsel %vm2574, %v1923, 0
    %v2648 = vsel %vm2574, %v1924, 0
    %v2651 = vsel %vm2574, %v1925, 0
    %v2654 = vsel %vm2574, %v1926, 0
    %v2657 = vsel %vm2574, %v1927, 0
    %v2660 = vsel %vm2574, %v1928, 0
    %v2663 = vsel %vm2574, %v1929, 0
    %v2666 = vsel %vm2574, %v1930, 0
    %v2669 = vsel %vm2574, %v1931, 0
    %v2672 = vsel %vm2574, %v1932, 0
    %v2675 = vsel %vm2574, %v1933, 0
    %v2678 = vsel %vm2574, %v1934, 0
    %v2681 = vsel %vm2574, %v1935, 0
    %v2684 = vsel %vm2574, %v1936, 0
    %v2687 = vsel %vm2574, %v1937, 0
    %v2690 = vsel %vm2574, %v1938, 0
    %v2693 = vsel %vm2574, %v1939, 0
    %v2696 = vsel %vm2574, %v1940, 0
    %v2699 = vsel %vm2574, %v1941, 0
    %v2702 = vsel %vm2574, %v1942, 0
    %v2705 = vsel %vm2574, %v1943, 0
    %v2708 = vsel %vm2574, %v1944, 0
    %v2711 = vsel %vm2574, %v1945, 0
    %v2714 = vsel %vm2574, %v1946, 0
    %v2717 = vsel %vm2574, %v1947, 0
    %v2720 = vsel %vm2574, %v1948, 0
    %v2723 = vsel %vm2574, %v1949, 0
    %v2726 = vsel %vm2574, %v1950, 0
    %v2729 = vsel %vm2574, %v1951, 0
    %v2732 = vsel %vm2574, %v1952, 0
    %v2735 = vsel %vm2574, %v1953, 0
    %v2738 = vsel %vm2574, %v1954, 0
    %v2741 = vsel %vm2574, %v1955, 0
    %v2744 = vsel %vm2574, %v1956, 0
    %v2747 = vsel %vm2574, %v1957, 0
    %v2750 = vsel %vm2574, %v1958, 0
    %v2753 = vsel %vm2574, %v1959, 0
    %v2756 = vsel %vm2574, %v1960, 0
    %v2759 = vsel %vm2574, %v1961, 0
    %v2762 = vsel %vm2574, %v1962, 0
    %v2765 = vsel %vm2574, %v1963, 0
    %v2768 = vsel %vm2574, %v1964, 0
    %v2771 = vsel %vm2574, %v1965, 0
    %v2774 = vsel %vm2574, %v1966, 0
    %v2777 = vsel %vm2574, %v1967, 0
    %v2780 = vsel %vm2574, %v1968, 0
    %v2783 = vsel %vm2574, %v1969, 0
    %v2786 = vsel %vm2574, %v1970, 0
    %v2789 = vsel %vm2574, %v1971, 0
    %v2792 = vsel %vm2574, %v1972, 0
    %v2795 = vsel %vm2574, %v1973, 0
    %v2798 = vsel %vm2574, %v1974, 0
    %v2801 = vsel %vm2574, %v1975, 0
    %v2804 = vsel %vm2574, %v1976, 0
    %v2807 = vsel %vm2574, %v1977, 0
    %v2810 = vsel %vm2574, %v1978, 0
    %v2813 = vsel %vm2574, %v1979, 0
    %v2816 = vsel %vm2574, %v1980, 0
    %v2819 = vsel %vm2574, %v1981, 0
    %v2822 = vsel %vm2574, %v1982, 0
    %v2825 = vsel %vm2574, %v1983, 0
    %v2828 = vsel %vm2574, %v1984, 0
    %v2831 = vsel %vm2574, %v1985, 0
    %v2834 = vsel %vm2574, %v1986, 0
    %v2837 = vsel %vm2574, %v1987, 0
    %v2840 = vsel %vm2574, %v1988, 0
    %v2843 = vsel %vm2574, %v1989, 0
    %v2846 = vsel %vm2574, %v1990, 0
    %v2849 = vsel %vm2574, %v1991, 0
    %v2852 = vsel %vm2574, %v1992, 0
    %v2855 = vsel %vm2574, %v1993, 0
    %v2858 = vsel %vm2574, %v1994, 0
    %v2861 = vsel %vm2574, %v1995, 0
    %vm2863 = vcmask 1044480
    %v2865 = vsel %vm2863, %v1858, 0
    %2867 = vmatpush.msra.mxu0 0.0
    %2868 = vmatpush.msra.mxu0 0.0
    %2869 = vmatpush.msra.mxu0 0.0
    %2870 = vmatpush.msra.mxu0 0.0
    %2871 = vmatpush.msra.mxu0 0.0
    %2872 = vmatpush.msra.mxu0 0.0
    %2873 = vmatpush.msra.mxu0 0.0
    %2874 = vmatpush.msra.mxu0 0.0
    %2875 = vmatpush.msra.mxu0 0.0
    %2876 = vmatpush.msra.mxu0 0.0
    %2877 = vmatpush.msra.mxu0 0.0
    %2878 = vmatpush.msra.mxu0 0.0
    %2879 = vmatpush.msra.mxu0 0.0
    %2880 = vmatpush.msra.mxu0 0.0
    %2881 = vmatpush.msra.mxu0 0.0
    %2882 = vmatpush.msra.mxu0 %v2865
    %2883 = vmatmul.f32.gmra.mxu0 %v2576
    %v2884 = vpop.f32.mrf.mxu0
    %v2885 = vadd.f32 0.0, %v2884
    %2886 = vmatmul.f32.gmra.mxu0 %v2579
    %v2887 = vpop.f32.mrf.mxu0
    %v2888 = vadd.f32 0.0, %v2887
    %2889 = vmatmul.f32.gmra.mxu0 %v2582
    %v2890 = vpop.f32.mrf.mxu0
    %v2891 = vadd.f32 0.0, %v2890
    %2892 = vmatmul.f32.gmra.mxu0 %v2585
    %v2893 = vpop.f32.mrf.mxu0
    %v2894 = vadd.f32 0.0, %v2893
    %2895 = vmatmul.f32.gmra.mxu0 %v2588
    %v2896 = vpop.f32.mrf.mxu0
    %v2897 = vadd.f32 0.0, %v2896
    %2898 = vmatmul.f32.gmra.mxu0 %v2591
    %v2899 = vpop.f32.mrf.mxu0
    %v2900 = vadd.f32 0.0, %v2899
    %2901 = vmatmul.f32.gmra.mxu0 %v2594
    %v2902 = vpop.f32.mrf.mxu0
    %v2903 = vadd.f32 0.0, %v2902
    %2904 = vmatmul.f32.gmra.mxu0 %v2597
    %v2905 = vpop.f32.mrf.mxu0
    %v2906 = vadd.f32 0.0, %v2905
    %2907 = vmatmul.f32.gmra.mxu0 %v2600
    %v2908 = vpop.f32.mrf.mxu0
    %v2909 = vadd.f32 0.0, %v2908
    %2910 = vmatmul.f32.gmra.mxu0 %v2603
    %v2911 = vpop.f32.mrf.mxu0
    %v2912 = vadd.f32 0.0, %v2911
    %2913 = vmatmul.f32.gmra.mxu0 %v2606
    %v2914 = vpop.f32.mrf.mxu0
    %v2915 = vadd.f32 0.0, %v2914
    %2916 = vmatmul.f32.gmra.mxu0 %v2609
    %v2917 = vpop.f32.mrf.mxu0
    %v2918 = vadd.f32 0.0, %v2917
    %2919 = vmatmul.f32.gmra.mxu0 %v2612
    %v2920 = vpop.f32.mrf.mxu0
    %v2921 = vadd.f32 0.0, %v2920
    %2922 = vmatmul.f32.gmra.mxu0 %v2615
    %v2923 = vpop.f32.mrf.mxu0
    %v2924 = vadd.f32 0.0, %v2923
    %2925 = vmatmul.f32.gmra.mxu0 %v2618
    %v2926 = vpop.f32.mrf.mxu0
    %v2927 = vadd.f32 0.0, %v2926
    %2928 = vmatmul.f32.gmra.mxu0 %v2621
    %v2929 = vpop.f32.mrf.mxu0
    %v2930 = vadd.f32 0.0, %v2929
    %2931 = vmatmul.f32.gmra.mxu0 %v2624
    %v2932 = vpop.f32.mrf.mxu0
    %v2933 = vadd.f32 0.0, %v2932
    %2934 = vmatmul.f32.gmra.mxu0 %v2627
    %v2935 = vpop.f32.mrf.mxu0
    %v2936 = vadd.f32 0.0, %v2935
    %2937 = vmatmul.f32.gmra.mxu0 %v2630
    %v2938 = vpop.f32.mrf.mxu0
    %v2939 = vadd.f32 0.0, %v2938
    %2940 = vmatmul.f32.gmra.mxu0 %v2633
    %v2941 = vpop.f32.mrf.mxu0
    %v2942 = vadd.f32 0.0, %v2941
    %2943 = vmatmul.f32.gmra.mxu0 %v2636
    %v2944 = vpop.f32.mrf.mxu0
    %v2945 = vadd.f32 0.0, %v2944
    %2946 = vmatmul.f32.gmra.mxu0 %v2639
    %v2947 = vpop.f32.mrf.mxu0
    %v2948 = vadd.f32 0.0, %v2947
    %2949 = vmatmul.f32.gmra.mxu0 %v2642
    %v2950 = vpop.f32.mrf.mxu0
    %v2951 = vadd.f32 0.0, %v2950
    %2952 = vmatmul.f32.gmra.mxu0 %v2645
    %v2953 = vpop.f32.mrf.mxu0
    %v2954 = vadd.f32 0.0, %v2953
    %2955 = vmatmul.f32.gmra.mxu0 %v2648
    %v2956 = vpop.f32.mrf.mxu0
    %v2957 = vadd.f32 0.0, %v2956
    %2958 = vmatmul.f32.gmra.mxu0 %v2651
    %v2959 = vpop.f32.mrf.mxu0
    %v2960 = vadd.f32 0.0, %v2959
    %2961 = vmatmul.f32.gmra.mxu0 %v2654
    %v2962 = vpop.f32.mrf.mxu0
    %v2963 = vadd.f32 0.0, %v2962
    %2964 = vmatmul.f32.gmra.mxu0 %v2657
    %v2965 = vpop.f32.mrf.mxu0
    %v2966 = vadd.f32 0.0, %v2965
    %2967 = vmatmul.f32.gmra.mxu0 %v2660
    %v2968 = vpop.f32.mrf.mxu0
    %v2969 = vadd.f32 0.0, %v2968
    %2970 = vmatmul.f32.gmra.mxu0 %v2663
    %v2971 = vpop.f32.mrf.mxu0
    %v2972 = vadd.f32 0.0, %v2971
    %2973 = vmatmul.f32.gmra.mxu0 %v2666
    %v2974 = vpop.f32.mrf.mxu0
    %v2975 = vadd.f32 0.0, %v2974
    %2976 = vmatmul.f32.gmra.mxu0 %v2669
    %v2977 = vpop.f32.mrf.mxu0
    %v2978 = vadd.f32 0.0, %v2977
    %2979 = vmatmul.f32.gmra.mxu0 %v2672
    %v2980 = vpop.f32.mrf.mxu0
    %v2981 = vadd.f32 0.0, %v2980
    %2982 = vmatmul.f32.gmra.mxu0 %v2675
    %v2983 = vpop.f32.mrf.mxu0
    %v2984 = vadd.f32 0.0, %v2983
    %2985 = vmatmul.f32.gmra.mxu0 %v2678
    %v2986 = vpop.f32.mrf.mxu0
    %v2987 = vadd.f32 0.0, %v2986
    %2988 = vmatmul.f32.gmra.mxu0 %v2681
    %v2989 = vpop.f32.mrf.mxu0
    %v2990 = vadd.f32 0.0, %v2989
    %2991 = vmatmul.f32.gmra.mxu0 %v2684
    %v2992 = vpop.f32.mrf.mxu0
    %v2993 = vadd.f32 0.0, %v2992
    %2994 = vmatmul.f32.gmra.mxu0 %v2687
    %v2995 = vpop.f32.mrf.mxu0
    %v2996 = vadd.f32 0.0, %v2995
    %2997 = vmatmul.f32.gmra.mxu0 %v2690
    %v2998 = vpop.f32.mrf.mxu0
    %v2999 = vadd.f32 0.0, %v2998
    %3000 = vmatmul.f32.gmra.mxu0 %v2693
    %v3001 = vpop.f32.mrf.mxu0
    %v3002 = vadd.f32 0.0, %v3001
    %3003 = vmatmul.f32.gmra.mxu0 %v2696
    %v3004 = vpop.f32.mrf.mxu0
    %v3005 = vadd.f32 0.0, %v3004
    %3006 = vmatmul.f32.gmra.mxu0 %v2699
    %v3007 = vpop.f32.mrf.mxu0
    %v3008 = vadd.f32 0.0, %v3007
    %3009 = vmatmul.f32.gmra.mxu0 %v2702
    %v3010 = vpop.f32.mrf.mxu0
    %v3011 = vadd.f32 0.0, %v3010
    %3012 = vmatmul.f32.gmra.mxu0 %v2705
    %v3013 = vpop.f32.mrf.mxu0
    %v3014 = vadd.f32 0.0, %v3013
    %3015 = vmatmul.f32.gmra.mxu0 %v2708
    %v3016 = vpop.f32.mrf.mxu0
    %v3017 = vadd.f32 0.0, %v3016
    %3018 = vmatmul.f32.gmra.mxu0 %v2711
    %v3019 = vpop.f32.mrf.mxu0
    %v3020 = vadd.f32 0.0, %v3019
    %3021 = vmatmul.f32.gmra.mxu0 %v2714
    %v3022 = vpop.f32.mrf.mxu0
    %v3023 = vadd.f32 0.0, %v3022
    %3024 = vmatmul.f32.gmra.mxu0 %v2717
    %v3025 = vpop.f32.mrf.mxu0
    %v3026 = vadd.f32 0.0, %v3025
    %3027 = vmatmul.f32.gmra.mxu0 %v2720
    %v3028 = vpop.f32.mrf.mxu0
    %v3029 = vadd.f32 0.0, %v3028
    %3030 = vmatmul.f32.gmra.mxu0 %v2723
    %v3031 = vpop.f32.mrf.mxu0
    %v3032 = vadd.f32 0.0, %v3031
    %3033 = vmatmul.f32.gmra.mxu0 %v2726
    %v3034 = vpop.f32.mrf.mxu0
    %v3035 = vadd.f32 0.0, %v3034
    %3036 = vmatmul.f32.gmra.mxu0 %v2729
    %v3037 = vpop.f32.mrf.mxu0
    %v3038 = vadd.f32 0.0, %v3037
    %3039 = vmatmul.f32.gmra.mxu0 %v2732
    %v3040 = vpop.f32.mrf.mxu0
    %v3041 = vadd.f32 0.0, %v3040
    %3042 = vmatmul.f32.gmra.mxu0 %v2735
    %v3043 = vpop.f32.mrf.mxu0
    %v3044 = vadd.f32 0.0, %v3043
    %3045 = vmatmul.f32.gmra.mxu0 %v2738
    %v3046 = vpop.f32.mrf.mxu0
    %v3047 = vadd.f32 0.0, %v3046
    %3048 = vmatmul.f32.gmra.mxu0 %v2741
    %v3049 = vpop.f32.mrf.mxu0
    %v3050 = vadd.f32 0.0, %v3049
    %3051 = vmatmul.f32.gmra.mxu0 %v2744
    %v3052 = vpop.f32.mrf.mxu0
    %v3053 = vadd.f32 0.0, %v3052
    %3054 = vmatmul.f32.gmra.mxu0 %v2747
    %v3055 = vpop.f32.mrf.mxu0
    %v3056 = vadd.f32 0.0, %v3055
    %3057 = vmatmul.f32.gmra.mxu0 %v2750
    %v3058 = vpop.f32.mrf.mxu0
    %v3059 = vadd.f32 0.0, %v3058
    %3060 = vmatmul.f32.gmra.mxu0 %v2753
    %v3061 = vpop.f32.mrf.mxu0
    %v3062 = vadd.f32 0.0, %v3061
    %3063 = vmatmul.f32.gmra.mxu0 %v2756
    %v3064 = vpop.f32.mrf.mxu0
    %v3065 = vadd.f32 0.0, %v3064
    %3066 = vmatmul.f32.gmra.mxu0 %v2759
    %v3067 = vpop.f32.mrf.mxu0
    %v3068 = vadd.f32 0.0, %v3067
    %3069 = vmatmul.f32.gmra.mxu0 %v2762
    %v3070 = vpop.f32.mrf.mxu0
    %v3071 = vadd.f32 0.0, %v3070
    %3072 = vmatmul.f32.gmra.mxu0 %v2765
    %v3073 = vpop.f32.mrf.mxu0
    %v3074 = vadd.f32 0.0, %v3073
    %3075 = vmatmul.f32.gmra.mxu0 %v2768
    %v3076 = vpop.f32.mrf.mxu0
    %v3077 = vadd.f32 0.0, %v3076
    %3078 = vmatmul.f32.gmra.mxu0 %v2771
    %v3079 = vpop.f32.mrf.mxu0
    %v3080 = vadd.f32 0.0, %v3079
    %3081 = vmatmul.f32.gmra.mxu0 %v2774
    %v3082 = vpop.f32.mrf.mxu0
    %v3083 = vadd.f32 0.0, %v3082
    %3084 = vmatmul.f32.gmra.mxu0 %v2777
    %v3085 = vpop.f32.mrf.mxu0
    %v3086 = vadd.f32 0.0, %v3085
    %3087 = vmatmul.f32.gmra.mxu0 %v2780
    %v3088 = vpop.f32.mrf.mxu0
    %v3089 = vadd.f32 0.0, %v3088
    %3090 = vmatmul.f32.gmra.mxu0 %v2783
    %v3091 = vpop.f32.mrf.mxu0
    %v3092 = vadd.f32 0.0, %v3091
    %3093 = vmatmul.f32.gmra.mxu0 %v2786
    %v3094 = vpop.f32.mrf.mxu0
    %v3095 = vadd.f32 0.0, %v3094
    %3096 = vmatmul.f32.gmra.mxu0 %v2789
    %v3097 = vpop.f32.mrf.mxu0
    %v3098 = vadd.f32 0.0, %v3097
    %3099 = vmatmul.f32.gmra.mxu0 %v2792
    %v3100 = vpop.f32.mrf.mxu0
    %v3101 = vadd.f32 0.0, %v3100
    %3102 = vmatmul.f32.gmra.mxu0 %v2795
    %v3103 = vpop.f32.mrf.mxu0
    %v3104 = vadd.f32 0.0, %v3103
    %3105 = vmatmul.f32.gmra.mxu0 %v2798
    %v3106 = vpop.f32.mrf.mxu0
    %v3107 = vadd.f32 0.0, %v3106
    %3108 = vmatmul.f32.gmra.mxu0 %v2801
    %v3109 = vpop.f32.mrf.mxu0
    %v3110 = vadd.f32 0.0, %v3109
    %3111 = vmatmul.f32.gmra.mxu0 %v2804
    %v3112 = vpop.f32.mrf.mxu0
    %v3113 = vadd.f32 0.0, %v3112
    %3114 = vmatmul.f32.gmra.mxu0 %v2807
    %v3115 = vpop.f32.mrf.mxu0
    %v3116 = vadd.f32 0.0, %v3115
    %3117 = vmatmul.f32.gmra.mxu0 %v2810
    %v3118 = vpop.f32.mrf.mxu0
    %v3119 = vadd.f32 0.0, %v3118
    %3120 = vmatmul.f32.gmra.mxu0 %v2813
    %v3121 = vpop.f32.mrf.mxu0
    %v3122 = vadd.f32 0.0, %v3121
    %3123 = vmatmul.f32.gmra.mxu0 %v2816
    %v3124 = vpop.f32.mrf.mxu0
    %v3125 = vadd.f32 0.0, %v3124
    %3126 = vmatmul.f32.gmra.mxu0 %v2819
    %v3127 = vpop.f32.mrf.mxu0
    %v3128 = vadd.f32 0.0, %v3127
    %3129 = vmatmul.f32.gmra.mxu0 %v2822
    %v3130 = vpop.f32.mrf.mxu0
    %v3131 = vadd.f32 0.0, %v3130
    %3132 = vmatmul.f32.gmra.mxu0 %v2825
    %v3133 = vpop.f32.mrf.mxu0
    %v3134 = vadd.f32 0.0, %v3133
    %3135 = vmatmul.f32.gmra.mxu0 %v2828
    %v3136 = vpop.f32.mrf.mxu0
    %v3137 = vadd.f32 0.0, %v3136
    %3138 = vmatmul.f32.gmra.mxu0 %v2831
    %v3139 = vpop.f32.mrf.mxu0
    %v3140 = vadd.f32 0.0, %v3139
    %3141 = vmatmul.f32.gmra.mxu0 %v2834
    %v3142 = vpop.f32.mrf.mxu0
    %v3143 = vadd.f32 0.0, %v3142
    %3144 = vmatmul.f32.gmra.mxu0 %v2837
    %v3145 = vpop.f32.mrf.mxu0
    %v3146 = vadd.f32 0.0, %v3145
    %3147 = vmatmul.f32.gmra.mxu0 %v2840
    %v3148 = vpop.f32.mrf.mxu0
    %v3149 = vadd.f32 0.0, %v3148
    %3150 = vmatmul.f32.gmra.mxu0 %v2843
    %v3151 = vpop.f32.mrf.mxu0
    %v3152 = vadd.f32 0.0, %v3151
    %3153 = vmatmul.f32.gmra.mxu0 %v2846
    %v3154 = vpop.f32.mrf.mxu0
    %v3155 = vadd.f32 0.0, %v3154
    %3156 = vmatmul.f32.gmra.mxu0 %v2849
    %v3157 = vpop.f32.mrf.mxu0
    %v3158 = vadd.f32 0.0, %v3157
    %3159 = vmatmul.f32.gmra.mxu0 %v2852
    %v3160 = vpop.f32.mrf.mxu0
    %v3161 = vadd.f32 0.0, %v3160
    %3162 = vmatmul.f32.gmra.mxu0 %v2855
    %v3163 = vpop.f32.mrf.mxu0
    %v3164 = vadd.f32 0.0, %v3163
    %3165 = vmatmul.f32.gmra.mxu0 %v2858
    %v3166 = vpop.f32.mrf.mxu0
    %v3167 = vadd.f32 0.0, %v3166
    %3168 = vmatmul.f32.gmra.mxu0 %v2861
    %v3169 = vpop.f32.mrf.mxu0
    %v3170 = vadd.f32 0.0, %v3169
    %3171 = vdwg.mxu0
    %v3173 = vsel %vm2574, %v2189, 0
    %v3176 = vsel %vm2574, %v2190, 0
    %v3179 = vsel %vm2574, %v2191, 0
    %v3182 = vsel %vm2574, %v2192, 0
    %v3185 = vsel %vm2574, %v2193, 0
    %v3188 = vsel %vm2574, %v2194, 0
    %v3191 = vsel %vm2574, %v2195, 0
    %v3194 = vsel %vm2574, %v2196, 0
    %v3197 = vsel %vm2574, %v2197, 0
    %v3200 = vsel %vm2574, %v2198, 0
    %v3203 = vsel %vm2574, %v2199, 0
    %v3206 = vsel %vm2574, %v2200, 0
    %v3209 = vsel %vm2574, %v2201, 0
    %v3212 = vsel %vm2574, %v2202, 0
    %v3215 = vsel %vm2574, %v2203, 0
    %v3218 = vsel %vm2574, %v2204, 0
    %v3221 = vsel %vm2574, %v2205, 0
    %v3224 = vsel %vm2574, %v2206, 0
    %v3227 = vsel %vm2574, %v2207, 0
    %v3230 = vsel %vm2574, %v2208, 0
    %v3233 = vsel %vm2574, %v2209, 0
    %v3236 = vsel %vm2574, %v2210, 0
    %v3239 = vsel %vm2574, %v2211, 0
    %v3242 = vsel %vm2574, %v2212, 0
    %v3245 = vsel %vm2574, %v2213, 0
    %v3248 = vsel %vm2574, %v2214, 0
    %v3251 = vsel %vm2574, %v2215, 0
    %v3254 = vsel %vm2574, %v2216, 0
    %v3257 = vsel %vm2574, %v2217, 0
    %v3260 = vsel %vm2574, %v2218, 0
    %v3263 = vsel %vm2574, %v2219, 0
    %v3266 = vsel %vm2574, %v2220, 0
    %v3269 = vsel %vm2574, %v2221, 0
    %v3272 = vsel %vm2574, %v2222, 0
    %v3275 = vsel %vm2574, %v2223, 0
    %v3278 = vsel %vm2574, %v2224, 0
    %v3281 = vsel %vm2574, %v2225, 0
    %v3284 = vsel %vm2574, %v2226, 0
    %v3287 = vsel %vm2574, %v2227, 0
    %v3290 = vsel %vm2574, %v2228, 0
    %v3293 = vsel %vm2574, %v2229, 0
    %v3296 = vsel %vm2574, %v2230, 0
    %v3299 = vsel %vm2574, %v2231, 0
    %v3302 = vsel %vm2574, %v2232, 0
    %v3305 = vsel %vm2574, %v2233, 0
    %v3308 = vsel %vm2574, %v2234, 0
    %v3311 = vsel %vm2574, %v2235, 0
    %v3314 = vsel %vm2574, %v2236, 0
    %v3317 = vsel %vm2574, %v2237, 0
    %v3320 = vsel %vm2574, %v2238, 0
    %v3323 = vsel %vm2574, %v2239, 0
    %v3326 = vsel %vm2574, %v2240, 0
    %v3329 = vsel %vm2574, %v2241, 0
    %v3332 = vsel %vm2574, %v2242, 0
    %v3335 = vsel %vm2574, %v2243, 0
    %v3338 = vsel %vm2574, %v2244, 0
    %v3341 = vsel %vm2574, %v2245, 0
    %v3344 = vsel %vm2574, %v2246, 0
    %v3347 = vsel %vm2574, %v2247, 0
    %v3350 = vsel %vm2574, %v2248, 0
    %v3353 = vsel %vm2574, %v2249, 0
    %v3356 = vsel %vm2574, %v2250, 0
    %v3359 = vsel %vm2574, %v2251, 0
    %v3362 = vsel %vm2574, %v2252, 0
    %v3365 = vsel %vm2574, %v2253, 0
    %v3368 = vsel %vm2574, %v2254, 0
    %v3371 = vsel %vm2574, %v2255, 0
    %v3374 = vsel %vm2574, %v2256, 0
    %v3377 = vsel %vm2574, %v2257, 0
    %v3380 = vsel %vm2574, %v2258, 0
    %v3383 = vsel %vm2574, %v2259, 0
    %v3386 = vsel %vm2574, %v2260, 0
    %v3389 = vsel %vm2574, %v2261, 0
    %v3392 = vsel %vm2574, %v2262, 0
    %v3395 = vsel %vm2574, %v2263, 0
    %v3398 = vsel %vm2574, %v2264, 0
    %v3401 = vsel %vm2574, %v2265, 0
    %v3404 = vsel %vm2574, %v2266, 0
    %v3407 = vsel %vm2574, %v2267, 0
    %v3410 = vsel %vm2574, %v2268, 0
    %v3413 = vsel %vm2574, %v2269, 0
    %v3416 = vsel %vm2574, %v2270, 0
    %v3419 = vsel %vm2574, %v2271, 0
    %v3422 = vsel %vm2574, %v2272, 0
    %v3425 = vsel %vm2574, %v2273, 0
    %v3428 = vsel %vm2574, %v2274, 0
    %v3431 = vsel %vm2574, %v2275, 0
    %v3434 = vsel %vm2574, %v2276, 0
    %v3437 = vsel %vm2574, %v2277, 0
    %v3440 = vsel %vm2574, %v2278, 0
    %v3443 = vsel %vm2574, %v2279, 0
    %v3446 = vsel %vm2574, %v2280, 0
    %v3449 = vsel %vm2574, %v2281, 0
    %v3452 = vsel %vm2574, %v2282, 0
    %v3455 = vsel %vm2574, %v2283, 0
    %v3458 = vsel %vm2574, %v2284, 0
    %v3461 = vsel %vm2863, %v1856, 0
    %3463 = vmatpush.msra.mxu0 0.0
    %3464 = vmatpush.msra.mxu0 0.0
    %3465 = vmatpush.msra.mxu0 0.0
    %3466 = vmatpush.msra.mxu0 0.0
    %3467 = vmatpush.msra.mxu0 0.0
    %3468 = vmatpush.msra.mxu0 0.0
    %3469 = vmatpush.msra.mxu0 0.0
    %3470 = vmatpush.msra.mxu0 0.0
    %3471 = vmatpush.msra.mxu0 0.0
    %3472 = vmatpush.msra.mxu0 0.0
    %3473 = vmatpush.msra.mxu0 0.0
    %3474 = vmatpush.msra.mxu0 0.0
    %3475 = vmatpush.msra.mxu0 0.0
    %3476 = vmatpush.msra.mxu0 0.0
    %3477 = vmatpush.msra.mxu0 0.0
    %3478 = vmatpush.msra.mxu0 %v3461
    %3479 = vmatmul.f32.gmra.mxu0 %v3173
    %v3480 = vpop.f32.mrf.mxu0
    %v3481 = vadd.f32 %v2885, %v3480
    %3482 = vmatmul.f32.gmra.mxu0 %v3176
    %v3483 = vpop.f32.mrf.mxu0
    %v3484 = vadd.f32 %v2888, %v3483
    %3485 = vmatmul.f32.gmra.mxu0 %v3179
    %v3486 = vpop.f32.mrf.mxu0
    %v3487 = vadd.f32 %v2891, %v3486
    %3488 = vmatmul.f32.gmra.mxu0 %v3182
    %v3489 = vpop.f32.mrf.mxu0
    %v3490 = vadd.f32 %v2894, %v3489
    %3491 = vmatmul.f32.gmra.mxu0 %v3185
    %v3492 = vpop.f32.mrf.mxu0
    %v3493 = vadd.f32 %v2897, %v3492
    %3494 = vmatmul.f32.gmra.mxu0 %v3188
    %v3495 = vpop.f32.mrf.mxu0
    %v3496 = vadd.f32 %v2900, %v3495
    %3497 = vmatmul.f32.gmra.mxu0 %v3191
    %v3498 = vpop.f32.mrf.mxu0
    %v3499 = vadd.f32 %v2903, %v3498
    %3500 = vmatmul.f32.gmra.mxu0 %v3194
    %v3501 = vpop.f32.mrf.mxu0
    %v3502 = vadd.f32 %v2906, %v3501
    %3503 = vmatmul.f32.gmra.mxu0 %v3197
    %v3504 = vpop.f32.mrf.mxu0
    %v3505 = vadd.f32 %v2909, %v3504
    %3506 = vmatmul.f32.gmra.mxu0 %v3200
    %v3507 = vpop.f32.mrf.mxu0
    %v3508 = vadd.f32 %v2912, %v3507
    %3509 = vmatmul.f32.gmra.mxu0 %v3203
    %v3510 = vpop.f32.mrf.mxu0
    %v3511 = vadd.f32 %v2915, %v3510
    %3512 = vmatmul.f32.gmra.mxu0 %v3206
    %v3513 = vpop.f32.mrf.mxu0
    %v3514 = vadd.f32 %v2918, %v3513
    %3515 = vmatmul.f32.gmra.mxu0 %v3209
    %v3516 = vpop.f32.mrf.mxu0
    %v3517 = vadd.f32 %v2921, %v3516
    %3518 = vmatmul.f32.gmra.mxu0 %v3212
    %v3519 = vpop.f32.mrf.mxu0
    %v3520 = vadd.f32 %v2924, %v3519
    %3521 = vmatmul.f32.gmra.mxu0 %v3215
    %v3522 = vpop.f32.mrf.mxu0
    %v3523 = vadd.f32 %v2927, %v3522
    %3524 = vmatmul.f32.gmra.mxu0 %v3218
    %v3525 = vpop.f32.mrf.mxu0
    %v3526 = vadd.f32 %v2930, %v3525
    %3527 = vmatmul.f32.gmra.mxu0 %v3221
    %v3528 = vpop.f32.mrf.mxu0
    %v3529 = vadd.f32 %v2933, %v3528
    %3530 = vmatmul.f32.gmra.mxu0 %v3224
    %v3531 = vpop.f32.mrf.mxu0
    %v3532 = vadd.f32 %v2936, %v3531
    %3533 = vmatmul.f32.gmra.mxu0 %v3227
    %v3534 = vpop.f32.mrf.mxu0
    %v3535 = vadd.f32 %v2939, %v3534
    %3536 = vmatmul.f32.gmra.mxu0 %v3230
    %v3537 = vpop.f32.mrf.mxu0
    %v3538 = vadd.f32 %v2942, %v3537
    %3539 = vmatmul.f32.gmra.mxu0 %v3233
    %v3540 = vpop.f32.mrf.mxu0
    %v3541 = vadd.f32 %v2945, %v3540
    %3542 = vmatmul.f32.gmra.mxu0 %v3236
    %v3543 = vpop.f32.mrf.mxu0
    %v3544 = vadd.f32 %v2948, %v3543
    %3545 = vmatmul.f32.gmra.mxu0 %v3239
    %v3546 = vpop.f32.mrf.mxu0
    %v3547 = vadd.f32 %v2951, %v3546
    %3548 = vmatmul.f32.gmra.mxu0 %v3242
    %v3549 = vpop.f32.mrf.mxu0
    %v3550 = vadd.f32 %v2954, %v3549
    %3551 = vmatmul.f32.gmra.mxu0 %v3245
    %v3552 = vpop.f32.mrf.mxu0
    %v3553 = vadd.f32 %v2957, %v3552
    %3554 = vmatmul.f32.gmra.mxu0 %v3248
    %v3555 = vpop.f32.mrf.mxu0
    %v3556 = vadd.f32 %v2960, %v3555
    %3557 = vmatmul.f32.gmra.mxu0 %v3251
    %v3558 = vpop.f32.mrf.mxu0
    %v3559 = vadd.f32 %v2963, %v3558
    %3560 = vmatmul.f32.gmra.mxu0 %v3254
    %v3561 = vpop.f32.mrf.mxu0
    %v3562 = vadd.f32 %v2966, %v3561
    %3563 = vmatmul.f32.gmra.mxu0 %v3257
    %v3564 = vpop.f32.mrf.mxu0
    %v3565 = vadd.f32 %v2969, %v3564
    %3566 = vmatmul.f32.gmra.mxu0 %v3260
    %v3567 = vpop.f32.mrf.mxu0
    %v3568 = vadd.f32 %v2972, %v3567
    %3569 = vmatmul.f32.gmra.mxu0 %v3263
    %v3570 = vpop.f32.mrf.mxu0
    %v3571 = vadd.f32 %v2975, %v3570
    %3572 = vmatmul.f32.gmra.mxu0 %v3266
    %v3573 = vpop.f32.mrf.mxu0
    %v3574 = vadd.f32 %v2978, %v3573
    %3575 = vmatmul.f32.gmra.mxu0 %v3269
    %v3576 = vpop.f32.mrf.mxu0
    %v3577 = vadd.f32 %v2981, %v3576
    %3578 = vmatmul.f32.gmra.mxu0 %v3272
    %v3579 = vpop.f32.mrf.mxu0
    %v3580 = vadd.f32 %v2984, %v3579
    %3581 = vmatmul.f32.gmra.mxu0 %v3275
    %v3582 = vpop.f32.mrf.mxu0
    %v3583 = vadd.f32 %v2987, %v3582
    %3584 = vmatmul.f32.gmra.mxu0 %v3278
    %v3585 = vpop.f32.mrf.mxu0
    %v3586 = vadd.f32 %v2990, %v3585
    %3587 = vmatmul.f32.gmra.mxu0 %v3281
    %v3588 = vpop.f32.mrf.mxu0
    %v3589 = vadd.f32 %v2993, %v3588
    %3590 = vmatmul.f32.gmra.mxu0 %v3284
    %v3591 = vpop.f32.mrf.mxu0
    %v3592 = vadd.f32 %v2996, %v3591
    %3593 = vmatmul.f32.gmra.mxu0 %v3287
    %v3594 = vpop.f32.mrf.mxu0
    %v3595 = vadd.f32 %v2999, %v3594
    %3596 = vmatmul.f32.gmra.mxu0 %v3290
    %v3597 = vpop.f32.mrf.mxu0
    %v3598 = vadd.f32 %v3002, %v3597
    %3599 = vmatmul.f32.gmra.mxu0 %v3293
    %v3600 = vpop.f32.mrf.mxu0
    %v3601 = vadd.f32 %v3005, %v3600
    %3602 = vmatmul.f32.gmra.mxu0 %v3296
    %v3603 = vpop.f32.mrf.mxu0
    %v3604 = vadd.f32 %v3008, %v3603
    %3605 = vmatmul.f32.gmra.mxu0 %v3299
    %v3606 = vpop.f32.mrf.mxu0
    %v3607 = vadd.f32 %v3011, %v3606
    %3608 = vmatmul.f32.gmra.mxu0 %v3302
    %v3609 = vpop.f32.mrf.mxu0
    %v3610 = vadd.f32 %v3014, %v3609
    %3611 = vmatmul.f32.gmra.mxu0 %v3305
    %v3612 = vpop.f32.mrf.mxu0
    %v3613 = vadd.f32 %v3017, %v3612
    %3614 = vmatmul.f32.gmra.mxu0 %v3308
    %v3615 = vpop.f32.mrf.mxu0
    %v3616 = vadd.f32 %v3020, %v3615
    %3617 = vmatmul.f32.gmra.mxu0 %v3311
    %v3618 = vpop.f32.mrf.mxu0
    %v3619 = vadd.f32 %v3023, %v3618
    %3620 = vmatmul.f32.gmra.mxu0 %v3314
    %v3621 = vpop.f32.mrf.mxu0
    %v3622 = vadd.f32 %v3026, %v3621
    %3623 = vmatmul.f32.gmra.mxu0 %v3317
    %v3624 = vpop.f32.mrf.mxu0
    %v3625 = vadd.f32 %v3029, %v3624
    %3626 = vmatmul.f32.gmra.mxu0 %v3320
    %v3627 = vpop.f32.mrf.mxu0
    %v3628 = vadd.f32 %v3032, %v3627
    %3629 = vmatmul.f32.gmra.mxu0 %v3323
    %v3630 = vpop.f32.mrf.mxu0
    %v3631 = vadd.f32 %v3035, %v3630
    %3632 = vmatmul.f32.gmra.mxu0 %v3326
    %v3633 = vpop.f32.mrf.mxu0
    %v3634 = vadd.f32 %v3038, %v3633
    %3635 = vmatmul.f32.gmra.mxu0 %v3329
    %v3636 = vpop.f32.mrf.mxu0
    %v3637 = vadd.f32 %v3041, %v3636
    %3638 = vmatmul.f32.gmra.mxu0 %v3332
    %v3639 = vpop.f32.mrf.mxu0
    %v3640 = vadd.f32 %v3044, %v3639
    %3641 = vmatmul.f32.gmra.mxu0 %v3335
    %v3642 = vpop.f32.mrf.mxu0
    %v3643 = vadd.f32 %v3047, %v3642
    %3644 = vmatmul.f32.gmra.mxu0 %v3338
    %v3645 = vpop.f32.mrf.mxu0
    %v3646 = vadd.f32 %v3050, %v3645
    %3647 = vmatmul.f32.gmra.mxu0 %v3341
    %v3648 = vpop.f32.mrf.mxu0
    %v3649 = vadd.f32 %v3053, %v3648
    %3650 = vmatmul.f32.gmra.mxu0 %v3344
    %v3651 = vpop.f32.mrf.mxu0
    %v3652 = vadd.f32 %v3056, %v3651
    %3653 = vmatmul.f32.gmra.mxu0 %v3347
    %v3654 = vpop.f32.mrf.mxu0
    %v3655 = vadd.f32 %v3059, %v3654
    %3656 = vmatmul.f32.gmra.mxu0 %v3350
    %v3657 = vpop.f32.mrf.mxu0
    %v3658 = vadd.f32 %v3062, %v3657
    %3659 = vmatmul.f32.gmra.mxu0 %v3353
    %v3660 = vpop.f32.mrf.mxu0
    %v3661 = vadd.f32 %v3065, %v3660
    %3662 = vmatmul.f32.gmra.mxu0 %v3356
    %v3663 = vpop.f32.mrf.mxu0
    %v3664 = vadd.f32 %v3068, %v3663
    %3665 = vmatmul.f32.gmra.mxu0 %v3359
    %v3666 = vpop.f32.mrf.mxu0
    %v3667 = vadd.f32 %v3071, %v3666
    %3668 = vmatmul.f32.gmra.mxu0 %v3362
    %v3669 = vpop.f32.mrf.mxu0
    %v3670 = vadd.f32 %v3074, %v3669
    %3671 = vmatmul.f32.gmra.mxu0 %v3365
    %v3672 = vpop.f32.mrf.mxu0
    %v3673 = vadd.f32 %v3077, %v3672
    %3674 = vmatmul.f32.gmra.mxu0 %v3368
    %v3675 = vpop.f32.mrf.mxu0
    %v3676 = vadd.f32 %v3080, %v3675
    %3677 = vmatmul.f32.gmra.mxu0 %v3371
    %v3678 = vpop.f32.mrf.mxu0
    %v3679 = vadd.f32 %v3083, %v3678
    %3680 = vmatmul.f32.gmra.mxu0 %v3374
    %v3681 = vpop.f32.mrf.mxu0
    %v3682 = vadd.f32 %v3086, %v3681
    %3683 = vmatmul.f32.gmra.mxu0 %v3377
    %v3684 = vpop.f32.mrf.mxu0
    %v3685 = vadd.f32 %v3089, %v3684
    %3686 = vmatmul.f32.gmra.mxu0 %v3380
    %v3687 = vpop.f32.mrf.mxu0
    %v3688 = vadd.f32 %v3092, %v3687
    %3689 = vmatmul.f32.gmra.mxu0 %v3383
    %v3690 = vpop.f32.mrf.mxu0
    %v3691 = vadd.f32 %v3095, %v3690
    %3692 = vmatmul.f32.gmra.mxu0 %v3386
    %v3693 = vpop.f32.mrf.mxu0
    %v3694 = vadd.f32 %v3098, %v3693
    %3695 = vmatmul.f32.gmra.mxu0 %v3389
    %v3696 = vpop.f32.mrf.mxu0
    %v3697 = vadd.f32 %v3101, %v3696
    %3698 = vmatmul.f32.gmra.mxu0 %v3392
    %v3699 = vpop.f32.mrf.mxu0
    %v3700 = vadd.f32 %v3104, %v3699
    %3701 = vmatmul.f32.gmra.mxu0 %v3395
    %v3702 = vpop.f32.mrf.mxu0
    %v3703 = vadd.f32 %v3107, %v3702
    %3704 = vmatmul.f32.gmra.mxu0 %v3398
    %v3705 = vpop.f32.mrf.mxu0
    %v3706 = vadd.f32 %v3110, %v3705
    %3707 = vmatmul.f32.gmra.mxu0 %v3401
    %v3708 = vpop.f32.mrf.mxu0
    %v3709 = vadd.f32 %v3113, %v3708
    %3710 = vmatmul.f32.gmra.mxu0 %v3404
    %v3711 = vpop.f32.mrf.mxu0
    %v3712 = vadd.f32 %v3116, %v3711
    %3713 = vmatmul.f32.gmra.mxu0 %v3407
    %v3714 = vpop.f32.mrf.mxu0
    %v3715 = vadd.f32 %v3119, %v3714
    %3716 = vmatmul.f32.gmra.mxu0 %v3410
    %v3717 = vpop.f32.mrf.mxu0
    %v3718 = vadd.f32 %v3122, %v3717
    %3719 = vmatmul.f32.gmra.mxu0 %v3413
    %v3720 = vpop.f32.mrf.mxu0
    %v3721 = vadd.f32 %v3125, %v3720
    %3722 = vmatmul.f32.gmra.mxu0 %v3416
    %v3723 = vpop.f32.mrf.mxu0
    %v3724 = vadd.f32 %v3128, %v3723
    %3725 = vmatmul.f32.gmra.mxu0 %v3419
    %v3726 = vpop.f32.mrf.mxu0
    %v3727 = vadd.f32 %v3131, %v3726
    %3728 = vmatmul.f32.gmra.mxu0 %v3422
    %v3729 = vpop.f32.mrf.mxu0
    %v3730 = vadd.f32 %v3134, %v3729
    %3731 = vmatmul.f32.gmra.mxu0 %v3425
    %v3732 = vpop.f32.mrf.mxu0
    %v3733 = vadd.f32 %v3137, %v3732
    %3734 = vmatmul.f32.gmra.mxu0 %v3428
    %v3735 = vpop.f32.mrf.mxu0
    %v3736 = vadd.f32 %v3140, %v3735
    %3737 = vmatmul.f32.gmra.mxu0 %v3431
    %v3738 = vpop.f32.mrf.mxu0
    %v3739 = vadd.f32 %v3143, %v3738
    %3740 = vmatmul.f32.gmra.mxu0 %v3434
    %v3741 = vpop.f32.mrf.mxu0
    %v3742 = vadd.f32 %v3146, %v3741
    %3743 = vmatmul.f32.gmra.mxu0 %v3437
    %v3744 = vpop.f32.mrf.mxu0
    %v3745 = vadd.f32 %v3149, %v3744
    %3746 = vmatmul.f32.gmra.mxu0 %v3440
    %v3747 = vpop.f32.mrf.mxu0
    %v3748 = vadd.f32 %v3152, %v3747
    %3749 = vmatmul.f32.gmra.mxu0 %v3443
    %v3750 = vpop.f32.mrf.mxu0
    %v3751 = vadd.f32 %v3155, %v3750
    %3752 = vmatmul.f32.gmra.mxu0 %v3446
    %v3753 = vpop.f32.mrf.mxu0
    %v3754 = vadd.f32 %v3158, %v3753
    %3755 = vmatmul.f32.gmra.mxu0 %v3449
    %v3756 = vpop.f32.mrf.mxu0
    %v3757 = vadd.f32 %v3161, %v3756
    %3758 = vmatmul.f32.gmra.mxu0 %v3452
    %v3759 = vpop.f32.mrf.mxu0
    %v3760 = vadd.f32 %v3164, %v3759
    %3761 = vmatmul.f32.gmra.mxu0 %v3455
    %v3762 = vpop.f32.mrf.mxu0
    %v3763 = vadd.f32 %v3167, %v3762
    %3764 = vmatmul.f32.gmra.mxu0 %v3458
    %v3765 = vpop.f32.mrf.mxu0
    %v3766 = vadd.f32 %v3170, %v3765
    %3767 = vdwg.mxu0
    %v3769 = vsel %vm2574, %v2478, 0
    %v3772 = vsel %vm2574, %v2479, 0
    %v3775 = vsel %vm2574, %v2480, 0
    %v3778 = vsel %vm2574, %v2481, 0
    %v3781 = vsel %vm2574, %v2482, 0
    %v3784 = vsel %vm2574, %v2483, 0
    %v3787 = vsel %vm2574, %v2484, 0
    %v3790 = vsel %vm2574, %v2485, 0
    %v3793 = vsel %vm2574, %v2486, 0
    %v3796 = vsel %vm2574, %v2487, 0
    %v3799 = vsel %vm2574, %v2488, 0
    %v3802 = vsel %vm2574, %v2489, 0
    %v3805 = vsel %vm2574, %v2490, 0
    %v3808 = vsel %vm2574, %v2491, 0
    %v3811 = vsel %vm2574, %v2492, 0
    %v3814 = vsel %vm2574, %v2493, 0
    %v3817 = vsel %vm2574, %v2494, 0
    %v3820 = vsel %vm2574, %v2495, 0
    %v3823 = vsel %vm2574, %v2496, 0
    %v3826 = vsel %vm2574, %v2497, 0
    %v3829 = vsel %vm2574, %v2498, 0
    %v3832 = vsel %vm2574, %v2499, 0
    %v3835 = vsel %vm2574, %v2500, 0
    %v3838 = vsel %vm2574, %v2501, 0
    %v3841 = vsel %vm2574, %v2502, 0
    %v3844 = vsel %vm2574, %v2503, 0
    %v3847 = vsel %vm2574, %v2504, 0
    %v3850 = vsel %vm2574, %v2505, 0
    %v3853 = vsel %vm2574, %v2506, 0
    %v3856 = vsel %vm2574, %v2507, 0
    %v3859 = vsel %vm2574, %v2508, 0
    %v3862 = vsel %vm2574, %v2509, 0
    %v3865 = vsel %vm2574, %v2510, 0
    %v3868 = vsel %vm2574, %v2511, 0
    %v3871 = vsel %vm2574, %v2512, 0
    %v3874 = vsel %vm2574, %v2513, 0
    %v3877 = vsel %vm2574, %v2514, 0
    %v3880 = vsel %vm2574, %v2515, 0
    %v3883 = vsel %vm2574, %v2516, 0
    %v3886 = vsel %vm2574, %v2517, 0
    %v3889 = vsel %vm2574, %v2518, 0
    %v3892 = vsel %vm2574, %v2519, 0
    %v3895 = vsel %vm2574, %v2520, 0
    %v3898 = vsel %vm2574, %v2521, 0
    %v3901 = vsel %vm2574, %v2522, 0
    %v3904 = vsel %vm2574, %v2523, 0
    %v3907 = vsel %vm2574, %v2524, 0
    %v3910 = vsel %vm2574, %v2525, 0
    %v3913 = vsel %vm2574, %v2526, 0
    %v3916 = vsel %vm2574, %v2527, 0
    %v3919 = vsel %vm2574, %v2528, 0
    %v3922 = vsel %vm2574, %v2529, 0
    %v3925 = vsel %vm2574, %v2530, 0
    %v3928 = vsel %vm2574, %v2531, 0
    %v3931 = vsel %vm2574, %v2532, 0
    %v3934 = vsel %vm2574, %v2533, 0
    %v3937 = vsel %vm2574, %v2534, 0
    %v3940 = vsel %vm2574, %v2535, 0
    %v3943 = vsel %vm2574, %v2536, 0
    %v3946 = vsel %vm2574, %v2537, 0
    %v3949 = vsel %vm2574, %v2538, 0
    %v3952 = vsel %vm2574, %v2539, 0
    %v3955 = vsel %vm2574, %v2540, 0
    %v3958 = vsel %vm2574, %v2541, 0
    %v3961 = vsel %vm2574, %v2542, 0
    %v3964 = vsel %vm2574, %v2543, 0
    %v3967 = vsel %vm2574, %v2544, 0
    %v3970 = vsel %vm2574, %v2545, 0
    %v3973 = vsel %vm2574, %v2546, 0
    %v3976 = vsel %vm2574, %v2547, 0
    %v3979 = vsel %vm2574, %v2548, 0
    %v3982 = vsel %vm2574, %v2549, 0
    %v3985 = vsel %vm2574, %v2550, 0
    %v3988 = vsel %vm2574, %v2551, 0
    %v3991 = vsel %vm2574, %v2552, 0
    %v3994 = vsel %vm2574, %v2553, 0
    %v3997 = vsel %vm2574, %v2554, 0
    %v4000 = vsel %vm2574, %v2555, 0
    %v4003 = vsel %vm2574, %v2556, 0
    %v4006 = vsel %vm2574, %v2557, 0
    %v4009 = vsel %vm2574, %v2558, 0
    %v4012 = vsel %vm2574, %v2559, 0
    %v4015 = vsel %vm2574, %v2560, 0
    %v4018 = vsel %vm2574, %v2561, 0
    %v4021 = vsel %vm2574, %v2562, 0
    %v4024 = vsel %vm2574, %v2563, 0
    %v4027 = vsel %vm2574, %v2564, 0
    %v4030 = vsel %vm2574, %v2565, 0
    %v4033 = vsel %vm2574, %v2566, 0
    %v4036 = vsel %vm2574, %v2567, 0
    %v4039 = vsel %vm2574, %v2568, 0
    %v4042 = vsel %vm2574, %v2569, 0
    %v4045 = vsel %vm2574, %v2570, 0
    %v4048 = vsel %vm2574, %v2571, 0
    %v4051 = vsel %vm2574, %v2572, 0
    %v4054 = vsel %vm2574, %v2573, 0
    %v4057 = vsel %vm2863, %v1860, 0
    %4059 = vmatpush.msra.mxu0 0.0
    %4060 = vmatpush.msra.mxu0 0.0
    %4061 = vmatpush.msra.mxu0 0.0
    %4062 = vmatpush.msra.mxu0 0.0
    %4063 = vmatpush.msra.mxu0 0.0
    %4064 = vmatpush.msra.mxu0 0.0
    %4065 = vmatpush.msra.mxu0 0.0
    %4066 = vmatpush.msra.mxu0 0.0
    %4067 = vmatpush.msra.mxu0 0.0
    %4068 = vmatpush.msra.mxu0 0.0
    %4069 = vmatpush.msra.mxu0 0.0
    %4070 = vmatpush.msra.mxu0 0.0
    %4071 = vmatpush.msra.mxu0 0.0
    %4072 = vmatpush.msra.mxu0 0.0
    %4073 = vmatpush.msra.mxu0 0.0
    %4074 = vmatpush.msra.mxu0 %v4057
    %4075 = vmatmul.f32.gmra.mxu0 %v3769
    %v4076 = vpop.f32.mrf.mxu0
    %v4077 = vadd.f32 0.0, %v4076
    %4078 = vmatmul.f32.gmra.mxu0 %v3772
    %v4079 = vpop.f32.mrf.mxu0
    %v4080 = vadd.f32 0.0, %v4079
    %4081 = vmatmul.f32.gmra.mxu0 %v3775
    %v4082 = vpop.f32.mrf.mxu0
    %v4083 = vadd.f32 0.0, %v4082
    %4084 = vmatmul.f32.gmra.mxu0 %v3778
    %v4085 = vpop.f32.mrf.mxu0
    %v4086 = vadd.f32 0.0, %v4085
    %4087 = vmatmul.f32.gmra.mxu0 %v3781
    %v4088 = vpop.f32.mrf.mxu0
    %v4089 = vadd.f32 0.0, %v4088
    %4090 = vmatmul.f32.gmra.mxu0 %v3784
    %v4091 = vpop.f32.mrf.mxu0
    %v4092 = vadd.f32 0.0, %v4091
    %4093 = vmatmul.f32.gmra.mxu0 %v3787
    %v4094 = vpop.f32.mrf.mxu0
    %v4095 = vadd.f32 0.0, %v4094
    %4096 = vmatmul.f32.gmra.mxu0 %v3790
    %v4097 = vpop.f32.mrf.mxu0
    %v4098 = vadd.f32 0.0, %v4097
    %4099 = vmatmul.f32.gmra.mxu0 %v3793
    %v4100 = vpop.f32.mrf.mxu0
    %v4101 = vadd.f32 0.0, %v4100
    %4102 = vmatmul.f32.gmra.mxu0 %v3796
    %v4103 = vpop.f32.mrf.mxu0
    %v4104 = vadd.f32 0.0, %v4103
    %4105 = vmatmul.f32.gmra.mxu0 %v3799
    %v4106 = vpop.f32.mrf.mxu0
    %v4107 = vadd.f32 0.0, %v4106
    %4108 = vmatmul.f32.gmra.mxu0 %v3802
    %v4109 = vpop.f32.mrf.mxu0
    %v4110 = vadd.f32 0.0, %v4109
    %4111 = vmatmul.f32.gmra.mxu0 %v3805
    %v4112 = vpop.f32.mrf.mxu0
    %v4113 = vadd.f32 0.0, %v4112
    %4114 = vmatmul.f32.gmra.mxu0 %v3808
    %v4115 = vpop.f32.mrf.mxu0
    %v4116 = vadd.f32 0.0, %v4115
    %4117 = vmatmul.f32.gmra.mxu0 %v3811
    %v4118 = vpop.f32.mrf.mxu0
    %v4119 = vadd.f32 0.0, %v4118
    %4120 = vmatmul.f32.gmra.mxu0 %v3814
    %v4121 = vpop.f32.mrf.mxu0
    %v4122 = vadd.f32 0.0, %v4121
    %4123 = vmatmul.f32.gmra.mxu0 %v3817
    %v4124 = vpop.f32.mrf.mxu0
    %v4125 = vadd.f32 0.0, %v4124
    %4126 = vmatmul.f32.gmra.mxu0 %v3820
    %v4127 = vpop.f32.mrf.mxu0
    %v4128 = vadd.f32 0.0, %v4127
    %4129 = vmatmul.f32.gmra.mxu0 %v3823
    %v4130 = vpop.f32.mrf.mxu0
    %v4131 = vadd.f32 0.0, %v4130
    %4132 = vmatmul.f32.gmra.mxu0 %v3826
    %v4133 = vpop.f32.mrf.mxu0
    %v4134 = vadd.f32 0.0, %v4133
    %4135 = vmatmul.f32.gmra.mxu0 %v3829
    %v4136 = vpop.f32.mrf.mxu0
    %v4137 = vadd.f32 0.0, %v4136
    %4138 = vmatmul.f32.gmra.mxu0 %v3832
    %v4139 = vpop.f32.mrf.mxu0
    %v4140 = vadd.f32 0.0, %v4139
    %4141 = vmatmul.f32.gmra.mxu0 %v3835
    %v4142 = vpop.f32.mrf.mxu0
    %v4143 = vadd.f32 0.0, %v4142
    %4144 = vmatmul.f32.gmra.mxu0 %v3838
    %v4145 = vpop.f32.mrf.mxu0
    %v4146 = vadd.f32 0.0, %v4145
    %4147 = vmatmul.f32.gmra.mxu0 %v3841
    %v4148 = vpop.f32.mrf.mxu0
    %v4149 = vadd.f32 0.0, %v4148
    %4150 = vmatmul.f32.gmra.mxu0 %v3844
    %v4151 = vpop.f32.mrf.mxu0
    %v4152 = vadd.f32 0.0, %v4151
    %4153 = vmatmul.f32.gmra.mxu0 %v3847
    %v4154 = vpop.f32.mrf.mxu0
    %v4155 = vadd.f32 0.0, %v4154
    %4156 = vmatmul.f32.gmra.mxu0 %v3850
    %v4157 = vpop.f32.mrf.mxu0
    %v4158 = vadd.f32 0.0, %v4157
    %4159 = vmatmul.f32.gmra.mxu0 %v3853
    %v4160 = vpop.f32.mrf.mxu0
    %v4161 = vadd.f32 0.0, %v4160
    %4162 = vmatmul.f32.gmra.mxu0 %v3856
    %v4163 = vpop.f32.mrf.mxu0
    %v4164 = vadd.f32 0.0, %v4163
    %4165 = vmatmul.f32.gmra.mxu0 %v3859
    %v4166 = vpop.f32.mrf.mxu0
    %v4167 = vadd.f32 0.0, %v4166
    %4168 = vmatmul.f32.gmra.mxu0 %v3862
    %v4169 = vpop.f32.mrf.mxu0
    %v4170 = vadd.f32 0.0, %v4169
    %4171 = vmatmul.f32.gmra.mxu0 %v3865
    %v4172 = vpop.f32.mrf.mxu0
    %v4173 = vadd.f32 0.0, %v4172
    %4174 = vmatmul.f32.gmra.mxu0 %v3868
    %v4175 = vpop.f32.mrf.mxu0
    %v4176 = vadd.f32 0.0, %v4175
    %4177 = vmatmul.f32.gmra.mxu0 %v3871
    %v4178 = vpop.f32.mrf.mxu0
    %v4179 = vadd.f32 0.0, %v4178
    %4180 = vmatmul.f32.gmra.mxu0 %v3874
    %v4181 = vpop.f32.mrf.mxu0
    %v4182 = vadd.f32 0.0, %v4181
    %4183 = vmatmul.f32.gmra.mxu0 %v3877
    %v4184 = vpop.f32.mrf.mxu0
    %v4185 = vadd.f32 0.0, %v4184
    %4186 = vmatmul.f32.gmra.mxu0 %v3880
    %v4187 = vpop.f32.mrf.mxu0
    %v4188 = vadd.f32 0.0, %v4187
    %4189 = vmatmul.f32.gmra.mxu0 %v3883
    %v4190 = vpop.f32.mrf.mxu0
    %v4191 = vadd.f32 0.0, %v4190
    %4192 = vmatmul.f32.gmra.mxu0 %v3886
    %v4193 = vpop.f32.mrf.mxu0
    %v4194 = vadd.f32 0.0, %v4193
    %4195 = vmatmul.f32.gmra.mxu0 %v3889
    %v4196 = vpop.f32.mrf.mxu0
    %v4197 = vadd.f32 0.0, %v4196
    %4198 = vmatmul.f32.gmra.mxu0 %v3892
    %v4199 = vpop.f32.mrf.mxu0
    %v4200 = vadd.f32 0.0, %v4199
    %4201 = vmatmul.f32.gmra.mxu0 %v3895
    %v4202 = vpop.f32.mrf.mxu0
    %v4203 = vadd.f32 0.0, %v4202
    %4204 = vmatmul.f32.gmra.mxu0 %v3898
    %v4205 = vpop.f32.mrf.mxu0
    %v4206 = vadd.f32 0.0, %v4205
    %4207 = vmatmul.f32.gmra.mxu0 %v3901
    %v4208 = vpop.f32.mrf.mxu0
    %v4209 = vadd.f32 0.0, %v4208
    %4210 = vmatmul.f32.gmra.mxu0 %v3904
    %v4211 = vpop.f32.mrf.mxu0
    %v4212 = vadd.f32 0.0, %v4211
    %4213 = vmatmul.f32.gmra.mxu0 %v3907
    %v4214 = vpop.f32.mrf.mxu0
    %v4215 = vadd.f32 0.0, %v4214
    %4216 = vmatmul.f32.gmra.mxu0 %v3910
    %v4217 = vpop.f32.mrf.mxu0
    %v4218 = vadd.f32 0.0, %v4217
    %4219 = vmatmul.f32.gmra.mxu0 %v3913
    %v4220 = vpop.f32.mrf.mxu0
    %v4221 = vadd.f32 0.0, %v4220
    %4222 = vmatmul.f32.gmra.mxu0 %v3916
    %v4223 = vpop.f32.mrf.mxu0
    %v4224 = vadd.f32 0.0, %v4223
    %4225 = vmatmul.f32.gmra.mxu0 %v3919
    %v4226 = vpop.f32.mrf.mxu0
    %v4227 = vadd.f32 0.0, %v4226
    %4228 = vmatmul.f32.gmra.mxu0 %v3922
    %v4229 = vpop.f32.mrf.mxu0
    %v4230 = vadd.f32 0.0, %v4229
    %4231 = vmatmul.f32.gmra.mxu0 %v3925
    %v4232 = vpop.f32.mrf.mxu0
    %v4233 = vadd.f32 0.0, %v4232
    %4234 = vmatmul.f32.gmra.mxu0 %v3928
    %v4235 = vpop.f32.mrf.mxu0
    %v4236 = vadd.f32 0.0, %v4235
    %4237 = vmatmul.f32.gmra.mxu0 %v3931
    %v4238 = vpop.f32.mrf.mxu0
    %v4239 = vadd.f32 0.0, %v4238
    %4240 = vmatmul.f32.gmra.mxu0 %v3934
    %v4241 = vpop.f32.mrf.mxu0
    %v4242 = vadd.f32 0.0, %v4241
    %4243 = vmatmul.f32.gmra.mxu0 %v3937
    %v4244 = vpop.f32.mrf.mxu0
    %v4245 = vadd.f32 0.0, %v4244
    %4246 = vmatmul.f32.gmra.mxu0 %v3940
    %v4247 = vpop.f32.mrf.mxu0
    %v4248 = vadd.f32 0.0, %v4247
    %4249 = vmatmul.f32.gmra.mxu0 %v3943
    %v4250 = vpop.f32.mrf.mxu0
    %v4251 = vadd.f32 0.0, %v4250
    %4252 = vmatmul.f32.gmra.mxu0 %v3946
    %v4253 = vpop.f32.mrf.mxu0
    %v4254 = vadd.f32 0.0, %v4253
    %4255 = vmatmul.f32.gmra.mxu0 %v3949
    %v4256 = vpop.f32.mrf.mxu0
    %v4257 = vadd.f32 0.0, %v4256
    %4258 = vmatmul.f32.gmra.mxu0 %v3952
    %v4259 = vpop.f32.mrf.mxu0
    %v4260 = vadd.f32 0.0, %v4259
    %4261 = vmatmul.f32.gmra.mxu0 %v3955
    %v4262 = vpop.f32.mrf.mxu0
    %v4263 = vadd.f32 0.0, %v4262
    %4264 = vmatmul.f32.gmra.mxu0 %v3958
    %v4265 = vpop.f32.mrf.mxu0
    %v4266 = vadd.f32 0.0, %v4265
    %4267 = vmatmul.f32.gmra.mxu0 %v3961
    %v4268 = vpop.f32.mrf.mxu0
    %v4269 = vadd.f32 0.0, %v4268
    %4270 = vmatmul.f32.gmra.mxu0 %v3964
    %v4271 = vpop.f32.mrf.mxu0
    %v4272 = vadd.f32 0.0, %v4271
    %4273 = vmatmul.f32.gmra.mxu0 %v3967
    %v4274 = vpop.f32.mrf.mxu0
    %v4275 = vadd.f32 0.0, %v4274
    %4276 = vmatmul.f32.gmra.mxu0 %v3970
    %v4277 = vpop.f32.mrf.mxu0
    %v4278 = vadd.f32 0.0, %v4277
    %4279 = vmatmul.f32.gmra.mxu0 %v3973
    %v4280 = vpop.f32.mrf.mxu0
    %v4281 = vadd.f32 0.0, %v4280
    %4282 = vmatmul.f32.gmra.mxu0 %v3976
    %v4283 = vpop.f32.mrf.mxu0
    %v4284 = vadd.f32 0.0, %v4283
    %4285 = vmatmul.f32.gmra.mxu0 %v3979
    %v4286 = vpop.f32.mrf.mxu0
    %v4287 = vadd.f32 0.0, %v4286
    %4288 = vmatmul.f32.gmra.mxu0 %v3982
    %v4289 = vpop.f32.mrf.mxu0
    %v4290 = vadd.f32 0.0, %v4289
    %4291 = vmatmul.f32.gmra.mxu0 %v3985
    %v4292 = vpop.f32.mrf.mxu0
    %v4293 = vadd.f32 0.0, %v4292
    %4294 = vmatmul.f32.gmra.mxu0 %v3988
    %v4295 = vpop.f32.mrf.mxu0
    %v4296 = vadd.f32 0.0, %v4295
    %4297 = vmatmul.f32.gmra.mxu0 %v3991
    %v4298 = vpop.f32.mrf.mxu0
    %v4299 = vadd.f32 0.0, %v4298
    %4300 = vmatmul.f32.gmra.mxu0 %v3994
    %v4301 = vpop.f32.mrf.mxu0
    %v4302 = vadd.f32 0.0, %v4301
    %4303 = vmatmul.f32.gmra.mxu0 %v3997
    %v4304 = vpop.f32.mrf.mxu0
    %v4305 = vadd.f32 0.0, %v4304
    %4306 = vmatmul.f32.gmra.mxu0 %v4000
    %v4307 = vpop.f32.mrf.mxu0
    %v4308 = vadd.f32 0.0, %v4307
    %4309 = vmatmul.f32.gmra.mxu0 %v4003
    %v4310 = vpop.f32.mrf.mxu0
    %v4311 = vadd.f32 0.0, %v4310
    %4312 = vmatmul.f32.gmra.mxu0 %v4006
    %v4313 = vpop.f32.mrf.mxu0
    %v4314 = vadd.f32 0.0, %v4313
    %4315 = vmatmul.f32.gmra.mxu0 %v4009
    %v4316 = vpop.f32.mrf.mxu0
    %v4317 = vadd.f32 0.0, %v4316
    %4318 = vmatmul.f32.gmra.mxu0 %v4012
    %v4319 = vpop.f32.mrf.mxu0
    %v4320 = vadd.f32 0.0, %v4319
    %4321 = vmatmul.f32.gmra.mxu0 %v4015
    %v4322 = vpop.f32.mrf.mxu0
    %v4323 = vadd.f32 0.0, %v4322
    %4324 = vmatmul.f32.gmra.mxu0 %v4018
    %v4325 = vpop.f32.mrf.mxu0
    %v4326 = vadd.f32 0.0, %v4325
    %4327 = vmatmul.f32.gmra.mxu0 %v4021
    %v4328 = vpop.f32.mrf.mxu0
    %v4329 = vadd.f32 0.0, %v4328
    %4330 = vmatmul.f32.gmra.mxu0 %v4024
    %v4331 = vpop.f32.mrf.mxu0
    %v4332 = vadd.f32 0.0, %v4331
    %4333 = vmatmul.f32.gmra.mxu0 %v4027
    %v4334 = vpop.f32.mrf.mxu0
    %v4335 = vadd.f32 0.0, %v4334
    %4336 = vmatmul.f32.gmra.mxu0 %v4030
    %v4337 = vpop.f32.mrf.mxu0
    %v4338 = vadd.f32 0.0, %v4337
    %4339 = vmatmul.f32.gmra.mxu0 %v4033
    %v4340 = vpop.f32.mrf.mxu0
    %v4341 = vadd.f32 0.0, %v4340
    %4342 = vmatmul.f32.gmra.mxu0 %v4036
    %v4343 = vpop.f32.mrf.mxu0
    %v4344 = vadd.f32 0.0, %v4343
    %4345 = vmatmul.f32.gmra.mxu0 %v4039
    %v4346 = vpop.f32.mrf.mxu0
    %v4347 = vadd.f32 0.0, %v4346
    %4348 = vmatmul.f32.gmra.mxu0 %v4042
    %v4349 = vpop.f32.mrf.mxu0
    %v4350 = vadd.f32 0.0, %v4349
    %4351 = vmatmul.f32.gmra.mxu0 %v4045
    %v4352 = vpop.f32.mrf.mxu0
    %v4353 = vadd.f32 0.0, %v4352
    %4354 = vmatmul.f32.gmra.mxu0 %v4048
    %v4355 = vpop.f32.mrf.mxu0
    %v4356 = vadd.f32 0.0, %v4355
    %4357 = vmatmul.f32.gmra.mxu0 %v4051
    %v4358 = vpop.f32.mrf.mxu0
    %v4359 = vadd.f32 0.0, %v4358
    %4360 = vmatmul.f32.gmra.mxu0 %v4054
    %v4361 = vpop.f32.mrf.mxu0
    %v4362 = vadd.f32 0.0, %v4361
    %4363 = vdwg.mxu0
    %v4364 = vadd.f32 %v3481, %v4077
    %v4365 = vadd.f32 %v3484, %v4080
    %v4366 = vadd.f32 %v3487, %v4083
    %v4367 = vadd.f32 %v3490, %v4086
    %v4368 = vadd.f32 %v3493, %v4089
    %v4369 = vadd.f32 %v3496, %v4092
    %v4370 = vadd.f32 %v3499, %v4095
    %v4371 = vadd.f32 %v3502, %v4098
    %v4372 = vadd.f32 %v3505, %v4101
    %v4373 = vadd.f32 %v3508, %v4104
    %v4374 = vadd.f32 %v3511, %v4107
    %v4375 = vadd.f32 %v3514, %v4110
    %v4376 = vadd.f32 %v3517, %v4113
    %v4377 = vadd.f32 %v3520, %v4116
    %v4378 = vadd.f32 %v3523, %v4119
    %v4379 = vadd.f32 %v3526, %v4122
    %v4380 = vadd.f32 %v3529, %v4125
    %v4381 = vadd.f32 %v3532, %v4128
    %v4382 = vadd.f32 %v3535, %v4131
    %v4383 = vadd.f32 %v3538, %v4134
    %v4384 = vadd.f32 %v3541, %v4137
    %v4385 = vadd.f32 %v3544, %v4140
    %v4386 = vadd.f32 %v3547, %v4143
    %v4387 = vadd.f32 %v3550, %v4146
    %v4388 = vadd.f32 %v3553, %v4149
    %v4389 = vadd.f32 %v3556, %v4152
    %v4390 = vadd.f32 %v3559, %v4155
    %v4391 = vadd.f32 %v3562, %v4158
    %v4392 = vadd.f32 %v3565, %v4161
    %v4393 = vadd.f32 %v3568, %v4164
    %v4394 = vadd.f32 %v3571, %v4167
    %v4395 = vadd.f32 %v3574, %v4170
    %v4396 = vadd.f32 %v3577, %v4173
    %v4397 = vadd.f32 %v3580, %v4176
    %v4398 = vadd.f32 %v3583, %v4179
    %v4399 = vadd.f32 %v3586, %v4182
    %v4400 = vadd.f32 %v3589, %v4185
    %v4401 = vadd.f32 %v3592, %v4188
    %v4402 = vadd.f32 %v3595, %v4191
    %v4403 = vadd.f32 %v3598, %v4194
    %v4404 = vadd.f32 %v3601, %v4197
    %v4405 = vadd.f32 %v3604, %v4200
    %v4406 = vadd.f32 %v3607, %v4203
    %v4407 = vadd.f32 %v3610, %v4206
    %v4408 = vadd.f32 %v3613, %v4209
    %v4409 = vadd.f32 %v3616, %v4212
    %v4410 = vadd.f32 %v3619, %v4215
    %v4411 = vadd.f32 %v3622, %v4218
    %v4412 = vadd.f32 %v3625, %v4221
    %v4413 = vadd.f32 %v3628, %v4224
    %v4414 = vadd.f32 %v3631, %v4227
    %v4415 = vadd.f32 %v3634, %v4230
    %v4416 = vadd.f32 %v3637, %v4233
    %v4417 = vadd.f32 %v3640, %v4236
    %v4418 = vadd.f32 %v3643, %v4239
    %v4419 = vadd.f32 %v3646, %v4242
    %v4420 = vadd.f32 %v3649, %v4245
    %v4421 = vadd.f32 %v3652, %v4248
    %v4422 = vadd.f32 %v3655, %v4251
    %v4423 = vadd.f32 %v3658, %v4254
    %v4424 = vadd.f32 %v3661, %v4257
    %v4425 = vadd.f32 %v3664, %v4260
    %v4426 = vadd.f32 %v3667, %v4263
    %v4427 = vadd.f32 %v3670, %v4266
    %v4428 = vadd.f32 %v3673, %v4269
    %v4429 = vadd.f32 %v3676, %v4272
    %v4430 = vadd.f32 %v3679, %v4275
    %v4431 = vadd.f32 %v3682, %v4278
    %v4432 = vadd.f32 %v3685, %v4281
    %v4433 = vadd.f32 %v3688, %v4284
    %v4434 = vadd.f32 %v3691, %v4287
    %v4435 = vadd.f32 %v3694, %v4290
    %v4436 = vadd.f32 %v3697, %v4293
    %v4437 = vadd.f32 %v3700, %v4296
    %v4438 = vadd.f32 %v3703, %v4299
    %v4439 = vadd.f32 %v3706, %v4302
    %v4440 = vadd.f32 %v3709, %v4305
    %v4441 = vadd.f32 %v3712, %v4308
    %v4442 = vadd.f32 %v3715, %v4311
    %v4443 = vadd.f32 %v3718, %v4314
    %v4444 = vadd.f32 %v3721, %v4317
    %v4445 = vadd.f32 %v3724, %v4320
    %v4446 = vadd.f32 %v3727, %v4323
    %v4447 = vadd.f32 %v3730, %v4326
    %v4448 = vadd.f32 %v3733, %v4329
    %v4449 = vadd.f32 %v3736, %v4332
    %v4450 = vadd.f32 %v3739, %v4335
    %v4451 = vadd.f32 %v3742, %v4338
    %v4452 = vadd.f32 %v3745, %v4341
    %v4453 = vadd.f32 %v3748, %v4344
    %v4454 = vadd.f32 %v3751, %v4347
    %v4455 = vadd.f32 %v3754, %v4350
    %v4456 = vadd.f32 %v3757, %v4353
    %v4457 = vadd.f32 %v3760, %v4356
    %v4458 = vadd.f32 %v3763, %v4359
    %v4459 = vadd.f32 %v3766, %v4362
    %v4461 = vperm.slane %v1893, 0
    %v4463 = vadd.f32 %v4364, %v4461
    %v4464 = vadd.f32 %v4365, %v4461
    %v4465 = vadd.f32 %v4366, %v4461
    %v4466 = vadd.f32 %v4367, %v4461
    %v4467 = vadd.f32 %v4368, %v4461
    %v4468 = vadd.f32 %v4369, %v4461
    %v4469 = vadd.f32 %v4370, %v4461
    %v4470 = vadd.f32 %v4371, %v4461
    %v4471 = vadd.f32 %v4372, %v4461
    %v4472 = vadd.f32 %v4373, %v4461
    %v4473 = vadd.f32 %v4374, %v4461
    %v4474 = vadd.f32 %v4375, %v4461
    %v4475 = vadd.f32 %v4376, %v4461
    %v4476 = vadd.f32 %v4377, %v4461
    %v4477 = vadd.f32 %v4378, %v4461
    %v4478 = vadd.f32 %v4379, %v4461
    %v4479 = vadd.f32 %v4380, %v4461
    %v4480 = vadd.f32 %v4381, %v4461
    %v4481 = vadd.f32 %v4382, %v4461
    %v4482 = vadd.f32 %v4383, %v4461
    %v4483 = vadd.f32 %v4384, %v4461
    %v4484 = vadd.f32 %v4385, %v4461
    %v4485 = vadd.f32 %v4386, %v4461
    %v4486 = vadd.f32 %v4387, %v4461
    %v4487 = vadd.f32 %v4388, %v4461
    %v4488 = vadd.f32 %v4389, %v4461
    %v4489 = vadd.f32 %v4390, %v4461
    %v4490 = vadd.f32 %v4391, %v4461
    %v4491 = vadd.f32 %v4392, %v4461
    %v4492 = vadd.f32 %v4393, %v4461
    %v4493 = vadd.f32 %v4394, %v4461
    %v4494 = vadd.f32 %v4395, %v4461
    %v4495 = vadd.f32 %v4396, %v4461
    %v4496 = vadd.f32 %v4397, %v4461
    %v4497 = vadd.f32 %v4398, %v4461
    %v4498 = vadd.f32 %v4399, %v4461
    %v4499 = vadd.f32 %v4400, %v4461
    %v4500 = vadd.f32 %v4401, %v4461
    %v4501 = vadd.f32 %v4402, %v4461
    %v4502 = vadd.f32 %v4403, %v4461
    %v4503 = vadd.f32 %v4404, %v4461
    %v4504 = vadd.f32 %v4405, %v4461
    %v4505 = vadd.f32 %v4406, %v4461
    %v4506 = vadd.f32 %v4407, %v4461
    %v4507 = vadd.f32 %v4408, %v4461
    %v4508 = vadd.f32 %v4409, %v4461
    %v4509 = vadd.f32 %v4410, %v4461
    %v4510 = vadd.f32 %v4411, %v4461
    %v4511 = vadd.f32 %v4412, %v4461
    %v4512 = vadd.f32 %v4413, %v4461
    %v4513 = vadd.f32 %v4414, %v4461
    %v4514 = vadd.f32 %v4415, %v4461
    %v4515 = vadd.f32 %v4416, %v4461
    %v4516 = vadd.f32 %v4417, %v4461
    %v4517 = vadd.f32 %v4418, %v4461
    %v4518 = vadd.f32 %v4419, %v4461
    %v4519 = vadd.f32 %v4420, %v4461
    %v4520 = vadd.f32 %v4421, %v4461
    %v4521 = vadd.f32 %v4422, %v4461
    %v4522 = vadd.f32 %v4423, %v4461
    %v4523 = vadd.f32 %v4424, %v4461
    %v4524 = vadd.f32 %v4425, %v4461
    %v4525 = vadd.f32 %v4426, %v4461
    %v4526 = vadd.f32 %v4427, %v4461
    %v4527 = vadd.f32 %v4428, %v4461
    %v4528 = vadd.f32 %v4429, %v4461
    %v4529 = vadd.f32 %v4430, %v4461
    %v4530 = vadd.f32 %v4431, %v4461
    %v4531 = vadd.f32 %v4432, %v4461
    %v4532 = vadd.f32 %v4433, %v4461
    %v4533 = vadd.f32 %v4434, %v4461
    %v4534 = vadd.f32 %v4435, %v4461
    %v4535 = vadd.f32 %v4436, %v4461
    %v4536 = vadd.f32 %v4437, %v4461
    %v4537 = vadd.f32 %v4438, %v4461
    %v4538 = vadd.f32 %v4439, %v4461
    %v4539 = vadd.f32 %v4440, %v4461
    %v4540 = vadd.f32 %v4441, %v4461
    %v4541 = vadd.f32 %v4442, %v4461
    %v4542 = vadd.f32 %v4443, %v4461
    %v4543 = vadd.f32 %v4444, %v4461
    %v4544 = vadd.f32 %v4445, %v4461
    %v4545 = vadd.f32 %v4446, %v4461
    %v4546 = vadd.f32 %v4447, %v4461
    %v4547 = vadd.f32 %v4448, %v4461
    %v4548 = vadd.f32 %v4449, %v4461
    %v4549 = vadd.f32 %v4450, %v4461
    %v4550 = vadd.f32 %v4451, %v4461
    %v4551 = vadd.f32 %v4452, %v4461
    %v4552 = vadd.f32 %v4453, %v4461
    %v4553 = vadd.f32 %v4454, %v4461
    %v4554 = vadd.f32 %v4455, %v4461
    %v4555 = vadd.f32 %v4456, %v4461
    %v4556 = vadd.f32 %v4457, %v4461
    %v4557 = vadd.f32 %v4458, %v4461
    %v4558 = vadd.f32 %v4459, %v4461
    %v4559 = vmax.f32 %v4463, 0.0
    %v4560 = vmax.f32 %v4464, 0.0
    %v4561 = vmax.f32 %v4465, 0.0
    %v4562 = vmax.f32 %v4466, 0.0
    %v4563 = vmax.f32 %v4467, 0.0
    %v4564 = vmax.f32 %v4468, 0.0
    %v4565 = vmax.f32 %v4469, 0.0
    %v4566 = vmax.f32 %v4470, 0.0
    %v4567 = vmax.f32 %v4471, 0.0
    %v4568 = vmax.f32 %v4472, 0.0
    %v4569 = vmax.f32 %v4473, 0.0
    %v4570 = vmax.f32 %v4474, 0.0
    %v4571 = vmax.f32 %v4475, 0.0
    %v4572 = vmax.f32 %v4476, 0.0
    %v4573 = vmax.f32 %v4477, 0.0
    %v4574 = vmax.f32 %v4478, 0.0
    %v4575 = vmax.f32 %v4479, 0.0
    %v4576 = vmax.f32 %v4480, 0.0
    %v4577 = vmax.f32 %v4481, 0.0
    %v4578 = vmax.f32 %v4482, 0.0
    %v4579 = vmax.f32 %v4483, 0.0
    %v4580 = vmax.f32 %v4484, 0.0
    %v4581 = vmax.f32 %v4485, 0.0
    %v4582 = vmax.f32 %v4486, 0.0
    %v4583 = vmax.f32 %v4487, 0.0
    %v4584 = vmax.f32 %v4488, 0.0
    %v4585 = vmax.f32 %v4489, 0.0
    %v4586 = vmax.f32 %v4490, 0.0
    %v4587 = vmax.f32 %v4491, 0.0
    %v4588 = vmax.f32 %v4492, 0.0
    %v4589 = vmax.f32 %v4493, 0.0
    %v4590 = vmax.f32 %v4494, 0.0
    %v4591 = vmax.f32 %v4495, 0.0
    %v4592 = vmax.f32 %v4496, 0.0
    %v4593 = vmax.f32 %v4497, 0.0
    %v4594 = vmax.f32 %v4498, 0.0
    %v4595 = vmax.f32 %v4499, 0.0
    %v4596 = vmax.f32 %v4500, 0.0
    %v4597 = vmax.f32 %v4501, 0.0
    %v4598 = vmax.f32 %v4502, 0.0
    %v4599 = vmax.f32 %v4503, 0.0
    %v4600 = vmax.f32 %v4504, 0.0
    %v4601 = vmax.f32 %v4505, 0.0
    %v4602 = vmax.f32 %v4506, 0.0
    %v4603 = vmax.f32 %v4507, 0.0
    %v4604 = vmax.f32 %v4508, 0.0
    %v4605 = vmax.f32 %v4509, 0.0
    %v4606 = vmax.f32 %v4510, 0.0
    %v4607 = vmax.f32 %v4511, 0.0
    %v4608 = vmax.f32 %v4512, 0.0
    %v4609 = vmax.f32 %v4513, 0.0
    %v4610 = vmax.f32 %v4514, 0.0
    %v4611 = vmax.f32 %v4515, 0.0
    %v4612 = vmax.f32 %v4516, 0.0
    %v4613 = vmax.f32 %v4517, 0.0
    %v4614 = vmax.f32 %v4518, 0.0
    %v4615 = vmax.f32 %v4519, 0.0
    %v4616 = vmax.f32 %v4520, 0.0
    %v4617 = vmax.f32 %v4521, 0.0
    %v4618 = vmax.f32 %v4522, 0.0
    %v4619 = vmax.f32 %v4523, 0.0
    %v4620 = vmax.f32 %v4524, 0.0
    %v4621 = vmax.f32 %v4525, 0.0
    %v4622 = vmax.f32 %v4526, 0.0
    %v4623 = vmax.f32 %v4527, 0.0
    %v4624 = vmax.f32 %v4528, 0.0
    %v4625 = vmax.f32 %v4529, 0.0
    %v4626 = vmax.f32 %v4530, 0.0
    %v4627 = vmax.f32 %v4531, 0.0
    %v4628 = vmax.f32 %v4532, 0.0
    %v4629 = vmax.f32 %v4533, 0.0
    %v4630 = vmax.f32 %v4534, 0.0
    %v4631 = vmax.f32 %v4535, 0.0
    %v4632 = vmax.f32 %v4536, 0.0
    %v4633 = vmax.f32 %v4537, 0.0
    %v4634 = vmax.f32 %v4538, 0.0
    %v4635 = vmax.f32 %v4539, 0.0
    %v4636 = vmax.f32 %v4540, 0.0
    %v4637 = vmax.f32 %v4541, 0.0
    %v4638 = vmax.f32 %v4542, 0.0
    %v4639 = vmax.f32 %v4543, 0.0
    %v4640 = vmax.f32 %v4544, 0.0
    %v4641 = vmax.f32 %v4545, 0.0
    %v4642 = vmax.f32 %v4546, 0.0
    %v4643 = vmax.f32 %v4547, 0.0
    %v4644 = vmax.f32 %v4548, 0.0
    %v4645 = vmax.f32 %v4549, 0.0
    %v4646 = vmax.f32 %v4550, 0.0
    %v4647 = vmax.f32 %v4551, 0.0
    %v4648 = vmax.f32 %v4552, 0.0
    %v4649 = vmax.f32 %v4553, 0.0
    %v4650 = vmax.f32 %v4554, 0.0
    %v4651 = vmax.f32 %v4555, 0.0
    %v4652 = vmax.f32 %v4556, 0.0
    %v4653 = vmax.f32 %v4557, 0.0
    %v4654 = vmax.f32 %v4558, 0.0
    %v4655 = vrot.slane %v4559, 7
    %v4656 = vrot.slane %v4560, 7
    %v4657 = vrot.slane %v4561, 7
    %v4658 = vrot.slane %v4562, 7
    %v4659 = vrot.slane %v4563, 7
    %v4660 = vrot.slane %v4564, 7
    %v4661 = vrot.slane %v4565, 7
    %v4662 = vrot.slane %v4566, 7
    %v4663 = vrot.slane %v4567, 7
    %v4664 = vrot.slane %v4568, 7
    %v4665 = vrot.slane %v4569, 7
    %v4666 = vrot.slane %v4570, 7
    %v4667 = vrot.slane %v4571, 7
    %v4668 = vrot.slane %v4572, 7
    %v4669 = vrot.slane %v4573, 7
    %v4670 = vrot.slane %v4574, 7
    %v4671 = vrot.slane %v4575, 7
    %v4672 = vrot.slane %v4576, 7
    %v4673 = vrot.slane %v4577, 7
    %v4674 = vrot.slane %v4578, 7
    %v4675 = vrot.slane %v4579, 7
    %v4676 = vrot.slane %v4580, 7
    %v4677 = vrot.slane %v4581, 7
    %v4678 = vrot.slane %v4582, 7
    %v4679 = vrot.slane %v4583, 7
    %v4680 = vrot.slane %v4584, 7
    %v4681 = vrot.slane %v4585, 7
    %v4682 = vrot.slane %v4586, 7
    %v4683 = vrot.slane %v4587, 7
    %v4684 = vrot.slane %v4588, 7
    %v4685 = vrot.slane %v4589, 7
    %v4686 = vrot.slane %v4590, 7
    %v4687 = vrot.slane %v4591, 7
    %v4688 = vrot.slane %v4592, 7
    %v4689 = vrot.slane %v4593, 7
    %v4690 = vrot.slane %v4594, 7
    %v4691 = vrot.slane %v4595, 7
    %v4692 = vrot.slane %v4596, 7
    %v4693 = vrot.slane %v4597, 7
    %v4694 = vrot.slane %v4598, 7
    %v4695 = vrot.slane %v4599, 7
    %v4696 = vrot.slane %v4600, 7
    %v4697 = vrot.slane %v4601, 7
    %v4698 = vrot.slane %v4602, 7
    %v4699 = vrot.slane %v4603, 7
    %v4700 = vrot.slane %v4604, 7
    %v4701 = vrot.slane %v4605, 7
    %v4702 = vrot.slane %v4606, 7
    %v4703 = vrot.slane %v4607, 7
    %v4704 = vrot.slane %v4608, 7
    %v4705 = vrot.slane %v4609, 7
    %v4706 = vrot.slane %v4610, 7
    %v4707 = vrot.slane %v4611, 7
    %v4708 = vrot.slane %v4612, 7
    %v4709 = vrot.slane %v4613, 7
    %v4710 = vrot.slane %v4614, 7
    %v4711 = vrot.slane %v4615, 7
    %v4712 = vrot.slane %v4616, 7
    %v4713 = vrot.slane %v4617, 7
    %v4714 = vrot.slane %v4618, 7
    %v4715 = vrot.slane %v4619, 7
    %v4716 = vrot.slane %v4620, 7
    %v4717 = vrot.slane %v4621, 7
    %v4718 = vrot.slane %v4622, 7
    %v4719 = vrot.slane %v4623, 7
    %v4720 = vrot.slane %v4624, 7
    %v4721 = vrot.slane %v4625, 7
    %v4722 = vrot.slane %v4626, 7
    %v4723 = vrot.slane %v4627, 7
    %v4724 = vrot.slane %v4628, 7
    %v4725 = vrot.slane %v4629, 7
    %v4726 = vrot.slane %v4630, 7
    %v4727 = vrot.slane %v4631, 7
    %v4728 = vrot.slane %v4632, 7
    %v4729 = vrot.slane %v4633, 7
    %v4730 = vrot.slane %v4634, 7
    %v4731 = vrot.slane %v4635, 7
    %v4732 = vrot.slane %v4636, 7
    %v4733 = vrot.slane %v4637, 7
    %v4734 = vrot.slane %v4638, 7
    %v4735 = vrot.slane %v4639, 7
    %v4736 = vrot.slane %v4640, 7
    %v4737 = vrot.slane %v4641, 7
    %v4738 = vrot.slane %v4642, 7
    %v4739 = vrot.slane %v4643, 7
    %v4740 = vrot.slane %v4644, 7
    %v4741 = vrot.slane %v4645, 7
    %v4742 = vrot.slane %v4646, 7
    %v4743 = vrot.slane %v4647, 7
    %v4744 = vrot.slane %v4648, 7
    %v4745 = vrot.slane %v4649, 7
    %v4746 = vrot.slane %v4650, 7
    %v4747 = vrot.slane %v4651, 7
    %v4748 = vrot.slane %v4652, 7
    %v4749 = vrot.slane %v4653, 7
    %v4750 = vrot.slane %v4654, 7
    %v4751 = vsel %vm2092, %v4749, %v4750
    %v4752 = vsel %vm2092, %v4748, %v4749
    %v4753 = vsel %vm2092, %v4747, %v4748
    %v4754 = vsel %vm2092, %v4746, %v4747
    %v4755 = vsel %vm2092, %v4745, %v4746
    %v4756 = vsel %vm2092, %v4744, %v4745
    %v4757 = vsel %vm2092, %v4743, %v4744
    %v4758 = vsel %vm2092, %v4742, %v4743
    %v4759 = vsel %vm2092, %v4741, %v4742
    %v4760 = vsel %vm2092, %v4740, %v4741
    %v4761 = vsel %vm2092, %v4739, %v4740
    %v4762 = vsel %vm2092, %v4738, %v4739
    %v4763 = vsel %vm2092, %v4737, %v4738
    %v4764 = vsel %vm2092, %v4736, %v4737
    %v4765 = vsel %vm2092, %v4735, %v4736
    %v4766 = vsel %vm2092, %v4734, %v4735
    %v4767 = vsel %vm2092, %v4733, %v4734
    %v4768 = vsel %vm2092, %v4732, %v4733
    %v4769 = vsel %vm2092, %v4731, %v4732
    %v4770 = vsel %vm2092, %v4730, %v4731
    %v4771 = vsel %vm2092, %v4729, %v4730
    %v4772 = vsel %vm2092, %v4728, %v4729
    %v4773 = vsel %vm2092, %v4727, %v4728
    %v4774 = vsel %vm2092, %v4726, %v4727
    %v4775 = vsel %vm2092, %v4725, %v4726
    %v4776 = vsel %vm2092, %v4724, %v4725
    %v4777 = vsel %vm2092, %v4723, %v4724
    %v4778 = vsel %vm2092, %v4722, %v4723
    %v4779 = vsel %vm2092, %v4721, %v4722
    %v4780 = vsel %vm2092, %v4720, %v4721
    %v4781 = vsel %vm2092, %v4719, %v4720
    %v4782 = vsel %vm2092, %v4718, %v4719
    %v4783 = vsel %vm2092, %v4717, %v4718
    %v4784 = vsel %vm2092, %v4716, %v4717
    %v4785 = vsel %vm2092, %v4715, %v4716
    %v4786 = vsel %vm2092, %v4714, %v4715
    %v4787 = vsel %vm2092, %v4713, %v4714
    %v4788 = vsel %vm2092, %v4712, %v4713
    %v4789 = vsel %vm2092, %v4711, %v4712
    %v4790 = vsel %vm2092, %v4710, %v4711
    %v4791 = vsel %vm2092, %v4709, %v4710
    %v4792 = vsel %vm2092, %v4708, %v4709
    %v4793 = vsel %vm2092, %v4707, %v4708
    %v4794 = vsel %vm2092, %v4706, %v4707
    %v4795 = vsel %vm2092, %v4705, %v4706
    %v4796 = vsel %vm2092, %v4704, %v4705
    %v4797 = vsel %vm2092, %v4703, %v4704
    %v4798 = vsel %vm2092, %v4702, %v4703
    %v4799 = vsel %vm2092, %v4701, %v4702
    %v4800 = vsel %vm2092, %v4700, %v4701
    %v4801 = vsel %vm2092, %v4699, %v4700
    %v4802 = vsel %vm2092, %v4698, %v4699
    %v4803 = vsel %vm2092, %v4697, %v4698
    %v4804 = vsel %vm2092, %v4696, %v4697
    %v4805 = vsel %vm2092, %v4695, %v4696
    %v4806 = vsel %vm2092, %v4694, %v4695
    %v4807 = vsel %vm2092, %v4693, %v4694
    %v4808 = vsel %vm2092, %v4692, %v4693
    %v4809 = vsel %vm2092, %v4691, %v4692
    %v4810 = vsel %vm2092, %v4690, %v4691
    %v4811 = vsel %vm2092, %v4689, %v4690
    %v4812 = vsel %vm2092, %v4688, %v4689
    %v4813 = vsel %vm2092, %v4687, %v4688
    %v4814 = vsel %vm2092, %v4686, %v4687
    %v4815 = vsel %vm2092, %v4685, %v4686
    %v4816 = vsel %vm2092, %v4684, %v4685
    %v4817 = vsel %vm2092, %v4683, %v4684
    %v4818 = vsel %vm2092, %v4682, %v4683
    %v4819 = vsel %vm2092, %v4681, %v4682
    %v4820 = vsel %vm2092, %v4680, %v4681
    %v4821 = vsel %vm2092, %v4679, %v4680
    %v4822 = vsel %vm2092, %v4678, %v4679
    %v4823 = vsel %vm2092, %v4677, %v4678
    %v4824 = vsel %vm2092, %v4676, %v4677
    %v4825 = vsel %vm2092, %v4675, %v4676
    %v4826 = vsel %vm2092, %v4674, %v4675
    %v4827 = vsel %vm2092, %v4673, %v4674
    %v4828 = vsel %vm2092, %v4672, %v4673
    %v4829 = vsel %vm2092, %v4671, %v4672
    %v4830 = vsel %vm2092, %v4670, %v4671
    %v4831 = vsel %vm2092, %v4669, %v4670
    %v4832 = vsel %vm2092, %v4668, %v4669
    %v4833 = vsel %vm2092, %v4667, %v4668
    %v4834 = vsel %vm2092, %v4666, %v4667
    %v4835 = vsel %vm2092, %v4665, %v4666
    %v4836 = vsel %vm2092, %v4664, %v4665
    %v4837 = vsel %vm2092, %v4663, %v4664
    %v4838 = vsel %vm2092, %v4662, %v4663
    %v4839 = vsel %vm2092, %v4661, %v4662
    %v4840 = vsel %vm2092, %v4660, %v4661
    %v4841 = vsel %vm2092, %v4659, %v4660
    %v4842 = vsel %vm2092, %v4658, %v4659
    %v4843 = vsel %vm2092, %v4657, %v4658
    %v4844 = vsel %vm2092, %v4656, %v4657
    %v4845 = vsel %vm2092, %v4655, %v4656
    %v4846 = vsel %vm2092, %v4750, %v4655
    %v4847 = vmul.f32 %v4846, %v1472
    %v4848 = vmul.f32 %v4845, %v1473
    %v4849 = vmul.f32 %v4844, %v1474
    %v4850 = vmul.f32 %v4843, %v1475
    %v4851 = vmul.f32 %v4842, %v1476
    %v4852 = vmul.f32 %v4841, %v1477
    %v4853 = vmul.f32 %v4840, %v1478
    %v4854 = vmul.f32 %v4839, %v1479
    %v4855 = vmul.f32 %v4838, %v1480
    %v4856 = vmul.f32 %v4837, %v1481
    %v4857 = vmul.f32 %v4836, %v1482
    %v4858 = vmul.f32 %v4835, %v1483
    %v4859 = vmul.f32 %v4834, %v1484
    %v4860 = vmul.f32 %v4833, %v1485
    %v4861 = vmul.f32 %v4832, %v1486
    %v4862 = vmul.f32 %v4831, %v1487
    %v4863 = vmul.f32 %v4830, %v1488
    %v4864 = vmul.f32 %v4829, %v1489
    %v4865 = vmul.f32 %v4828, %v1490
    %v4866 = vmul.f32 %v4827, %v1491
    %v4867 = vmul.f32 %v4826, %v1492
    %v4868 = vmul.f32 %v4825, %v1493
    %v4869 = vmul.f32 %v4824, %v1494
    %v4870 = vmul.f32 %v4823, %v1495
    %v4871 = vmul.f32 %v4822, %v1496
    %v4872 = vmul.f32 %v4821, %v1497
    %v4873 = vmul.f32 %v4820, %v1498
    %v4874 = vmul.f32 %v4819, %v1499
    %v4875 = vmul.f32 %v4818, %v1500
    %v4876 = vmul.f32 %v4817, %v1501
    %v4877 = vmul.f32 %v4816, %v1502
    %v4878 = vmul.f32 %v4815, %v1503
    %v4879 = vmul.f32 %v4814, %v1504
    %v4880 = vmul.f32 %v4813, %v1505
    %v4881 = vmul.f32 %v4812, %v1506
    %v4882 = vmul.f32 %v4811, %v1507
    %v4883 = vmul.f32 %v4810, %v1508
    %v4884 = vmul.f32 %v4809, %v1509
    %v4885 = vmul.f32 %v4808, %v1510
    %v4886 = vmul.f32 %v4807, %v1511
    %v4887 = vmul.f32 %v4806, %v1512
    %v4888 = vmul.f32 %v4805, %v1513
    %v4889 = vmul.f32 %v4804, %v1514
    %v4890 = vmul.f32 %v4803, %v1515
    %v4891 = vmul.f32 %v4802, %v1516
    %v4892 = vmul.f32 %v4801, %v1517
    %v4893 = vmul.f32 %v4800, %v1518
    %v4894 = vmul.f32 %v4799, %v1519
    %v4895 = vmul.f32 %v4798, %v1520
    %v4896 = vmul.f32 %v4797, %v1521
    %v4897 = vmul.f32 %v4796, %v1522
    %v4898 = vmul.f32 %v4795, %v1523
    %v4899 = vmul.f32 %v4794, %v1524
    %v4900 = vmul.f32 %v4793, %v1525
    %v4901 = vmul.f32 %v4792, %v1526
    %v4902 = vmul.f32 %v4791, %v1527
    %v4903 = vmul.f32 %v4790, %v1528
    %v4904 = vmul.f32 %v4789, %v1529
    %v4905 = vmul.f32 %v4788, %v1530
    %v4906 = vmul.f32 %v4787, %v1531
    %v4907 = vmul.f32 %v4786, %v1532
    %v4908 = vmul.f32 %v4785, %v1533
    %v4909 = vmul.f32 %v4784, %v1534
    %v4910 = vmul.f32 %v4783, %v1535
    %v4911 = vmul.f32 %v4782, %v1536
    %v4912 = vmul.f32 %v4781, %v1537
    %v4913 = vmul.f32 %v4780, %v1538
    %v4914 = vmul.f32 %v4779, %v1539
    %v4915 = vmul.f32 %v4778, %v1540
    %v4916 = vmul.f32 %v4777, %v1541
    %v4917 = vmul.f32 %v4776, %v1542
    %v4918 = vmul.f32 %v4775, %v1543
    %v4919 = vmul.f32 %v4774, %v1544
    %v4920 = vmul.f32 %v4773, %v1545
    %v4921 = vmul.f32 %v4772, %v1546
    %v4922 = vmul.f32 %v4771, %v1547
    %v4923 = vmul.f32 %v4770, %v1548
    %v4924 = vmul.f32 %v4769, %v1549
    %v4925 = vmul.f32 %v4768, %v1550
    %v4926 = vmul.f32 %v4767, %v1551
    %v4927 = vmul.f32 %v4766, %v1552
    %v4928 = vmul.f32 %v4765, %v1553
    %v4929 = vmul.f32 %v4764, %v1554
    %v4930 = vmul.f32 %v4763, %v1555
    %v4931 = vmul.f32 %v4762, %v1556
    %v4932 = vmul.f32 %v4761, %v1557
    %v4933 = vmul.f32 %v4760, %v1558
    %v4934 = vmul.f32 %v4759, %v1559
    %v4935 = vmul.f32 %v4758, %v1560
    %v4936 = vmul.f32 %v4757, %v1561
    %v4937 = vmul.f32 %v4756, %v1562
    %v4938 = vmul.f32 %v4755, %v1563
    %v4939 = vmul.f32 %v4754, %v1564
    %v4940 = vmul.f32 %v4753, %v1565
    %v4941 = vmul.f32 %v4752, %v1566
    %v4942 = vmul.f32 %v4751, %v1567
    %v4943 = vrot.slane %v4559, 1
    %v4944 = vrot.slane %v4560, 1
    %v4945 = vrot.slane %v4561, 1
    %v4946 = vrot.slane %v4562, 1
    %v4947 = vrot.slane %v4563, 1
    %v4948 = vrot.slane %v4564, 1
    %v4949 = vrot.slane %v4565, 1
    %v4950 = vrot.slane %v4566, 1
    %v4951 = vrot.slane %v4567, 1
    %v4952 = vrot.slane %v4568, 1
    %v4953 = vrot.slane %v4569, 1
    %v4954 = vrot.slane %v4570, 1
    %v4955 = vrot.slane %v4571, 1
    %v4956 = vrot.slane %v4572, 1
    %v4957 = vrot.slane %v4573, 1
    %v4958 = vrot.slane %v4574, 1
    %v4959 = vrot.slane %v4575, 1
    %v4960 = vrot.slane %v4576, 1
    %v4961 = vrot.slane %v4577, 1
    %v4962 = vrot.slane %v4578, 1
    %v4963 = vrot.slane %v4579, 1
    %v4964 = vrot.slane %v4580, 1
    %v4965 = vrot.slane %v4581, 1
    %v4966 = vrot.slane %v4582, 1
    %v4967 = vrot.slane %v4583, 1
    %v4968 = vrot.slane %v4584, 1
    %v4969 = vrot.slane %v4585, 1
    %v4970 = vrot.slane %v4586, 1
    %v4971 = vrot.slane %v4587, 1
    %v4972 = vrot.slane %v4588, 1
    %v4973 = vrot.slane %v4589, 1
    %v4974 = vrot.slane %v4590, 1
    %v4975 = vrot.slane %v4591, 1
    %v4976 = vrot.slane %v4592, 1
    %v4977 = vrot.slane %v4593, 1
    %v4978 = vrot.slane %v4594, 1
    %v4979 = vrot.slane %v4595, 1
    %v4980 = vrot.slane %v4596, 1
    %v4981 = vrot.slane %v4597, 1
    %v4982 = vrot.slane %v4598, 1
    %v4983 = vrot.slane %v4599, 1
    %v4984 = vrot.slane %v4600, 1
    %v4985 = vrot.slane %v4601, 1
    %v4986 = vrot.slane %v4602, 1
    %v4987 = vrot.slane %v4603, 1
    %v4988 = vrot.slane %v4604, 1
    %v4989 = vrot.slane %v4605, 1
    %v4990 = vrot.slane %v4606, 1
    %v4991 = vrot.slane %v4607, 1
    %v4992 = vrot.slane %v4608, 1
    %v4993 = vrot.slane %v4609, 1
    %v4994 = vrot.slane %v4610, 1
    %v4995 = vrot.slane %v4611, 1
    %v4996 = vrot.slane %v4612, 1
    %v4997 = vrot.slane %v4613, 1
    %v4998 = vrot.slane %v4614, 1
    %v4999 = vrot.slane %v4615, 1
    %v5000 = vrot.slane %v4616, 1
    %v5001 = vrot.slane %v4617, 1
    %v5002 = vrot.slane %v4618, 1
    %v5003 = vrot.slane %v4619, 1
    %v5004 = vrot.slane %v4620, 1
    %v5005 = vrot.slane %v4621, 1
    %v5006 = vrot.slane %v4622, 1
    %v5007 = vrot.slane %v4623, 1
    %v5008 = vrot.slane %v4624, 1
    %v5009 = vrot.slane %v4625, 1
    %v5010 = vrot.slane %v4626, 1
    %v5011 = vrot.slane %v4627, 1
    %v5012 = vrot.slane %v4628, 1
    %v5013 = vrot.slane %v4629, 1
    %v5014 = vrot.slane %v4630, 1
    %v5015 = vrot.slane %v4631, 1
    %v5016 = vrot.slane %v4632, 1
    %v5017 = vrot.slane %v4633, 1
    %v5018 = vrot.slane %v4634, 1
    %v5019 = vrot.slane %v4635, 1
    %v5020 = vrot.slane %v4636, 1
    %v5021 = vrot.slane %v4637, 1
    %v5022 = vrot.slane %v4638, 1
    %v5023 = vrot.slane %v4639, 1
    %v5024 = vrot.slane %v4640, 1
    %v5025 = vrot.slane %v4641, 1
    %v5026 = vrot.slane %v4642, 1
    %v5027 = vrot.slane %v4643, 1
    %v5028 = vrot.slane %v4644, 1
    %v5029 = vrot.slane %v4645, 1
    %v5030 = vrot.slane %v4646, 1
    %v5031 = vrot.slane %v4647, 1
    %v5032 = vrot.slane %v4648, 1
    %v5033 = vrot.slane %v4649, 1
    %v5034 = vrot.slane %v4650, 1
    %v5035 = vrot.slane %v4651, 1
    %v5036 = vrot.slane %v4652, 1
    %v5037 = vrot.slane %v4653, 1
    %v5038 = vrot.slane %v4654, 1
    %v5039 = vsel %vm2381, %v5037, %v5038
    %v5040 = vsel %vm2381, %v5036, %v5037
    %v5041 = vsel %vm2381, %v5035, %v5036
    %v5042 = vsel %vm2381, %v5034, %v5035
    %v5043 = vsel %vm2381, %v5033, %v5034
    %v5044 = vsel %vm2381, %v5032, %v5033
    %v5045 = vsel %vm2381, %v5031, %v5032
    %v5046 = vsel %vm2381, %v5030, %v5031
    %v5047 = vsel %vm2381, %v5029, %v5030
    %v5048 = vsel %vm2381, %v5028, %v5029
    %v5049 = vsel %vm2381, %v5027, %v5028
    %v5050 = vsel %vm2381, %v5026, %v5027
    %v5051 = vsel %vm2381, %v5025, %v5026
    %v5052 = vsel %vm2381, %v5024, %v5025
    %v5053 = vsel %vm2381, %v5023, %v5024
    %v5054 = vsel %vm2381, %v5022, %v5023
    %v5055 = vsel %vm2381, %v5021, %v5022
    %v5056 = vsel %vm2381, %v5020, %v5021
    %v5057 = vsel %vm2381, %v5019, %v5020
    %v5058 = vsel %vm2381, %v5018, %v5019
    %v5059 = vsel %vm2381, %v5017, %v5018
    %v5060 = vsel %vm2381, %v5016, %v5017
    %v5061 = vsel %vm2381, %v5015, %v5016
    %v5062 = vsel %vm2381, %v5014, %v5015
    %v5063 = vsel %vm2381, %v5013, %v5014
    %v5064 = vsel %vm2381, %v5012, %v5013
    %v5065 = vsel %vm2381, %v5011, %v5012
    %v5066 = vsel %vm2381, %v5010, %v5011
    %v5067 = vsel %vm2381, %v5009, %v5010
    %v5068 = vsel %vm2381, %v5008, %v5009
    %v5069 = vsel %vm2381, %v5007, %v5008
    %v5070 = vsel %vm2381, %v5006, %v5007
    %v5071 = vsel %vm2381, %v5005, %v5006
    %v5072 = vsel %vm2381, %v5004, %v5005
    %v5073 = vsel %vm2381, %v5003, %v5004
    %v5074 = vsel %vm2381, %v5002, %v5003
    %v5075 = vsel %vm2381, %v5001, %v5002
    %v5076 = vsel %vm2381, %v5000, %v5001
    %v5077 = vsel %vm2381, %v4999, %v5000
    %v5078 = vsel %vm2381, %v4998, %v4999
    %v5079 = vsel %vm2381, %v4997, %v4998
    %v5080 = vsel %vm2381, %v4996, %v4997
    %v5081 = vsel %vm2381, %v4995, %v4996
    %v5082 = vsel %vm2381, %v4994, %v4995
    %v5083 = vsel %vm2381, %v4993, %v4994
    %v5084 = vsel %vm2381, %v4992, %v4993
    %v5085 = vsel %vm2381, %v4991, %v4992
    %v5086 = vsel %vm2381, %v4990, %v4991
    %v5087 = vsel %vm2381, %v4989, %v4990
    %v5088 = vsel %vm2381, %v4988, %v4989
    %v5089 = vsel %vm2381, %v4987, %v4988
    %v5090 = vsel %vm2381, %v4986, %v4987
    %v5091 = vsel %vm2381, %v4985, %v4986
    %v5092 = vsel %vm2381, %v4984, %v4985
    %v5093 = vsel %vm2381, %v4983, %v4984
    %v5094 = vsel %vm2381, %v4982, %v4983
    %v5095 = vsel %vm2381, %v4981, %v4982
    %v5096 = vsel %vm2381, %v4980, %v4981
    %v5097 = vsel %vm2381, %v4979, %v4980
    %v5098 = vsel %vm2381, %v4978, %v4979
    %v5099 = vsel %vm2381, %v4977, %v4978
    %v5100 = vsel %vm2381, %v4976, %v4977
    %v5101 = vsel %vm2381, %v4975, %v4976
    %v5102 = vsel %vm2381, %v4974, %v4975
    %v5103 = vsel %vm2381, %v4973, %v4974
    %v5104 = vsel %vm2381, %v4972, %v4973
    %v5105 = vsel %vm2381, %v4971, %v4972
    %v5106 = vsel %vm2381, %v4970, %v4971
    %v5107 = vsel %vm2381, %v4969, %v4970
    %v5108 = vsel %vm2381, %v4968, %v4969
    %v5109 = vsel %vm2381, %v4967, %v4968
    %v5110 = vsel %vm2381, %v4966, %v4967
    %v5111 = vsel %vm2381, %v4965, %v4966
    %v5112 = vsel %vm2381, %v4964, %v4965
    %v5113 = vsel %vm2381, %v4963, %v4964
    %v5114 = vsel %vm2381, %v4962, %v4963
    %v5115 = vsel %vm2381, %v4961, %v4962
    %v5116 = vsel %vm2381, %v4960, %v4961
    %v5117 = vsel %vm2381, %v4959, %v4960
    %v5118 = vsel %vm2381, %v4958, %v4959
    %v5119 = vsel %vm2381, %v4957, %v4958
    %v5120 = vsel %vm2381, %v4956, %v4957
    %v5121 = vsel %vm2381, %v4955, %v4956
    %v5122 = vsel %vm2381, %v4954, %v4955
    %v5123 = vsel %vm2381, %v4953, %v4954
    %v5124 = vsel %vm2381, %v4952, %v4953
    %v5125 = vsel %vm2381, %v4951, %v4952
    %v5126 = vsel %vm2381, %v4950, %v4951
    %v5127 = vsel %vm2381, %v4949, %v4950
    %v5128 = vsel %vm2381, %v4948, %v4949
    %v5129 = vsel %vm2381, %v4947, %v4948
    %v5130 = vsel %vm2381, %v4946, %v4947
    %v5131 = vsel %vm2381, %v4945, %v4946
    %v5132 = vsel %vm2381, %v4944, %v4945
    %v5133 = vsel %vm2381, %v4943, %v4944
    %v5134 = vsel %vm2381, %v5038, %v4943
    %v5135 = vmul.f32 %v5133, %v1760
    %v5136 = vmul.f32 %v5132, %v1761
    %v5137 = vmul.f32 %v5131, %v1762
    %v5138 = vmul.f32 %v5130, %v1763
    %v5139 = vmul.f32 %v5129, %v1764
    %v5140 = vmul.f32 %v5128, %v1765
    %v5141 = vmul.f32 %v5127, %v1766
    %v5142 = vmul.f32 %v5126, %v1767
    %v5143 = vmul.f32 %v5125, %v1768
    %v5144 = vmul.f32 %v5124, %v1769
    %v5145 = vmul.f32 %v5123, %v1770
    %v5146 = vmul.f32 %v5122, %v1771
    %v5147 = vmul.f32 %v5121, %v1772
    %v5148 = vmul.f32 %v5120, %v1773
    %v5149 = vmul.f32 %v5119, %v1774
    %v5150 = vmul.f32 %v5118, %v1775
    %v5151 = vmul.f32 %v5117, %v1776
    %v5152 = vmul.f32 %v5116, %v1777
    %v5153 = vmul.f32 %v5115, %v1778
    %v5154 = vmul.f32 %v5114, %v1779
    %v5155 = vmul.f32 %v5113, %v1780
    %v5156 = vmul.f32 %v5112, %v1781
    %v5157 = vmul.f32 %v5111, %v1782
    %v5158 = vmul.f32 %v5110, %v1783
    %v5159 = vmul.f32 %v5109, %v1784
    %v5160 = vmul.f32 %v5108, %v1785
    %v5161 = vmul.f32 %v5107, %v1786
    %v5162 = vmul.f32 %v5106, %v1787
    %v5163 = vmul.f32 %v5105, %v1788
    %v5164 = vmul.f32 %v5104, %v1789
    %v5165 = vmul.f32 %v5103, %v1790
    %v5166 = vmul.f32 %v5102, %v1791
    %v5167 = vmul.f32 %v5101, %v1792
    %v5168 = vmul.f32 %v5100, %v1793
    %v5169 = vmul.f32 %v5099, %v1794
    %v5170 = vmul.f32 %v5098, %v1795
    %v5171 = vmul.f32 %v5097, %v1796
    %v5172 = vmul.f32 %v5096, %v1797
    %v5173 = vmul.f32 %v5095, %v1798
    %v5174 = vmul.f32 %v5094, %v1799
    %v5175 = vmul.f32 %v5093, %v1800
    %v5176 = vmul.f32 %v5092, %v1801
    %v5177 = vmul.f32 %v5091, %v1802
    %v5178 = vmul.f32 %v5090, %v1803
    %v5179 = vmul.f32 %v5089, %v1804
    %v5180 = vmul.f32 %v5088, %v1805
    %v5181 = vmul.f32 %v5087, %v1806
    %v5182 = vmul.f32 %v5086, %v1807
    %v5183 = vmul.f32 %v5085, %v1808
    %v5184 = vmul.f32 %v5084, %v1809
    %v5185 = vmul.f32 %v5083, %v1810
    %v5186 = vmul.f32 %v5082, %v1811
    %v5187 = vmul.f32 %v5081, %v1812
    %v5188 = vmul.f32 %v5080, %v1813
    %v5189 = vmul.f32 %v5079, %v1814
    %v5190 = vmul.f32 %v5078, %v1815
    %v5191 = vmul.f32 %v5077, %v1816
    %v5192 = vmul.f32 %v5076, %v1817
    %v5193 = vmul.f32 %v5075, %v1818
    %v5194 = vmul.f32 %v5074, %v1819
    %v5195 = vmul.f32 %v5073, %v1820
    %v5196 = vmul.f32 %v5072, %v1821
    %v5197 = vmul.f32 %v5071, %v1822
    %v5198 = vmul.f32 %v5070, %v1823
    %v5199 = vmul.f32 %v5069, %v1824
    %v5200 = vmul.f32 %v5068, %v1825
    %v5201 = vmul.f32 %v5067, %v1826
    %v5202 = vmul.f32 %v5066, %v1827
    %v5203 = vmul.f32 %v5065, %v1828
    %v5204 = vmul.f32 %v5064, %v1829
    %v5205 = vmul.f32 %v5063, %v1830
    %v5206 = vmul.f32 %v5062, %v1831
    %v5207 = vmul.f32 %v5061, %v1832
    %v5208 = vmul.f32 %v5060, %v1833
    %v5209 = vmul.f32 %v5059, %v1834
    %v5210 = vmul.f32 %v5058, %v1835
    %v5211 = vmul.f32 %v5057, %v1836
    %v5212 = vmul.f32 %v5056, %v1837
    %v5213 = vmul.f32 %v5055, %v1838
    %v5214 = vmul.f32 %v5054, %v1839
    %v5215 = vmul.f32 %v5053, %v1840
    %v5216 = vmul.f32 %v5052, %v1841
    %v5217 = vmul.f32 %v5051, %v1842
    %v5218 = vmul.f32 %v5050, %v1843
    %v5219 = vmul.f32 %v5049, %v1844
    %v5220 = vmul.f32 %v5048, %v1845
    %v5221 = vmul.f32 %v5047, %v1846
    %v5222 = vmul.f32 %v5046, %v1847
    %v5223 = vmul.f32 %v5045, %v1848
    %v5224 = vmul.f32 %v5044, %v1849
    %v5225 = vmul.f32 %v5043, %v1850
    %v5226 = vmul.f32 %v5042, %v1851
    %v5227 = vmul.f32 %v5041, %v1852
    %v5228 = vmul.f32 %v5040, %v1853
    %v5229 = vmul.f32 %v5039, %v1854
    %v5230 = vmul.f32 %v5134, %v1855
    %vm5231 = vcmask 261120
    %v5233 = vsel %vm5231, %v4559, 0
    %v5236 = vsel %vm5231, %v4560, 0
    %v5239 = vsel %vm5231, %v4561, 0
    %v5242 = vsel %vm5231, %v4562, 0
    %v5245 = vsel %vm5231, %v4563, 0
    %v5248 = vsel %vm5231, %v4564, 0
    %v5251 = vsel %vm5231, %v4565, 0
    %v5254 = vsel %vm5231, %v4566, 0
    %v5257 = vsel %vm5231, %v4567, 0
    %v5260 = vsel %vm5231, %v4568, 0
    %v5263 = vsel %vm5231, %v4569, 0
    %v5266 = vsel %vm5231, %v4570, 0
    %v5269 = vsel %vm5231, %v4571, 0
    %v5272 = vsel %vm5231, %v4572, 0
    %v5275 = vsel %vm5231, %v4573, 0
    %v5278 = vsel %vm5231, %v4574, 0
    %v5281 = vsel %vm5231, %v4575, 0
    %v5284 = vsel %vm5231, %v4576, 0
    %v5287 = vsel %vm5231, %v4577, 0
    %v5290 = vsel %vm5231, %v4578, 0
    %v5293 = vsel %vm5231, %v4579, 0
    %v5296 = vsel %vm5231, %v4580, 0
    %v5299 = vsel %vm5231, %v4581, 0
    %v5302 = vsel %vm5231, %v4582, 0
    %v5305 = vsel %vm5231, %v4583, 0
    %v5308 = vsel %vm5231, %v4584, 0
    %v5311 = vsel %vm5231, %v4585, 0
    %v5314 = vsel %vm5231, %v4586, 0
    %v5317 = vsel %vm5231, %v4587, 0
    %v5320 = vsel %vm5231, %v4588, 0
    %v5323 = vsel %vm5231, %v4589, 0
    %v5326 = vsel %vm5231, %v4590, 0
    %v5329 = vsel %vm5231, %v4591, 0
    %v5332 = vsel %vm5231, %v4592, 0
    %v5335 = vsel %vm5231, %v4593, 0
    %v5338 = vsel %vm5231, %v4594, 0
    %v5341 = vsel %vm5231, %v4595, 0
    %v5344 = vsel %vm5231, %v4596, 0
    %v5347 = vsel %vm5231, %v4597, 0
    %v5350 = vsel %vm5231, %v4598, 0
    %v5353 = vsel %vm5231, %v4599, 0
    %v5356 = vsel %vm5231, %v4600, 0
    %v5359 = vsel %vm5231, %v4601, 0
    %v5362 = vsel %vm5231, %v4602, 0
    %v5365 = vsel %vm5231, %v4603, 0
    %v5368 = vsel %vm5231, %v4604, 0
    %v5371 = vsel %vm5231, %v4605, 0
    %v5374 = vsel %vm5231, %v4606, 0
    %v5377 = vsel %vm5231, %v4607, 0
    %v5380 = vsel %vm5231, %v4608, 0
    %v5383 = vsel %vm5231, %v4609, 0
    %v5386 = vsel %vm5231, %v4610, 0
    %v5389 = vsel %vm5231, %v4611, 0
    %v5392 = vsel %vm5231, %v4612, 0
    %v5395 = vsel %vm5231, %v4613, 0
    %v5398 = vsel %vm5231, %v4614, 0
    %v5401 = vsel %vm5231, %v4615, 0
    %v5404 = vsel %vm5231, %v4616, 0
    %v5407 = vsel %vm5231, %v4617, 0
    %v5410 = vsel %vm5231, %v4618, 0
    %v5413 = vsel %vm5231, %v4619, 0
    %v5416 = vsel %vm5231, %v4620, 0
    %v5419 = vsel %vm5231, %v4621, 0
    %v5422 = vsel %vm5231, %v4622, 0
    %v5425 = vsel %vm5231, %v4623, 0
    %v5428 = vsel %vm5231, %v4624, 0
    %v5431 = vsel %vm5231, %v4625, 0
    %v5434 = vsel %vm5231, %v4626, 0
    %v5437 = vsel %vm5231, %v4627, 0
    %v5440 = vsel %vm5231, %v4628, 0
    %v5443 = vsel %vm5231, %v4629, 0
    %v5446 = vsel %vm5231, %v4630, 0
    %v5449 = vsel %vm5231, %v4631, 0
    %v5452 = vsel %vm5231, %v4632, 0
    %v5455 = vsel %vm5231, %v4633, 0
    %v5458 = vsel %vm5231, %v4634, 0
    %v5461 = vsel %vm5231, %v4635, 0
    %v5464 = vsel %vm5231, %v4636, 0
    %v5467 = vsel %vm5231, %v4637, 0
    %v5470 = vsel %vm5231, %v4638, 0
    %v5473 = vsel %vm5231, %v4639, 0
    %v5476 = vsel %vm5231, %v4640, 0
    %v5479 = vsel %vm5231, %v4641, 0
    %v5482 = vsel %vm5231, %v4642, 0
    %v5485 = vsel %vm5231, %v4643, 0
    %v5488 = vsel %vm5231, %v4644, 0
    %v5491 = vsel %vm5231, %v4645, 0
    %v5494 = vsel %vm5231, %v4646, 0
    %v5497 = vsel %vm5231, %v4647, 0
    %v5500 = vsel %vm5231, %v4648, 0
    %v5503 = vsel %vm5231, %v4649, 0
    %v5506 = vsel %vm5231, %v4650, 0
    %v5509 = vsel %vm5231, %v4651, 0
    %v5512 = vsel %vm5231, %v4652, 0
    %v5515 = vsel %vm5231, %v4653, 0
    %v5518 = vsel %vm5231, %v4654, 0
    %5520 = vmatpush.msra.mxu0 0.0
    %5521 = vmatpush.msra.mxu0 0.0
    %5522 = vmatpush.msra.mxu0 0.0
    %5523 = vmatpush.msra.mxu0 0.0
    %5524 = vmatpush.msra.mxu0 0.0
    %5525 = vmatpush.msra.mxu0 0.0
    %5526 = vmatpush.msra.mxu0 0.0
    %5527 = vmatpush.msra.mxu0 0.0
    %5528 = vmatpush.msra.mxu0 0.0
    %5529 = vmatpush.msra.mxu0 0.0
    %5530 = vmatpush.msra.mxu0 0.0
    %5531 = vmatpush.msra.mxu0 0.0
    %5532 = vmatpush.msra.mxu0 %v1870
    %5533 = vmatpush.msra.mxu0 %v1869
    %5534 = vmatpush.msra.mxu0 %v1868
    %5535 = vmatpush.msra.mxu0 %v1867
    %5536 = vmatmul.f32.gmra.mxu0 %v5233
    %v5537 = vpop.f32.mrf.mxu0
    %v5538 = vadd.f32 0.0, %v5537
    %5539 = vmatmul.f32.gmra.mxu0 %v5236
    %v5540 = vpop.f32.mrf.mxu0
    %v5541 = vadd.f32 0.0, %v5540
    %5542 = vmatmul.f32.gmra.mxu0 %v5239
    %v5543 = vpop.f32.mrf.mxu0
    %v5544 = vadd.f32 0.0, %v5543
    %5545 = vmatmul.f32.gmra.mxu0 %v5242
    %v5546 = vpop.f32.mrf.mxu0
    %v5547 = vadd.f32 0.0, %v5546
    %5548 = vmatmul.f32.gmra.mxu0 %v5245
    %v5549 = vpop.f32.mrf.mxu0
    %v5550 = vadd.f32 0.0, %v5549
    %5551 = vmatmul.f32.gmra.mxu0 %v5248
    %v5552 = vpop.f32.mrf.mxu0
    %v5553 = vadd.f32 0.0, %v5552
    %5554 = vmatmul.f32.gmra.mxu0 %v5251
    %v5555 = vpop.f32.mrf.mxu0
    %v5556 = vadd.f32 0.0, %v5555
    %5557 = vmatmul.f32.gmra.mxu0 %v5254
    %v5558 = vpop.f32.mrf.mxu0
    %v5559 = vadd.f32 0.0, %v5558
    %5560 = vmatmul.f32.gmra.mxu0 %v5257
    %v5561 = vpop.f32.mrf.mxu0
    %v5562 = vadd.f32 0.0, %v5561
    %5563 = vmatmul.f32.gmra.mxu0 %v5260
    %v5564 = vpop.f32.mrf.mxu0
    %v5565 = vadd.f32 0.0, %v5564
    %5566 = vmatmul.f32.gmra.mxu0 %v5263
    %v5567 = vpop.f32.mrf.mxu0
    %v5568 = vadd.f32 0.0, %v5567
    %5569 = vmatmul.f32.gmra.mxu0 %v5266
    %v5570 = vpop.f32.mrf.mxu0
    %v5571 = vadd.f32 0.0, %v5570
    %5572 = vmatmul.f32.gmra.mxu0 %v5269
    %v5573 = vpop.f32.mrf.mxu0
    %v5574 = vadd.f32 0.0, %v5573
    %5575 = vmatmul.f32.gmra.mxu0 %v5272
    %v5576 = vpop.f32.mrf.mxu0
    %v5577 = vadd.f32 0.0, %v5576
    %5578 = vmatmul.f32.gmra.mxu0 %v5275
    %v5579 = vpop.f32.mrf.mxu0
    %v5580 = vadd.f32 0.0, %v5579
    %5581 = vmatmul.f32.gmra.mxu0 %v5278
    %v5582 = vpop.f32.mrf.mxu0
    %v5583 = vadd.f32 0.0, %v5582
    %5584 = vmatmul.f32.gmra.mxu0 %v5281
    %v5585 = vpop.f32.mrf.mxu0
    %v5586 = vadd.f32 0.0, %v5585
    %5587 = vmatmul.f32.gmra.mxu0 %v5284
    %v5588 = vpop.f32.mrf.mxu0
    %v5589 = vadd.f32 0.0, %v5588
    %5590 = vmatmul.f32.gmra.mxu0 %v5287
    %v5591 = vpop.f32.mrf.mxu0
    %v5592 = vadd.f32 0.0, %v5591
    %5593 = vmatmul.f32.gmra.mxu0 %v5290
    %v5594 = vpop.f32.mrf.mxu0
    %v5595 = vadd.f32 0.0, %v5594
    %5596 = vmatmul.f32.gmra.mxu0 %v5293
    %v5597 = vpop.f32.mrf.mxu0
    %v5598 = vadd.f32 0.0, %v5597
    %5599 = vmatmul.f32.gmra.mxu0 %v5296
    %v5600 = vpop.f32.mrf.mxu0
    %v5601 = vadd.f32 0.0, %v5600
    %5602 = vmatmul.f32.gmra.mxu0 %v5299
    %v5603 = vpop.f32.mrf.mxu0
    %v5604 = vadd.f32 0.0, %v5603
    %5605 = vmatmul.f32.gmra.mxu0 %v5302
    %v5606 = vpop.f32.mrf.mxu0
    %v5607 = vadd.f32 0.0, %v5606
    %5608 = vmatmul.f32.gmra.mxu0 %v5305
    %v5609 = vpop.f32.mrf.mxu0
    %v5610 = vadd.f32 0.0, %v5609
    %5611 = vmatmul.f32.gmra.mxu0 %v5308
    %v5612 = vpop.f32.mrf.mxu0
    %v5613 = vadd.f32 0.0, %v5612
    %5614 = vmatmul.f32.gmra.mxu0 %v5311
    %v5615 = vpop.f32.mrf.mxu0
    %v5616 = vadd.f32 0.0, %v5615
    %5617 = vmatmul.f32.gmra.mxu0 %v5314
    %v5618 = vpop.f32.mrf.mxu0
    %v5619 = vadd.f32 0.0, %v5618
    %5620 = vmatmul.f32.gmra.mxu0 %v5317
    %v5621 = vpop.f32.mrf.mxu0
    %v5622 = vadd.f32 0.0, %v5621
    %5623 = vmatmul.f32.gmra.mxu0 %v5320
    %v5624 = vpop.f32.mrf.mxu0
    %v5625 = vadd.f32 0.0, %v5624
    %5626 = vmatmul.f32.gmra.mxu0 %v5323
    %v5627 = vpop.f32.mrf.mxu0
    %v5628 = vadd.f32 0.0, %v5627
    %5629 = vmatmul.f32.gmra.mxu0 %v5326
    %v5630 = vpop.f32.mrf.mxu0
    %v5631 = vadd.f32 0.0, %v5630
    %5632 = vmatmul.f32.gmra.mxu0 %v5329
    %v5633 = vpop.f32.mrf.mxu0
    %v5634 = vadd.f32 0.0, %v5633
    %5635 = vmatmul.f32.gmra.mxu0 %v5332
    %v5636 = vpop.f32.mrf.mxu0
    %v5637 = vadd.f32 0.0, %v5636
    %5638 = vmatmul.f32.gmra.mxu0 %v5335
    %v5639 = vpop.f32.mrf.mxu0
    %v5640 = vadd.f32 0.0, %v5639
    %5641 = vmatmul.f32.gmra.mxu0 %v5338
    %v5642 = vpop.f32.mrf.mxu0
    %v5643 = vadd.f32 0.0, %v5642
    %5644 = vmatmul.f32.gmra.mxu0 %v5341
    %v5645 = vpop.f32.mrf.mxu0
    %v5646 = vadd.f32 0.0, %v5645
    %5647 = vmatmul.f32.gmra.mxu0 %v5344
    %v5648 = vpop.f32.mrf.mxu0
    %v5649 = vadd.f32 0.0, %v5648
    %5650 = vmatmul.f32.gmra.mxu0 %v5347
    %v5651 = vpop.f32.mrf.mxu0
    %v5652 = vadd.f32 0.0, %v5651
    %5653 = vmatmul.f32.gmra.mxu0 %v5350
    %v5654 = vpop.f32.mrf.mxu0
    %v5655 = vadd.f32 0.0, %v5654
    %5656 = vmatmul.f32.gmra.mxu0 %v5353
    %v5657 = vpop.f32.mrf.mxu0
    %v5658 = vadd.f32 0.0, %v5657
    %5659 = vmatmul.f32.gmra.mxu0 %v5356
    %v5660 = vpop.f32.mrf.mxu0
    %v5661 = vadd.f32 0.0, %v5660
    %5662 = vmatmul.f32.gmra.mxu0 %v5359
    %v5663 = vpop.f32.mrf.mxu0
    %v5664 = vadd.f32 0.0, %v5663
    %5665 = vmatmul.f32.gmra.mxu0 %v5362
    %v5666 = vpop.f32.mrf.mxu0
    %v5667 = vadd.f32 0.0, %v5666
    %5668 = vmatmul.f32.gmra.mxu0 %v5365
    %v5669 = vpop.f32.mrf.mxu0
    %v5670 = vadd.f32 0.0, %v5669
    %5671 = vmatmul.f32.gmra.mxu0 %v5368
    %v5672 = vpop.f32.mrf.mxu0
    %v5673 = vadd.f32 0.0, %v5672
    %5674 = vmatmul.f32.gmra.mxu0 %v5371
    %v5675 = vpop.f32.mrf.mxu0
    %v5676 = vadd.f32 0.0, %v5675
    %5677 = vmatmul.f32.gmra.mxu0 %v5374
    %v5678 = vpop.f32.mrf.mxu0
    %v5679 = vadd.f32 0.0, %v5678
    %5680 = vmatmul.f32.gmra.mxu0 %v5377
    %v5681 = vpop.f32.mrf.mxu0
    %v5682 = vadd.f32 0.0, %v5681
    %5683 = vmatmul.f32.gmra.mxu0 %v5380
    %v5684 = vpop.f32.mrf.mxu0
    %v5685 = vadd.f32 0.0, %v5684
    %5686 = vmatmul.f32.gmra.mxu0 %v5383
    %v5687 = vpop.f32.mrf.mxu0
    %v5688 = vadd.f32 0.0, %v5687
    %5689 = vmatmul.f32.gmra.mxu0 %v5386
    %v5690 = vpop.f32.mrf.mxu0
    %v5691 = vadd.f32 0.0, %v5690
    %5692 = vmatmul.f32.gmra.mxu0 %v5389
    %v5693 = vpop.f32.mrf.mxu0
    %v5694 = vadd.f32 0.0, %v5693
    %5695 = vmatmul.f32.gmra.mxu0 %v5392
    %v5696 = vpop.f32.mrf.mxu0
    %v5697 = vadd.f32 0.0, %v5696
    %5698 = vmatmul.f32.gmra.mxu0 %v5395
    %v5699 = vpop.f32.mrf.mxu0
    %v5700 = vadd.f32 0.0, %v5699
    %5701 = vmatmul.f32.gmra.mxu0 %v5398
    %v5702 = vpop.f32.mrf.mxu0
    %v5703 = vadd.f32 0.0, %v5702
    %5704 = vmatmul.f32.gmra.mxu0 %v5401
    %v5705 = vpop.f32.mrf.mxu0
    %v5706 = vadd.f32 0.0, %v5705
    %5707 = vmatmul.f32.gmra.mxu0 %v5404
    %v5708 = vpop.f32.mrf.mxu0
    %v5709 = vadd.f32 0.0, %v5708
    %5710 = vmatmul.f32.gmra.mxu0 %v5407
    %v5711 = vpop.f32.mrf.mxu0
    %v5712 = vadd.f32 0.0, %v5711
    %5713 = vmatmul.f32.gmra.mxu0 %v5410
    %v5714 = vpop.f32.mrf.mxu0
    %v5715 = vadd.f32 0.0, %v5714
    %5716 = vmatmul.f32.gmra.mxu0 %v5413
    %v5717 = vpop.f32.mrf.mxu0
    %v5718 = vadd.f32 0.0, %v5717
    %5719 = vmatmul.f32.gmra.mxu0 %v5416
    %v5720 = vpop.f32.mrf.mxu0
    %v5721 = vadd.f32 0.0, %v5720
    %5722 = vmatmul.f32.gmra.mxu0 %v5419
    %v5723 = vpop.f32.mrf.mxu0
    %v5724 = vadd.f32 0.0, %v5723
    %5725 = vmatmul.f32.gmra.mxu0 %v5422
    %v5726 = vpop.f32.mrf.mxu0
    %v5727 = vadd.f32 0.0, %v5726
    %5728 = vmatmul.f32.gmra.mxu0 %v5425
    %v5729 = vpop.f32.mrf.mxu0
    %v5730 = vadd.f32 0.0, %v5729
    %5731 = vmatmul.f32.gmra.mxu0 %v5428
    %v5732 = vpop.f32.mrf.mxu0
    %v5733 = vadd.f32 0.0, %v5732
    %5734 = vmatmul.f32.gmra.mxu0 %v5431
    %v5735 = vpop.f32.mrf.mxu0
    %v5736 = vadd.f32 0.0, %v5735
    %5737 = vmatmul.f32.gmra.mxu0 %v5434
    %v5738 = vpop.f32.mrf.mxu0
    %v5739 = vadd.f32 0.0, %v5738
    %5740 = vmatmul.f32.gmra.mxu0 %v5437
    %v5741 = vpop.f32.mrf.mxu0
    %v5742 = vadd.f32 0.0, %v5741
    %5743 = vmatmul.f32.gmra.mxu0 %v5440
    %v5744 = vpop.f32.mrf.mxu0
    %v5745 = vadd.f32 0.0, %v5744
    %5746 = vmatmul.f32.gmra.mxu0 %v5443
    %v5747 = vpop.f32.mrf.mxu0
    %v5748 = vadd.f32 0.0, %v5747
    %5749 = vmatmul.f32.gmra.mxu0 %v5446
    %v5750 = vpop.f32.mrf.mxu0
    %v5751 = vadd.f32 0.0, %v5750
    %5752 = vmatmul.f32.gmra.mxu0 %v5449
    %v5753 = vpop.f32.mrf.mxu0
    %v5754 = vadd.f32 0.0, %v5753
    %5755 = vmatmul.f32.gmra.mxu0 %v5452
    %v5756 = vpop.f32.mrf.mxu0
    %v5757 = vadd.f32 0.0, %v5756
    %5758 = vmatmul.f32.gmra.mxu0 %v5455
    %v5759 = vpop.f32.mrf.mxu0
    %v5760 = vadd.f32 0.0, %v5759
    %5761 = vmatmul.f32.gmra.mxu0 %v5458
    %v5762 = vpop.f32.mrf.mxu0
    %v5763 = vadd.f32 0.0, %v5762
    %5764 = vmatmul.f32.gmra.mxu0 %v5461
    %v5765 = vpop.f32.mrf.mxu0
    %v5766 = vadd.f32 0.0, %v5765
    %5767 = vmatmul.f32.gmra.mxu0 %v5464
    %v5768 = vpop.f32.mrf.mxu0
    %v5769 = vadd.f32 0.0, %v5768
    %5770 = vmatmul.f32.gmra.mxu0 %v5467
    %v5771 = vpop.f32.mrf.mxu0
    %v5772 = vadd.f32 0.0, %v5771
    %5773 = vmatmul.f32.gmra.mxu0 %v5470
    %v5774 = vpop.f32.mrf.mxu0
    %v5775 = vadd.f32 0.0, %v5774
    %5776 = vmatmul.f32.gmra.mxu0 %v5473
    %v5777 = vpop.f32.mrf.mxu0
    %v5778 = vadd.f32 0.0, %v5777
    %5779 = vmatmul.f32.gmra.mxu0 %v5476
    %v5780 = vpop.f32.mrf.mxu0
    %v5781 = vadd.f32 0.0, %v5780
    %5782 = vmatmul.f32.gmra.mxu0 %v5479
    %v5783 = vpop.f32.mrf.mxu0
    %v5784 = vadd.f32 0.0, %v5783
    %5785 = vmatmul.f32.gmra.mxu0 %v5482
    %v5786 = vpop.f32.mrf.mxu0
    %v5787 = vadd.f32 0.0, %v5786
    %5788 = vmatmul.f32.gmra.mxu0 %v5485
    %v5789 = vpop.f32.mrf.mxu0
    %v5790 = vadd.f32 0.0, %v5789
    %5791 = vmatmul.f32.gmra.mxu0 %v5488
    %v5792 = vpop.f32.mrf.mxu0
    %v5793 = vadd.f32 0.0, %v5792
    %5794 = vmatmul.f32.gmra.mxu0 %v5491
    %v5795 = vpop.f32.mrf.mxu0
    %v5796 = vadd.f32 0.0, %v5795
    %5797 = vmatmul.f32.gmra.mxu0 %v5494
    %v5798 = vpop.f32.mrf.mxu0
    %v5799 = vadd.f32 0.0, %v5798
    %5800 = vmatmul.f32.gmra.mxu0 %v5497
    %v5801 = vpop.f32.mrf.mxu0
    %v5802 = vadd.f32 0.0, %v5801
    %5803 = vmatmul.f32.gmra.mxu0 %v5500
    %v5804 = vpop.f32.mrf.mxu0
    %v5805 = vadd.f32 0.0, %v5804
    %5806 = vmatmul.f32.gmra.mxu0 %v5503
    %v5807 = vpop.f32.mrf.mxu0
    %v5808 = vadd.f32 0.0, %v5807
    %5809 = vmatmul.f32.gmra.mxu0 %v5506
    %v5810 = vpop.f32.mrf.mxu0
    %v5811 = vadd.f32 0.0, %v5810
    %5812 = vmatmul.f32.gmra.mxu0 %v5509
    %v5813 = vpop.f32.mrf.mxu0
    %v5814 = vadd.f32 0.0, %v5813
    %5815 = vmatmul.f32.gmra.mxu0 %v5512
    %v5816 = vpop.f32.mrf.mxu0
    %v5817 = vadd.f32 0.0, %v5816
    %5818 = vmatmul.f32.gmra.mxu0 %v5515
    %v5819 = vpop.f32.mrf.mxu0
    %v5820 = vadd.f32 0.0, %v5819
    %5821 = vmatmul.f32.gmra.mxu0 %v5518
    %v5822 = vpop.f32.mrf.mxu0
    %v5823 = vadd.f32 0.0, %v5822
    %5824 = vdwg.mxu0
    %v5826 = vsel %vm5231, %v4847, 0
    %v5829 = vsel %vm5231, %v4848, 0
    %v5832 = vsel %vm5231, %v4849, 0
    %v5835 = vsel %vm5231, %v4850, 0
    %v5838 = vsel %vm5231, %v4851, 0
    %v5841 = vsel %vm5231, %v4852, 0
    %v5844 = vsel %vm5231, %v4853, 0
    %v5847 = vsel %vm5231, %v4854, 0
    %v5850 = vsel %vm5231, %v4855, 0
    %v5853 = vsel %vm5231, %v4856, 0
    %v5856 = vsel %vm5231, %v4857, 0
    %v5859 = vsel %vm5231, %v4858, 0
    %v5862 = vsel %vm5231, %v4859, 0
    %v5865 = vsel %vm5231, %v4860, 0
    %v5868 = vsel %vm5231, %v4861, 0
    %v5871 = vsel %vm5231, %v4862, 0
    %v5874 = vsel %vm5231, %v4863, 0
    %v5877 = vsel %vm5231, %v4864, 0
    %v5880 = vsel %vm5231, %v4865, 0
    %v5883 = vsel %vm5231, %v4866, 0
    %v5886 = vsel %vm5231, %v4867, 0
    %v5889 = vsel %vm5231, %v4868, 0
    %v5892 = vsel %vm5231, %v4869, 0
    %v5895 = vsel %vm5231, %v4870, 0
    %v5898 = vsel %vm5231, %v4871, 0
    %v5901 = vsel %vm5231, %v4872, 0
    %v5904 = vsel %vm5231, %v4873, 0
    %v5907 = vsel %vm5231, %v4874, 0
    %v5910 = vsel %vm5231, %v4875, 0
    %v5913 = vsel %vm5231, %v4876, 0
    %v5916 = vsel %vm5231, %v4877, 0
    %v5919 = vsel %vm5231, %v4878, 0
    %v5922 = vsel %vm5231, %v4879, 0
    %v5925 = vsel %vm5231, %v4880, 0
    %v5928 = vsel %vm5231, %v4881, 0
    %v5931 = vsel %vm5231, %v4882, 0
    %v5934 = vsel %vm5231, %v4883, 0
    %v5937 = vsel %vm5231, %v4884, 0
    %v5940 = vsel %vm5231, %v4885, 0
    %v5943 = vsel %vm5231, %v4886, 0
    %v5946 = vsel %vm5231, %v4887, 0
    %v5949 = vsel %vm5231, %v4888, 0
    %v5952 = vsel %vm5231, %v4889, 0
    %v5955 = vsel %vm5231, %v4890, 0
    %v5958 = vsel %vm5231, %v4891, 0
    %v5961 = vsel %vm5231, %v4892, 0
    %v5964 = vsel %vm5231, %v4893, 0
    %v5967 = vsel %vm5231, %v4894, 0
    %v5970 = vsel %vm5231, %v4895, 0
    %v5973 = vsel %vm5231, %v4896, 0
    %v5976 = vsel %vm5231, %v4897, 0
    %v5979 = vsel %vm5231, %v4898, 0
    %v5982 = vsel %vm5231, %v4899, 0
    %v5985 = vsel %vm5231, %v4900, 0
    %v5988 = vsel %vm5231, %v4901, 0
    %v5991 = vsel %vm5231, %v4902, 0
    %v5994 = vsel %vm5231, %v4903, 0
    %v5997 = vsel %vm5231, %v4904, 0
    %v6000 = vsel %vm5231, %v4905, 0
    %v6003 = vsel %vm5231, %v4906, 0
    %v6006 = vsel %vm5231, %v4907, 0
    %v6009 = vsel %vm5231, %v4908, 0
    %v6012 = vsel %vm5231, %v4909, 0
    %v6015 = vsel %vm5231, %v4910, 0
    %v6018 = vsel %vm5231, %v4911, 0
    %v6021 = vsel %vm5231, %v4912, 0
    %v6024 = vsel %vm5231, %v4913, 0
    %v6027 = vsel %vm5231, %v4914, 0
    %v6030 = vsel %vm5231, %v4915, 0
    %v6033 = vsel %vm5231, %v4916, 0
    %v6036 = vsel %vm5231, %v4917, 0
    %v6039 = vsel %vm5231, %v4918, 0
    %v6042 = vsel %vm5231, %v4919, 0
    %v6045 = vsel %vm5231, %v4920, 0
    %v6048 = vsel %vm5231, %v4921, 0
    %v6051 = vsel %vm5231, %v4922, 0
    %v6054 = vsel %vm5231, %v4923, 0
    %v6057 = vsel %vm5231, %v4924, 0
    %v6060 = vsel %vm5231, %v4925, 0
    %v6063 = vsel %vm5231, %v4926, 0
    %v6066 = vsel %vm5231, %v4927, 0
    %v6069 = vsel %vm5231, %v4928, 0
    %v6072 = vsel %vm5231, %v4929, 0
    %v6075 = vsel %vm5231, %v4930, 0
    %v6078 = vsel %vm5231, %v4931, 0
    %v6081 = vsel %vm5231, %v4932, 0
    %v6084 = vsel %vm5231, %v4933, 0
    %v6087 = vsel %vm5231, %v4934, 0
    %v6090 = vsel %vm5231, %v4935, 0
    %v6093 = vsel %vm5231, %v4936, 0
    %v6096 = vsel %vm5231, %v4937, 0
    %v6099 = vsel %vm5231, %v4938, 0
    %v6102 = vsel %vm5231, %v4939, 0
    %v6105 = vsel %vm5231, %v4940, 0
    %v6108 = vsel %vm5231, %v4941, 0
    %v6111 = vsel %vm5231, %v4942, 0
    %6113 = vmatpush.msra.mxu0 0.0
    %6114 = vmatpush.msra.mxu0 0.0
    %6115 = vmatpush.msra.mxu0 0.0
    %6116 = vmatpush.msra.mxu0 0.0
    %6117 = vmatpush.msra.mxu0 0.0
    %6118 = vmatpush.msra.mxu0 0.0
    %6119 = vmatpush.msra.mxu0 0.0
    %6120 = vmatpush.msra.mxu0 0.0
    %6121 = vmatpush.msra.mxu0 0.0
    %6122 = vmatpush.msra.mxu0 0.0
    %6123 = vmatpush.msra.mxu0 0.0
    %6124 = vmatpush.msra.mxu0 0.0
    %6125 = vmatpush.msra.mxu0 %v1865
    %6126 = vmatpush.msra.mxu0 %v1864
    %6127 = vmatpush.msra.mxu0 %v1863
    %6128 = vmatpush.msra.mxu0 %v1862
    %6129 = vmatmul.f32.gmra.mxu0 %v5826
    %v6130 = vpop.f32.mrf.mxu0
    %v6131 = vadd.f32 %v5538, %v6130
    %6132 = vmatmul.f32.gmra.mxu0 %v5829
    %v6133 = vpop.f32.mrf.mxu0
    %v6134 = vadd.f32 %v5541, %v6133
    %6135 = vmatmul.f32.gmra.mxu0 %v5832
    %v6136 = vpop.f32.mrf.mxu0
    %v6137 = vadd.f32 %v5544, %v6136
    %6138 = vmatmul.f32.gmra.mxu0 %v5835
    %v6139 = vpop.f32.mrf.mxu0
    %v6140 = vadd.f32 %v5547, %v6139
    %6141 = vmatmul.f32.gmra.mxu0 %v5838
    %v6142 = vpop.f32.mrf.mxu0
    %v6143 = vadd.f32 %v5550, %v6142
    %6144 = vmatmul.f32.gmra.mxu0 %v5841
    %v6145 = vpop.f32.mrf.mxu0
    %v6146 = vadd.f32 %v5553, %v6145
    %6147 = vmatmul.f32.gmra.mxu0 %v5844
    %v6148 = vpop.f32.mrf.mxu0
    %v6149 = vadd.f32 %v5556, %v6148
    %6150 = vmatmul.f32.gmra.mxu0 %v5847
    %v6151 = vpop.f32.mrf.mxu0
    %v6152 = vadd.f32 %v5559, %v6151
    %6153 = vmatmul.f32.gmra.mxu0 %v5850
    %v6154 = vpop.f32.mrf.mxu0
    %v6155 = vadd.f32 %v5562, %v6154
    %6156 = vmatmul.f32.gmra.mxu0 %v5853
    %v6157 = vpop.f32.mrf.mxu0
    %v6158 = vadd.f32 %v5565, %v6157
    %6159 = vmatmul.f32.gmra.mxu0 %v5856
    %v6160 = vpop.f32.mrf.mxu0
    %v6161 = vadd.f32 %v5568, %v6160
    %6162 = vmatmul.f32.gmra.mxu0 %v5859
    %v6163 = vpop.f32.mrf.mxu0
    %v6164 = vadd.f32 %v5571, %v6163
    %6165 = vmatmul.f32.gmra.mxu0 %v5862
    %v6166 = vpop.f32.mrf.mxu0
    %v6167 = vadd.f32 %v5574, %v6166
    %6168 = vmatmul.f32.gmra.mxu0 %v5865
    %v6169 = vpop.f32.mrf.mxu0
    %v6170 = vadd.f32 %v5577, %v6169
    %6171 = vmatmul.f32.gmra.mxu0 %v5868
    %v6172 = vpop.f32.mrf.mxu0
    %v6173 = vadd.f32 %v5580, %v6172
    %6174 = vmatmul.f32.gmra.mxu0 %v5871
    %v6175 = vpop.f32.mrf.mxu0
    %v6176 = vadd.f32 %v5583, %v6175
    %6177 = vmatmul.f32.gmra.mxu0 %v5874
    %v6178 = vpop.f32.mrf.mxu0
    %v6179 = vadd.f32 %v5586, %v6178
    %6180 = vmatmul.f32.gmra.mxu0 %v5877
    %v6181 = vpop.f32.mrf.mxu0
    %v6182 = vadd.f32 %v5589, %v6181
    %6183 = vmatmul.f32.gmra.mxu0 %v5880
    %v6184 = vpop.f32.mrf.mxu0
    %v6185 = vadd.f32 %v5592, %v6184
    %6186 = vmatmul.f32.gmra.mxu0 %v5883
    %v6187 = vpop.f32.mrf.mxu0
    %v6188 = vadd.f32 %v5595, %v6187
    %6189 = vmatmul.f32.gmra.mxu0 %v5886
    %v6190 = vpop.f32.mrf.mxu0
    %v6191 = vadd.f32 %v5598, %v6190
    %6192 = vmatmul.f32.gmra.mxu0 %v5889
    %v6193 = vpop.f32.mrf.mxu0
    %v6194 = vadd.f32 %v5601, %v6193
    %6195 = vmatmul.f32.gmra.mxu0 %v5892
    %v6196 = vpop.f32.mrf.mxu0
    %v6197 = vadd.f32 %v5604, %v6196
    %6198 = vmatmul.f32.gmra.mxu0 %v5895
    %v6199 = vpop.f32.mrf.mxu0
    %v6200 = vadd.f32 %v5607, %v6199
    %6201 = vmatmul.f32.gmra.mxu0 %v5898
    %v6202 = vpop.f32.mrf.mxu0
    %v6203 = vadd.f32 %v5610, %v6202
    %6204 = vmatmul.f32.gmra.mxu0 %v5901
    %v6205 = vpop.f32.mrf.mxu0
    %v6206 = vadd.f32 %v5613, %v6205
    %6207 = vmatmul.f32.gmra.mxu0 %v5904
    %v6208 = vpop.f32.mrf.mxu0
    %v6209 = vadd.f32 %v5616, %v6208
    %6210 = vmatmul.f32.gmra.mxu0 %v5907
    %v6211 = vpop.f32.mrf.mxu0
    %v6212 = vadd.f32 %v5619, %v6211
    %6213 = vmatmul.f32.gmra.mxu0 %v5910
    %v6214 = vpop.f32.mrf.mxu0
    %v6215 = vadd.f32 %v5622, %v6214
    %6216 = vmatmul.f32.gmra.mxu0 %v5913
    %v6217 = vpop.f32.mrf.mxu0
    %v6218 = vadd.f32 %v5625, %v6217
    %6219 = vmatmul.f32.gmra.mxu0 %v5916
    %v6220 = vpop.f32.mrf.mxu0
    %v6221 = vadd.f32 %v5628, %v6220
    %6222 = vmatmul.f32.gmra.mxu0 %v5919
    %v6223 = vpop.f32.mrf.mxu0
    %v6224 = vadd.f32 %v5631, %v6223
    %6225 = vmatmul.f32.gmra.mxu0 %v5922
    %v6226 = vpop.f32.mrf.mxu0
    %v6227 = vadd.f32 %v5634, %v6226
    %6228 = vmatmul.f32.gmra.mxu0 %v5925
    %v6229 = vpop.f32.mrf.mxu0
    %v6230 = vadd.f32 %v5637, %v6229
    %6231 = vmatmul.f32.gmra.mxu0 %v5928
    %v6232 = vpop.f32.mrf.mxu0
    %v6233 = vadd.f32 %v5640, %v6232
    %6234 = vmatmul.f32.gmra.mxu0 %v5931
    %v6235 = vpop.f32.mrf.mxu0
    %v6236 = vadd.f32 %v5643, %v6235
    %6237 = vmatmul.f32.gmra.mxu0 %v5934
    %v6238 = vpop.f32.mrf.mxu0
    %v6239 = vadd.f32 %v5646, %v6238
    %6240 = vmatmul.f32.gmra.mxu0 %v5937
    %v6241 = vpop.f32.mrf.mxu0
    %v6242 = vadd.f32 %v5649, %v6241
    %6243 = vmatmul.f32.gmra.mxu0 %v5940
    %v6244 = vpop.f32.mrf.mxu0
    %v6245 = vadd.f32 %v5652, %v6244
    %6246 = vmatmul.f32.gmra.mxu0 %v5943
    %v6247 = vpop.f32.mrf.mxu0
    %v6248 = vadd.f32 %v5655, %v6247
    %6249 = vmatmul.f32.gmra.mxu0 %v5946
    %v6250 = vpop.f32.mrf.mxu0
    %v6251 = vadd.f32 %v5658, %v6250
    %6252 = vmatmul.f32.gmra.mxu0 %v5949
    %v6253 = vpop.f32.mrf.mxu0
    %v6254 = vadd.f32 %v5661, %v6253
    %6255 = vmatmul.f32.gmra.mxu0 %v5952
    %v6256 = vpop.f32.mrf.mxu0
    %v6257 = vadd.f32 %v5664, %v6256
    %6258 = vmatmul.f32.gmra.mxu0 %v5955
    %v6259 = vpop.f32.mrf.mxu0
    %v6260 = vadd.f32 %v5667, %v6259
    %6261 = vmatmul.f32.gmra.mxu0 %v5958
    %v6262 = vpop.f32.mrf.mxu0
    %v6263 = vadd.f32 %v5670, %v6262
    %6264 = vmatmul.f32.gmra.mxu0 %v5961
    %v6265 = vpop.f32.mrf.mxu0
    %v6266 = vadd.f32 %v5673, %v6265
    %6267 = vmatmul.f32.gmra.mxu0 %v5964
    %v6268 = vpop.f32.mrf.mxu0
    %v6269 = vadd.f32 %v5676, %v6268
    %6270 = vmatmul.f32.gmra.mxu0 %v5967
    %v6271 = vpop.f32.mrf.mxu0
    %v6272 = vadd.f32 %v5679, %v6271
    %6273 = vmatmul.f32.gmra.mxu0 %v5970
    %v6274 = vpop.f32.mrf.mxu0
    %v6275 = vadd.f32 %v5682, %v6274
    %6276 = vmatmul.f32.gmra.mxu0 %v5973
    %v6277 = vpop.f32.mrf.mxu0
    %v6278 = vadd.f32 %v5685, %v6277
    %6279 = vmatmul.f32.gmra.mxu0 %v5976
    %v6280 = vpop.f32.mrf.mxu0
    %v6281 = vadd.f32 %v5688, %v6280
    %6282 = vmatmul.f32.gmra.mxu0 %v5979
    %v6283 = vpop.f32.mrf.mxu0
    %v6284 = vadd.f32 %v5691, %v6283
    %6285 = vmatmul.f32.gmra.mxu0 %v5982
    %v6286 = vpop.f32.mrf.mxu0
    %v6287 = vadd.f32 %v5694, %v6286
    %6288 = vmatmul.f32.gmra.mxu0 %v5985
    %v6289 = vpop.f32.mrf.mxu0
    %v6290 = vadd.f32 %v5697, %v6289
    %6291 = vmatmul.f32.gmra.mxu0 %v5988
    %v6292 = vpop.f32.mrf.mxu0
    %v6293 = vadd.f32 %v5700, %v6292
    %6294 = vmatmul.f32.gmra.mxu0 %v5991
    %v6295 = vpop.f32.mrf.mxu0
    %v6296 = vadd.f32 %v5703, %v6295
    %6297 = vmatmul.f32.gmra.mxu0 %v5994
    %v6298 = vpop.f32.mrf.mxu0
    %v6299 = vadd.f32 %v5706, %v6298
    %6300 = vmatmul.f32.gmra.mxu0 %v5997
    %v6301 = vpop.f32.mrf.mxu0
    %v6302 = vadd.f32 %v5709, %v6301
    %6303 = vmatmul.f32.gmra.mxu0 %v6000
    %v6304 = vpop.f32.mrf.mxu0
    %v6305 = vadd.f32 %v5712, %v6304
    %6306 = vmatmul.f32.gmra.mxu0 %v6003
    %v6307 = vpop.f32.mrf.mxu0
    %v6308 = vadd.f32 %v5715, %v6307
    %6309 = vmatmul.f32.gmra.mxu0 %v6006
    %v6310 = vpop.f32.mrf.mxu0
    %v6311 = vadd.f32 %v5718, %v6310
    %6312 = vmatmul.f32.gmra.mxu0 %v6009
    %v6313 = vpop.f32.mrf.mxu0
    %v6314 = vadd.f32 %v5721, %v6313
    %6315 = vmatmul.f32.gmra.mxu0 %v6012
    %v6316 = vpop.f32.mrf.mxu0
    %v6317 = vadd.f32 %v5724, %v6316
    %6318 = vmatmul.f32.gmra.mxu0 %v6015
    %v6319 = vpop.f32.mrf.mxu0
    %v6320 = vadd.f32 %v5727, %v6319
    %6321 = vmatmul.f32.gmra.mxu0 %v6018
    %v6322 = vpop.f32.mrf.mxu0
    %v6323 = vadd.f32 %v5730, %v6322
    %6324 = vmatmul.f32.gmra.mxu0 %v6021
    %v6325 = vpop.f32.mrf.mxu0
    %v6326 = vadd.f32 %v5733, %v6325
    %6327 = vmatmul.f32.gmra.mxu0 %v6024
    %v6328 = vpop.f32.mrf.mxu0
    %v6329 = vadd.f32 %v5736, %v6328
    %6330 = vmatmul.f32.gmra.mxu0 %v6027
    %v6331 = vpop.f32.mrf.mxu0
    %v6332 = vadd.f32 %v5739, %v6331
    %6333 = vmatmul.f32.gmra.mxu0 %v6030
    %v6334 = vpop.f32.mrf.mxu0
    %v6335 = vadd.f32 %v5742, %v6334
    %6336 = vmatmul.f32.gmra.mxu0 %v6033
    %v6337 = vpop.f32.mrf.mxu0
    %v6338 = vadd.f32 %v5745, %v6337
    %6339 = vmatmul.f32.gmra.mxu0 %v6036
    %v6340 = vpop.f32.mrf.mxu0
    %v6341 = vadd.f32 %v5748, %v6340
    %6342 = vmatmul.f32.gmra.mxu0 %v6039
    %v6343 = vpop.f32.mrf.mxu0
    %v6344 = vadd.f32 %v5751, %v6343
    %6345 = vmatmul.f32.gmra.mxu0 %v6042
    %v6346 = vpop.f32.mrf.mxu0
    %v6347 = vadd.f32 %v5754, %v6346
    %6348 = vmatmul.f32.gmra.mxu0 %v6045
    %v6349 = vpop.f32.mrf.mxu0
    %v6350 = vadd.f32 %v5757, %v6349
    %6351 = vmatmul.f32.gmra.mxu0 %v6048
    %v6352 = vpop.f32.mrf.mxu0
    %v6353 = vadd.f32 %v5760, %v6352
    %6354 = vmatmul.f32.gmra.mxu0 %v6051
    %v6355 = vpop.f32.mrf.mxu0
    %v6356 = vadd.f32 %v5763, %v6355
    %6357 = vmatmul.f32.gmra.mxu0 %v6054
    %v6358 = vpop.f32.mrf.mxu0
    %v6359 = vadd.f32 %v5766, %v6358
    %6360 = vmatmul.f32.gmra.mxu0 %v6057
    %v6361 = vpop.f32.mrf.mxu0
    %v6362 = vadd.f32 %v5769, %v6361
    %6363 = vmatmul.f32.gmra.mxu0 %v6060
    %v6364 = vpop.f32.mrf.mxu0
    %v6365 = vadd.f32 %v5772, %v6364
    %6366 = vmatmul.f32.gmra.mxu0 %v6063
    %v6367 = vpop.f32.mrf.mxu0
    %v6368 = vadd.f32 %v5775, %v6367
    %6369 = vmatmul.f32.gmra.mxu0 %v6066
    %v6370 = vpop.f32.mrf.mxu0
    %v6371 = vadd.f32 %v5778, %v6370
    %6372 = vmatmul.f32.gmra.mxu0 %v6069
    %v6373 = vpop.f32.mrf.mxu0
    %v6374 = vadd.f32 %v5781, %v6373
    %6375 = vmatmul.f32.gmra.mxu0 %v6072
    %v6376 = vpop.f32.mrf.mxu0
    %v6377 = vadd.f32 %v5784, %v6376
    %6378 = vmatmul.f32.gmra.mxu0 %v6075
    %v6379 = vpop.f32.mrf.mxu0
    %v6380 = vadd.f32 %v5787, %v6379
    %6381 = vmatmul.f32.gmra.mxu0 %v6078
    %v6382 = vpop.f32.mrf.mxu0
    %v6383 = vadd.f32 %v5790, %v6382
    %6384 = vmatmul.f32.gmra.mxu0 %v6081
    %v6385 = vpop.f32.mrf.mxu0
    %v6386 = vadd.f32 %v5793, %v6385
    %6387 = vmatmul.f32.gmra.mxu0 %v6084
    %v6388 = vpop.f32.mrf.mxu0
    %v6389 = vadd.f32 %v5796, %v6388
    %6390 = vmatmul.f32.gmra.mxu0 %v6087
    %v6391 = vpop.f32.mrf.mxu0
    %v6392 = vadd.f32 %v5799, %v6391
    %6393 = vmatmul.f32.gmra.mxu0 %v6090
    %v6394 = vpop.f32.mrf.mxu0
    %v6395 = vadd.f32 %v5802, %v6394
    %6396 = vmatmul.f32.gmra.mxu0 %v6093
    %v6397 = vpop.f32.mrf.mxu0
    %v6398 = vadd.f32 %v5805, %v6397
    %6399 = vmatmul.f32.gmra.mxu0 %v6096
    %v6400 = vpop.f32.mrf.mxu0
    %v6401 = vadd.f32 %v5808, %v6400
    %6402 = vmatmul.f32.gmra.mxu0 %v6099
    %v6403 = vpop.f32.mrf.mxu0
    %v6404 = vadd.f32 %v5811, %v6403
    %6405 = vmatmul.f32.gmra.mxu0 %v6102
    %v6406 = vpop.f32.mrf.mxu0
    %v6407 = vadd.f32 %v5814, %v6406
    %6408 = vmatmul.f32.gmra.mxu0 %v6105
    %v6409 = vpop.f32.mrf.mxu0
    %v6410 = vadd.f32 %v5817, %v6409
    %6411 = vmatmul.f32.gmra.mxu0 %v6108
    %v6412 = vpop.f32.mrf.mxu0
    %v6413 = vadd.f32 %v5820, %v6412
    %6414 = vmatmul.f32.gmra.mxu0 %v6111
    %v6415 = vpop.f32.mrf.mxu0
    %v6416 = vadd.f32 %v5823, %v6415
    %6417 = vdwg.mxu0
    %v6419 = vsel %vm5231, %v5135, 0
    %v6422 = vsel %vm5231, %v5136, 0
    %v6425 = vsel %vm5231, %v5137, 0
    %v6428 = vsel %vm5231, %v5138, 0
    %v6431 = vsel %vm5231, %v5139, 0
    %v6434 = vsel %vm5231, %v5140, 0
    %v6437 = vsel %vm5231, %v5141, 0
    %v6440 = vsel %vm5231, %v5142, 0
    %v6443 = vsel %vm5231, %v5143, 0
    %v6446 = vsel %vm5231, %v5144, 0
    %v6449 = vsel %vm5231, %v5145, 0
    %v6452 = vsel %vm5231, %v5146, 0
    %v6455 = vsel %vm5231, %v5147, 0
    %v6458 = vsel %vm5231, %v5148, 0
    %v6461 = vsel %vm5231, %v5149, 0
    %v6464 = vsel %vm5231, %v5150, 0
    %v6467 = vsel %vm5231, %v5151, 0
    %v6470 = vsel %vm5231, %v5152, 0
    %v6473 = vsel %vm5231, %v5153, 0
    %v6476 = vsel %vm5231, %v5154, 0
    %v6479 = vsel %vm5231, %v5155, 0
    %v6482 = vsel %vm5231, %v5156, 0
    %v6485 = vsel %vm5231, %v5157, 0
    %v6488 = vsel %vm5231, %v5158, 0
    %v6491 = vsel %vm5231, %v5159, 0
    %v6494 = vsel %vm5231, %v5160, 0
    %v6497 = vsel %vm5231, %v5161, 0
    %v6500 = vsel %vm5231, %v5162, 0
    %v6503 = vsel %vm5231, %v5163, 0
    %v6506 = vsel %vm5231, %v5164, 0
    %v6509 = vsel %vm5231, %v5165, 0
    %v6512 = vsel %vm5231, %v5166, 0
    %v6515 = vsel %vm5231, %v5167, 0
    %v6518 = vsel %vm5231, %v5168, 0
    %v6521 = vsel %vm5231, %v5169, 0
    %v6524 = vsel %vm5231, %v5170, 0
    %v6527 = vsel %vm5231, %v5171, 0
    %v6530 = vsel %vm5231, %v5172, 0
    %v6533 = vsel %vm5231, %v5173, 0
    %v6536 = vsel %vm5231, %v5174, 0
    %v6539 = vsel %vm5231, %v5175, 0
    %v6542 = vsel %vm5231, %v5176, 0
    %v6545 = vsel %vm5231, %v5177, 0
    %v6548 = vsel %vm5231, %v5178, 0
    %v6551 = vsel %vm5231, %v5179, 0
    %v6554 = vsel %vm5231, %v5180, 0
    %v6557 = vsel %vm5231, %v5181, 0
    %v6560 = vsel %vm5231, %v5182, 0
    %v6563 = vsel %vm5231, %v5183, 0
    %v6566 = vsel %vm5231, %v5184, 0
    %v6569 = vsel %vm5231, %v5185, 0
    %v6572 = vsel %vm5231, %v5186, 0
    %v6575 = vsel %vm5231, %v5187, 0
    %v6578 = vsel %vm5231, %v5188, 0
    %v6581 = vsel %vm5231, %v5189, 0
    %v6584 = vsel %vm5231, %v5190, 0
    %v6587 = vsel %vm5231, %v5191, 0
    %v6590 = vsel %vm5231, %v5192, 0
    %v6593 = vsel %vm5231, %v5193, 0
    %v6596 = vsel %vm5231, %v5194, 0
    %v6599 = vsel %vm5231, %v5195, 0
    %v6602 = vsel %vm5231, %v5196, 0
    %v6605 = vsel %vm5231, %v5197, 0
    %v6608 = vsel %vm5231, %v5198, 0
    %v6611 = vsel %vm5231, %v5199, 0
    %v6614 = vsel %vm5231, %v5200, 0
    %v6617 = vsel %vm5231, %v5201, 0
    %v6620 = vsel %vm5231, %v5202, 0
    %v6623 = vsel %vm5231, %v5203, 0
    %v6626 = vsel %vm5231, %v5204, 0
    %v6629 = vsel %vm5231, %v5205, 0
    %v6632 = vsel %vm5231, %v5206, 0
    %v6635 = vsel %vm5231, %v5207, 0
    %v6638 = vsel %vm5231, %v5208, 0
    %v6641 = vsel %vm5231, %v5209, 0
    %v6644 = vsel %vm5231, %v5210, 0
    %v6647 = vsel %vm5231, %v5211, 0
    %v6650 = vsel %vm5231, %v5212, 0
    %v6653 = vsel %vm5231, %v5213, 0
    %v6656 = vsel %vm5231, %v5214, 0
    %v6659 = vsel %vm5231, %v5215, 0
    %v6662 = vsel %vm5231, %v5216, 0
    %v6665 = vsel %vm5231, %v5217, 0
    %v6668 = vsel %vm5231, %v5218, 0
    %v6671 = vsel %vm5231, %v5219, 0
    %v6674 = vsel %vm5231, %v5220, 0
    %v6677 = vsel %vm5231, %v5221, 0
    %v6680 = vsel %vm5231, %v5222, 0
    %v6683 = vsel %vm5231, %v5223, 0
    %v6686 = vsel %vm5231, %v5224, 0
    %v6689 = vsel %vm5231, %v5225, 0
    %v6692 = vsel %vm5231, %v5226, 0
    %v6695 = vsel %vm5231, %v5227, 0
    %v6698 = vsel %vm5231, %v5228, 0
    %v6701 = vsel %vm5231, %v5229, 0
    %v6704 = vsel %vm5231, %v5230, 0
    %6706 = vmatpush.msra.mxu0 0.0
    %6707 = vmatpush.msra.mxu0 0.0
    %6708 = vmatpush.msra.mxu0 0.0
    %6709 = vmatpush.msra.mxu0 0.0
    %6710 = vmatpush.msra.mxu0 0.0
    %6711 = vmatpush.msra.mxu0 0.0
    %6712 = vmatpush.msra.mxu0 0.0
    %6713 = vmatpush.msra.mxu0 0.0
    %6714 = vmatpush.msra.mxu0 0.0
    %6715 = vmatpush.msra.mxu0 0.0
    %6716 = vmatpush.msra.mxu0 0.0
    %6717 = vmatpush.msra.mxu0 0.0
    %6718 = vmatpush.msra.mxu0 %v1875
    %6719 = vmatpush.msra.mxu0 %v1874
    %6720 = vmatpush.msra.mxu0 %v1873
    %6721 = vmatpush.msra.mxu0 %v1872
    %6722 = vmatmul.f32.gmra.mxu0 %v6419
    %v6723 = vpop.f32.mrf.mxu0
    %v6724 = vadd.f32 0.0, %v6723
    %6725 = vmatmul.f32.gmra.mxu0 %v6422
    %v6726 = vpop.f32.mrf.mxu0
    %v6727 = vadd.f32 0.0, %v6726
    %6728 = vmatmul.f32.gmra.mxu0 %v6425
    %v6729 = vpop.f32.mrf.mxu0
    %v6730 = vadd.f32 0.0, %v6729
    %6731 = vmatmul.f32.gmra.mxu0 %v6428
    %v6732 = vpop.f32.mrf.mxu0
    %v6733 = vadd.f32 0.0, %v6732
    %6734 = vmatmul.f32.gmra.mxu0 %v6431
    %v6735 = vpop.f32.mrf.mxu0
    %v6736 = vadd.f32 0.0, %v6735
    %6737 = vmatmul.f32.gmra.mxu0 %v6434
    %v6738 = vpop.f32.mrf.mxu0
    %v6739 = vadd.f32 0.0, %v6738
    %6740 = vmatmul.f32.gmra.mxu0 %v6437
    %v6741 = vpop.f32.mrf.mxu0
    %v6742 = vadd.f32 0.0, %v6741
    %6743 = vmatmul.f32.gmra.mxu0 %v6440
    %v6744 = vpop.f32.mrf.mxu0
    %v6745 = vadd.f32 0.0, %v6744
    %6746 = vmatmul.f32.gmra.mxu0 %v6443
    %v6747 = vpop.f32.mrf.mxu0
    %v6748 = vadd.f32 0.0, %v6747
    %6749 = vmatmul.f32.gmra.mxu0 %v6446
    %v6750 = vpop.f32.mrf.mxu0
    %v6751 = vadd.f32 0.0, %v6750
    %6752 = vmatmul.f32.gmra.mxu0 %v6449
    %v6753 = vpop.f32.mrf.mxu0
    %v6754 = vadd.f32 0.0, %v6753
    %6755 = vmatmul.f32.gmra.mxu0 %v6452
    %v6756 = vpop.f32.mrf.mxu0
    %v6757 = vadd.f32 0.0, %v6756
    %6758 = vmatmul.f32.gmra.mxu0 %v6455
    %v6759 = vpop.f32.mrf.mxu0
    %v6760 = vadd.f32 0.0, %v6759
    %6761 = vmatmul.f32.gmra.mxu0 %v6458
    %v6762 = vpop.f32.mrf.mxu0
    %v6763 = vadd.f32 0.0, %v6762
    %6764 = vmatmul.f32.gmra.mxu0 %v6461
    %v6765 = vpop.f32.mrf.mxu0
    %v6766 = vadd.f32 0.0, %v6765
    %6767 = vmatmul.f32.gmra.mxu0 %v6464
    %v6768 = vpop.f32.mrf.mxu0
    %v6769 = vadd.f32 0.0, %v6768
    %6770 = vmatmul.f32.gmra.mxu0 %v6467
    %v6771 = vpop.f32.mrf.mxu0
    %v6772 = vadd.f32 0.0, %v6771
    %6773 = vmatmul.f32.gmra.mxu0 %v6470
    %v6774 = vpop.f32.mrf.mxu0
    %v6775 = vadd.f32 0.0, %v6774
    %6776 = vmatmul.f32.gmra.mxu0 %v6473
    %v6777 = vpop.f32.mrf.mxu0
    %v6778 = vadd.f32 0.0, %v6777
    %6779 = vmatmul.f32.gmra.mxu0 %v6476
    %v6780 = vpop.f32.mrf.mxu0
    %v6781 = vadd.f32 0.0, %v6780
    %6782 = vmatmul.f32.gmra.mxu0 %v6479
    %v6783 = vpop.f32.mrf.mxu0
    %v6784 = vadd.f32 0.0, %v6783
    %6785 = vmatmul.f32.gmra.mxu0 %v6482
    %v6786 = vpop.f32.mrf.mxu0
    %v6787 = vadd.f32 0.0, %v6786
    %6788 = vmatmul.f32.gmra.mxu0 %v6485
    %v6789 = vpop.f32.mrf.mxu0
    %v6790 = vadd.f32 0.0, %v6789
    %6791 = vmatmul.f32.gmra.mxu0 %v6488
    %v6792 = vpop.f32.mrf.mxu0
    %v6793 = vadd.f32 0.0, %v6792
    %6794 = vmatmul.f32.gmra.mxu0 %v6491
    %v6795 = vpop.f32.mrf.mxu0
    %v6796 = vadd.f32 0.0, %v6795
    %6797 = vmatmul.f32.gmra.mxu0 %v6494
    %v6798 = vpop.f32.mrf.mxu0
    %v6799 = vadd.f32 0.0, %v6798
    %6800 = vmatmul.f32.gmra.mxu0 %v6497
    %v6801 = vpop.f32.mrf.mxu0
    %v6802 = vadd.f32 0.0, %v6801
    %6803 = vmatmul.f32.gmra.mxu0 %v6500
    %v6804 = vpop.f32.mrf.mxu0
    %v6805 = vadd.f32 0.0, %v6804
    %6806 = vmatmul.f32.gmra.mxu0 %v6503
    %v6807 = vpop.f32.mrf.mxu0
    %v6808 = vadd.f32 0.0, %v6807
    %6809 = vmatmul.f32.gmra.mxu0 %v6506
    %v6810 = vpop.f32.mrf.mxu0
    %v6811 = vadd.f32 0.0, %v6810
    %6812 = vmatmul.f32.gmra.mxu0 %v6509
    %v6813 = vpop.f32.mrf.mxu0
    %v6814 = vadd.f32 0.0, %v6813
    %6815 = vmatmul.f32.gmra.mxu0 %v6512
    %v6816 = vpop.f32.mrf.mxu0
    %v6817 = vadd.f32 0.0, %v6816
    %6818 = vmatmul.f32.gmra.mxu0 %v6515
    %v6819 = vpop.f32.mrf.mxu0
    %v6820 = vadd.f32 0.0, %v6819
    %6821 = vmatmul.f32.gmra.mxu0 %v6518
    %v6822 = vpop.f32.mrf.mxu0
    %v6823 = vadd.f32 0.0, %v6822
    %6824 = vmatmul.f32.gmra.mxu0 %v6521
    %v6825 = vpop.f32.mrf.mxu0
    %v6826 = vadd.f32 0.0, %v6825
    %6827 = vmatmul.f32.gmra.mxu0 %v6524
    %v6828 = vpop.f32.mrf.mxu0
    %v6829 = vadd.f32 0.0, %v6828
    %6830 = vmatmul.f32.gmra.mxu0 %v6527
    %v6831 = vpop.f32.mrf.mxu0
    %v6832 = vadd.f32 0.0, %v6831
    %6833 = vmatmul.f32.gmra.mxu0 %v6530
    %v6834 = vpop.f32.mrf.mxu0
    %v6835 = vadd.f32 0.0, %v6834
    %6836 = vmatmul.f32.gmra.mxu0 %v6533
    %v6837 = vpop.f32.mrf.mxu0
    %v6838 = vadd.f32 0.0, %v6837
    %6839 = vmatmul.f32.gmra.mxu0 %v6536
    %v6840 = vpop.f32.mrf.mxu0
    %v6841 = vadd.f32 0.0, %v6840
    %6842 = vmatmul.f32.gmra.mxu0 %v6539
    %v6843 = vpop.f32.mrf.mxu0
    %v6844 = vadd.f32 0.0, %v6843
    %6845 = vmatmul.f32.gmra.mxu0 %v6542
    %v6846 = vpop.f32.mrf.mxu0
    %v6847 = vadd.f32 0.0, %v6846
    %6848 = vmatmul.f32.gmra.mxu0 %v6545
    %v6849 = vpop.f32.mrf.mxu0
    %v6850 = vadd.f32 0.0, %v6849
    %6851 = vmatmul.f32.gmra.mxu0 %v6548
    %v6852 = vpop.f32.mrf.mxu0
    %v6853 = vadd.f32 0.0, %v6852
    %6854 = vmatmul.f32.gmra.mxu0 %v6551
    %v6855 = vpop.f32.mrf.mxu0
    %v6856 = vadd.f32 0.0, %v6855
    %6857 = vmatmul.f32.gmra.mxu0 %v6554
    %v6858 = vpop.f32.mrf.mxu0
    %v6859 = vadd.f32 0.0, %v6858
    %6860 = vmatmul.f32.gmra.mxu0 %v6557
    %v6861 = vpop.f32.mrf.mxu0
    %v6862 = vadd.f32 0.0, %v6861
    %6863 = vmatmul.f32.gmra.mxu0 %v6560
    %v6864 = vpop.f32.mrf.mxu0
    %v6865 = vadd.f32 0.0, %v6864
    %6866 = vmatmul.f32.gmra.mxu0 %v6563
    %v6867 = vpop.f32.mrf.mxu0
    %v6868 = vadd.f32 0.0, %v6867
    %6869 = vmatmul.f32.gmra.mxu0 %v6566
    %v6870 = vpop.f32.mrf.mxu0
    %v6871 = vadd.f32 0.0, %v6870
    %6872 = vmatmul.f32.gmra.mxu0 %v6569
    %v6873 = vpop.f32.mrf.mxu0
    %v6874 = vadd.f32 0.0, %v6873
    %6875 = vmatmul.f32.gmra.mxu0 %v6572
    %v6876 = vpop.f32.mrf.mxu0
    %v6877 = vadd.f32 0.0, %v6876
    %6878 = vmatmul.f32.gmra.mxu0 %v6575
    %v6879 = vpop.f32.mrf.mxu0
    %v6880 = vadd.f32 0.0, %v6879
    %6881 = vmatmul.f32.gmra.mxu0 %v6578
    %v6882 = vpop.f32.mrf.mxu0
    %v6883 = vadd.f32 0.0, %v6882
    %6884 = vmatmul.f32.gmra.mxu0 %v6581
    %v6885 = vpop.f32.mrf.mxu0
    %v6886 = vadd.f32 0.0, %v6885
    %6887 = vmatmul.f32.gmra.mxu0 %v6584
    %v6888 = vpop.f32.mrf.mxu0
    %v6889 = vadd.f32 0.0, %v6888
    %6890 = vmatmul.f32.gmra.mxu0 %v6587
    %v6891 = vpop.f32.mrf.mxu0
    %v6892 = vadd.f32 0.0, %v6891
    %6893 = vmatmul.f32.gmra.mxu0 %v6590
    %v6894 = vpop.f32.mrf.mxu0
    %v6895 = vadd.f32 0.0, %v6894
    %6896 = vmatmul.f32.gmra.mxu0 %v6593
    %v6897 = vpop.f32.mrf.mxu0
    %v6898 = vadd.f32 0.0, %v6897
    %6899 = vmatmul.f32.gmra.mxu0 %v6596
    %v6900 = vpop.f32.mrf.mxu0
    %v6901 = vadd.f32 0.0, %v6900
    %6902 = vmatmul.f32.gmra.mxu0 %v6599
    %v6903 = vpop.f32.mrf.mxu0
    %v6904 = vadd.f32 0.0, %v6903
    %6905 = vmatmul.f32.gmra.mxu0 %v6602
    %v6906 = vpop.f32.mrf.mxu0
    %v6907 = vadd.f32 0.0, %v6906
    %6908 = vmatmul.f32.gmra.mxu0 %v6605
    %v6909 = vpop.f32.mrf.mxu0
    %v6910 = vadd.f32 0.0, %v6909
    %6911 = vmatmul.f32.gmra.mxu0 %v6608
    %v6912 = vpop.f32.mrf.mxu0
    %v6913 = vadd.f32 0.0, %v6912
    %6914 = vmatmul.f32.gmra.mxu0 %v6611
    %v6915 = vpop.f32.mrf.mxu0
    %v6916 = vadd.f32 0.0, %v6915
    %6917 = vmatmul.f32.gmra.mxu0 %v6614
    %v6918 = vpop.f32.mrf.mxu0
    %v6919 = vadd.f32 0.0, %v6918
    %6920 = vmatmul.f32.gmra.mxu0 %v6617
    %v6921 = vpop.f32.mrf.mxu0
    %v6922 = vadd.f32 0.0, %v6921
    %6923 = vmatmul.f32.gmra.mxu0 %v6620
    %v6924 = vpop.f32.mrf.mxu0
    %v6925 = vadd.f32 0.0, %v6924
    %6926 = vmatmul.f32.gmra.mxu0 %v6623
    %v6927 = vpop.f32.mrf.mxu0
    %v6928 = vadd.f32 0.0, %v6927
    %6929 = vmatmul.f32.gmra.mxu0 %v6626
    %v6930 = vpop.f32.mrf.mxu0
    %v6931 = vadd.f32 0.0, %v6930
    %6932 = vmatmul.f32.gmra.mxu0 %v6629
    %v6933 = vpop.f32.mrf.mxu0
    %v6934 = vadd.f32 0.0, %v6933
    %6935 = vmatmul.f32.gmra.mxu0 %v6632
    %v6936 = vpop.f32.mrf.mxu0
    %v6937 = vadd.f32 0.0, %v6936
    %6938 = vmatmul.f32.gmra.mxu0 %v6635
    %v6939 = vpop.f32.mrf.mxu0
    %v6940 = vadd.f32 0.0, %v6939
    %6941 = vmatmul.f32.gmra.mxu0 %v6638
    %v6942 = vpop.f32.mrf.mxu0
    %v6943 = vadd.f32 0.0, %v6942
    %6944 = vmatmul.f32.gmra.mxu0 %v6641
    %v6945 = vpop.f32.mrf.mxu0
    %v6946 = vadd.f32 0.0, %v6945
    %6947 = vmatmul.f32.gmra.mxu0 %v6644
    %v6948 = vpop.f32.mrf.mxu0
    %v6949 = vadd.f32 0.0, %v6948
    %6950 = vmatmul.f32.gmra.mxu0 %v6647
    %v6951 = vpop.f32.mrf.mxu0
    %v6952 = vadd.f32 0.0, %v6951
    %6953 = vmatmul.f32.gmra.mxu0 %v6650
    %v6954 = vpop.f32.mrf.mxu0
    %v6955 = vadd.f32 0.0, %v6954
    %6956 = vmatmul.f32.gmra.mxu0 %v6653
    %v6957 = vpop.f32.mrf.mxu0
    %v6958 = vadd.f32 0.0, %v6957
    %6959 = vmatmul.f32.gmra.mxu0 %v6656
    %v6960 = vpop.f32.mrf.mxu0
    %v6961 = vadd.f32 0.0, %v6960
    %6962 = vmatmul.f32.gmra.mxu0 %v6659
    %v6963 = vpop.f32.mrf.mxu0
    %v6964 = vadd.f32 0.0, %v6963
    %6965 = vmatmul.f32.gmra.mxu0 %v6662
    %v6966 = vpop.f32.mrf.mxu0
    %v6967 = vadd.f32 0.0, %v6966
    %6968 = vmatmul.f32.gmra.mxu0 %v6665
    %v6969 = vpop.f32.mrf.mxu0
    %v6970 = vadd.f32 0.0, %v6969
    %6971 = vmatmul.f32.gmra.mxu0 %v6668
    %v6972 = vpop.f32.mrf.mxu0
    %v6973 = vadd.f32 0.0, %v6972
    %6974 = vmatmul.f32.gmra.mxu0 %v6671
    %v6975 = vpop.f32.mrf.mxu0
    %v6976 = vadd.f32 0.0, %v6975
    %6977 = vmatmul.f32.gmra.mxu0 %v6674
    %v6978 = vpop.f32.mrf.mxu0
    %v6979 = vadd.f32 0.0, %v6978
    %6980 = vmatmul.f32.gmra.mxu0 %v6677
    %v6981 = vpop.f32.mrf.mxu0
    %v6982 = vadd.f32 0.0, %v6981
    %6983 = vmatmul.f32.gmra.mxu0 %v6680
    %v6984 = vpop.f32.mrf.mxu0
    %v6985 = vadd.f32 0.0, %v6984
    %6986 = vmatmul.f32.gmra.mxu0 %v6683
    %v6987 = vpop.f32.mrf.mxu0
    %v6988 = vadd.f32 0.0, %v6987
    %6989 = vmatmul.f32.gmra.mxu0 %v6686
    %v6990 = vpop.f32.mrf.mxu0
    %v6991 = vadd.f32 0.0, %v6990
    %6992 = vmatmul.f32.gmra.mxu0 %v6689
    %v6993 = vpop.f32.mrf.mxu0
    %v6994 = vadd.f32 0.0, %v6993
    %6995 = vmatmul.f32.gmra.mxu0 %v6692
    %v6996 = vpop.f32.mrf.mxu0
    %v6997 = vadd.f32 0.0, %v6996
    %6998 = vmatmul.f32.gmra.mxu0 %v6695
    %v6999 = vpop.f32.mrf.mxu0
    %v7000 = vadd.f32 0.0, %v6999
    %7001 = vmatmul.f32.gmra.mxu0 %v6698
    %v7002 = vpop.f32.mrf.mxu0
    %v7003 = vadd.f32 0.0, %v7002
    %7004 = vmatmul.f32.gmra.mxu0 %v6701
    %v7005 = vpop.f32.mrf.mxu0
    %v7006 = vadd.f32 0.0, %v7005
    %7007 = vmatmul.f32.gmra.mxu0 %v6704
    %v7008 = vpop.f32.mrf.mxu0
    %v7009 = vadd.f32 0.0, %v7008
    %7010 = vdwg.mxu0
    %v7011 = vadd.f32 %v6131, %v6724
    %v7012 = vadd.f32 %v6134, %v6727
    %v7013 = vadd.f32 %v6137, %v6730
    %v7014 = vadd.f32 %v6140, %v6733
    %v7015 = vadd.f32 %v6143, %v6736
    %v7016 = vadd.f32 %v6146, %v6739
    %v7017 = vadd.f32 %v6149, %v6742
    %v7018 = vadd.f32 %v6152, %v6745
    %v7019 = vadd.f32 %v6155, %v6748
    %v7020 = vadd.f32 %v6158, %v6751
    %v7021 = vadd.f32 %v6161, %v6754
    %v7022 = vadd.f32 %v6164, %v6757
    %v7023 = vadd.f32 %v6167, %v6760
    %v7024 = vadd.f32 %v6170, %v6763
    %v7025 = vadd.f32 %v6173, %v6766
    %v7026 = vadd.f32 %v6176, %v6769
    %v7027 = vadd.f32 %v6179, %v6772
    %v7028 = vadd.f32 %v6182, %v6775
    %v7029 = vadd.f32 %v6185, %v6778
    %v7030 = vadd.f32 %v6188, %v6781
    %v7031 = vadd.f32 %v6191, %v6784
    %v7032 = vadd.f32 %v6194, %v6787
    %v7033 = vadd.f32 %v6197, %v6790
    %v7034 = vadd.f32 %v6200, %v6793
    %v7035 = vadd.f32 %v6203, %v6796
    %v7036 = vadd.f32 %v6206, %v6799
    %v7037 = vadd.f32 %v6209, %v6802
    %v7038 = vadd.f32 %v6212, %v6805
    %v7039 = vadd.f32 %v6215, %v6808
    %v7040 = vadd.f32 %v6218, %v6811
    %v7041 = vadd.f32 %v6221, %v6814
    %v7042 = vadd.f32 %v6224, %v6817
    %v7043 = vadd.f32 %v6227, %v6820
    %v7044 = vadd.f32 %v6230, %v6823
    %v7045 = vadd.f32 %v6233, %v6826
    %v7046 = vadd.f32 %v6236, %v6829
    %v7047 = vadd.f32 %v6239, %v6832
    %v7048 = vadd.f32 %v6242, %v6835
    %v7049 = vadd.f32 %v6245, %v6838
    %v7050 = vadd.f32 %v6248, %v6841
    %v7051 = vadd.f32 %v6251, %v6844
    %v7052 = vadd.f32 %v6254, %v6847
    %v7053 = vadd.f32 %v6257, %v6850
    %v7054 = vadd.f32 %v6260, %v6853
    %v7055 = vadd.f32 %v6263, %v6856
    %v7056 = vadd.f32 %v6266, %v6859
    %v7057 = vadd.f32 %v6269, %v6862
    %v7058 = vadd.f32 %v6272, %v6865
    %v7059 = vadd.f32 %v6275, %v6868
    %v7060 = vadd.f32 %v6278, %v6871
    %v7061 = vadd.f32 %v6281, %v6874
    %v7062 = vadd.f32 %v6284, %v6877
    %v7063 = vadd.f32 %v6287, %v6880
    %v7064 = vadd.f32 %v6290, %v6883
    %v7065 = vadd.f32 %v6293, %v6886
    %v7066 = vadd.f32 %v6296, %v6889
    %v7067 = vadd.f32 %v6299, %v6892
    %v7068 = vadd.f32 %v6302, %v6895
    %v7069 = vadd.f32 %v6305, %v6898
    %v7070 = vadd.f32 %v6308, %v6901
    %v7071 = vadd.f32 %v6311, %v6904
    %v7072 = vadd.f32 %v6314, %v6907
    %v7073 = vadd.f32 %v6317, %v6910
    %v7074 = vadd.f32 %v6320, %v6913
    %v7075 = vadd.f32 %v6323, %v6916
    %v7076 = vadd.f32 %v6326, %v6919
    %v7077 = vadd.f32 %v6329, %v6922
    %v7078 = vadd.f32 %v6332, %v6925
    %v7079 = vadd.f32 %v6335, %v6928
    %v7080 = vadd.f32 %v6338, %v6931
    %v7081 = vadd.f32 %v6341, %v6934
    %v7082 = vadd.f32 %v6344, %v6937
    %v7083 = vadd.f32 %v6347, %v6940
    %v7084 = vadd.f32 %v6350, %v6943
    %v7085 = vadd.f32 %v6353, %v6946
    %v7086 = vadd.f32 %v6356, %v6949
    %v7087 = vadd.f32 %v6359, %v6952
    %v7088 = vadd.f32 %v6362, %v6955
    %v7089 = vadd.f32 %v6365, %v6958
    %v7090 = vadd.f32 %v6368, %v6961
    %v7091 = vadd.f32 %v6371, %v6964
    %v7092 = vadd.f32 %v6374, %v6967
    %v7093 = vadd.f32 %v6377, %v6970
    %v7094 = vadd.f32 %v6380, %v6973
    %v7095 = vadd.f32 %v6383, %v6976
    %v7096 = vadd.f32 %v6386, %v6979
    %v7097 = vadd.f32 %v6389, %v6982
    %v7098 = vadd.f32 %v6392, %v6985
    %v7099 = vadd.f32 %v6395, %v6988
    %v7100 = vadd.f32 %v6398, %v6991
    %v7101 = vadd.f32 %v6401, %v6994
    %v7102 = vadd.f32 %v6404, %v6997
    %v7103 = vadd.f32 %v6407, %v7000
    %v7104 = vadd.f32 %v6410, %v7003
    %v7105 = vadd.f32 %v6413, %v7006
    %v7106 = vadd.f32 %v6416, %v7009
    %v7108 = vperm.slane %v1895, 0
    %v7110 = vadd.f32 %v7011, %v7108
    %v7111 = vadd.f32 %v7012, %v7108
    %v7112 = vadd.f32 %v7013, %v7108
    %v7113 = vadd.f32 %v7014, %v7108
    %v7114 = vadd.f32 %v7015, %v7108
    %v7115 = vadd.f32 %v7016, %v7108
    %v7116 = vadd.f32 %v7017, %v7108
    %v7117 = vadd.f32 %v7018, %v7108
    %v7118 = vadd.f32 %v7019, %v7108
    %v7119 = vadd.f32 %v7020, %v7108
    %v7120 = vadd.f32 %v7021, %v7108
    %v7121 = vadd.f32 %v7022, %v7108
    %v7122 = vadd.f32 %v7023, %v7108
    %v7123 = vadd.f32 %v7024, %v7108
    %v7124 = vadd.f32 %v7025, %v7108
    %v7125 = vadd.f32 %v7026, %v7108
    %v7126 = vadd.f32 %v7027, %v7108
    %v7127 = vadd.f32 %v7028, %v7108
    %v7128 = vadd.f32 %v7029, %v7108
    %v7129 = vadd.f32 %v7030, %v7108
    %v7130 = vadd.f32 %v7031, %v7108
    %v7131 = vadd.f32 %v7032, %v7108
    %v7132 = vadd.f32 %v7033, %v7108
    %v7133 = vadd.f32 %v7034, %v7108
    %v7134 = vadd.f32 %v7035, %v7108
    %v7135 = vadd.f32 %v7036, %v7108
    %v7136 = vadd.f32 %v7037, %v7108
    %v7137 = vadd.f32 %v7038, %v7108
    %v7138 = vadd.f32 %v7039, %v7108
    %v7139 = vadd.f32 %v7040, %v7108
    %v7140 = vadd.f32 %v7041, %v7108
    %v7141 = vadd.f32 %v7042, %v7108
    %v7142 = vadd.f32 %v7043, %v7108
    %v7143 = vadd.f32 %v7044, %v7108
    %v7144 = vadd.f32 %v7045, %v7108
    %v7145 = vadd.f32 %v7046, %v7108
    %v7146 = vadd.f32 %v7047, %v7108
    %v7147 = vadd.f32 %v7048, %v7108
    %v7148 = vadd.f32 %v7049, %v7108
    %v7149 = vadd.f32 %v7050, %v7108
    %v7150 = vadd.f32 %v7051, %v7108
    %v7151 = vadd.f32 %v7052, %v7108
    %v7152 = vadd.f32 %v7053, %v7108
    %v7153 = vadd.f32 %v7054, %v7108
    %v7154 = vadd.f32 %v7055, %v7108
    %v7155 = vadd.f32 %v7056, %v7108
    %v7156 = vadd.f32 %v7057, %v7108
    %v7157 = vadd.f32 %v7058, %v7108
    %v7158 = vadd.f32 %v7059, %v7108
    %v7159 = vadd.f32 %v7060, %v7108
    %v7160 = vadd.f32 %v7061, %v7108
    %v7161 = vadd.f32 %v7062, %v7108
    %v7162 = vadd.f32 %v7063, %v7108
    %v7163 = vadd.f32 %v7064, %v7108
    %v7164 = vadd.f32 %v7065, %v7108
    %v7165 = vadd.f32 %v7066, %v7108
    %v7166 = vadd.f32 %v7067, %v7108
    %v7167 = vadd.f32 %v7068, %v7108
    %v7168 = vadd.f32 %v7069, %v7108
    %v7169 = vadd.f32 %v7070, %v7108
    %v7170 = vadd.f32 %v7071, %v7108
    %v7171 = vadd.f32 %v7072, %v7108
    %v7172 = vadd.f32 %v7073, %v7108
    %v7173 = vadd.f32 %v7074, %v7108
    %v7174 = vadd.f32 %v7075, %v7108
    %v7175 = vadd.f32 %v7076, %v7108
    %v7176 = vadd.f32 %v7077, %v7108
    %v7177 = vadd.f32 %v7078, %v7108
    %v7178 = vadd.f32 %v7079, %v7108
    %v7179 = vadd.f32 %v7080, %v7108
    %v7180 = vadd.f32 %v7081, %v7108
    %v7181 = vadd.f32 %v7082, %v7108
    %v7182 = vadd.f32 %v7083, %v7108
    %v7183 = vadd.f32 %v7084, %v7108
    %v7184 = vadd.f32 %v7085, %v7108
    %v7185 = vadd.f32 %v7086, %v7108
    %v7186 = vadd.f32 %v7087, %v7108
    %v7187 = vadd.f32 %v7088, %v7108
    %v7188 = vadd.f32 %v7089, %v7108
    %v7189 = vadd.f32 %v7090, %v7108
    %v7190 = vadd.f32 %v7091, %v7108
    %v7191 = vadd.f32 %v7092, %v7108
    %v7192 = vadd.f32 %v7093, %v7108
    %v7193 = vadd.f32 %v7094, %v7108
    %v7194 = vadd.f32 %v7095, %v7108
    %v7195 = vadd.f32 %v7096, %v7108
    %v7196 = vadd.f32 %v7097, %v7108
    %v7197 = vadd.f32 %v7098, %v7108
    %v7198 = vadd.f32 %v7099, %v7108
    %v7199 = vadd.f32 %v7100, %v7108
    %v7200 = vadd.f32 %v7101, %v7108
    %v7201 = vadd.f32 %v7102, %v7108
    %v7202 = vadd.f32 %v7103, %v7108
    %v7203 = vadd.f32 %v7104, %v7108
    %v7204 = vadd.f32 %v7105, %v7108
    %v7205 = vadd.f32 %v7106, %v7108
    %v7206 = vmax.f32 %v7110, 0.0
    %v7207 = vmax.f32 %v7111, 0.0
    %v7208 = vmax.f32 %v7112, 0.0
    %v7209 = vmax.f32 %v7113, 0.0
    %v7210 = vmax.f32 %v7114, 0.0
    %v7211 = vmax.f32 %v7115, 0.0
    %v7212 = vmax.f32 %v7116, 0.0
    %v7213 = vmax.f32 %v7117, 0.0
    %v7214 = vmax.f32 %v7118, 0.0
    %v7215 = vmax.f32 %v7119, 0.0
    %v7216 = vmax.f32 %v7120, 0.0
    %v7217 = vmax.f32 %v7121, 0.0
    %v7218 = vmax.f32 %v7122, 0.0
    %v7219 = vmax.f32 %v7123, 0.0
    %v7220 = vmax.f32 %v7124, 0.0
    %v7221 = vmax.f32 %v7125, 0.0
    %v7222 = vmax.f32 %v7126, 0.0
    %v7223 = vmax.f32 %v7127, 0.0
    %v7224 = vmax.f32 %v7128, 0.0
    %v7225 = vmax.f32 %v7129, 0.0
    %v7226 = vmax.f32 %v7130, 0.0
    %v7227 = vmax.f32 %v7131, 0.0
    %v7228 = vmax.f32 %v7132, 0.0
    %v7229 = vmax.f32 %v7133, 0.0
    %v7230 = vmax.f32 %v7134, 0.0
    %v7231 = vmax.f32 %v7135, 0.0
    %v7232 = vmax.f32 %v7136, 0.0
    %v7233 = vmax.f32 %v7137, 0.0
    %v7234 = vmax.f32 %v7138, 0.0
    %v7235 = vmax.f32 %v7139, 0.0
    %v7236 = vmax.f32 %v7140, 0.0
    %v7237 = vmax.f32 %v7141, 0.0
    %v7238 = vmax.f32 %v7142, 0.0
    %v7239 = vmax.f32 %v7143, 0.0
    %v7240 = vmax.f32 %v7144, 0.0
    %v7241 = vmax.f32 %v7145, 0.0
    %v7242 = vmax.f32 %v7146, 0.0
    %v7243 = vmax.f32 %v7147, 0.0
    %v7244 = vmax.f32 %v7148, 0.0
    %v7245 = vmax.f32 %v7149, 0.0
    %v7246 = vmax.f32 %v7150, 0.0
    %v7247 = vmax.f32 %v7151, 0.0
    %v7248 = vmax.f32 %v7152, 0.0
    %v7249 = vmax.f32 %v7153, 0.0
    %v7250 = vmax.f32 %v7154, 0.0
    %v7251 = vmax.f32 %v7155, 0.0
    %v7252 = vmax.f32 %v7156, 0.0
    %v7253 = vmax.f32 %v7157, 0.0
    %v7254 = vmax.f32 %v7158, 0.0
    %v7255 = vmax.f32 %v7159, 0.0
    %v7256 = vmax.f32 %v7160, 0.0
    %v7257 = vmax.f32 %v7161, 0.0
    %v7258 = vmax.f32 %v7162, 0.0
    %v7259 = vmax.f32 %v7163, 0.0
    %v7260 = vmax.f32 %v7164, 0.0
    %v7261 = vmax.f32 %v7165, 0.0
    %v7262 = vmax.f32 %v7166, 0.0
    %v7263 = vmax.f32 %v7167, 0.0
    %v7264 = vmax.f32 %v7168, 0.0
    %v7265 = vmax.f32 %v7169, 0.0
    %v7266 = vmax.f32 %v7170, 0.0
    %v7267 = vmax.f32 %v7171, 0.0
    %v7268 = vmax.f32 %v7172, 0.0
    %v7269 = vmax.f32 %v7173, 0.0
    %v7270 = vmax.f32 %v7174, 0.0
    %v7271 = vmax.f32 %v7175, 0.0
    %v7272 = vmax.f32 %v7176, 0.0
    %v7273 = vmax.f32 %v7177, 0.0
    %v7274 = vmax.f32 %v7178, 0.0
    %v7275 = vmax.f32 %v7179, 0.0
    %v7276 = vmax.f32 %v7180, 0.0
    %v7277 = vmax.f32 %v7181, 0.0
    %v7278 = vmax.f32 %v7182, 0.0
    %v7279 = vmax.f32 %v7183, 0.0
    %v7280 = vmax.f32 %v7184, 0.0
    %v7281 = vmax.f32 %v7185, 0.0
    %v7282 = vmax.f32 %v7186, 0.0
    %v7283 = vmax.f32 %v7187, 0.0
    %v7284 = vmax.f32 %v7188, 0.0
    %v7285 = vmax.f32 %v7189, 0.0
    %v7286 = vmax.f32 %v7190, 0.0
    %v7287 = vmax.f32 %v7191, 0.0
    %v7288 = vmax.f32 %v7192, 0.0
    %v7289 = vmax.f32 %v7193, 0.0
    %v7290 = vmax.f32 %v7194, 0.0
    %v7291 = vmax.f32 %v7195, 0.0
    %v7292 = vmax.f32 %v7196, 0.0
    %v7293 = vmax.f32 %v7197, 0.0
    %v7294 = vmax.f32 %v7198, 0.0
    %v7295 = vmax.f32 %v7199, 0.0
    %v7296 = vmax.f32 %v7200, 0.0
    %v7297 = vmax.f32 %v7201, 0.0
    %v7298 = vmax.f32 %v7202, 0.0
    %v7299 = vmax.f32 %v7203, 0.0
    %v7300 = vmax.f32 %v7204, 0.0
    %v7301 = vmax.f32 %v7205, 0.0
    %vm7302 = vcmask 523264
    %v7303 = vsel %vm7302, %v7206, 0.0
    %v7304 = vsel %vm7302, %v7207, 0.0
    %v7305 = vadd.f32 %v7303, %v7304
    %v7306 = vrot.slane %v7305, 4
    %v7307 = vadd.f32 %v7305, %v7306
    %v7308 = vrot.slane %v7307, 2
    %v7309 = vadd.f32 %v7307, %v7308
    %v7310 = vrot.slane %v7309, 1
    %v7311 = vadd.f32 %v7309, %v7310
    %v7312 = vsel %vm7302, %v7208, 0.0
    %v7313 = vsel %vm7302, %v7209, 0.0
    %v7314 = vadd.f32 %v7312, %v7313
    %v7315 = vrot.slane %v7314, 4
    %v7316 = vadd.f32 %v7314, %v7315
    %v7317 = vrot.slane %v7316, 2
    %v7318 = vadd.f32 %v7316, %v7317
    %v7319 = vrot.slane %v7318, 1
    %v7320 = vadd.f32 %v7318, %v7319
    %v7321 = vsel %vm7302, %v7210, 0.0
    %v7322 = vsel %vm7302, %v7211, 0.0
    %v7323 = vadd.f32 %v7321, %v7322
    %v7324 = vrot.slane %v7323, 4
    %v7325 = vadd.f32 %v7323, %v7324
    %v7326 = vrot.slane %v7325, 2
    %v7327 = vadd.f32 %v7325, %v7326
    %v7328 = vrot.slane %v7327, 1
    %v7329 = vadd.f32 %v7327, %v7328
    %v7330 = vsel %vm7302, %v7212, 0.0
    %v7331 = vsel %vm7302, %v7213, 0.0
    %v7332 = vadd.f32 %v7330, %v7331
    %v7333 = vrot.slane %v7332, 4
    %v7334 = vadd.f32 %v7332, %v7333
    %v7335 = vrot.slane %v7334, 2
    %v7336 = vadd.f32 %v7334, %v7335
    %v7337 = vrot.slane %v7336, 1
    %v7338 = vadd.f32 %v7336, %v7337
    %v7339 = vsel %vm7302, %v7214, 0.0
    %v7340 = vsel %vm7302, %v7215, 0.0
    %v7341 = vadd.f32 %v7339, %v7340
    %v7342 = vrot.slane %v7341, 4
    %v7343 = vadd.f32 %v7341, %v7342
    %v7344 = vrot.slane %v7343, 2
    %v7345 = vadd.f32 %v7343, %v7344
    %v7346 = vrot.slane %v7345, 1
    %v7347 = vadd.f32 %v7345, %v7346
    %v7348 = vsel %vm7302, %v7216, 0.0
    %v7349 = vsel %vm7302, %v7217, 0.0
    %v7350 = vadd.f32 %v7348, %v7349
    %v7351 = vrot.slane %v7350, 4
    %v7352 = vadd.f32 %v7350, %v7351
    %v7353 = vrot.slane %v7352, 2
    %v7354 = vadd.f32 %v7352, %v7353
    %v7355 = vrot.slane %v7354, 1
    %v7356 = vadd.f32 %v7354, %v7355
    %v7357 = vsel %vm7302, %v7218, 0.0
    %v7358 = vsel %vm7302, %v7219, 0.0
    %v7359 = vadd.f32 %v7357, %v7358
    %v7360 = vrot.slane %v7359, 4
    %v7361 = vadd.f32 %v7359, %v7360
    %v7362 = vrot.slane %v7361, 2
    %v7363 = vadd.f32 %v7361, %v7362
    %v7364 = vrot.slane %v7363, 1
    %v7365 = vadd.f32 %v7363, %v7364
    %v7366 = vsel %vm7302, %v7220, 0.0
    %v7367 = vsel %vm7302, %v7221, 0.0
    %v7368 = vadd.f32 %v7366, %v7367
    %v7369 = vrot.slane %v7368, 4
    %v7370 = vadd.f32 %v7368, %v7369
    %v7371 = vrot.slane %v7370, 2
    %v7372 = vadd.f32 %v7370, %v7371
    %v7373 = vrot.slane %v7372, 1
    %v7374 = vadd.f32 %v7372, %v7373
    %v7375 = vsel %vm7302, %v7222, 0.0
    %v7376 = vsel %vm7302, %v7223, 0.0
    %v7377 = vadd.f32 %v7375, %v7376
    %v7378 = vrot.slane %v7377, 4
    %v7379 = vadd.f32 %v7377, %v7378
    %v7380 = vrot.slane %v7379, 2
    %v7381 = vadd.f32 %v7379, %v7380
    %v7382 = vrot.slane %v7381, 1
    %v7383 = vadd.f32 %v7381, %v7382
    %v7384 = vsel %vm7302, %v7224, 0.0
    %v7385 = vsel %vm7302, %v7225, 0.0
    %v7386 = vadd.f32 %v7384, %v7385
    %v7387 = vrot.slane %v7386, 4
    %v7388 = vadd.f32 %v7386, %v7387
    %v7389 = vrot.slane %v7388, 2
    %v7390 = vadd.f32 %v7388, %v7389
    %v7391 = vrot.slane %v7390, 1
    %v7392 = vadd.f32 %v7390, %v7391
    %v7393 = vsel %vm7302, %v7226, 0.0
    %v7394 = vsel %vm7302, %v7227, 0.0
    %v7395 = vadd.f32 %v7393, %v7394
    %v7396 = vrot.slane %v7395, 4
    %v7397 = vadd.f32 %v7395, %v7396
    %v7398 = vrot.slane %v7397, 2
    %v7399 = vadd.f32 %v7397, %v7398
    %v7400 = vrot.slane %v7399, 1
    %v7401 = vadd.f32 %v7399, %v7400
    %v7402 = vsel %vm7302, %v7228, 0.0
    %v7403 = vsel %vm7302, %v7229, 0.0
    %v7404 = vadd.f32 %v7402, %v7403
    %v7405 = vrot.slane %v7404, 4
    %v7406 = vadd.f32 %v7404, %v7405
    %v7407 = vrot.slane %v7406, 2
    %v7408 = vadd.f32 %v7406, %v7407
    %v7409 = vrot.slane %v7408, 1
    %v7410 = vadd.f32 %v7408, %v7409
    %v7411 = vsel %vm7302, %v7230, 0.0
    %v7412 = vsel %vm7302, %v7231, 0.0
    %v7413 = vadd.f32 %v7411, %v7412
    %v7414 = vrot.slane %v7413, 4
    %v7415 = vadd.f32 %v7413, %v7414
    %v7416 = vrot.slane %v7415, 2
    %v7417 = vadd.f32 %v7415, %v7416
    %v7418 = vrot.slane %v7417, 1
    %v7419 = vadd.f32 %v7417, %v7418
    %v7420 = vsel %vm7302, %v7232, 0.0
    %v7421 = vsel %vm7302, %v7233, 0.0
    %v7422 = vadd.f32 %v7420, %v7421
    %v7423 = vrot.slane %v7422, 4
    %v7424 = vadd.f32 %v7422, %v7423
    %v7425 = vrot.slane %v7424, 2
    %v7426 = vadd.f32 %v7424, %v7425
    %v7427 = vrot.slane %v7426, 1
    %v7428 = vadd.f32 %v7426, %v7427
    %v7429 = vsel %vm7302, %v7234, 0.0
    %v7430 = vsel %vm7302, %v7235, 0.0
    %v7431 = vadd.f32 %v7429, %v7430
    %v7432 = vrot.slane %v7431, 4
    %v7433 = vadd.f32 %v7431, %v7432
    %v7434 = vrot.slane %v7433, 2
    %v7435 = vadd.f32 %v7433, %v7434
    %v7436 = vrot.slane %v7435, 1
    %v7437 = vadd.f32 %v7435, %v7436
    %v7438 = vsel %vm7302, %v7236, 0.0
    %v7439 = vsel %vm7302, %v7237, 0.0
    %v7440 = vadd.f32 %v7438, %v7439
    %v7441 = vrot.slane %v7440, 4
    %v7442 = vadd.f32 %v7440, %v7441
    %v7443 = vrot.slane %v7442, 2
    %v7444 = vadd.f32 %v7442, %v7443
    %v7445 = vrot.slane %v7444, 1
    %v7446 = vadd.f32 %v7444, %v7445
    %v7447 = vsel %vm7302, %v7238, 0.0
    %v7448 = vsel %vm7302, %v7239, 0.0
    %v7449 = vadd.f32 %v7447, %v7448
    %v7450 = vrot.slane %v7449, 4
    %v7451 = vadd.f32 %v7449, %v7450
    %v7452 = vrot.slane %v7451, 2
    %v7453 = vadd.f32 %v7451, %v7452
    %v7454 = vrot.slane %v7453, 1
    %v7455 = vadd.f32 %v7453, %v7454
    %v7456 = vsel %vm7302, %v7240, 0.0
    %v7457 = vsel %vm7302, %v7241, 0.0
    %v7458 = vadd.f32 %v7456, %v7457
    %v7459 = vrot.slane %v7458, 4
    %v7460 = vadd.f32 %v7458, %v7459
    %v7461 = vrot.slane %v7460, 2
    %v7462 = vadd.f32 %v7460, %v7461
    %v7463 = vrot.slane %v7462, 1
    %v7464 = vadd.f32 %v7462, %v7463
    %v7465 = vsel %vm7302, %v7242, 0.0
    %v7466 = vsel %vm7302, %v7243, 0.0
    %v7467 = vadd.f32 %v7465, %v7466
    %v7468 = vrot.slane %v7467, 4
    %v7469 = vadd.f32 %v7467, %v7468
    %v7470 = vrot.slane %v7469, 2
    %v7471 = vadd.f32 %v7469, %v7470
    %v7472 = vrot.slane %v7471, 1
    %v7473 = vadd.f32 %v7471, %v7472
    %v7474 = vsel %vm7302, %v7244, 0.0
    %v7475 = vsel %vm7302, %v7245, 0.0
    %v7476 = vadd.f32 %v7474, %v7475
    %v7477 = vrot.slane %v7476, 4
    %v7478 = vadd.f32 %v7476, %v7477
    %v7479 = vrot.slane %v7478, 2
    %v7480 = vadd.f32 %v7478, %v7479
    %v7481 = vrot.slane %v7480, 1
    %v7482 = vadd.f32 %v7480, %v7481
    %v7483 = vsel %vm7302, %v7246, 0.0
    %v7484 = vsel %vm7302, %v7247, 0.0
    %v7485 = vadd.f32 %v7483, %v7484
    %v7486 = vrot.slane %v7485, 4
    %v7487 = vadd.f32 %v7485, %v7486
    %v7488 = vrot.slane %v7487, 2
    %v7489 = vadd.f32 %v7487, %v7488
    %v7490 = vrot.slane %v7489, 1
    %v7491 = vadd.f32 %v7489, %v7490
    %v7492 = vsel %vm7302, %v7248, 0.0
    %v7493 = vsel %vm7302, %v7249, 0.0
    %v7494 = vadd.f32 %v7492, %v7493
    %v7495 = vrot.slane %v7494, 4
    %v7496 = vadd.f32 %v7494, %v7495
    %v7497 = vrot.slane %v7496, 2
    %v7498 = vadd.f32 %v7496, %v7497
    %v7499 = vrot.slane %v7498, 1
    %v7500 = vadd.f32 %v7498, %v7499
    %v7501 = vsel %vm7302, %v7250, 0.0
    %v7502 = vsel %vm7302, %v7251, 0.0
    %v7503 = vadd.f32 %v7501, %v7502
    %v7504 = vrot.slane %v7503, 4
    %v7505 = vadd.f32 %v7503, %v7504
    %v7506 = vrot.slane %v7505, 2
    %v7507 = vadd.f32 %v7505, %v7506
    %v7508 = vrot.slane %v7507, 1
    %v7509 = vadd.f32 %v7507, %v7508
    %v7510 = vsel %vm7302, %v7252, 0.0
    %v7511 = vsel %vm7302, %v7253, 0.0
    %v7512 = vadd.f32 %v7510, %v7511
    %v7513 = vrot.slane %v7512, 4
    %v7514 = vadd.f32 %v7512, %v7513
    %v7515 = vrot.slane %v7514, 2
    %v7516 = vadd.f32 %v7514, %v7515
    %v7517 = vrot.slane %v7516, 1
    %v7518 = vadd.f32 %v7516, %v7517
    %v7519 = vsel %vm7302, %v7254, 0.0
    %v7520 = vsel %vm7302, %v7255, 0.0
    %v7521 = vadd.f32 %v7519, %v7520
    %v7522 = vrot.slane %v7521, 4
    %v7523 = vadd.f32 %v7521, %v7522
    %v7524 = vrot.slane %v7523, 2
    %v7525 = vadd.f32 %v7523, %v7524
    %v7526 = vrot.slane %v7525, 1
    %v7527 = vadd.f32 %v7525, %v7526
    %v7528 = vsel %vm7302, %v7256, 0.0
    %v7529 = vsel %vm7302, %v7257, 0.0
    %v7530 = vadd.f32 %v7528, %v7529
    %v7531 = vrot.slane %v7530, 4
    %v7532 = vadd.f32 %v7530, %v7531
    %v7533 = vrot.slane %v7532, 2
    %v7534 = vadd.f32 %v7532, %v7533
    %v7535 = vrot.slane %v7534, 1
    %v7536 = vadd.f32 %v7534, %v7535
    %v7537 = vsel %vm7302, %v7258, 0.0
    %v7538 = vsel %vm7302, %v7259, 0.0
    %v7539 = vadd.f32 %v7537, %v7538
    %v7540 = vrot.slane %v7539, 4
    %v7541 = vadd.f32 %v7539, %v7540
    %v7542 = vrot.slane %v7541, 2
    %v7543 = vadd.f32 %v7541, %v7542
    %v7544 = vrot.slane %v7543, 1
    %v7545 = vadd.f32 %v7543, %v7544
    %v7546 = vsel %vm7302, %v7260, 0.0
    %v7547 = vsel %vm7302, %v7261, 0.0
    %v7548 = vadd.f32 %v7546, %v7547
    %v7549 = vrot.slane %v7548, 4
    %v7550 = vadd.f32 %v7548, %v7549
    %v7551 = vrot.slane %v7550, 2
    %v7552 = vadd.f32 %v7550, %v7551
    %v7553 = vrot.slane %v7552, 1
    %v7554 = vadd.f32 %v7552, %v7553
    %v7555 = vsel %vm7302, %v7262, 0.0
    %v7556 = vsel %vm7302, %v7263, 0.0
    %v7557 = vadd.f32 %v7555, %v7556
    %v7558 = vrot.slane %v7557, 4
    %v7559 = vadd.f32 %v7557, %v7558
    %v7560 = vrot.slane %v7559, 2
    %v7561 = vadd.f32 %v7559, %v7560
    %v7562 = vrot.slane %v7561, 1
    %v7563 = vadd.f32 %v7561, %v7562
    %v7564 = vsel %vm7302, %v7264, 0.0
    %v7565 = vsel %vm7302, %v7265, 0.0
    %v7566 = vadd.f32 %v7564, %v7565
    %v7567 = vrot.slane %v7566, 4
    %v7568 = vadd.f32 %v7566, %v7567
    %v7569 = vrot.slane %v7568, 2
    %v7570 = vadd.f32 %v7568, %v7569
    %v7571 = vrot.slane %v7570, 1
    %v7572 = vadd.f32 %v7570, %v7571
    %v7573 = vsel %vm7302, %v7266, 0.0
    %v7574 = vsel %vm7302, %v7267, 0.0
    %v7575 = vadd.f32 %v7573, %v7574
    %v7576 = vrot.slane %v7575, 4
    %v7577 = vadd.f32 %v7575, %v7576
    %v7578 = vrot.slane %v7577, 2
    %v7579 = vadd.f32 %v7577, %v7578
    %v7580 = vrot.slane %v7579, 1
    %v7581 = vadd.f32 %v7579, %v7580
    %v7582 = vsel %vm7302, %v7268, 0.0
    %v7583 = vsel %vm7302, %v7269, 0.0
    %v7584 = vadd.f32 %v7582, %v7583
    %v7585 = vrot.slane %v7584, 4
    %v7586 = vadd.f32 %v7584, %v7585
    %v7587 = vrot.slane %v7586, 2
    %v7588 = vadd.f32 %v7586, %v7587
    %v7589 = vrot.slane %v7588, 1
    %v7590 = vadd.f32 %v7588, %v7589
    %v7591 = vsel %vm7302, %v7270, 0.0
    %v7592 = vsel %vm7302, %v7271, 0.0
    %v7593 = vadd.f32 %v7591, %v7592
    %v7594 = vrot.slane %v7593, 4
    %v7595 = vadd.f32 %v7593, %v7594
    %v7596 = vrot.slane %v7595, 2
    %v7597 = vadd.f32 %v7595, %v7596
    %v7598 = vrot.slane %v7597, 1
    %v7599 = vadd.f32 %v7597, %v7598
    %v7600 = vsel %vm7302, %v7272, 0.0
    %v7601 = vsel %vm7302, %v7273, 0.0
    %v7602 = vadd.f32 %v7600, %v7601
    %v7603 = vrot.slane %v7602, 4
    %v7604 = vadd.f32 %v7602, %v7603
    %v7605 = vrot.slane %v7604, 2
    %v7606 = vadd.f32 %v7604, %v7605
    %v7607 = vrot.slane %v7606, 1
    %v7608 = vadd.f32 %v7606, %v7607
    %v7609 = vsel %vm7302, %v7274, 0.0
    %v7610 = vsel %vm7302, %v7275, 0.0
    %v7611 = vadd.f32 %v7609, %v7610
    %v7612 = vrot.slane %v7611, 4
    %v7613 = vadd.f32 %v7611, %v7612
    %v7614 = vrot.slane %v7613, 2
    %v7615 = vadd.f32 %v7613, %v7614
    %v7616 = vrot.slane %v7615, 1
    %v7617 = vadd.f32 %v7615, %v7616
    %v7618 = vsel %vm7302, %v7276, 0.0
    %v7619 = vsel %vm7302, %v7277, 0.0
    %v7620 = vadd.f32 %v7618, %v7619
    %v7621 = vrot.slane %v7620, 4
    %v7622 = vadd.f32 %v7620, %v7621
    %v7623 = vrot.slane %v7622, 2
    %v7624 = vadd.f32 %v7622, %v7623
    %v7625 = vrot.slane %v7624, 1
    %v7626 = vadd.f32 %v7624, %v7625
    %v7627 = vsel %vm7302, %v7278, 0.0
    %v7628 = vsel %vm7302, %v7279, 0.0
    %v7629 = vadd.f32 %v7627, %v7628
    %v7630 = vrot.slane %v7629, 4
    %v7631 = vadd.f32 %v7629, %v7630
    %v7632 = vrot.slane %v7631, 2
    %v7633 = vadd.f32 %v7631, %v7632
    %v7634 = vrot.slane %v7633, 1
    %v7635 = vadd.f32 %v7633, %v7634
    %v7636 = vsel %vm7302, %v7280, 0.0
    %v7637 = vsel %vm7302, %v7281, 0.0
    %v7638 = vadd.f32 %v7636, %v7637
    %v7639 = vrot.slane %v7638, 4
    %v7640 = vadd.f32 %v7638, %v7639
    %v7641 = vrot.slane %v7640, 2
    %v7642 = vadd.f32 %v7640, %v7641
    %v7643 = vrot.slane %v7642, 1
    %v7644 = vadd.f32 %v7642, %v7643
    %v7645 = vsel %vm7302, %v7282, 0.0
    %v7646 = vsel %vm7302, %v7283, 0.0
    %v7647 = vadd.f32 %v7645, %v7646
    %v7648 = vrot.slane %v7647, 4
    %v7649 = vadd.f32 %v7647, %v7648
    %v7650 = vrot.slane %v7649, 2
    %v7651 = vadd.f32 %v7649, %v7650
    %v7652 = vrot.slane %v7651, 1
    %v7653 = vadd.f32 %v7651, %v7652
    %v7654 = vsel %vm7302, %v7284, 0.0
    %v7655 = vsel %vm7302, %v7285, 0.0
    %v7656 = vadd.f32 %v7654, %v7655
    %v7657 = vrot.slane %v7656, 4
    %v7658 = vadd.f32 %v7656, %v7657
    %v7659 = vrot.slane %v7658, 2
    %v7660 = vadd.f32 %v7658, %v7659
    %v7661 = vrot.slane %v7660, 1
    %v7662 = vadd.f32 %v7660, %v7661
    %v7663 = vsel %vm7302, %v7286, 0.0
    %v7664 = vsel %vm7302, %v7287, 0.0
    %v7665 = vadd.f32 %v7663, %v7664
    %v7666 = vrot.slane %v7665, 4
    %v7667 = vadd.f32 %v7665, %v7666
    %v7668 = vrot.slane %v7667, 2
    %v7669 = vadd.f32 %v7667, %v7668
    %v7670 = vrot.slane %v7669, 1
    %v7671 = vadd.f32 %v7669, %v7670
    %v7672 = vsel %vm7302, %v7288, 0.0
    %v7673 = vsel %vm7302, %v7289, 0.0
    %v7674 = vadd.f32 %v7672, %v7673
    %v7675 = vrot.slane %v7674, 4
    %v7676 = vadd.f32 %v7674, %v7675
    %v7677 = vrot.slane %v7676, 2
    %v7678 = vadd.f32 %v7676, %v7677
    %v7679 = vrot.slane %v7678, 1
    %v7680 = vadd.f32 %v7678, %v7679
    %v7681 = vsel %vm7302, %v7290, 0.0
    %v7682 = vsel %vm7302, %v7291, 0.0
    %v7683 = vadd.f32 %v7681, %v7682
    %v7684 = vrot.slane %v7683, 4
    %v7685 = vadd.f32 %v7683, %v7684
    %v7686 = vrot.slane %v7685, 2
    %v7687 = vadd.f32 %v7685, %v7686
    %v7688 = vrot.slane %v7687, 1
    %v7689 = vadd.f32 %v7687, %v7688
    %v7690 = vsel %vm7302, %v7292, 0.0
    %v7691 = vsel %vm7302, %v7293, 0.0
    %v7692 = vadd.f32 %v7690, %v7691
    %v7693 = vrot.slane %v7692, 4
    %v7694 = vadd.f32 %v7692, %v7693
    %v7695 = vrot.slane %v7694, 2
    %v7696 = vadd.f32 %v7694, %v7695
    %v7697 = vrot.slane %v7696, 1
    %v7698 = vadd.f32 %v7696, %v7697
    %v7699 = vsel %vm7302, %v7294, 0.0
    %v7700 = vsel %vm7302, %v7295, 0.0
    %v7701 = vadd.f32 %v7699, %v7700
    %v7702 = vrot.slane %v7701, 4
    %v7703 = vadd.f32 %v7701, %v7702
    %v7704 = vrot.slane %v7703, 2
    %v7705 = vadd.f32 %v7703, %v7704
    %v7706 = vrot.slane %v7705, 1
    %v7707 = vadd.f32 %v7705, %v7706
    %v7708 = vsel %vm7302, %v7296, 0.0
    %v7709 = vsel %vm7302, %v7297, 0.0
    %v7710 = vadd.f32 %v7708, %v7709
    %v7711 = vrot.slane %v7710, 4
    %v7712 = vadd.f32 %v7710, %v7711
    %v7713 = vrot.slane %v7712, 2
    %v7714 = vadd.f32 %v7712, %v7713
    %v7715 = vrot.slane %v7714, 1
    %v7716 = vadd.f32 %v7714, %v7715
    %v7717 = vsel %vm7302, %v7298, 0.0
    %v7718 = vsel %vm7302, %v7299, 0.0
    %v7719 = vadd.f32 %v7717, %v7718
    %v7720 = vrot.slane %v7719, 4
    %v7721 = vadd.f32 %v7719, %v7720
    %v7722 = vrot.slane %v7721, 2
    %v7723 = vadd.f32 %v7721, %v7722
    %v7724 = vrot.slane %v7723, 1
    %v7725 = vadd.f32 %v7723, %v7724
    %v7726 = vsel %vm7302, %v7300, 0.0
    %v7727 = vsel %vm7302, %v7301, 0.0
    %v7728 = vadd.f32 %v7726, %v7727
    %v7729 = vrot.slane %v7728, 4
    %v7730 = vadd.f32 %v7728, %v7729
    %v7731 = vrot.slane %v7730, 2
    %v7732 = vadd.f32 %v7730, %v7731
    %v7733 = vrot.slane %v7732, 1
    %v7734 = vadd.f32 %v7732, %v7733
    %v7735 = vmul.f32 %v7311, 0.0625
    %v7736 = vmul.f32 %v7320, 0.0625
    %v7737 = vmul.f32 %v7329, 0.0625
    %v7738 = vmul.f32 %v7338, 0.0625
    %v7739 = vmul.f32 %v7347, 0.0625
    %v7740 = vmul.f32 %v7356, 0.0625
    %v7741 = vmul.f32 %v7365, 0.0625
    %v7742 = vmul.f32 %v7374, 0.0625
    %v7743 = vmul.f32 %v7383, 0.0625
    %v7744 = vmul.f32 %v7392, 0.0625
    %v7745 = vmul.f32 %v7401, 0.0625
    %v7746 = vmul.f32 %v7410, 0.0625
    %v7747 = vmul.f32 %v7419, 0.0625
    %v7748 = vmul.f32 %v7428, 0.0625
    %v7749 = vmul.f32 %v7437, 0.0625
    %v7750 = vmul.f32 %v7446, 0.0625
    %v7751 = vmul.f32 %v7455, 0.0625
    %v7752 = vmul.f32 %v7464, 0.0625
    %v7753 = vmul.f32 %v7473, 0.0625
    %v7754 = vmul.f32 %v7482, 0.0625
    %v7755 = vmul.f32 %v7491, 0.0625
    %v7756 = vmul.f32 %v7500, 0.0625
    %v7757 = vmul.f32 %v7509, 0.0625
    %v7758 = vmul.f32 %v7518, 0.0625
    %v7759 = vmul.f32 %v7527, 0.0625
    %v7760 = vmul.f32 %v7536, 0.0625
    %v7761 = vmul.f32 %v7545, 0.0625
    %v7762 = vmul.f32 %v7554, 0.0625
    %v7763 = vmul.f32 %v7563, 0.0625
    %v7764 = vmul.f32 %v7572, 0.0625
    %v7765 = vmul.f32 %v7581, 0.0625
    %v7766 = vmul.f32 %v7590, 0.0625
    %v7767 = vmul.f32 %v7599, 0.0625
    %v7768 = vmul.f32 %v7608, 0.0625
    %v7769 = vmul.f32 %v7617, 0.0625
    %v7770 = vmul.f32 %v7626, 0.0625
    %v7771 = vmul.f32 %v7635, 0.0625
    %v7772 = vmul.f32 %v7644, 0.0625
    %v7773 = vmul.f32 %v7653, 0.0625
    %v7774 = vmul.f32 %v7662, 0.0625
    %v7775 = vmul.f32 %v7671, 0.0625
    %v7776 = vmul.f32 %v7680, 0.0625
    %v7777 = vmul.f32 %v7689, 0.0625
    %v7778 = vmul.f32 %v7698, 0.0625
    %v7779 = vmul.f32 %v7707, 0.0625
    %v7780 = vmul.f32 %v7716, 0.0625
    %v7781 = vmul.f32 %v7725, 0.0625
    %v7782 = vmul.f32 %v7734, 0.0625
    %s7783 = scalar_lea.vmem [#allocation2], 1152
    %v7784 = vld [vmem:[%s7783] sm:$0xff]
    %v7785 = vld [vmem:[%s7783 + $0x8] sm:$0xff]
    %v7786 = vld [vmem:[%s7783 + $0x10] sm:$0xff]
    %v7787 = vld [vmem:[%s7783 + $0x18] sm:$0xff]
    %v7788 = vld [vmem:[%s7783 + $0x20] sm:$0xff]
    %v7789 = vld [vmem:[%s7783 + $0x28] sm:$0xff]
    %v7790 = vld [vmem:[%s7783 + $0x30] sm:$0xff]
    %v7791 = vld [vmem:[%s7783 + $0x38] sm:$0xff]
    %vm7808 = vcmask 1041409
    %v7809 = vsel %vm7808, %v7736, %v7735
    %vm7810 = vcmask 1042434
    %v7811 = vsel %vm7810, %v7737, %v7809
    %vm7812 = vcmask 1043459
    %v7813 = vsel %vm7812, %v7738, %v7811
    %vm7814 = vcmask 1044484
    %v7815 = vsel %vm7814, %v7739, %v7813
    %vm7816 = vcmask 1045509
    %v7817 = vsel %vm7816, %v7740, %v7815
    %vm7818 = vcmask 1046534
    %v7819 = vsel %vm7818, %v7741, %v7817
    %vm7820 = vcmask 1047559
    %v7821 = vsel %vm7820, %v7742, %v7819
    %v7822 = vsel %vm7808, %v7744, %v7743
    %v7823 = vsel %vm7810, %v7745, %v7822
    %v7824 = vsel %vm7812, %v7746, %v7823
    %v7825 = vsel %vm7814, %v7747, %v7824
    %v7826 = vsel %vm7816, %v7748, %v7825
    %v7827 = vsel %vm7818, %v7749, %v7826
    %v7828 = vsel %vm7820, %v7750, %v7827
    %v7829 = vsel %vm7302, %v7821, 0
    %v7831 = vsel %vm7302, %v7828, 0
    %7833 = vmatpush.msra.mxu0 0.0
    %7834 = vmatpush.msra.mxu0 0.0
    %7835 = vmatpush.msra.mxu0 0.0
    %7836 = vmatpush.msra.mxu0 0.0
    %7837 = vmatpush.msra.mxu0 0.0
    %7838 = vmatpush.msra.mxu0 0.0
    %7839 = vmatpush.msra.mxu0 0.0
    %7840 = vmatpush.msra.mxu0 0.0
    %7841 = vmatpush.msra.mxu0 %v7791
    %7842 = vmatpush.msra.mxu0 %v7790
    %7843 = vmatpush.msra.mxu0 %v7789
    %7844 = vmatpush.msra.mxu0 %v7788
    %7845 = vmatpush.msra.mxu0 %v7787
    %7846 = vmatpush.msra.mxu0 %v7786
    %7847 = vmatpush.msra.mxu0 %v7785
    %7848 = vmatpush.msra.mxu0 %v7784
    %7849 = vmatmul.f32.gmra.mxu0 %v7829
    %v7850 = vpop.f32.mrf.mxu0
    %v7851 = vadd.f32 0.0, %v7850
    %7852 = vmatmul.f32.gmra.mxu0 %v7831
    %v7853 = vpop.f32.mrf.mxu0
    %v7854 = vadd.f32 0.0, %v7853
    %7855 = vdwg.mxu0
    %v7857 = vperm.slane %v1897, 0
    %v7859 = vadd.f32 %v7857, %v7851
    %v7860 = vadd.f32 %v7857, %v7854
    %v7861 = vld [vmem:[%s7783 + $0x40] sm:$0xff]
    %v7862 = vld [vmem:[%s7783 + $0x48] sm:$0xff]
    %v7863 = vld [vmem:[%s7783 + $0x50] sm:$0xff]
    %v7864 = vld [vmem:[%s7783 + $0x58] sm:$0xff]
    %v7865 = vld [vmem:[%s7783 + $0x60] sm:$0xff]
    %v7866 = vld [vmem:[%s7783 + $0x68] sm:$0xff]
    %v7867 = vld [vmem:[%s7783 + $0x70] sm:$0xff]
    %v7868 = vld [vmem:[%s7783 + $0x78] sm:$0xff]
    %v7885 = vsel %vm7808, %v7752, %v7751
    %v7886 = vsel %vm7810, %v7753, %v7885
    %v7887 = vsel %vm7812, %v7754, %v7886
    %v7888 = vsel %vm7814, %v7755, %v7887
    %v7889 = vsel %vm7816, %v7756, %v7888
    %v7890 = vsel %vm7818, %v7757, %v7889
    %v7891 = vsel %vm7820, %v7758, %v7890
    %v7892 = vsel %vm7808, %v7760, %v7759
    %v7893 = vsel %vm7810, %v7761, %v7892
    %v7894 = vsel %vm7812, %v7762, %v7893
    %v7895 = vsel %vm7814, %v7763, %v7894
    %v7896 = vsel %vm7816, %v7764, %v7895
    %v7897 = vsel %vm7818, %v7765, %v7896
    %v7898 = vsel %vm7820, %v7766, %v7897
    %v7899 = vsel %vm7302, %v7891, 0
    %v7901 = vsel %vm7302, %v7898, 0
    %7903 = vmatpush.msra.mxu0 0.0
    %7904 = vmatpush.msra.mxu0 0.0
    %7905 = vmatpush.msra.mxu0 0.0
    %7906 = vmatpush.msra.mxu0 0.0
    %7907 = vmatpush.msra.mxu0 0.0
    %7908 = vmatpush.msra.mxu0 0.0
    %7909 = vmatpush.msra.mxu0 0.0
    %7910 = vmatpush.msra.mxu0 0.0
    %7911 = vmatpush.msra.mxu0 %v7868
    %7912 = vmatpush.msra.mxu0 %v7867
    %7913 = vmatpush.msra.mxu0 %v7866
    %7914 = vmatpush.msra.mxu0 %v7865
    %7915 = vmatpush.msra.mxu0 %v7864
    %7916 = vmatpush.msra.mxu0 %v7863
    %7917 = vmatpush.msra.mxu0 %v7862
    %7918 = vmatpush.msra.mxu0 %v7861
    %7919 = vmatmul.f32.gmra.mxu0 %v7899
    %v7920 = vpop.f32.mrf.mxu0
    %v7921 = vadd.f32 0.0, %v7920
    %7922 = vmatmul.f32.gmra.mxu0 %v7901
    %v7923 = vpop.f32.mrf.mxu0
    %v7924 = vadd.f32 0.0, %v7923
    %7925 = vdwg.mxu0
    %v7926 = vadd.f32 %v7859, %v7921
    %v7927 = vadd.f32 %v7860, %v7924
    %v7928 = vld [vmem:[%s7783 + $0x80] sm:$0xff]
    %v7929 = vld [vmem:[%s7783 + $0x88] sm:$0xff]
    %v7930 = vld [vmem:[%s7783 + $0x90] sm:$0xff]
    %v7931 = vld [vmem:[%s7783 + $0x98] sm:$0xff]
    %v7932 = vld [vmem:[%s7783 + $0xa0] sm:$0xff]
    %v7933 = vld [vmem:[%s7783 + $0xa8] sm:$0xff]
    %v7934 = vld [vmem:[%s7783 + $0xb0] sm:$0xff]
    %v7935 = vld [vmem:[%s7783 + $0xb8] sm:$0xff]
    %v7952 = vsel %vm7808, %v7768, %v7767
    %v7953 = vsel %vm7810, %v7769, %v7952
    %v7954 = vsel %vm7812, %v7770, %v7953
    %v7955 = vsel %vm7814, %v7771, %v7954
    %v7956 = vsel %vm7816, %v7772, %v7955
    %v7957 = vsel %vm7818, %v7773, %v7956
    %v7958 = vsel %vm7820, %v7774, %v7957
    %v7959 = vsel %vm7808, %v7776, %v7775
    %v7960 = vsel %vm7810, %v7777, %v7959
    %v7961 = vsel %vm7812, %v7778, %v7960
    %v7962 = vsel %vm7814, %v7779, %v7961
    %v7963 = vsel %vm7816, %v7780, %v7962
    %v7964 = vsel %vm7818, %v7781, %v7963
    %v7965 = vsel %vm7820, %v7782, %v7964
    %v7966 = vsel %vm7302, %v7958, 0
    %v7968 = vsel %vm7302, %v7965, 0
    %7970 = vmatpush.msra.mxu0 0.0
    %7971 = vmatpush.msra.mxu0 0.0
    %7972 = vmatpush.msra.mxu0 0.0
    %7973 = vmatpush.msra.mxu0 0.0
    %7974 = vmatpush.msra.mxu0 0.0
    %7975 = vmatpush.msra.mxu0 0.0
    %7976 = vmatpush.msra.mxu0 0.0
    %7977 = vmatpush.msra.mxu0 0.0
    %7978 = vmatpush.msra.mxu0 %v7935
    %7979 = vmatpush.msra.mxu0 %v7934
    %7980 = vmatpush.msra.mxu0 %v7933
    %7981 = vmatpush.msra.mxu0 %v7932
    %7982 = vmatpush.msra.mxu0 %v7931
    %7983 = vmatpush.msra.mxu0 %v7930
    %7984 = vmatpush.msra.mxu0 %v7929
    %7985 = vmatpush.msra.mxu0 %v7928
    %7986 = vmatmul.f32.gmra.mxu0 %v7966
    %v7987 = vpop.f32.mrf.mxu0
    %v7988 = vadd.f32 0.0, %v7987
    %7989 = vmatmul.f32.gmra.mxu0 %v7968
    %v7990 = vpop.f32.mrf.mxu0
    %v7991 = vadd.f32 0.0, %v7990
    %7992 = vdwg.mxu0
    %v7993 = vadd.f32 %v7926, %v7988
    %v7994 = vadd.f32 %v7927, %v7991
    %v7995 = vmax.f32 %v7993, 0.0
    %v7996 = vmax.f32 %v7994, 0.0
    %v7998 = vperm.slane %v1899, 0
    %8000 = vmatpush.msra.mxu0 %v1892
    %8001 = vmatpush.msra.mxu0 %v1891
    %8002 = vmatpush.msra.mxu0 %v1890
    %8003 = vmatpush.msra.mxu0 %v1889
    %8004 = vmatpush.msra.mxu0 %v1888
    %8005 = vmatpush.msra.mxu0 %v1887
    %8006 = vmatpush.msra.mxu0 %v1886
    %8007 = vmatpush.msra.mxu0 %v1885
    %8008 = vmatpush.msra.mxu0 %v1884
    %8009 = vmatpush.msra.mxu0 %v1883
    %8010 = vmatpush.msra.mxu0 %v1882
    %8011 = vmatpush.msra.mxu0 %v1881
    %8012 = vmatpush.msra.mxu0 %v1880
    %8013 = vmatpush.msra.mxu0 %v1879
    %8014 = vmatpush.msra.mxu0 %v1878
    %8015 = vmatpush.msra.mxu0 %v1877
    %8016 = vmatmul.f32.gmra.mxu0 %v7995
    %v8017 = vpop.f32.mrf.mxu0
    %v8018 = vadd.f32 %v7998, %v8017
    %8019 = vmatmul.f32.gmra.mxu0 %v7996
    %v8020 = vpop.f32.mrf.mxu0
    %v8021 = vadd.f32 %v7998, %v8020
    %8022 = vdwg.mxu0
    %8023 = vst [vmem:[#allocation5] sm:$0xff] %v8018
    %8024 = vst [vmem:[#allocation5 + $0x8] sm:$0xff] %v8021
    // Predicated region
    $region18: #{tpu_custom_call.1} parent=1 // pred_check
      _
    $region19: #{tpu_custom_call.1} parent=1 // pred_check_branch
      %8026 = sbr.rel (0) target = $region21
    $region20: #{tpu_custom_call.1} parent=1 // pred_region
      %8028 = vsyncadd [#allocation4], 0
      %s8029 = sshll.u32 [#allocation5], 4
      %s8030 = int_to_ptr.vmem [resolvable:$true] %s8029
      %s8031 = sshll.u32 %s3, 4
      %s8032 = int_to_ptr.hbm [resolvable:$true] %s8031
      %8037 = dma.vmem_to_hbm [thread:$0]  %s8030, 256, %s8032, [#allocation4], 128, 128, 8
    $region21: #{tpu_custom_call.1} parent=1 // pred_fallthru
      _
    // Predicated region
    $region22: #{tpu_custom_call.1} parent=1 // pred_check
      _
    $region23: #{tpu_custom_call.1} parent=1 // pred_check_branch
      %8039 = sbr.rel (0) target = $region25
    $region24: #{tpu_custom_call.1} parent=1 // pred_region
      %8041 = dma.done [#allocation4], 256
    $region25: #{tpu_custom_call.1} parent=1 // pred_fallthru
      _
    %8042 = vsyncpa [#allocation3], 1
    %8043 = vsyncpa [#allocation4], 1

</llo_original>
